<compile_context>
chip_gen: v6e
topology: v6e:2x2x1
jax: 0.10.0
libtpu: 0.0.40
codegen_flags: <defaults>
</compile_context>

<pallas_src>
import functools

import jax
import jax.numpy as jnp
from jax.experimental import pallas as pl
from jax.experimental.pallas import tpu as pltpu

LRELU_SLOPE = 0.2
BN_EPS = 1e-5
MAX_FUSED_BN_ROWS = 1024   # fuse BN into the matmul epilogue when M fits one tile
TK_CAP = 512               # K tile cap -> multi-step grids so weight DMA overlaps MXU
TN_CAP = 256               # N tile cap -> >=2 N tiles on the widest layer (v7x 2 TCs)

FEATURES = (64, 128, 256, 512)
KSIZE = 4


def _round_up(x, m):
    return (x + m - 1) // m * m


def _pick_tile(padded, cap, step=128):
    """Largest multiple of `step` that divides `padded` and is <= cap."""
    if padded <= cap:
        return padded
    best = step
    t = 2 * step
    while t <= cap:
        if padded % t == 0:
            best = t
        t += step
    return best


# ----------------------------------------------------------------------------
# Pallas kernels
# ----------------------------------------------------------------------------

def _matmul_affine_kernel(x_ref, w_ref, scale_ref, shift_ref, o_ref, acc_ref, *, act):
    """out = act((x @ w) * scale + shift); K-reduction on the last grid axis."""
    k = pl.program_id(2)

    @pl.when(k == 0)
    def _():
        acc_ref[...] = jnp.zeros_like(acc_ref)

    acc_ref[...] += jnp.dot(x_ref[...], w_ref[...],
                            preferred_element_type=jnp.float32)

    @pl.when(k == pl.num_programs(2) - 1)
    def _():
        y = acc_ref[...] * scale_ref[...] + shift_ref[...]
        if act:
            y = jnp.where(y >= 0, y, LRELU_SLOPE * y)
        o_ref[...] = y.astype(o_ref.dtype)


def _matmul_affine_1k_kernel(x_ref, w_ref, scale_ref, shift_ref, o_ref, *, act):
    """Single-K-step variant: no f32 accumulator scratch, no zero-fill."""
    y = jnp.dot(x_ref[...], w_ref[...], preferred_element_type=jnp.float32)
    y = y * scale_ref[...] + shift_ref[...]
    if act:
        y = jnp.where(y >= 0, y, LRELU_SLOPE * y)
    o_ref[...] = y.astype(o_ref.dtype)


def _matmul_bn_act_kernel(x_ref, w_ref, gamma_ref, beta_ref, o_ref, acc_ref,
                          *, inv_rows):
    """out = LeakyReLU(BatchNorm_train(x @ w)); whole M lives in one row tile.

    Zero-padded rows of x give zero rows in the accumulator, so summing over
    all tile rows and dividing by the true row count yields exact batch stats.
    Stats are per output channel (column), so splitting N across tiles is exact.
    """
    k = pl.program_id(1)

    @pl.when(k == 0)
    def _():
        acc_ref[...] = jnp.zeros_like(acc_ref)

    acc_ref[...] += jnp.dot(x_ref[...], w_ref[...],
                            preferred_element_type=jnp.float32)

    @pl.when(k == pl.num_programs(1) - 1)
    def _():
        acc = acc_ref[...]
        s = jnp.sum(acc, axis=0, keepdims=True)
        sq = jnp.sum(acc * acc, axis=0, keepdims=True)
        mean = s * inv_rows
        var = jnp.maximum(sq * inv_rows - mean * mean, 0.0)
        scale = gamma_ref[...] * jax.lax.rsqrt(var + BN_EPS)
        y = (acc - mean) * scale + beta_ref[...]
        y = jnp.where(y >= 0, y, LRELU_SLOPE * y)
        o_ref[...] = y.astype(o_ref.dtype)


def _bn_stats_kernel(x_ref, sum_ref, sq_ref):
    @pl.when(pl.program_id(0) == 0)
    def _():
        sum_ref[...] = jnp.zeros_like(sum_ref)
        sq_ref[...] = jnp.zeros_like(sq_ref)

    x = x_ref[...].astype(jnp.float32)
    sum_ref[...] += jnp.sum(x, axis=0, keepdims=True)
    sq_ref[...] += jnp.sum(x * x, axis=0, keepdims=True)


def _scale_shift_act_kernel(x_ref, scale_ref, shift_ref, o_ref, *, act):
    y = x_ref[...].astype(jnp.float32) * scale_ref[...] + shift_ref[...]
    if act:
        y = jnp.where(y >= 0, y, LRELU_SLOPE * y)
    o_ref[...] = y.astype(o_ref.dtype)


# ----------------------------------------------------------------------------
# Pallas wrappers (weights arrive pre-padded / pre-cast, shape [Kp, Np] bf16)
# ----------------------------------------------------------------------------

def matmul_affine_act(x, wp, scale, shift, *, n_out, act, out_dtype=jnp.bfloat16):
    """act((x @ w) * scale + shift).  x:[M,K] (unpadded), wp:[Kp,Np] bf16."""
    M, K = x.shape
    Kp, Np = wp.shape
    if M <= 512:
        tm = max(_round_up(M, 16), 16)
        Mp = tm
    else:
        tm = 256
        Mp = _round_up(M, tm)
    tk = _pick_tile(Kp, TK_CAP)
    tn = _pick_tile(Np, TN_CAP)
    nk = Kp // tk

    xp = jnp.pad(x.astype(jnp.bfloat16), ((0, Mp - M), (0, Kp - K)))

    if nk == 1:
        out = pl.pallas_call(
            functools.partial(_matmul_affine_1k_kernel, act=act),
            out_shape=jax.ShapeDtypeStruct((Mp, Np), out_dtype),
            grid_spec=pltpu.PrefetchScalarGridSpec(
                num_scalar_prefetch=0,
                grid=(Mp // tm, Np // tn),
                in_specs=[
                    pl.BlockSpec((tm, Kp), lambda i, j: (i, 0)),
                    pl.BlockSpec((Kp, tn), lambda i, j: (0, j)),
                    pl.BlockSpec((1, tn), lambda i, j: (0, j)),
                    pl.BlockSpec((1, tn), lambda i, j: (0, j)),
                ],
                out_specs=pl.BlockSpec((tm, tn), lambda i, j: (i, j)),
            ),
            compiler_params=pltpu.CompilerParams(
                dimension_semantics=("parallel", "parallel")),
        )(xp, wp, scale, shift)
    else:
        out = pl.pallas_call(
            functools.partial(_matmul_affine_kernel, act=act),
            out_shape=jax.ShapeDtypeStruct((Mp, Np), out_dtype),
            grid_spec=pltpu.PrefetchScalarGridSpec(
                num_scalar_prefetch=0,
                grid=(Mp // tm, Np // tn, nk),
                in_specs=[
                    pl.BlockSpec((tm, tk), lambda i, j, k: (i, k)),
                    pl.BlockSpec((tk, tn), lambda i, j, k: (k, j)),
                    pl.BlockSpec((1, tn), lambda i, j, k: (0, j)),
                    pl.BlockSpec((1, tn), lambda i, j, k: (0, j)),
                ],
                out_specs=pl.BlockSpec((tm, tn), lambda i, j, k: (i, j)),
                scratch_shapes=[pltpu.VMEM((tm, tn), jnp.float32)],
            ),
            compiler_params=pltpu.CompilerParams(
                dimension_semantics=("parallel", "parallel", "arbitrary")),
        )(xp, wp, scale, shift)
    return out[:M, :n_out]


def matmul_bn_act(x, wp, gamma, beta, *, n_out):
    """LeakyReLU(BatchNorm_train(x @ w)); requires M <= MAX_FUSED_BN_ROWS."""
    M, K = x.shape
    Kp, Np = wp.shape
    tm = max(_round_up(M, 16), 16)
    tk = _pick_tile(Kp, TK_CAP)
    tn = _pick_tile(Np, TN_CAP)

    xp = jnp.pad(x.astype(jnp.bfloat16), ((0, tm - M), (0, Kp - K)))

    out = pl.pallas_call(
        functools.partial(_matmul_bn_act_kernel, inv_rows=1.0 / M),
        out_shape=jax.ShapeDtypeStruct((tm, Np), jnp.bfloat16),
        grid_spec=pltpu.PrefetchScalarGridSpec(
            num_scalar_prefetch=0,
            grid=(Np // tn, Kp // tk),
            in_specs=[
                pl.BlockSpec((tm, tk), lambda j, k: (0, k)),
                pl.BlockSpec((tk, tn), lambda j, k: (k, j)),
                pl.BlockSpec((1, tn), lambda j, k: (0, j)),
                pl.BlockSpec((1, tn), lambda j, k: (0, j)),
            ],
            out_specs=pl.BlockSpec((tm, tn), lambda j, k: (0, j)),
            scratch_shapes=[pltpu.VMEM((tm, tn), jnp.float32)],
        ),
        compiler_params=pltpu.CompilerParams(
            dimension_semantics=("parallel", "arbitrary")),
    )(xp, wp, gamma, beta)
    return out[:M, :n_out]


def bn_batch_stats(x, *, tm=256):
    """Per-channel mean and biased variance over rows of x:[M, C]."""
    M, N = x.shape
    Mp, Np = _round_up(M, tm), _round_up(N, 128)
    xp = jnp.pad(x, ((0, Mp - M), (0, Np - N)))  # zero rows contribute 0 to sums
    s, sq = pl.pallas_call(
        _bn_stats_kernel,
        out_shape=(jax.ShapeDtypeStruct((1, Np), jnp.float32),
                   jax.ShapeDtypeStruct((1, Np), jnp.float32)),
        grid_spec=pltpu.PrefetchScalarGridSpec(
            num_scalar_prefetch=0,
            grid=(Mp // tm,),
            in_specs=[pl.BlockSpec((tm, Np), lambda i: (i, 0))],
            out_specs=(pl.BlockSpec((1, Np), lambda i: (0, 0)),
                       pl.BlockSpec((1, Np), lambda i: (0, 0))),
        ),
        compiler_params=pltpu.CompilerParams(dimension_semantics=("arbitrary",)),
    )(xp)
    mean = s[0, :N] / M
    var = sq[0, :N] / M - mean * mean
    return mean, var


def scale_shift_act(x, scale, shift, *, act, out_dtype=jnp.bfloat16, tm=256):
    """Per-channel affine + optional LeakyReLU on x:[M, C]."""
    M, N = x.shape
    Mp, Np = _round_up(M, tm), _round_up(N, 128)
    xp = jnp.pad(x, ((0, Mp - M), (0, Np - N)))
    sc = jnp.pad(scale.astype(jnp.float32), (0, Np - N)).reshape(1, Np)
    sh = jnp.pad(shift.astype(jnp.float32), (0, Np - N)).reshape(1, Np)
    out = pl.pallas_call(
        functools.partial(_scale_shift_act_kernel, act=act),
        out_shape=jax.ShapeDtypeStruct((Mp, Np), out_dtype),
        grid_spec=pltpu.PrefetchScalarGridSpec(
            num_scalar_prefetch=0,
            grid=(Mp // tm,),
            in_specs=[pl.BlockSpec((tm, Np), lambda i: (i, 0)),
                      pl.BlockSpec((1, Np), lambda i: (0, 0)),
                      pl.BlockSpec((1, Np), lambda i: (0, 0))],
            out_specs=pl.BlockSpec((tm, Np), lambda i: (i, 0)),
        ),
        compiler_params=pltpu.CompilerParams(dimension_semantics=("parallel",)),
    )(xp, sc, sh)
    return out[:M, :N]


# ----------------------------------------------------------------------------
# Conv layer glue (NHWC, strided-slice im2col; heavy math in Pallas)
# ----------------------------------------------------------------------------

def im2col_nhwc(x, k, stride, pad):
    """x: [N, H, W, C] -> patches [N*Ho*Wo, k*k*C] (column order kh, kw, c)."""
    if pad > 0:
        x = jnp.pad(x, ((0, 0), (pad, pad), (pad, pad), (0, 0)), mode="reflect")
    n, h, w, c = x.shape
    ho = (h - k) // stride + 1
    wo = (w - k) // stride + 1
    cols = []
    for kh in range(k):
        for kw in range(k):
            sl = jax.lax.slice(
                x,
                (0, kh, kw, 0),
                (n, kh + (ho - 1) * stride + 1, kw + (wo - 1) * stride + 1, c),
                (1, stride, stride, 1))
            cols.append(sl)                       # [N, Ho, Wo, C]
    patches = jnp.concatenate(cols, axis=-1)      # [N, Ho, Wo, k*k*C]
    return patches.reshape(n * ho * wo, k * k * c), ho, wo


# ----------------------------------------------------------------------------
# Parameters: raw init + one-time pre-formatting (outside the jitted forward)
# ----------------------------------------------------------------------------

def init_params(key, in_channels=3, features=FEATURES):
    keys = iter(jax.random.split(key, 32))

    def rnd(shape, scale=0.05):
        return scale * jax.random.normal(next(keys), shape, jnp.float32)

    params = {
        "init_w": rnd((features[0], in_channels * 2, 4, 4)),
        "init_b": rnd((features[0],)),
        "blocks": [],
    }
    cin = features[0]
    for f in features[1:]:
        params["blocks"].append({
            "w": rnd((f, cin, 4, 4)),
            "gamma": 1.0 + rnd((f,), 0.1),
            "beta": rnd((f,), 0.1),
        })
        cin = f
    params["final_w"] = rnd((1, cin, 4, 4))
    params["final_b"] = rnd((1,))
    return params


def prepare_params(params):
    """One-time weight formatting: [Cout,Cin,k,k] -> padded bf16 [Kp, Np]."""
    def prep_w(w):
        cout, cin, kh, kw = w.shape
        K = kh * kw * cin
        Kp, Np = _round_up(K, 128), _round_up(cout, 128)
        wmat = w.transpose(2, 3, 1, 0).reshape(K, cout)
        return jnp.pad(wmat, ((0, Kp - K), (0, Np - cout))).astype(jnp.bfloat16), Np

    def pad_vec(v, Np):
        return jnp.pad(v.astype(jnp.float32), (0, Np - v.shape[0])).reshape(1, Np)

    prepped = {}
    w0, Np0 = prep_w(params["init_w"])
    prepped["init_w"] = w0
    prepped["init_scale"] = jnp.ones((1, Np0), jnp.float32)
    prepped["init_shift"] = pad_vec(params["init_b"], Np0)

    prepped["blocks"] = []
    for blk in params["blocks"]:
        wb, Npb = prep_w(blk["w"])
        prepped["blocks"].append({
            "w": wb,
            "gamma": pad_vec(blk["gamma"], Npb),
            "beta": pad_vec(blk["beta"], Npb),
        })

    # Final conv has Cout=1: keep the weight unpadded ([K, 1] bf16); the tiny
    # matvec stays in XLA (per perf review: avoids a 128x-padded weight DMA
    # and a whole pallas_call launch).
    fw = params["final_w"]
    cout, cin, kh, kw = fw.shape
    prepped["final_w"] = fw.transpose(2, 3, 1, 0).reshape(kh * kw * cin, cout) \
                           .astype(jnp.bfloat16)
    prepped["final_b"] = params["final_b"].astype(jnp.float32)
    return prepped


# ----------------------------------------------------------------------------
# Discriminator forward
# ----------------------------------------------------------------------------

def discriminator_forward(prepped, x, y):
    # NCHW at the API boundary only; NHWC (lane-dense channels) internally.
    h = jnp.concatenate([x, y], axis=1)                # [N, 2*Cin, H, W]
    h = h.transpose(0, 2, 3, 1).astype(jnp.bfloat16)   # -> NHWC
    n = h.shape[0]

    # initial: Conv(k4, s2, p1 reflect, bias) + LeakyReLU(0.2)
    patches, ho, wo = im2col_nhwc(h, KSIZE, 2, 1)
    h = matmul_affine_act(patches, prepped["init_w"], prepped["init_scale"],
                          prepped["init_shift"], n_out=FEATURES[0], act=True)
    h = h.reshape(n, ho, wo, FEATURES[0])

    # CNNBlocks: Conv(k4, stride, pad=0, no bias) + BatchNorm2d(train) + LeakyReLU(0.2)
    nblocks = len(prepped["blocks"])
    for i, blk in enumerate(prepped["blocks"]):
        cout = FEATURES[i + 1]
        stride = 1 if i == nblocks - 1 else 2
        patches, ho, wo = im2col_nhwc(h, KSIZE, stride, 0)
        m = patches.shape[0]
        if m <= MAX_FUSED_BN_ROWS:
            # Fully fused: conv matmul + batch stats + normalize + LeakyReLU.
            o = matmul_bn_act(patches, blk["w"], blk["gamma"], blk["beta"],
                              n_out=cout)
        else:
            # Fallback for large spatial sizes: matmul -> stats -> normalize.
            Np = blk["w"].shape[1]
            ones = jnp.ones((1, Np), jnp.float32)
            zeros = jnp.zeros((1, Np), jnp.float32)
            conv_out = matmul_affine_act(patches, blk["w"], ones, zeros,
                                         n_out=cout, act=False,
                                         out_dtype=jnp.float32)
            mean, var = bn_batch_stats(conv_out)
            var = jnp.maximum(var, 0.0)
            g = blk["gamma"][0, :cout]
            b = blk["beta"][0, :cout]
            scl = g * jax.lax.rsqrt(var + BN_EPS)
            shf = b - mean * scl
            o = scale_shift_act(conv_out, scl, shf, act=True)
        h = o.reshape(n, ho, wo, cout)

    # final: Conv(k4, s1, p1 reflect, bias), Cout=1, no activation — XLA matvec.
    patches, ho, wo = im2col_nhwc(h, KSIZE, 1, 1)
    out = jnp.dot(patches, prepped["final_w"],
                  preferred_element_type=jnp.float32) + prepped["final_b"]
    out = out.reshape(n, ho, wo, 1)
    return out.transpose(0, 3, 1, 2)                   # back to NCHW


if __name__ == "__main__":
    key = jax.random.PRNGKey(0)
    kp, kx, ky = jax.random.split(key, 3)

    # Smallest spatial size the 5-conv stack supports is ~64.
    N, C, H, W = 2, 3, 64, 64
    x = jax.random.normal(kx, (N, C, H, W), jnp.float32)
    y = jax.random.normal(ky, (N, C, H, W), jnp.float32)
    params = init_params(kp, in_channels=C)
    prepped = prepare_params(params)   # one-time weight formatting, outside jit

    fwd = jax.jit(discriminator_forward)
    out = fwd(prepped, x, y)
    jax.block_until_ready(out)

    # 64 -> 32 -> 15 -> 6 -> 3 -> 2 (k=4; strides 2,2,2,1,1; pads 1,0,0,0,1)
    assert out.shape == (N, 1, 2, 2), out.shape
    assert out.dtype == jnp.float32
    assert bool(jnp.all(jnp.isfinite(out)))
    print("KERNEL_OK")
</pallas_src>

<mosaic_0001>
module attributes {stable_mosaic.version = 11 : i64} {
  func.func @_matmul_affine_1k_kernel(%arg0: i32, %arg1: i32, %arg2: memref<256x128xbf16, #tpu.memory_space<vmem>>, %arg3: memref<128x128xbf16, #tpu.memory_space<vmem>>, %arg4: memref<1x128xf32, #tpu.memory_space<vmem>>, %arg5: memref<1x128xf32, #tpu.memory_space<vmem>>, %arg6: memref<256x128xbf16, #tpu.memory_space<vmem>>) attributes {dimension_semantics = [#tpu.dimension_semantics<parallel>, #tpu.dimension_semantics<parallel>], iteration_bounds = array<i64: 8, 1>, scalar_prefetch = 0 : i64, scratch_operands = 0 : i64, tpu.core_type = #tpu.core_type<tc>, window_params = [{transform_indices = @transform_0, window_bounds = array<i64: 256, 128>}, {transform_indices = @transform_1, window_bounds = array<i64: 128, 128>}, {transform_indices = @transform_2, window_bounds = array<i64: 1, 128>}, {transform_indices = @transform_3, window_bounds = array<i64: 1, 128>}, {transform_indices = @transform_4, window_bounds = array<i64: 256, 128>}]} {
    %c0 = arith.constant 0 : index
    %c0_0 = arith.constant 0 : index
    %0 = vector.load %arg2[%c0, %c0_0] : memref<256x128xbf16, #tpu.memory_space<vmem>>, vector<256x128xbf16>
    %c0_1 = arith.constant 0 : index
    %c0_2 = arith.constant 0 : index
    %1 = vector.load %arg3[%c0_1, %c0_2] : memref<128x128xbf16, #tpu.memory_space<vmem>>, vector<128x128xbf16>
    %cst = arith.constant dense<0.000000e+00> : vector<256x128xf32>
    %2 = tpu.matmul %0, %1, %cst {dimension_numbers = #tpu.dot_dimension_numbers<[1], [0], [0], [1], [0, 0, 1, 1], [], []>} : vector<256x128xbf16>, vector<128x128xbf16>, vector<256x128xf32> -> vector<256x128xf32>
    %c0_3 = arith.constant 0 : index
    %c0_4 = arith.constant 0 : index
    %3 = vector.load %arg4[%c0_3, %c0_4] : memref<1x128xf32, #tpu.memory_space<vmem>>, vector<1x128xf32>
    %4 = vector.broadcast %3 : vector<1x128xf32> to vector<256x128xf32>
    %5 = arith.mulf %2, %4 : vector<256x128xf32>
    %c0_5 = arith.constant 0 : index
    %c0_6 = arith.constant 0 : index
    %6 = vector.load %arg5[%c0_5, %c0_6] : memref<1x128xf32, #tpu.memory_space<vmem>>, vector<1x128xf32>
    %7 = vector.broadcast %6 : vector<1x128xf32> to vector<256x128xf32>
    %8 = arith.addf %5, %7 : vector<256x128xf32>
    %cst_7 = arith.constant 0.000000e+00 : f32
    %9 = vector.broadcast %cst_7 : f32 to vector<256x128xf32>
    %10 = arith.cmpf oge, %8, %9 : vector<256x128xf32>
    %cst_8 = arith.constant 2.000000e-01 : f32
    %11 = vector.broadcast %cst_8 : f32 to vector<256x128xf32>
    %12 = arith.mulf %11, %8 : vector<256x128xf32>
    %13 = arith.select %10, %8, %12 : vector<256x128xi1>, vector<256x128xf32>
    %14 = arith.truncf %13 : vector<256x128xf32> to vector<256x128xbf16>
    %c0_9 = arith.constant 0 : index
    %c0_10 = arith.constant 0 : index
    %15 = vector.load %arg6[%c0_9, %c0_10] : memref<256x128xbf16, #tpu.memory_space<vmem>>, vector<256x128xbf16>
    tpu.vector_store %arg6[%c0_9, %c0_10], %14 {strides = array<i32>} : memref<256x128xbf16, #tpu.memory_space<vmem>>, vector<256x128xbf16>,
    return
  }
  func.func @transform_0(%arg0: i32, %arg1: i32) -> (i32, i32) {
    %c0_i32 = arith.constant 0 : i32
    %c0_i32_0 = arith.constant 0 : i32
    return %arg0, %c0_i32 : i32, i32
  }
  func.func @transform_1(%arg0: i32, %arg1: i32) -> (i32, i32) {
    %c0_i32 = arith.constant 0 : i32
    %c0_i32_0 = arith.constant 0 : i32
    return %c0_i32, %arg1 : i32, i32
  }
  func.func @transform_2(%arg0: i32, %arg1: i32) -> (i32, i32) {
    %c0_i32 = arith.constant 0 : i32
    %c0_i32_0 = arith.constant 0 : i32
    return %c0_i32, %arg1 : i32, i32
  }
  func.func @transform_3(%arg0: i32, %arg1: i32) -> (i32, i32) {
    %c0_i32 = arith.constant 0 : i32
    %c0_i32_0 = arith.constant 0 : i32
    return %c0_i32, %arg1 : i32, i32
  }
  func.func @transform_4(%arg0: i32, %arg1: i32) -> (i32, i32) {
    %c0_i32 = arith.constant 0 : i32
    return %arg0, %arg1 : i32, i32
  }
}

module attributes {stable_mosaic.version = 11 : i64} {
  func.func @_matmul_bn_act_kernel(%arg0: i32, %arg1: i32, %arg2: memref<464x512xbf16, #tpu.memory_space<vmem>>, %arg3: memref<512x128xbf16, #tpu.memory_space<vmem>>, %arg4: memref<1x128xf32, #tpu.memory_space<vmem>>, %arg5: memref<1x128xf32, #tpu.memory_space<vmem>>, %arg6: memref<464x128xbf16, #tpu.memory_space<vmem>>, %arg7: memref<464x128xf32, #tpu.memory_space<vmem>>) attributes {dimension_semantics = [#tpu.dimension_semantics<parallel>, #tpu.dimension_semantics<arbitrary>], iteration_bounds = array<i64: 1, 2>, scalar_prefetch = 0 : i64, scratch_operands = 1 : i64, tpu.core_type = #tpu.core_type<tc>, window_params = [{transform_indices = @transform_0, window_bounds = array<i64: 464, 512>}, {transform_indices = @transform_1, window_bounds = array<i64: 512, 128>}, {transform_indices = @transform_2, window_bounds = array<i64: 1, 128>}, {transform_indices = @transform_3, window_bounds = array<i64: 1, 128>}, {transform_indices = @transform_4, window_bounds = array<i64: 464, 128>}]} {
    %c0_i32 = arith.constant 0 : i32
    %0 = arith.cmpi eq, %arg1, %c0_i32 : i32
    %1 = arith.extui %0 : i1 to i32
    %c0_i32_0 = arith.constant 0 : i32
    %2 = arith.cmpi ne, %1, %c0_i32_0 : i32
    scf.if %2 {
      %cst_9 = arith.constant 0.000000e+00 : f32
      %12 = vector.broadcast %cst_9 : f32 to vector<464x128xf32>
      %c0_10 = arith.constant 0 : index
      %c0_11 = arith.constant 0 : index
      %13 = vector.load %arg7[%c0_10, %c0_11] : memref<464x128xf32, #tpu.memory_space<vmem>>, vector<464x128xf32>
      tpu.vector_store %arg7[%c0_10, %c0_11], %12 {strides = array<i32>} : memref<464x128xf32, #tpu.memory_space<vmem>>, vector<464x128xf32>,
    } else {
    }
    %c0 = arith.constant 0 : index
    %c0_1 = arith.constant 0 : index
    %3 = vector.load %arg7[%c0, %c0_1] : memref<464x128xf32, #tpu.memory_space<vmem>>, vector<464x128xf32>
    %c0_2 = arith.constant 0 : index
    %c0_3 = arith.constant 0 : index
    %4 = vector.load %arg2[%c0_2, %c0_3] : memref<464x512xbf16, #tpu.memory_space<vmem>>, vector<464x512xbf16>
    %c0_4 = arith.constant 0 : index
    %c0_5 = arith.constant 0 : index
    %5 = vector.load %arg3[%c0_4, %c0_5] : memref<512x128xbf16, #tpu.memory_space<vmem>>, vector<512x128xbf16>
    %cst = arith.constant dense<0.000000e+00> : vector<464x128xf32>
    %6 = tpu.matmul %4, %5, %cst {dimension_numbers = #tpu.dot_dimension_numbers<[1], [0], [0], [1], [0, 0, 1, 1], [], []>} : vector<464x512xbf16>, vector<512x128xbf16>, vector<464x128xf32> -> vector<464x128xf32>
    %7 = arith.addf %3, %6 : vector<464x128xf32>
    %c0_6 = arith.constant 0 : index
    %c0_7 = arith.constant 0 : index
    %8 = vector.load %arg7[%c0_6, %c0_7] : memref<464x128xf32, #tpu.memory_space<vmem>>, vector<464x128xf32>
    tpu.vector_store %arg7[%c0_6, %c0_7], %7 {strides = array<i32>} : memref<464x128xf32, #tpu.memory_space<vmem>>, vector<464x128xf32>,
    %c1_i32 = arith.constant 1 : i32
    %9 = arith.cmpi eq, %arg1, %c1_i32 : i32
    %10 = arith.extui %9 : i1 to i32
    %c0_i32_8 = arith.constant 0 : i32
    %11 = arith.cmpi ne, %10, %c0_i32_8 : i32
    scf.if %11 {
      %c0_9 = arith.constant 0 : index
      %c0_10 = arith.constant 0 : index
      %12 = vector.load %arg7[%c0_9, %c0_10] : memref<464x128xf32, #tpu.memory_space<vmem>>, vector<464x128xf32>
      %cst_11 = arith.constant dense<0.000000e+00> : vector<128xf32>
      %13 = vector.multi_reduction <add>, %12, %cst_11 [0] : vector<464x128xf32> to vector<128xf32>
      %14 = vector.shape_cast %13 : vector<128xf32> to vector<1x128xf32>
      %15 = arith.mulf %12, %12 : vector<464x128xf32>
      %cst_12 = arith.constant dense<0.000000e+00> : vector<128xf32>
      %16 = vector.multi_reduction <add>, %15, %cst_12 [0] : vector<464x128xf32> to vector<128xf32>
      %17 = vector.shape_cast %16 : vector<128xf32> to vector<1x128xf32>
      %cst_13 = arith.constant 0.00222222228 : f32
      %18 = vector.broadcast %cst_13 : f32 to vector<1x128xf32>
      %19 = arith.mulf %14, %18 : vector<1x128xf32>
      %cst_14 = arith.constant 0.00222222228 : f32
      %20 = vector.broadcast %cst_14 : f32 to vector<1x128xf32>
      %21 = arith.mulf %17, %20 : vector<1x128xf32>
      %22 = arith.mulf %19, %19 : vector<1x128xf32>
      %23 = arith.subf %21, %22 : vector<1x128xf32>
      %cst_15 = arith.constant 0.000000e+00 : f32
      %24 = vector.broadcast %cst_15 : f32 to vector<1x128xf32>
      %25 = arith.maximumf %23, %24 : vector<1x128xf32>
      %c0_16 = arith.constant 0 : index
      %c0_17 = arith.constant 0 : index
      %26 = vector.load %arg4[%c0_16, %c0_17] : memref<1x128xf32, #tpu.memory_space<vmem>>, vector<1x128xf32>
      %cst_18 = arith.constant 9.99999974E-6 : f32
      %27 = vector.broadcast %cst_18 : f32 to vector<1x128xf32>
      %28 = arith.addf %25, %27 : vector<1x128xf32>
      %29 = math.rsqrt %28 : vector<1x128xf32>
      %30 = arith.mulf %26, %29 : vector<1x128xf32>
      %31 = vector.broadcast %19 : vector<1x128xf32> to vector<464x128xf32>
      %32 = arith.subf %12, %31 : vector<464x128xf32>
      %33 = vector.broadcast %30 : vector<1x128xf32> to vector<464x128xf32>
      %34 = arith.mulf %32, %33 : vector<464x128xf32>
      %c0_19 = arith.constant 0 : index
      %c0_20 = arith.constant 0 : index
      %35 = vector.load %arg5[%c0_19, %c0_20] : memref<1x128xf32, #tpu.memory_space<vmem>>, vector<1x128xf32>
      %36 = vector.broadcast %35 : vector<1x128xf32> to vector<464x128xf32>
      %37 = arith.addf %34, %36 : vector<464x128xf32>
      %cst_21 = arith.constant 0.000000e+00 : f32
      %38 = vector.broadcast %cst_21 : f32 to vector<464x128xf32>
      %39 = arith.cmpf oge, %37, %38 : vector<464x128xf32>
      %cst_22 = arith.constant 2.000000e-01 : f32
      %40 = vector.broadcast %cst_22 : f32 to vector<464x128xf32>
      %41 = arith.mulf %40, %37 : vector<464x128xf32>
      %42 = arith.select %39, %37, %41 : vector<464x128xi1>, vector<464x128xf32>
      %43 = arith.truncf %42 : vector<464x128xf32> to vector<464x128xbf16>
      %c0_23 = arith.constant 0 : index
      %c0_24 = arith.constant 0 : index
      %44 = vector.load %arg6[%c0_23, %c0_24] : memref<464x128xbf16, #tpu.memory_space<vmem>>, vector<464x128xbf16>
      tpu.vector_store %arg6[%c0_23, %c0_24], %43 {strides = array<i32>} : memref<464x128xbf16, #tpu.memory_space<vmem>>, vector<464x128xbf16>,
    } else {
    }
    return
  }
  func.func @transform_0(%arg0: i32, %arg1: i32) -> (i32, i32) {
    %c0_i32 = arith.constant 0 : i32
    %c0_i32_0 = arith.constant 0 : i32
    return %c0_i32, %arg1 : i32, i32
  }
  func.func @transform_1(%arg0: i32, %arg1: i32) -> (i32, i32) {
    %c0_i32 = arith.constant 0 : i32
    return %arg1, %arg0 : i32, i32
  }
  func.func @transform_2(%arg0: i32, %arg1: i32) -> (i32, i32) {
    %c0_i32 = arith.constant 0 : i32
    %c0_i32_0 = arith.constant 0 : i32
    return %c0_i32, %arg0 : i32, i32
  }
  func.func @transform_3(%arg0: i32, %arg1: i32) -> (i32, i32) {
    %c0_i32 = arith.constant 0 : i32
    %c0_i32_0 = arith.constant 0 : i32
    return %c0_i32, %arg0 : i32, i32
  }
  func.func @transform_4(%arg0: i32, %arg1: i32) -> (i32, i32) {
    %c0_i32 = arith.constant 0 : i32
    %c0_i32_0 = arith.constant 0 : i32
    return %c0_i32, %arg0 : i32, i32
  }
}

module attributes {stable_mosaic.version = 11 : i64} {
  func.func @_matmul_bn_act_kernel(%arg0: i32, %arg1: i32, %arg2: memref<80x512xbf16, #tpu.memory_space<vmem>>, %arg3: memref<512x256xbf16, #tpu.memory_space<vmem>>, %arg4: memref<1x256xf32, #tpu.memory_space<vmem>>, %arg5: memref<1x256xf32, #tpu.memory_space<vmem>>, %arg6: memref<80x256xbf16, #tpu.memory_space<vmem>>, %arg7: memref<80x256xf32, #tpu.memory_space<vmem>>) attributes {dimension_semantics = [#tpu.dimension_semantics<parallel>, #tpu.dimension_semantics<arbitrary>], iteration_bounds = array<i64: 1, 4>, scalar_prefetch = 0 : i64, scratch_operands = 1 : i64, tpu.core_type = #tpu.core_type<tc>, window_params = [{transform_indices = @transform_0, window_bounds = array<i64: 80, 512>}, {transform_indices = @transform_1, window_bounds = array<i64: 512, 256>}, {transform_indices = @transform_2, window_bounds = array<i64: 1, 256>}, {transform_indices = @transform_3, window_bounds = array<i64: 1, 256>}, {transform_indices = @transform_4, window_bounds = array<i64: 80, 256>}]} {
    %c0_i32 = arith.constant 0 : i32
    %0 = arith.cmpi eq, %arg1, %c0_i32 : i32
    %1 = arith.extui %0 : i1 to i32
    %c0_i32_0 = arith.constant 0 : i32
    %2 = arith.cmpi ne, %1, %c0_i32_0 : i32
    scf.if %2 {
      %cst_9 = arith.constant 0.000000e+00 : f32
      %12 = vector.broadcast %cst_9 : f32 to vector<80x256xf32>
      %c0_10 = arith.constant 0 : index
      %c0_11 = arith.constant 0 : index
      %13 = vector.load %arg7[%c0_10, %c0_11] : memref<80x256xf32, #tpu.memory_space<vmem>>, vector<80x256xf32>
      tpu.vector_store %arg7[%c0_10, %c0_11], %12 {strides = array<i32>} : memref<80x256xf32, #tpu.memory_space<vmem>>, vector<80x256xf32>,
    } else {
    }
    %c0 = arith.constant 0 : index
    %c0_1 = arith.constant 0 : index
    %3 = vector.load %arg7[%c0, %c0_1] : memref<80x256xf32, #tpu.memory_space<vmem>>, vector<80x256xf32>
    %c0_2 = arith.constant 0 : index
    %c0_3 = arith.constant 0 : index
    %4 = vector.load %arg2[%c0_2, %c0_3] : memref<80x512xbf16, #tpu.memory_space<vmem>>, vector<80x512xbf16>
    %c0_4 = arith.constant 0 : index
    %c0_5 = arith.constant 0 : index
    %5 = vector.load %arg3[%c0_4, %c0_5] : memref<512x256xbf16, #tpu.memory_space<vmem>>, vector<512x256xbf16>
    %cst = arith.constant dense<0.000000e+00> : vector<80x256xf32>
    %6 = tpu.matmul %4, %5, %cst {dimension_numbers = #tpu.dot_dimension_numbers<[1], [0], [0], [1], [0, 0, 1, 1], [], []>} : vector<80x512xbf16>, vector<512x256xbf16>, vector<80x256xf32> -> vector<80x256xf32>
    %7 = arith.addf %3, %6 : vector<80x256xf32>
    %c0_6 = arith.constant 0 : index
    %c0_7 = arith.constant 0 : index
    %8 = vector.load %arg7[%c0_6, %c0_7] : memref<80x256xf32, #tpu.memory_space<vmem>>, vector<80x256xf32>
    tpu.vector_store %arg7[%c0_6, %c0_7], %7 {strides = array<i32>} : memref<80x256xf32, #tpu.memory_space<vmem>>, vector<80x256xf32>,
    %c3_i32 = arith.constant 3 : i32
    %9 = arith.cmpi eq, %arg1, %c3_i32 : i32
    %10 = arith.extui %9 : i1 to i32
    %c0_i32_8 = arith.constant 0 : i32
    %11 = arith.cmpi ne, %10, %c0_i32_8 : i32
    scf.if %11 {
      %c0_9 = arith.constant 0 : index
      %c0_10 = arith.constant 0 : index
      %12 = vector.load %arg7[%c0_9, %c0_10] : memref<80x256xf32, #tpu.memory_space<vmem>>, vector<80x256xf32>
      %cst_11 = arith.constant dense<0.000000e+00> : vector<256xf32>
      %13 = vector.multi_reduction <add>, %12, %cst_11 [0] : vector<80x256xf32> to vector<256xf32>
      %14 = vector.shape_cast %13 : vector<256xf32> to vector<1x256xf32>
      %15 = arith.mulf %12, %12 : vector<80x256xf32>
      %cst_12 = arith.constant dense<0.000000e+00> : vector<256xf32>
      %16 = vector.multi_reduction <add>, %15, %cst_12 [0] : vector<80x256xf32> to vector<256xf32>
      %17 = vector.shape_cast %16 : vector<256xf32> to vector<1x256xf32>
      %cst_13 = arith.constant 0.013888889 : f32
      %18 = vector.broadcast %cst_13 : f32 to vector<1x256xf32>
      %19 = arith.mulf %14, %18 : vector<1x256xf32>
      %cst_14 = arith.constant 0.013888889 : f32
      %20 = vector.broadcast %cst_14 : f32 to vector<1x256xf32>
      %21 = arith.mulf %17, %20 : vector<1x256xf32>
      %22 = arith.mulf %19, %19 : vector<1x256xf32>
      %23 = arith.subf %21, %22 : vector<1x256xf32>
      %cst_15 = arith.constant 0.000000e+00 : f32
      %24 = vector.broadcast %cst_15 : f32 to vector<1x256xf32>
      %25 = arith.maximumf %23, %24 : vector<1x256xf32>
      %c0_16 = arith.constant 0 : index
      %c0_17 = arith.constant 0 : index
      %26 = vector.load %arg4[%c0_16, %c0_17] : memref<1x256xf32, #tpu.memory_space<vmem>>, vector<1x256xf32>
      %cst_18 = arith.constant 9.99999974E-6 : f32
      %27 = vector.broadcast %cst_18 : f32 to vector<1x256xf32>
      %28 = arith.addf %25, %27 : vector<1x256xf32>
      %29 = math.rsqrt %28 : vector<1x256xf32>
      %30 = arith.mulf %26, %29 : vector<1x256xf32>
      %31 = vector.broadcast %19 : vector<1x256xf32> to vector<80x256xf32>
      %32 = arith.subf %12, %31 : vector<80x256xf32>
      %33 = vector.broadcast %30 : vector<1x256xf32> to vector<80x256xf32>
      %34 = arith.mulf %32, %33 : vector<80x256xf32>
      %c0_19 = arith.constant 0 : index
      %c0_20 = arith.constant 0 : index
      %35 = vector.load %arg5[%c0_19, %c0_20] : memref<1x256xf32, #tpu.memory_space<vmem>>, vector<1x256xf32>
      %36 = vector.broadcast %35 : vector<1x256xf32> to vector<80x256xf32>
      %37 = arith.addf %34, %36 : vector<80x256xf32>
      %cst_21 = arith.constant 0.000000e+00 : f32
      %38 = vector.broadcast %cst_21 : f32 to vector<80x256xf32>
      %39 = arith.cmpf oge, %37, %38 : vector<80x256xf32>
      %cst_22 = arith.constant 2.000000e-01 : f32
      %40 = vector.broadcast %cst_22 : f32 to vector<80x256xf32>
      %41 = arith.mulf %40, %37 : vector<80x256xf32>
      %42 = arith.select %39, %37, %41 : vector<80x256xi1>, vector<80x256xf32>
      %43 = arith.truncf %42 : vector<80x256xf32> to vector<80x256xbf16>
      %c0_23 = arith.constant 0 : index
      %c0_24 = arith.constant 0 : index
      %44 = vector.load %arg6[%c0_23, %c0_24] : memref<80x256xbf16, #tpu.memory_space<vmem>>, vector<80x256xbf16>
      tpu.vector_store %arg6[%c0_23, %c0_24], %43 {strides = array<i32>} : memref<80x256xbf16, #tpu.memory_space<vmem>>, vector<80x256xbf16>,
    } else {
    }
    return
  }
  func.func @transform_0(%arg0: i32, %arg1: i32) -> (i32, i32) {
    %c0_i32 = arith.constant 0 : i32
    %c0_i32_0 = arith.constant 0 : i32
    return %c0_i32, %arg1 : i32, i32
  }
  func.func @transform_1(%arg0: i32, %arg1: i32) -> (i32, i32) {
    %c0_i32 = arith.constant 0 : i32
    return %arg1, %arg0 : i32, i32
  }
  func.func @transform_2(%arg0: i32, %arg1: i32) -> (i32, i32) {
    %c0_i32 = arith.constant 0 : i32
    %c0_i32_0 = arith.constant 0 : i32
    return %c0_i32, %arg0 : i32, i32
  }
  func.func @transform_3(%arg0: i32, %arg1: i32) -> (i32, i32) {
    %c0_i32 = arith.constant 0 : i32
    %c0_i32_0 = arith.constant 0 : i32
    return %c0_i32, %arg0 : i32, i32
  }
  func.func @transform_4(%arg0: i32, %arg1: i32) -> (i32, i32) {
    %c0_i32 = arith.constant 0 : i32
    %c0_i32_0 = arith.constant 0 : i32
    return %c0_i32, %arg0 : i32, i32
  }
}

module attributes {stable_mosaic.version = 11 : i64} {
  func.func @_matmul_bn_act_kernel(%arg0: i32, %arg1: i32, %arg2: memref<32x512xbf16, #tpu.memory_space<vmem>>, %arg3: memref<512x256xbf16, #tpu.memory_space<vmem>>, %arg4: memref<1x256xf32, #tpu.memory_space<vmem>>, %arg5: memref<1x256xf32, #tpu.memory_space<vmem>>, %arg6: memref<32x256xbf16, #tpu.memory_space<vmem>>, %arg7: memref<32x256xf32, #tpu.memory_space<vmem>>) attributes {dimension_semantics = [#tpu.dimension_semantics<parallel>, #tpu.dimension_semantics<arbitrary>], iteration_bounds = array<i64: 2, 8>, scalar_prefetch = 0 : i64, scratch_operands = 1 : i64, tpu.core_type = #tpu.core_type<tc>, window_params = [{transform_indices = @transform_0, window_bounds = array<i64: 32, 512>}, {transform_indices = @transform_1, window_bounds = array<i64: 512, 256>}, {transform_indices = @transform_2, window_bounds = array<i64: 1, 256>}, {transform_indices = @transform_3, window_bounds = array<i64: 1, 256>}, {transform_indices = @transform_4, window_bounds = array<i64: 32, 256>}]} {
    %c0_i32 = arith.constant 0 : i32
    %0 = arith.cmpi eq, %arg1, %c0_i32 : i32
    %1 = arith.extui %0 : i1 to i32
    %c0_i32_0 = arith.constant 0 : i32
    %2 = arith.cmpi ne, %1, %c0_i32_0 : i32
    scf.if %2 {
      %cst_9 = arith.constant 0.000000e+00 : f32
      %12 = vector.broadcast %cst_9 : f32 to vector<32x256xf32>
      %c0_10 = arith.constant 0 : index
      %c0_11 = arith.constant 0 : index
      %13 = vector.load %arg7[%c0_10, %c0_11] : memref<32x256xf32, #tpu.memory_space<vmem>>, vector<32x256xf32>
      tpu.vector_store %arg7[%c0_10, %c0_11], %12 {strides = array<i32>} : memref<32x256xf32, #tpu.memory_space<vmem>>, vector<32x256xf32>,
    } else {
    }
    %c0 = arith.constant 0 : index
    %c0_1 = arith.constant 0 : index
    %3 = vector.load %arg7[%c0, %c0_1] : memref<32x256xf32, #tpu.memory_space<vmem>>, vector<32x256xf32>
    %c0_2 = arith.constant 0 : index
    %c0_3 = arith.constant 0 : index
    %4 = vector.load %arg2[%c0_2, %c0_3] : memref<32x512xbf16, #tpu.memory_space<vmem>>, vector<32x512xbf16>
    %c0_4 = arith.constant 0 : index
    %c0_5 = arith.constant 0 : index
    %5 = vector.load %arg3[%c0_4, %c0_5] : memref<512x256xbf16, #tpu.memory_space<vmem>>, vector<512x256xbf16>
    %cst = arith.constant dense<0.000000e+00> : vector<32x256xf32>
    %6 = tpu.matmul %4, %5, %cst {dimension_numbers = #tpu.dot_dimension_numbers<[1], [0], [0], [1], [0, 0, 1, 1], [], []>} : vector<32x512xbf16>, vector<512x256xbf16>, vector<32x256xf32> -> vector<32x256xf32>
    %7 = arith.addf %3, %6 : vector<32x256xf32>
    %c0_6 = arith.constant 0 : index
    %c0_7 = arith.constant 0 : index
    %8 = vector.load %arg7[%c0_6, %c0_7] : memref<32x256xf32, #tpu.memory_space<vmem>>, vector<32x256xf32>
    tpu.vector_store %arg7[%c0_6, %c0_7], %7 {strides = array<i32>} : memref<32x256xf32, #tpu.memory_space<vmem>>, vector<32x256xf32>,
    %c7_i32 = arith.constant 7 : i32
    %9 = arith.cmpi eq, %arg1, %c7_i32 : i32
    %10 = arith.extui %9 : i1 to i32
    %c0_i32_8 = arith.constant 0 : i32
    %11 = arith.cmpi ne, %10, %c0_i32_8 : i32
    scf.if %11 {
      %c0_9 = arith.constant 0 : index
      %c0_10 = arith.constant 0 : index
      %12 = vector.load %arg7[%c0_9, %c0_10] : memref<32x256xf32, #tpu.memory_space<vmem>>, vector<32x256xf32>
      %cst_11 = arith.constant dense<0.000000e+00> : vector<256xf32>
      %13 = vector.multi_reduction <add>, %12, %cst_11 [0] : vector<32x256xf32> to vector<256xf32>
      %14 = vector.shape_cast %13 : vector<256xf32> to vector<1x256xf32>
      %15 = arith.mulf %12, %12 : vector<32x256xf32>
      %cst_12 = arith.constant dense<0.000000e+00> : vector<256xf32>
      %16 = vector.multi_reduction <add>, %15, %cst_12 [0] : vector<32x256xf32> to vector<256xf32>
      %17 = vector.shape_cast %16 : vector<256xf32> to vector<1x256xf32>
      %cst_13 = arith.constant 0.055555556 : f32
      %18 = vector.broadcast %cst_13 : f32 to vector<1x256xf32>
      %19 = arith.mulf %14, %18 : vector<1x256xf32>
      %cst_14 = arith.constant 0.055555556 : f32
      %20 = vector.broadcast %cst_14 : f32 to vector<1x256xf32>
      %21 = arith.mulf %17, %20 : vector<1x256xf32>
      %22 = arith.mulf %19, %19 : vector<1x256xf32>
      %23 = arith.subf %21, %22 : vector<1x256xf32>
      %cst_15 = arith.constant 0.000000e+00 : f32
      %24 = vector.broadcast %cst_15 : f32 to vector<1x256xf32>
      %25 = arith.maximumf %23, %24 : vector<1x256xf32>
      %c0_16 = arith.constant 0 : index
      %c0_17 = arith.constant 0 : index
      %26 = vector.load %arg4[%c0_16, %c0_17] : memref<1x256xf32, #tpu.memory_space<vmem>>, vector<1x256xf32>
      %cst_18 = arith.constant 9.99999974E-6 : f32
      %27 = vector.broadcast %cst_18 : f32 to vector<1x256xf32>
      %28 = arith.addf %25, %27 : vector<1x256xf32>
      %29 = math.rsqrt %28 : vector<1x256xf32>
      %30 = arith.mulf %26, %29 : vector<1x256xf32>
      %31 = vector.broadcast %19 : vector<1x256xf32> to vector<32x256xf32>
      %32 = arith.subf %12, %31 : vector<32x256xf32>
      %33 = vector.broadcast %30 : vector<1x256xf32> to vector<32x256xf32>
      %34 = arith.mulf %32, %33 : vector<32x256xf32>
      %c0_19 = arith.constant 0 : index
      %c0_20 = arith.constant 0 : index
      %35 = vector.load %arg5[%c0_19, %c0_20] : memref<1x256xf32, #tpu.memory_space<vmem>>, vector<1x256xf32>
      %36 = vector.broadcast %35 : vector<1x256xf32> to vector<32x256xf32>
      %37 = arith.addf %34, %36 : vector<32x256xf32>
      %cst_21 = arith.constant 0.000000e+00 : f32
      %38 = vector.broadcast %cst_21 : f32 to vector<32x256xf32>
      %39 = arith.cmpf oge, %37, %38 : vector<32x256xf32>
      %cst_22 = arith.constant 2.000000e-01 : f32
      %40 = vector.broadcast %cst_22 : f32 to vector<32x256xf32>
      %41 = arith.mulf %40, %37 : vector<32x256xf32>
      %42 = arith.select %39, %37, %41 : vector<32x256xi1>, vector<32x256xf32>
      %43 = arith.truncf %42 : vector<32x256xf32> to vector<32x256xbf16>
      %c0_23 = arith.constant 0 : index
      %c0_24 = arith.constant 0 : index
      %44 = vector.load %arg6[%c0_23, %c0_24] : memref<32x256xbf16, #tpu.memory_space<vmem>>, vector<32x256xbf16>
      tpu.vector_store %arg6[%c0_23, %c0_24], %43 {strides = array<i32>} : memref<32x256xbf16, #tpu.memory_space<vmem>>, vector<32x256xbf16>,
    } else {
    }
    return
  }
  func.func @transform_0(%arg0: i32, %arg1: i32) -> (i32, i32) {
    %c0_i32 = arith.constant 0 : i32
    %c0_i32_0 = arith.constant 0 : i32
    return %c0_i32, %arg1 : i32, i32
  }
  func.func @transform_1(%arg0: i32, %arg1: i32) -> (i32, i32) {
    %c0_i32 = arith.constant 0 : i32
    return %arg1, %arg0 : i32, i32
  }
  func.func @transform_2(%arg0: i32, %arg1: i32) -> (i32, i32) {
    %c0_i32 = arith.constant 0 : i32
    %c0_i32_0 = arith.constant 0 : i32
    return %c0_i32, %arg0 : i32, i32
  }
  func.func @transform_3(%arg0: i32, %arg1: i32) -> (i32, i32) {
    %c0_i32 = arith.constant 0 : i32
    %c0_i32_0 = arith.constant 0 : i32
    return %c0_i32, %arg0 : i32, i32
  }
  func.func @transform_4(%arg0: i32, %arg1: i32) -> (i32, i32) {
    %c0_i32 = arith.constant 0 : i32
    %c0_i32_0 = arith.constant 0 : i32
    return %c0_i32, %arg0 : i32, i32
  }
}

</mosaic_0001>

<llo_original>
// kernel: discriminator_forward.4
$region0: #{discriminator_forward.4}
  #allocation0 [shape = 'u32[]', space=smem, size = 0x4, offset = 0x4, fixed_abs, tag = 'smem constant byte address 0x4 - core index']
  #allocation1 [shape = 'u32[144,128]{1,0:T(1,128)}', space=vmem, size = 0x12000, scoped, tag = 'internal scratch']
  %s0 = inlined_call_operand.vmem [shape: bf16[2048,128], index: 0, kind: input, shape index: {}]
  %s1 = inlined_call_operand.vmem [shape: bf16[128,128], index: 1, kind: input, shape index: {}]
  %s2 = inlined_call_operand.vmem [shape: f32[1,128], index: 2, kind: input, shape index: {}]
  %s3 = inlined_call_operand.vmem [shape: f32[1,128], index: 3, kind: input, shape index: {}]
  %s4 = inlined_call_operand.vmem [shape: bf16[2048,128], index: 4, kind: output, shape index: {}]
  %s5 = sld [smem:[#allocation0]]
  $region49: #{discriminator_forward.4} parent=0
    _
  %s7 = ssub.s32 1, %s5
  %s8 = scalar_select 0, %s7, %s5
  loop: start=0, step=1, limit=10
  $region2: #{discriminator_forward.4} parent=0 // loop_pre_header
    _
  $region3: #{discriminator_forward.4} parent=0 // loop_header
    %s10 = sphi 0, %s14
    %p11 = scmp.ge.s32.totalorder %s10, 10
    %s17 = sphi 0, %s29
    %s18 = sphi 0, %s25
    %s19 = sphi 0, %s17
    %s20 = sphi 0, %s18
    %s21 = sphi 0, %s19
    %s22 = sphi 0, %s20
    %s32 = sphi 0, %s34
    %s35 = sphi 0, %s32
    %s36 = sphi 0, %s35
    %s52 = sphi 0, %s36
    %s58 = sphi 0, %s60
    %s61 = sphi 0, %s58
    %s62 = sphi 0, %s61
    %s78 = sphi 0, %s62
    %s84 = sphi 0, %s86
    %s87 = sphi 0, %s84
    %s88 = sphi 0, %s87
    %s104 = sphi 0, %s88
    %s110 = sphi 0, %s112
    %s113 = sphi 0, %s110
    %s114 = sphi 0, %s113
    %s130 = sphi 0, %s114
    %s138 = sphi 0, %s140
    %s141 = sphi 0, %s138
    %s142 = sphi 0, %s141
    %s158 = sphi 0, %s142
  $region4: #{discriminator_forward.4} parent=0 // loop_header_branch
    %13 = sbr.rel (%p11) target = $region8
  $region5: #{discriminator_forward.4} parent=0 // loop_body
    %s15 = ssub.s32 %s10, 1
    %s16 = ssub.s32 %s10, 2
    %s23 = sadd.s32 1, %s18
    %p24 = scmp.ge.s32.totalorder %s23, 1
    %s25 = scalar_select %p24, 0, %s23
    %s26 = sadd.s32 1, %s17
    %s27 = scalar_select %p24, %s26, %s17
    %p28 = scmp.ge.s32.totalorder %s27, 8
    %s29 = scalar_select %p28, 0, %s27
    %s30 = ssub.s32 %s17, %s29
    %p31 = scmp.eq.s32.totalorder %s30, 0
    %s33 = sadd.s32 %s32, 1
    %s34 = scalar_select %p31, %s32, %s33
    %p37 = pneg %p31
    %p38 = scmp.eq.s32.totalorder %s10, 7
    %p39 = por %p37, %p38
    %p40 = scmp.ne.s32.totalorder %s32, %s35
    %p41 = scmp.eq.s32.totalorder %s10, 0
    %p42 = por %p40, %p41
    %p43 = scmp.ne.s32.totalorder %s32, %s35
    %p44 = scmp.eq.s32.totalorder %s15, 7
    %p45 = por %p43, %p44
    %p46 = scmp.ne.s32.totalorder %s35, %s36
    %p47 = scmp.eq.s32.totalorder %s15, 0
    %p48 = por %p46, %p47
    %p49 = scmp.ne.s32.totalorder %s35, %s36
    %p50 = scmp.eq.s32.totalorder %s16, 7
    %p51 = por %p49, %p50
    %p53 = scmp.ne.s32.totalorder %s36, %s52
    %p54 = scmp.eq.s32.totalorder %s16, 0
    %p55 = por %p53, %p54
    %s56 = ssub.s32 %s18, %s25
    %p57 = scmp.eq.s32.totalorder %s56, 0
    %s59 = sadd.s32 %s58, 1
    %s60 = scalar_select %p57, %s58, %s59
    %p63 = pneg %p57
    %p64 = scmp.eq.s32.totalorder %s10, 7
    %p65 = por %p63, %p64
    %p66 = scmp.ne.s32.totalorder %s58, %s61
    %p67 = scmp.eq.s32.totalorder %s10, 0
    %p68 = por %p66, %p67
    %p69 = scmp.ne.s32.totalorder %s58, %s61
    %p70 = scmp.eq.s32.totalorder %s15, 7
    %p71 = por %p69, %p70
    %p72 = scmp.ne.s32.totalorder %s61, %s62
    %p73 = scmp.eq.s32.totalorder %s15, 0
    %p74 = por %p72, %p73
    %p75 = scmp.ne.s32.totalorder %s61, %s62
    %p76 = scmp.eq.s32.totalorder %s16, 7
    %p77 = por %p75, %p76
    %p79 = scmp.ne.s32.totalorder %s62, %s78
    %p80 = scmp.eq.s32.totalorder %s16, 0
    %p81 = por %p79, %p80
    %s82 = ssub.s32 %s18, %s25
    %p83 = scmp.eq.s32.totalorder %s82, 0
    %s85 = sadd.s32 %s84, 1
    %s86 = scalar_select %p83, %s84, %s85
    %p89 = pneg %p83
    %p90 = scmp.eq.s32.totalorder %s10, 7
    %p91 = por %p89, %p90
    %p92 = scmp.ne.s32.totalorder %s84, %s87
    %p93 = scmp.eq.s32.totalorder %s10, 0
    %p94 = por %p92, %p93
    %p95 = scmp.ne.s32.totalorder %s84, %s87
    %p96 = scmp.eq.s32.totalorder %s15, 7
    %p97 = por %p95, %p96
    %p98 = scmp.ne.s32.totalorder %s87, %s88
    %p99 = scmp.eq.s32.totalorder %s15, 0
    %p100 = por %p98, %p99
    %p101 = scmp.ne.s32.totalorder %s87, %s88
    %p102 = scmp.eq.s32.totalorder %s16, 7
    %p103 = por %p101, %p102
    %p105 = scmp.ne.s32.totalorder %s88, %s104
    %p106 = scmp.eq.s32.totalorder %s16, 0
    %p107 = por %p105, %p106
    %s108 = ssub.s32 %s18, %s25
    %p109 = scmp.eq.s32.totalorder %s108, 0
    %s111 = sadd.s32 %s110, 1
    %s112 = scalar_select %p109, %s110, %s111
    %p115 = pneg %p109
    %p116 = scmp.eq.s32.totalorder %s10, 7
    %p117 = por %p115, %p116
    %p118 = scmp.ne.s32.totalorder %s110, %s113
    %p119 = scmp.eq.s32.totalorder %s10, 0
    %p120 = por %p118, %p119
    %p121 = scmp.ne.s32.totalorder %s110, %s113
    %p122 = scmp.eq.s32.totalorder %s15, 7
    %p123 = por %p121, %p122
    %p124 = scmp.ne.s32.totalorder %s113, %s114
    %p125 = scmp.eq.s32.totalorder %s15, 0
    %p126 = por %p124, %p125
    %p127 = scmp.ne.s32.totalorder %s113, %s114
    %p128 = scmp.eq.s32.totalorder %s16, 7
    %p129 = por %p127, %p128
    %p131 = scmp.ne.s32.totalorder %s114, %s130
    %p132 = scmp.eq.s32.totalorder %s16, 0
    %p133 = por %p131, %p132
    %s134 = ssub.s32 %s17, %s29
    %s135 = ssub.s32 %s18, %s25
    %s136 = sor.u32 %s134, %s135
    %p137 = scmp.eq.s32.totalorder %s136, 0
    %s139 = sadd.s32 %s138, 1
    %s140 = scalar_select %p137, %s138, %s139
    %p143 = pneg %p137
    %p144 = scmp.eq.s32.totalorder %s10, 7
    %p145 = por %p143, %p144
    %p146 = scmp.ne.s32.totalorder %s138, %s141
    %p147 = scmp.eq.s32.totalorder %s10, 0
    %p148 = por %p146, %p147
    %p149 = scmp.ne.s32.totalorder %s138, %s141
    %p150 = scmp.eq.s32.totalorder %s15, 7
    %p151 = por %p149, %p150
    %p152 = scmp.ne.s32.totalorder %s141, %s142
    %p153 = scmp.eq.s32.totalorder %s15, 0
    %p154 = por %p152, %p153
    %p155 = scmp.ne.s32.totalorder %s141, %s142
    %p156 = scmp.eq.s32.totalorder %s16, 7
    %p157 = por %p155, %p156
    %p159 = scmp.ne.s32.totalorder %s142, %s158
    %p160 = scmp.eq.s32.totalorder %s16, 0
    %p161 = por %p159, %p160
    %p162 = scmp.le.s32.totalorder 1, %s10
    %p163 = scmp.lt.s32.totalorder %s10, 9
    %p164 = pnand %p162, %p163
    %p165 = pneg %p164
    // Predicated region
    $region9: #{discriminator_forward.4} parent=5 // pred_check
      _
    $region10: #{discriminator_forward.4} parent=5 // pred_check_branch
      %167 = sbr.rel (%p164) target = $region12
    $region11: #{discriminator_forward.4} parent=5 // pred_region
      %s168 = ssub.s32 %s10, 1
      // Predicated region
      $region13: #{discriminator_forward.4} parent=11 // pred_check
        %p169 = pneg %p74
      $region14: #{discriminator_forward.4} parent=11 // pred_check_branch
        %171 = sbr.rel (%p169) target = $region16
      $region15: #{discriminator_forward.4} parent=11 // pred_region
        %p172 = scmp.lt.s32.totalorder %s20, 0
        %s173 = scalar_select %p172, %s20, 0
        %s174 = smul.addr %s173, 4
        %s175 = scalar_lea.vmem %s1, %s174
      $region16: #{discriminator_forward.4} parent=11 // pred_fallthru
        _
      // Predicated region
      $region17: #{discriminator_forward.4} parent=11 // pred_check
        %p176 = pneg %p100
      $region18: #{discriminator_forward.4} parent=11 // pred_check_branch
        %178 = sbr.rel (%p176) target = $region20
      $region19: #{discriminator_forward.4} parent=11 // pred_region
        %p179 = scmp.lt.s32.totalorder %s20, 0
        %s180 = scalar_select %p179, %s20, 0
        %s181 = scalar_lea.vmem %s2, %s180
      $region20: #{discriminator_forward.4} parent=11 // pred_fallthru
        _
      // Predicated region
      $region21: #{discriminator_forward.4} parent=11 // pred_check
        %p182 = pneg %p126
      $region22: #{discriminator_forward.4} parent=11 // pred_check_branch
        %184 = sbr.rel (%p182) target = $region24
      $region23: #{discriminator_forward.4} parent=11 // pred_region
        %p185 = scmp.lt.s32.totalorder %s20, 0
        %s186 = scalar_select %p185, %s20, 0
        %s187 = scalar_lea.vmem %s3, %s186
      $region24: #{discriminator_forward.4} parent=11 // pred_fallthru
        _
    $region12: #{discriminator_forward.4} parent=5 // pred_fallthru
      _
    %p188 = scmp.lt.s32.totalorder %s10, 8
    // Predicated region
    $region25: #{discriminator_forward.4} parent=5 // pred_check
      %p189 = pneg %p188
    $region26: #{discriminator_forward.4} parent=5 // pred_check_branch
      %191 = sbr.rel (%p189) target = $region28
    $region27: #{discriminator_forward.4} parent=5 // pred_region
      // Predicated region
      $region29: #{discriminator_forward.4} parent=27 // pred_check
        %p192 = pneg %p42
      $region30: #{discriminator_forward.4} parent=27 // pred_check_branch
        %194 = sbr.rel (%p192) target = $region32
      $region31: #{discriminator_forward.4} parent=27 // pred_region
        %s195 = smul.u32 32, %s17
        %p196 = scmp.lt.s32.totalorder %s195, 255
        %s197 = scalar_select %p196, %s195, 255
        %s198 = smul.addr %s197, 4
        %s199 = scalar_lea.vmem %s0, %s198
        %s200 = smul.u32 32, %s17
      $region32: #{discriminator_forward.4} parent=27 // pred_fallthru
        _
    $region28: #{discriminator_forward.4} parent=5 // pred_fallthru
      _
    %p201 = scmp.le.s32.totalorder 1, %s10
    %p202 = scmp.lt.s32.totalorder %s10, 9
    %p203 = pnand %p201, %p202
    %p204 = pneg %p203
    // Predicated region
    $region33: #{discriminator_forward.4} parent=5 // pred_check
      _
    $region34: #{discriminator_forward.4} parent=5 // pred_check_branch
      %206 = sbr.rel (%p203) target = $region36
    $region35: #{discriminator_forward.4} parent=5 // pred_region
      %s207 = ssub.s32 %s10, 1
      %s208 = smul.u32 32, %s19
      %p209 = scmp.lt.s32.totalorder %s208, 255
      %s210 = scalar_select %p209, %s208, 255
      %s211 = smul.addr %s210, 4
      %s212 = scalar_lea.vmem %s0, %s211
      %p213 = pneg %p48
      %p214 = pneg %p45
      %p215 = scmp.lt.s32.totalorder %s20, 0
      %s216 = scalar_select %p215, %s20, 0
      %s217 = smul.addr %s216, 4
      %s218 = scalar_lea.vmem %s1, %s217
      %p219 = pneg %p74
      %p220 = pneg %p71
      %p221 = scmp.lt.s32.totalorder %s20, 0
      %s222 = scalar_select %p221, %s20, 0
      %s223 = scalar_lea.vmem %s2, %s222
      %p224 = pneg %p100
      %p225 = pneg %p97
      %p226 = scmp.lt.s32.totalorder %s20, 0
      %s227 = scalar_select %p226, %s20, 0
      %s228 = scalar_lea.vmem %s3, %s227
      %p229 = pneg %p126
      %p230 = pneg %p123
      %p231 = pneg %p154
      %p232 = pneg %p151
      %s233 = smul.u32 32, %s19
      %p234 = scmp.lt.s32.totalorder %s233, 255
      %s235 = scalar_select %p234, %s233, 255
      %p236 = scmp.lt.s32.totalorder %s20, 0
      %s237 = scalar_select %p236, %s20, 0
      %s238 = sadd.s32 %s237, %s235
      %s239 = smul.addr %s238, 4
      %s240 = scalar_lea.vmem %s4, %s239
      %s241 = smul.u32 32, %s19
      %p242 = scmp.lt.s32.totalorder %s241, 255
      %s243 = scalar_select %p242, %s241, 255
      %s244 = smul.addr %s243, 4
      %s245 = scalar_lea.vmem %s0, %s244
      %s246 = smul.u32 32, %s19
      %p247 = scmp.lt.s32.totalorder %s20, 0
      %s248 = scalar_select %p247, %s20, 0
      %s249 = smul.addr %s248, 4
      %s250 = scalar_lea.vmem %s1, %s249
      %p251 = scmp.lt.s32.totalorder %s20, 0
      %s252 = scalar_select %p251, %s20, 0
      %s253 = scalar_lea.vmem %s2, %s252
      %p254 = scmp.lt.s32.totalorder %s20, 0
      %s255 = scalar_select %p254, %s20, 0
      %s256 = scalar_lea.vmem %s3, %s255
      %s257 = smul.u32 32, %s19
      %p258 = scmp.lt.s32.totalorder %s257, 255
      %s259 = scalar_select %p258, %s257, 255
      %p260 = scmp.lt.s32.totalorder %s20, 0
      %s261 = scalar_select %p260, %s20, 0
      %s262 = sadd.s32 %s261, %s259
      %s263 = smul.addr %s262, 4
      %s264 = scalar_lea.vmem %s4, %s263
      %s265 = smul.u32 32, %s19
      %v267 = vld [vmem:[%s245] sm:$0xf]
      %v268 = vld [vmem:[%s245 + $0x4] sm:$0xf]
      %v269 = vld [vmem:[%s245 + $0x8] sm:$0xf]
      %v270 = vld [vmem:[%s245 + $0xc] sm:$0xf]
      %v271 = vld [vmem:[%s245 + $0x10] sm:$0xf]
      %v272 = vld [vmem:[%s245 + $0x14] sm:$0xf]
      %v273 = vld [vmem:[%s245 + $0x18] sm:$0xf]
      %v274 = vld [vmem:[%s245 + $0x1c] sm:$0xf]
      %v275 = vld [vmem:[%s245 + $0x20] sm:$0xf]
      %v276 = vld [vmem:[%s245 + $0x24] sm:$0xf]
      %v277 = vld [vmem:[%s245 + $0x28] sm:$0xf]
      %v278 = vld [vmem:[%s245 + $0x2c] sm:$0xf]
      %v279 = vld [vmem:[%s245 + $0x30] sm:$0xf]
      %v280 = vld [vmem:[%s245 + $0x34] sm:$0xf]
      %v281 = vld [vmem:[%s245 + $0x38] sm:$0xf]
      %v282 = vld [vmem:[%s245 + $0x3c] sm:$0xf]
      %v283 = vld [vmem:[%s245 + $0x40] sm:$0xf]
      %v284 = vld [vmem:[%s245 + $0x44] sm:$0xf]
      %v285 = vld [vmem:[%s245 + $0x48] sm:$0xf]
      %v286 = vld [vmem:[%s245 + $0x4c] sm:$0xf]
      %v287 = vld [vmem:[%s245 + $0x50] sm:$0xf]
      %v288 = vld [vmem:[%s245 + $0x54] sm:$0xf]
      %v289 = vld [vmem:[%s245 + $0x58] sm:$0xf]
      %v290 = vld [vmem:[%s245 + $0x5c] sm:$0xf]
      %v291 = vld [vmem:[%s245 + $0x60] sm:$0xf]
      %v292 = vld [vmem:[%s245 + $0x64] sm:$0xf]
      %v293 = vld [vmem:[%s245 + $0x68] sm:$0xf]
      %v294 = vld [vmem:[%s245 + $0x6c] sm:$0xf]
      %v295 = vld [vmem:[%s245 + $0x70] sm:$0xf]
      %v296 = vld [vmem:[%s245 + $0x74] sm:$0xf]
      %v297 = vld [vmem:[%s245 + $0x78] sm:$0xf]
      %v298 = vld [vmem:[%s245 + $0x7c] sm:$0xf]
      %v299 = vld [vmem:[%s250] sm:$0xf]
      %v300 = vld [vmem:[%s250 + $0x4] sm:$0xf]
      %v301 = vld [vmem:[%s250 + $0x8] sm:$0xf]
      %v302 = vld [vmem:[%s250 + $0xc] sm:$0xf]
      %v303 = vld [vmem:[%s250 + $0x10] sm:$0xf]
      %v304 = vld [vmem:[%s250 + $0x14] sm:$0xf]
      %v305 = vld [vmem:[%s250 + $0x18] sm:$0xf]
      %v306 = vld [vmem:[%s250 + $0x1c] sm:$0xf]
      %v307 = vld [vmem:[%s250 + $0x20] sm:$0xf]
      %v308 = vld [vmem:[%s250 + $0x24] sm:$0xf]
      %v309 = vld [vmem:[%s250 + $0x28] sm:$0xf]
      %v310 = vld [vmem:[%s250 + $0x2c] sm:$0xf]
      %v311 = vld [vmem:[%s250 + $0x30] sm:$0xf]
      %v312 = vld [vmem:[%s250 + $0x34] sm:$0xf]
      %v313 = vld [vmem:[%s250 + $0x38] sm:$0xf]
      %v314 = vld [vmem:[%s250 + $0x3c] sm:$0xf]
      %v347 = vunpack.c.l.b16 %v267
      %v348 = vunpack.c.l.b16 %v268
      %v349 = vunpack.c.l.b16 %v269
      %v350 = vunpack.c.l.b16 %v270
      %v351 = vunpack.c.l.b16 %v271
      %v352 = vunpack.c.l.b16 %v272
      %v353 = vunpack.c.l.b16 %v273
      %v354 = vunpack.c.l.b16 %v274
      %v355 = vunpack.c.l.b16 %v275
      %v356 = vunpack.c.l.b16 %v276
      %v357 = vunpack.c.l.b16 %v277
      %v358 = vunpack.c.l.b16 %v278
      %v359 = vunpack.c.l.b16 %v279
      %v360 = vunpack.c.l.b16 %v280
      %v361 = vunpack.c.l.b16 %v281
      %v362 = vunpack.c.l.b16 %v282
      %v363 = vunpack.c.l.b16 %v283
      %v364 = vunpack.c.l.b16 %v284
      %v365 = vunpack.c.l.b16 %v285
      %v366 = vunpack.c.l.b16 %v286
      %v367 = vunpack.c.l.b16 %v287
      %v368 = vunpack.c.l.b16 %v288
      %v369 = vunpack.c.l.b16 %v289
      %v370 = vunpack.c.l.b16 %v290
      %v371 = vunpack.c.l.b16 %v291
      %v372 = vunpack.c.l.b16 %v292
      %v373 = vunpack.c.l.b16 %v293
      %v374 = vunpack.c.l.b16 %v294
      %v375 = vunpack.c.l.b16 %v295
      %v376 = vunpack.c.l.b16 %v296
      %v377 = vunpack.c.l.b16 %v297
      %v378 = vunpack.c.l.b16 %v298
      %v379 = vpack.c.b16 %v348, %v347
      %v380 = vpack.c.b16 %v350, %v349
      %v381 = vpack.c.b16 %v352, %v351
      %v382 = vpack.c.b16 %v354, %v353
      %v383 = vpack.c.b16 %v356, %v355
      %v384 = vpack.c.b16 %v358, %v357
      %v385 = vpack.c.b16 %v360, %v359
      %v386 = vpack.c.b16 %v362, %v361
      %v387 = vpack.c.b16 %v364, %v363
      %v388 = vpack.c.b16 %v366, %v365
      %v389 = vpack.c.b16 %v368, %v367
      %v390 = vpack.c.b16 %v370, %v369
      %v391 = vpack.c.b16 %v372, %v371
      %v392 = vpack.c.b16 %v374, %v373
      %v393 = vpack.c.b16 %v376, %v375
      %v394 = vpack.c.b16 %v378, %v377
      %v427 = vunpack.c.l.b16 %v299
      %v428 = vunpack.c.l.b16 %v300
      %v429 = vunpack.c.l.b16 %v301
      %v430 = vunpack.c.l.b16 %v302
      %v431 = vunpack.c.l.b16 %v303
      %v432 = vunpack.c.l.b16 %v304
      %v433 = vunpack.c.l.b16 %v305
      %v434 = vunpack.c.l.b16 %v306
      %v435 = vunpack.c.l.b16 %v307
      %v436 = vunpack.c.l.b16 %v308
      %v437 = vunpack.c.l.b16 %v309
      %v438 = vunpack.c.l.b16 %v310
      %v439 = vunpack.c.l.b16 %v311
      %v440 = vunpack.c.l.b16 %v312
      %v441 = vunpack.c.l.b16 %v313
      %v442 = vunpack.c.l.b16 %v314
      %v443 = vpack.c.b16 %v428, %v427
      %v444 = vpack.c.b16 %v430, %v429
      %v445 = vpack.c.b16 %v432, %v431
      %v446 = vpack.c.b16 %v434, %v433
      %v447 = vpack.c.b16 %v436, %v435
      %v448 = vpack.c.b16 %v438, %v437
      %v449 = vpack.c.b16 %v440, %v439
      %v450 = vpack.c.b16 %v442, %v441
      %459 = vmatprep.subr.bf16.mxu0 0
      %460 = vmatpush1.bf16.msra.mxu0 %v450
      %461 = vmatprep.subr.bf16.mxu0 0
      %462 = vmatpush1.bf16.msra.mxu0 %v449
      %463 = vmatprep.subr.bf16.mxu0 0
      %464 = vmatpush1.bf16.msra.mxu0 %v448
      %465 = vmatprep.subr.bf16.mxu0 0
      %466 = vmatpush1.bf16.msra.mxu0 %v447
      %467 = vmatprep.subr.bf16.mxu0 0
      %468 = vmatpush1.bf16.msra.mxu0 %v446
      %469 = vmatprep.subr.bf16.mxu0 0
      %470 = vmatpush1.bf16.msra.mxu0 %v445
      %471 = vmatprep.subr.bf16.mxu0 0
      %472 = vmatpush1.bf16.msra.mxu0 %v444
      %473 = vmatprep.subr.bf16.mxu0 0
      %474 = vmatpush1.bf16.msra.mxu0 %v443
      %475 = vmatprep.subr.bf16.mxu0 0
      %476 = vmatpush2.bf16.msra.mxu0 0
      %477 = vmatprep.subr.bf16.mxu0 0
      %478 = vmatpush2.bf16.msra.mxu0 0
      %479 = vmatprep.subr.bf16.mxu0 0
      %480 = vmatpush2.bf16.msra.mxu0 0
      %481 = vmatprep.subr.bf16.mxu0 0
      %482 = vmatpush2.bf16.msra.mxu0 0
      %483 = vmatprep.subr.bf16.mxu0 0
      %484 = vmatpush2.bf16.msra.mxu0 0
      %485 = vmatprep.subr.bf16.mxu0 0
      %486 = vmatpush2.bf16.msra.mxu0 0
      %487 = vmatprep.subr.bf16.mxu0 0
      %488 = vmatpush2.bf16.msra.mxu0 0
      %489 = vmatprep.subr.bf16.mxu0 0
      %490 = vmatpush2.bf16.msra.mxu0 0
      %491 = vmatprep.mubr.bf16.mxu0 0
      %492 = vmatmul.mubr.bf16.gmra.mxu0 %v379
      %v493 = vpop.f32.mrf.mxu0
      %v494 = vadd.f32 0.0, %v493
      %v495 = vpop.f32.mrf.mxu0
      %v496 = vpop.f32.mrf.mxu0
      %v497 = vadd.f32 0.0, %v496
      %v498 = vpop.f32.mrf.mxu0
      %499 = vmatprep.mubr.bf16.mxu0 0
      %500 = vmatmul.mubr.bf16.gmra.mxu0 %v380
      %v501 = vpop.f32.mrf.mxu0
      %v502 = vadd.f32 0.0, %v501
      %v503 = vpop.f32.mrf.mxu0
      %v504 = vpop.f32.mrf.mxu0
      %v505 = vadd.f32 0.0, %v504
      %v506 = vpop.f32.mrf.mxu0
      %507 = vmatprep.mubr.bf16.mxu0 0
      %508 = vmatmul.mubr.bf16.gmra.mxu0 %v381
      %v509 = vpop.f32.mrf.mxu0
      %v510 = vadd.f32 0.0, %v509
      %v511 = vpop.f32.mrf.mxu0
      %v512 = vpop.f32.mrf.mxu0
      %v513 = vadd.f32 0.0, %v512
      %v514 = vpop.f32.mrf.mxu0
      %515 = vmatprep.mubr.bf16.mxu0 0
      %516 = vmatmul.mubr.bf16.gmra.mxu0 %v382
      %v517 = vpop.f32.mrf.mxu0
      %v518 = vadd.f32 0.0, %v517
      %v519 = vpop.f32.mrf.mxu0
      %v520 = vpop.f32.mrf.mxu0
      %v521 = vadd.f32 0.0, %v520
      %v522 = vpop.f32.mrf.mxu0
      %523 = vmatprep.mubr.bf16.mxu0 0
      %524 = vmatmul.mubr.bf16.gmra.mxu0 %v383
      %v525 = vpop.f32.mrf.mxu0
      %v526 = vadd.f32 0.0, %v525
      %v527 = vpop.f32.mrf.mxu0
      %v528 = vpop.f32.mrf.mxu0
      %v529 = vadd.f32 0.0, %v528
      %v530 = vpop.f32.mrf.mxu0
      %531 = vmatprep.mubr.bf16.mxu0 0
      %532 = vmatmul.mubr.bf16.gmra.mxu0 %v384
      %v533 = vpop.f32.mrf.mxu0
      %v534 = vadd.f32 0.0, %v533
      %v535 = vpop.f32.mrf.mxu0
      %v536 = vpop.f32.mrf.mxu0
      %v537 = vadd.f32 0.0, %v536
      %v538 = vpop.f32.mrf.mxu0
      %539 = vmatprep.mubr.bf16.mxu0 0
      %540 = vmatmul.mubr.bf16.gmra.mxu0 %v385
      %v541 = vpop.f32.mrf.mxu0
      %v542 = vadd.f32 0.0, %v541
      %v543 = vpop.f32.mrf.mxu0
      %v544 = vpop.f32.mrf.mxu0
      %v545 = vadd.f32 0.0, %v544
      %v546 = vpop.f32.mrf.mxu0
      %547 = vmatprep.mubr.bf16.mxu0 0
      %548 = vmatmul.mubr.bf16.gmra.mxu0 %v386
      %v549 = vpop.f32.mrf.mxu0
      %v550 = vadd.f32 0.0, %v549
      %v551 = vpop.f32.mrf.mxu0
      %v552 = vpop.f32.mrf.mxu0
      %v553 = vadd.f32 0.0, %v552
      %v554 = vpop.f32.mrf.mxu0
      %555 = vmatprep.mubr.bf16.mxu0 0
      %556 = vmatmul.mubr.bf16.gmra.mxu0 %v387
      %v557 = vpop.f32.mrf.mxu0
      %v558 = vadd.f32 0.0, %v557
      %v559 = vpop.f32.mrf.mxu0
      %v560 = vpop.f32.mrf.mxu0
      %v561 = vadd.f32 0.0, %v560
      %v562 = vpop.f32.mrf.mxu0
      %563 = vmatprep.mubr.bf16.mxu0 0
      %564 = vmatmul.mubr.bf16.gmra.mxu0 %v388
      %v565 = vpop.f32.mrf.mxu0
      %v566 = vadd.f32 0.0, %v565
      %v567 = vpop.f32.mrf.mxu0
      %v568 = vpop.f32.mrf.mxu0
      %v569 = vadd.f32 0.0, %v568
      %v570 = vpop.f32.mrf.mxu0
      %571 = vmatprep.mubr.bf16.mxu0 0
      %572 = vmatmul.mubr.bf16.gmra.mxu0 %v389
      %v573 = vpop.f32.mrf.mxu0
      %v574 = vadd.f32 0.0, %v573
      %v575 = vpop.f32.mrf.mxu0
      %v576 = vpop.f32.mrf.mxu0
      %v577 = vadd.f32 0.0, %v576
      %v578 = vpop.f32.mrf.mxu0
      %579 = vmatprep.mubr.bf16.mxu0 0
      %580 = vmatmul.mubr.bf16.gmra.mxu0 %v390
      %v581 = vpop.f32.mrf.mxu0
      %v582 = vadd.f32 0.0, %v581
      %v583 = vpop.f32.mrf.mxu0
      %v584 = vpop.f32.mrf.mxu0
      %v585 = vadd.f32 0.0, %v584
      %v586 = vpop.f32.mrf.mxu0
      %587 = vmatprep.mubr.bf16.mxu0 0
      %588 = vmatmul.mubr.bf16.gmra.mxu0 %v391
      %v589 = vpop.f32.mrf.mxu0
      %v590 = vadd.f32 0.0, %v589
      %v591 = vpop.f32.mrf.mxu0
      %v592 = vpop.f32.mrf.mxu0
      %v593 = vadd.f32 0.0, %v592
      %v594 = vpop.f32.mrf.mxu0
      %595 = vmatprep.mubr.bf16.mxu0 0
      %596 = vmatmul.mubr.bf16.gmra.mxu0 %v392
      %v597 = vpop.f32.mrf.mxu0
      %v598 = vadd.f32 0.0, %v597
      %v599 = vpop.f32.mrf.mxu0
      %v600 = vpop.f32.mrf.mxu0
      %v601 = vadd.f32 0.0, %v600
      %v602 = vpop.f32.mrf.mxu0
      %603 = vmatprep.mubr.bf16.mxu0 0
      %604 = vmatmul.mubr.bf16.gmra.mxu0 %v393
      %v605 = vpop.f32.mrf.mxu0
      %v606 = vadd.f32 0.0, %v605
      %v607 = vpop.f32.mrf.mxu0
      %v608 = vpop.f32.mrf.mxu0
      %v609 = vadd.f32 0.0, %v608
      %v610 = vpop.f32.mrf.mxu0
      %611 = vmatprep.mubr.bf16.mxu0 0
      %612 = vmatmul.mubr.bf16.gmra.mxu0 %v394
      %v613 = vpop.f32.mrf.mxu0
      %v614 = vadd.f32 0.0, %v613
      %v615 = vpop.f32.mrf.mxu0
      %v616 = vpop.f32.mrf.mxu0
      %v617 = vadd.f32 0.0, %v616
      %v618 = vpop.f32.mrf.mxu0
      %619 = vdwg.mxu0
      %v620 = vld [vmem:[%s253] sm:$0x1]
      %v622 = vlaneseq
      %v623 = vshrl.u32 %v622, 7
      %v624 = vsub.s32 0, %v623
      %v625 = vrot.slane %v620, %v624
      %v627 = vmul.f32 %v494, %v625
      %v628 = vmul.f32 %v497, %v625
      %v629 = vmul.f32 %v502, %v625
      %v630 = vmul.f32 %v505, %v625
      %v631 = vmul.f32 %v510, %v625
      %v632 = vmul.f32 %v513, %v625
      %v633 = vmul.f32 %v518, %v625
      %v634 = vmul.f32 %v521, %v625
      %v635 = vmul.f32 %v526, %v625
      %v636 = vmul.f32 %v529, %v625
      %v637 = vmul.f32 %v534, %v625
      %v638 = vmul.f32 %v537, %v625
      %v639 = vmul.f32 %v542, %v625
      %v640 = vmul.f32 %v545, %v625
      %v641 = vmul.f32 %v550, %v625
      %v642 = vmul.f32 %v553, %v625
      %v643 = vmul.f32 %v558, %v625
      %v644 = vmul.f32 %v561, %v625
      %v645 = vmul.f32 %v566, %v625
      %v646 = vmul.f32 %v569, %v625
      %v647 = vmul.f32 %v574, %v625
      %v648 = vmul.f32 %v577, %v625
      %v649 = vmul.f32 %v582, %v625
      %v650 = vmul.f32 %v585, %v625
      %v651 = vmul.f32 %v590, %v625
      %v652 = vmul.f32 %v593, %v625
      %v653 = vmul.f32 %v598, %v625
      %v654 = vmul.f32 %v601, %v625
      %v655 = vmul.f32 %v606, %v625
      %v656 = vmul.f32 %v609, %v625
      %v657 = vmul.f32 %v614, %v625
      %v658 = vmul.f32 %v617, %v625
      %v659 = vld [vmem:[%s256] sm:$0x1]
      %v661 = vlaneseq
      %v662 = vshrl.u32 %v661, 7
      %v663 = vsub.s32 0, %v662
      %v664 = vrot.slane %v659, %v663
      %v666 = vadd.f32 %v627, %v664
      %v667 = vadd.f32 %v628, %v664
      %v668 = vadd.f32 %v629, %v664
      %v669 = vadd.f32 %v630, %v664
      %v670 = vadd.f32 %v631, %v664
      %v671 = vadd.f32 %v632, %v664
      %v672 = vadd.f32 %v633, %v664
      %v673 = vadd.f32 %v634, %v664
      %v674 = vadd.f32 %v635, %v664
      %v675 = vadd.f32 %v636, %v664
      %v676 = vadd.f32 %v637, %v664
      %v677 = vadd.f32 %v638, %v664
      %v678 = vadd.f32 %v639, %v664
      %v679 = vadd.f32 %v640, %v664
      %v680 = vadd.f32 %v641, %v664
      %v681 = vadd.f32 %v642, %v664
      %v682 = vadd.f32 %v643, %v664
      %v683 = vadd.f32 %v644, %v664
      %v684 = vadd.f32 %v645, %v664
      %v685 = vadd.f32 %v646, %v664
      %v686 = vadd.f32 %v647, %v664
      %v687 = vadd.f32 %v648, %v664
      %v688 = vadd.f32 %v649, %v664
      %v689 = vadd.f32 %v650, %v664
      %v690 = vadd.f32 %v651, %v664
      %v691 = vadd.f32 %v652, %v664
      %v692 = vadd.f32 %v653, %v664
      %v693 = vadd.f32 %v654, %v664
      %v694 = vadd.f32 %v655, %v664
      %v695 = vadd.f32 %v656, %v664
      %v696 = vadd.f32 %v657, %v664
      %v697 = vadd.f32 %v658, %v664
      %vm698 = vcmp.ge.f32.partialorder %v666, 0.0
      %vm699 = vcmp.ge.f32.partialorder %v667, 0.0
      %vm700 = vcmp.ge.f32.partialorder %v668, 0.0
      %vm701 = vcmp.ge.f32.partialorder %v669, 0.0
      %vm702 = vcmp.ge.f32.partialorder %v670, 0.0
      %vm703 = vcmp.ge.f32.partialorder %v671, 0.0
      %vm704 = vcmp.ge.f32.partialorder %v672, 0.0
      %vm705 = vcmp.ge.f32.partialorder %v673, 0.0
      %vm706 = vcmp.ge.f32.partialorder %v674, 0.0
      %vm707 = vcmp.ge.f32.partialorder %v675, 0.0
      %vm708 = vcmp.ge.f32.partialorder %v676, 0.0
      %vm709 = vcmp.ge.f32.partialorder %v677, 0.0
      %vm710 = vcmp.ge.f32.partialorder %v678, 0.0
      %vm711 = vcmp.ge.f32.partialorder %v679, 0.0
      %vm712 = vcmp.ge.f32.partialorder %v680, 0.0
      %vm713 = vcmp.ge.f32.partialorder %v681, 0.0
      %vm714 = vcmp.ge.f32.partialorder %v682, 0.0
      %vm715 = vcmp.ge.f32.partialorder %v683, 0.0
      %vm716 = vcmp.ge.f32.partialorder %v684, 0.0
      %vm717 = vcmp.ge.f32.partialorder %v685, 0.0
      %vm718 = vcmp.ge.f32.partialorder %v686, 0.0
      %vm719 = vcmp.ge.f32.partialorder %v687, 0.0
      %vm720 = vcmp.ge.f32.partialorder %v688, 0.0
      %vm721 = vcmp.ge.f32.partialorder %v689, 0.0
      %vm722 = vcmp.ge.f32.partialorder %v690, 0.0
      %vm723 = vcmp.ge.f32.partialorder %v691, 0.0
      %vm724 = vcmp.ge.f32.partialorder %v692, 0.0
      %vm725 = vcmp.ge.f32.partialorder %v693, 0.0
      %vm726 = vcmp.ge.f32.partialorder %v694, 0.0
      %vm727 = vcmp.ge.f32.partialorder %v695, 0.0
      %vm728 = vcmp.ge.f32.partialorder %v696, 0.0
      %vm729 = vcmp.ge.f32.partialorder %v697, 0.0
      %v730 = vmul.f32 %v666, 0.2
      %v731 = vmul.f32 %v667, 0.2
      %v732 = vmul.f32 %v668, 0.2
      %v733 = vmul.f32 %v669, 0.2
      %v734 = vmul.f32 %v670, 0.2
      %v735 = vmul.f32 %v671, 0.2
      %v736 = vmul.f32 %v672, 0.2
      %v737 = vmul.f32 %v673, 0.2
      %v738 = vmul.f32 %v674, 0.2
      %v739 = vmul.f32 %v675, 0.2
      %v740 = vmul.f32 %v676, 0.2
      %v741 = vmul.f32 %v677, 0.2
      %v742 = vmul.f32 %v678, 0.2
      %v743 = vmul.f32 %v679, 0.2
      %v744 = vmul.f32 %v680, 0.2
      %v745 = vmul.f32 %v681, 0.2
      %v746 = vmul.f32 %v682, 0.2
      %v747 = vmul.f32 %v683, 0.2
      %v748 = vmul.f32 %v684, 0.2
      %v749 = vmul.f32 %v685, 0.2
      %v750 = vmul.f32 %v686, 0.2
      %v751 = vmul.f32 %v687, 0.2
      %v752 = vmul.f32 %v688, 0.2
      %v753 = vmul.f32 %v689, 0.2
      %v754 = vmul.f32 %v690, 0.2
      %v755 = vmul.f32 %v691, 0.2
      %v756 = vmul.f32 %v692, 0.2
      %v757 = vmul.f32 %v693, 0.2
      %v758 = vmul.f32 %v694, 0.2
      %v759 = vmul.f32 %v695, 0.2
      %v760 = vmul.f32 %v696, 0.2
      %v761 = vmul.f32 %v697, 0.2
      %v762 = vsel %vm698, %v666, %v730
      %v763 = vsel %vm699, %v667, %v731
      %v764 = vsel %vm700, %v668, %v732
      %v765 = vsel %vm701, %v669, %v733
      %v766 = vsel %vm702, %v670, %v734
      %v767 = vsel %vm703, %v671, %v735
      %v768 = vsel %vm704, %v672, %v736
      %v769 = vsel %vm705, %v673, %v737
      %v770 = vsel %vm706, %v674, %v738
      %v771 = vsel %vm707, %v675, %v739
      %v772 = vsel %vm708, %v676, %v740
      %v773 = vsel %vm709, %v677, %v741
      %v774 = vsel %vm710, %v678, %v742
      %v775 = vsel %vm711, %v679, %v743
      %v776 = vsel %vm712, %v680, %v744
      %v777 = vsel %vm713, %v681, %v745
      %v778 = vsel %vm714, %v682, %v746
      %v779 = vsel %vm715, %v683, %v747
      %v780 = vsel %vm716, %v684, %v748
      %v781 = vsel %vm717, %v685, %v749
      %v782 = vsel %vm718, %v686, %v750
      %v783 = vsel %vm719, %v687, %v751
      %v784 = vsel %vm720, %v688, %v752
      %v785 = vsel %vm721, %v689, %v753
      %v786 = vsel %vm722, %v690, %v754
      %v787 = vsel %vm723, %v691, %v755
      %v788 = vsel %vm724, %v692, %v756
      %v789 = vsel %vm725, %v693, %v757
      %v790 = vsel %vm726, %v694, %v758
      %v791 = vsel %vm727, %v695, %v759
      %v792 = vsel %vm728, %v696, %v760
      %v793 = vsel %vm729, %v697, %v761
      %v794 = vpack.c.bf16 %v763, %v762
      %v795 = vpack.c.bf16 %v765, %v764
      %v796 = vpack.c.bf16 %v767, %v766
      %v797 = vpack.c.bf16 %v769, %v768
      %v798 = vpack.c.bf16 %v771, %v770
      %v799 = vpack.c.bf16 %v773, %v772
      %v800 = vpack.c.bf16 %v775, %v774
      %v801 = vpack.c.bf16 %v777, %v776
      %v802 = vpack.c.bf16 %v779, %v778
      %v803 = vpack.c.bf16 %v781, %v780
      %v804 = vpack.c.bf16 %v783, %v782
      %v805 = vpack.c.bf16 %v785, %v784
      %v806 = vpack.c.bf16 %v787, %v786
      %v807 = vpack.c.bf16 %v789, %v788
      %v808 = vpack.c.bf16 %v791, %v790
      %v809 = vpack.c.bf16 %v793, %v792
      %v826 = vunpack.c.l.b16 %v794
      %v827 = vunpack.c.h.b16 %v794
      %v828 = vunpack.c.l.b16 %v795
      %v829 = vunpack.c.h.b16 %v795
      %v830 = vunpack.c.l.b16 %v796
      %v831 = vunpack.c.h.b16 %v796
      %v832 = vunpack.c.l.b16 %v797
      %v833 = vunpack.c.h.b16 %v797
      %v834 = vunpack.c.l.b16 %v798
      %v835 = vunpack.c.h.b16 %v798
      %v836 = vunpack.c.l.b16 %v799
      %v837 = vunpack.c.h.b16 %v799
      %v838 = vunpack.c.l.b16 %v800
      %v839 = vunpack.c.h.b16 %v800
      %v840 = vunpack.c.l.b16 %v801
      %v841 = vunpack.c.h.b16 %v801
      %v842 = vunpack.c.l.b16 %v802
      %v843 = vunpack.c.h.b16 %v802
      %v844 = vunpack.c.l.b16 %v803
      %v845 = vunpack.c.h.b16 %v803
      %v846 = vunpack.c.l.b16 %v804
      %v847 = vunpack.c.h.b16 %v804
      %v848 = vunpack.c.l.b16 %v805
      %v849 = vunpack.c.h.b16 %v805
      %v850 = vunpack.c.l.b16 %v806
      %v851 = vunpack.c.h.b16 %v806
      %v852 = vunpack.c.l.b16 %v807
      %v853 = vunpack.c.h.b16 %v807
      %v854 = vunpack.c.l.b16 %v808
      %v855 = vunpack.c.h.b16 %v808
      %v856 = vunpack.c.l.b16 %v809
      %v857 = vunpack.c.h.b16 %v809
      %v858 = vpack.c.b16 %v826, %v826
      %v859 = vpack.c.b16 %v827, %v827
      %v860 = vpack.c.b16 %v828, %v828
      %v861 = vpack.c.b16 %v829, %v829
      %v862 = vpack.c.b16 %v830, %v830
      %v863 = vpack.c.b16 %v831, %v831
      %v864 = vpack.c.b16 %v832, %v832
      %v865 = vpack.c.b16 %v833, %v833
      %v866 = vpack.c.b16 %v834, %v834
      %v867 = vpack.c.b16 %v835, %v835
      %v868 = vpack.c.b16 %v836, %v836
      %v869 = vpack.c.b16 %v837, %v837
      %v870 = vpack.c.b16 %v838, %v838
      %v871 = vpack.c.b16 %v839, %v839
      %v872 = vpack.c.b16 %v840, %v840
      %v873 = vpack.c.b16 %v841, %v841
      %v874 = vpack.c.b16 %v842, %v842
      %v875 = vpack.c.b16 %v843, %v843
      %v876 = vpack.c.b16 %v844, %v844
      %v877 = vpack.c.b16 %v845, %v845
      %v878 = vpack.c.b16 %v846, %v846
      %v879 = vpack.c.b16 %v847, %v847
      %v880 = vpack.c.b16 %v848, %v848
      %v881 = vpack.c.b16 %v849, %v849
      %v882 = vpack.c.b16 %v850, %v850
      %v883 = vpack.c.b16 %v851, %v851
      %v884 = vpack.c.b16 %v852, %v852
      %v885 = vpack.c.b16 %v853, %v853
      %v886 = vpack.c.b16 %v854, %v854
      %v887 = vpack.c.b16 %v855, %v855
      %v888 = vpack.c.b16 %v856, %v856
      %v889 = vpack.c.b16 %v857, %v857
      %922 = vst [vmem:[%s264] sm:$0xf] %v858
      %923 = vst [vmem:[%s264 + $0x4] sm:$0xf] %v859
      %924 = vst [vmem:[%s264 + $0x8] sm:$0xf] %v860
      %925 = vst [vmem:[%s264 + $0xc] sm:$0xf] %v861
      %926 = vst [vmem:[%s264 + $0x10] sm:$0xf] %v862
      %927 = vst [vmem:[%s264 + $0x14] sm:$0xf] %v863
      %928 = vst [vmem:[%s264 + $0x18] sm:$0xf] %v864
      %929 = vst [vmem:[%s264 + $0x1c] sm:$0xf] %v865
      %930 = vst [vmem:[%s264 + $0x20] sm:$0xf] %v866
      %931 = vst [vmem:[%s264 + $0x24] sm:$0xf] %v867
      %932 = vst [vmem:[%s264 + $0x28] sm:$0xf] %v868
      %933 = vst [vmem:[%s264 + $0x2c] sm:$0xf] %v869
      %934 = vst [vmem:[%s264 + $0x30] sm:$0xf] %v870
      %935 = vst [vmem:[%s264 + $0x34] sm:$0xf] %v871
      %936 = vst [vmem:[%s264 + $0x38] sm:$0xf] %v872
      %937 = vst [vmem:[%s264 + $0x3c] sm:$0xf] %v873
      %938 = vst [vmem:[%s264 + $0x40] sm:$0xf] %v874
      %939 = vst [vmem:[%s264 + $0x44] sm:$0xf] %v875
      %940 = vst [vmem:[%s264 + $0x48] sm:$0xf] %v876
      %941 = vst [vmem:[%s264 + $0x4c] sm:$0xf] %v877
      %942 = vst [vmem:[%s264 + $0x50] sm:$0xf] %v878
      %943 = vst [vmem:[%s264 + $0x54] sm:$0xf] %v879
      %944 = vst [vmem:[%s264 + $0x58] sm:$0xf] %v880
      %945 = vst [vmem:[%s264 + $0x5c] sm:$0xf] %v881
      %946 = vst [vmem:[%s264 + $0x60] sm:$0xf] %v882
      %947 = vst [vmem:[%s264 + $0x64] sm:$0xf] %v883
      %948 = vst [vmem:[%s264 + $0x68] sm:$0xf] %v884
      %949 = vst [vmem:[%s264 + $0x6c] sm:$0xf] %v885
      %950 = vst [vmem:[%s264 + $0x70] sm:$0xf] %v886
      %951 = vst [vmem:[%s264 + $0x74] sm:$0xf] %v887
      %952 = vst [vmem:[%s264 + $0x78] sm:$0xf] %v888
      %953 = vst [vmem:[%s264 + $0x7c] sm:$0xf] %v889
      %s954 = smul.u32 32, %s19
      %p955 = scmp.lt.s32.totalorder %s954, 255
      %s956 = scalar_select %p955, %s954, 255
      %p957 = scmp.lt.s32.totalorder %s20, 0
      %s958 = scalar_select %p957, %s20, 0
      %s959 = sadd.s32 %s958, %s956
      %s960 = smul.addr %s959, 4
      %s961 = scalar_lea.vmem %s4, %s960
      // Predicated region
      $region37: #{discriminator_forward.4} parent=35 // pred_check
        %p962 = pneg %p151
      $region38: #{discriminator_forward.4} parent=35 // pred_check_branch
        %964 = sbr.rel (%p962) target = $region40
      $region39: #{discriminator_forward.4} parent=35 // pred_region
        %s965 = smul.u32 32, %s19
      $region40: #{discriminator_forward.4} parent=35 // pred_fallthru
        _
    $region36: #{discriminator_forward.4} parent=5 // pred_fallthru
      _
    %p966 = scmp.le.s32.totalorder 2, %s10
    // Predicated region
    $region41: #{discriminator_forward.4} parent=5 // pred_check
      %p967 = pneg %p966
    $region42: #{discriminator_forward.4} parent=5 // pred_check_branch
      %969 = sbr.rel (%p967) target = $region44
    $region43: #{discriminator_forward.4} parent=5 // pred_region
      %s970 = ssub.s32 %s10, 2
      // Predicated region
      $region45: #{discriminator_forward.4} parent=43 // pred_check
        %p971 = pneg %p157
      $region46: #{discriminator_forward.4} parent=43 // pred_check_branch
        %973 = sbr.rel (%p971) target = $region48
      $region47: #{discriminator_forward.4} parent=43 // pred_region
        %s974 = smul.u32 32, %s21
        %p975 = scmp.lt.s32.totalorder %s974, 255
        %s976 = scalar_select %p975, %s974, 255
        %p977 = scmp.lt.s32.totalorder %s22, 0
        %s978 = scalar_select %p977, %s22, 0
        %s979 = sadd.s32 %s978, %s976
        %s980 = smul.addr %s979, 4
        %s981 = scalar_lea.vmem %s4, %s980
      $region48: #{discriminator_forward.4} parent=43 // pred_fallthru
        _
    $region44: #{discriminator_forward.4} parent=5 // pred_fallthru
      _
  $region6: #{discriminator_forward.4} parent=0 // loop_footer
    %s14 = sadd.s32 1, %s10
  $region7: #{discriminator_forward.4} parent=0 // loop_footer_branch
    %9 = sbr.rel target = $region3
  $region8: #{discriminator_forward.4} parent=0 // loop_exit
    _

// kernel: discriminator_forward.5
$region0: #{discriminator_forward.5}
  #allocation0 [shape = 'u32[]', space=smem, size = 0x4, offset = 0x4, fixed_abs, tag = 'smem constant byte address 0x4 - core index']
  #allocation1 [shape = 'u32[144,128]{1,0:T(1,128)}', space=vmem, size = 0x12000, scoped, tag = 'internal scratch']
  #allocation2 [shape = 'f32[464,128]{1,0:T(8,128)}', space=vmem, size = 0x3a000, scoped, tag = 'scratch operand']
  %s0 = inlined_call_operand.vmem [shape: bf16[464,1024], index: 0, kind: input, shape index: {}]
  %s1 = inlined_call_operand.vmem [shape: bf16[1024,128], index: 1, kind: input, shape index: {}]
  %s2 = inlined_call_operand.vmem [shape: f32[1,128], index: 2, kind: input, shape index: {}]
  %s3 = inlined_call_operand.vmem [shape: f32[1,128], index: 3, kind: input, shape index: {}]
  %s4 = inlined_call_operand.vmem [shape: bf16[464,128], index: 4, kind: output, shape index: {}]
  %s5 = sld [smem:[#allocation0]]
  $region80: #{discriminator_forward.5} parent=0
    _
  %s7 = ssub.s32 1, %s5
  %s8 = scalar_select 0, %s7, %s5
  $region1: #{discriminator_forward.5} parent=0
    #allocation3 [shape = 'u8[950272]{0}', space=vmem, size = 0xe8000, scoped, tag = 'input window, operand 0']
    loop: start=0, step=1, limit=4
    $region2: #{discriminator_forward.5} parent=1 // loop_pre_header
      _
    $region3: #{discriminator_forward.5} parent=1 // loop_header
      %s10 = sphi 0, %s14
      %p11 = scmp.ge.s32.totalorder %s10, 4
      %s17 = sphi 0, %s29
      %s18 = sphi 0, %s25
      %s19 = sphi 0, %s17
      %s20 = sphi 0, %s18
      %s21 = sphi 0, %s19
      %s22 = sphi 0, %s20
      %s32 = sphi 0, %s34
      %s35 = sphi 0, %s32
      %s36 = sphi 0, %s35
      %s52 = sphi 0, %s36
      %s60 = sphi 0, %s62
      %s63 = sphi 0, %s60
      %s64 = sphi 0, %s63
      %s80 = sphi 0, %s64
      %s86 = sphi 0, %s88
      %s89 = sphi 0, %s86
      %s90 = sphi 0, %s89
      %s106 = sphi 0, %s90
      %s112 = sphi 0, %s114
      %s115 = sphi 0, %s112
      %s116 = sphi 0, %s115
      %s132 = sphi 0, %s116
      %s138 = sphi 0, %s140
      %s141 = sphi 0, %s138
      %s142 = sphi 0, %s141
      %s158 = sphi 0, %s142
    $region4: #{discriminator_forward.5} parent=1 // loop_header_branch
      %13 = sbr.rel (%p11) target = $region8
    $region5: #{discriminator_forward.5} parent=1 // loop_body
      %s15 = ssub.s32 %s10, 1
      %s16 = ssub.s32 %s10, 2
      %s23 = sadd.s32 1, %s18
      %p24 = scmp.ge.s32.totalorder %s23, 2
      %s25 = scalar_select %p24, 0, %s23
      %s26 = sadd.s32 1, %s17
      %s27 = scalar_select %p24, %s26, %s17
      %p28 = scmp.ge.s32.totalorder %s27, 1
      %s29 = scalar_select %p28, 0, %s27
      %s30 = ssub.s32 %s18, %s25
      %p31 = scmp.eq.s32.totalorder %s30, 0
      %s33 = sadd.s32 %s32, 1
      %s34 = scalar_select %p31, %s32, %s33
      %p37 = pneg %p31
      %p38 = scmp.eq.s32.totalorder %s10, 1
      %p39 = por %p37, %p38
      %p40 = scmp.ne.s32.totalorder %s32, %s35
      %p41 = scmp.eq.s32.totalorder %s10, 0
      %p42 = por %p40, %p41
      %p43 = scmp.ne.s32.totalorder %s32, %s35
      %p44 = scmp.eq.s32.totalorder %s15, 1
      %p45 = por %p43, %p44
      %p46 = scmp.ne.s32.totalorder %s35, %s36
      %p47 = scmp.eq.s32.totalorder %s15, 0
      %p48 = por %p46, %p47
      %p49 = scmp.ne.s32.totalorder %s35, %s36
      %p50 = scmp.eq.s32.totalorder %s16, 1
      %p51 = por %p49, %p50
      %p53 = scmp.ne.s32.totalorder %s36, %s52
      %p54 = scmp.eq.s32.totalorder %s16, 0
      %p55 = por %p53, %p54
      %s56 = ssub.s32 %s18, %s25
      %s57 = ssub.s32 %s17, %s29
      %s58 = sor.u32 %s56, %s57
      %p59 = scmp.eq.s32.totalorder %s58, 0
      %s61 = sadd.s32 %s60, 1
      %s62 = scalar_select %p59, %s60, %s61
      %p65 = pneg %p59
      %p66 = scmp.eq.s32.totalorder %s10, 1
      %p67 = por %p65, %p66
      %p68 = scmp.ne.s32.totalorder %s60, %s63
      %p69 = scmp.eq.s32.totalorder %s10, 0
      %p70 = por %p68, %p69
      %p71 = scmp.ne.s32.totalorder %s60, %s63
      %p72 = scmp.eq.s32.totalorder %s15, 1
      %p73 = por %p71, %p72
      %p74 = scmp.ne.s32.totalorder %s63, %s64
      %p75 = scmp.eq.s32.totalorder %s15, 0
      %p76 = por %p74, %p75
      %p77 = scmp.ne.s32.totalorder %s63, %s64
      %p78 = scmp.eq.s32.totalorder %s16, 1
      %p79 = por %p77, %p78
      %p81 = scmp.ne.s32.totalorder %s64, %s80
      %p82 = scmp.eq.s32.totalorder %s16, 0
      %p83 = por %p81, %p82
      %s84 = ssub.s32 %s17, %s29
      %p85 = scmp.eq.s32.totalorder %s84, 0
      %s87 = sadd.s32 %s86, 1
      %s88 = scalar_select %p85, %s86, %s87
      %p91 = pneg %p85
      %p92 = scmp.eq.s32.totalorder %s10, 1
      %p93 = por %p91, %p92
      %p94 = scmp.ne.s32.totalorder %s86, %s89
      %p95 = scmp.eq.s32.totalorder %s10, 0
      %p96 = por %p94, %p95
      %p97 = scmp.ne.s32.totalorder %s86, %s89
      %p98 = scmp.eq.s32.totalorder %s15, 1
      %p99 = por %p97, %p98
      %p100 = scmp.ne.s32.totalorder %s89, %s90
      %p101 = scmp.eq.s32.totalorder %s15, 0
      %p102 = por %p100, %p101
      %p103 = scmp.ne.s32.totalorder %s89, %s90
      %p104 = scmp.eq.s32.totalorder %s16, 1
      %p105 = por %p103, %p104
      %p107 = scmp.ne.s32.totalorder %s90, %s106
      %p108 = scmp.eq.s32.totalorder %s16, 0
      %p109 = por %p107, %p108
      %s110 = ssub.s32 %s17, %s29
      %p111 = scmp.eq.s32.totalorder %s110, 0
      %s113 = sadd.s32 %s112, 1
      %s114 = scalar_select %p111, %s112, %s113
      %p117 = pneg %p111
      %p118 = scmp.eq.s32.totalorder %s10, 1
      %p119 = por %p117, %p118
      %p120 = scmp.ne.s32.totalorder %s112, %s115
      %p121 = scmp.eq.s32.totalorder %s10, 0
      %p122 = por %p120, %p121
      %p123 = scmp.ne.s32.totalorder %s112, %s115
      %p124 = scmp.eq.s32.totalorder %s15, 1
      %p125 = por %p123, %p124
      %p126 = scmp.ne.s32.totalorder %s115, %s116
      %p127 = scmp.eq.s32.totalorder %s15, 0
      %p128 = por %p126, %p127
      %p129 = scmp.ne.s32.totalorder %s115, %s116
      %p130 = scmp.eq.s32.totalorder %s16, 1
      %p131 = por %p129, %p130
      %p133 = scmp.ne.s32.totalorder %s116, %s132
      %p134 = scmp.eq.s32.totalorder %s16, 0
      %p135 = por %p133, %p134
      %s136 = ssub.s32 %s17, %s29
      %p137 = scmp.eq.s32.totalorder %s136, 0
      %s139 = sadd.s32 %s138, 1
      %s140 = scalar_select %p137, %s138, %s139
      %p143 = pneg %p137
      %p144 = scmp.eq.s32.totalorder %s10, 1
      %p145 = por %p143, %p144
      %p146 = scmp.ne.s32.totalorder %s138, %s141
      %p147 = scmp.eq.s32.totalorder %s10, 0
      %p148 = por %p146, %p147
      %p149 = scmp.ne.s32.totalorder %s138, %s141
      %p150 = scmp.eq.s32.totalorder %s15, 1
      %p151 = por %p149, %p150
      %p152 = scmp.ne.s32.totalorder %s141, %s142
      %p153 = scmp.eq.s32.totalorder %s15, 0
      %p154 = por %p152, %p153
      %p155 = scmp.ne.s32.totalorder %s141, %s142
      %p156 = scmp.eq.s32.totalorder %s16, 1
      %p157 = por %p155, %p156
      %p159 = scmp.ne.s32.totalorder %s142, %s158
      %p160 = scmp.eq.s32.totalorder %s16, 0
      %p161 = por %p159, %p160
      %p162 = scmp.le.s32.totalorder 1, %s10
      %p163 = scmp.lt.s32.totalorder %s10, 3
      %p164 = pnand %p162, %p163
      %p165 = pneg %p164
      // Predicated region
      $region9: #{discriminator_forward.5} parent=5 // pred_check
        _
      $region10: #{discriminator_forward.5} parent=5 // pred_check_branch
        %167 = sbr.rel (%p164) target = $region12
      $region11: #{discriminator_forward.5} parent=5 // pred_region
        %s168 = ssub.s32 %s10, 1
        // Predicated region
        $region13: #{discriminator_forward.5} parent=11 // pred_check
          %p169 = pneg %p102
        $region14: #{discriminator_forward.5} parent=11 // pred_check_branch
          %171 = sbr.rel (%p169) target = $region16
        $region15: #{discriminator_forward.5} parent=11 // pred_region
          %p172 = scmp.lt.s32.totalorder %s19, 0
          %s173 = scalar_select %p172, %s19, 0
          %s174 = scalar_lea.vmem %s2, %s173
        $region16: #{discriminator_forward.5} parent=11 // pred_fallthru
          _
        // Predicated region
        $region17: #{discriminator_forward.5} parent=11 // pred_check
          %p175 = pneg %p128
        $region18: #{discriminator_forward.5} parent=11 // pred_check_branch
          %177 = sbr.rel (%p175) target = $region20
        $region19: #{discriminator_forward.5} parent=11 // pred_region
          %p178 = scmp.lt.s32.totalorder %s19, 0
          %s179 = scalar_select %p178, %s19, 0
          %s180 = scalar_lea.vmem %s3, %s179
        $region20: #{discriminator_forward.5} parent=11 // pred_fallthru
          _
      $region12: #{discriminator_forward.5} parent=5 // pred_fallthru
        _
      %p181 = scmp.lt.s32.totalorder %s10, 2
      // Predicated region
      $region21: #{discriminator_forward.5} parent=5 // pred_check
        %p182 = pneg %p181
      $region22: #{discriminator_forward.5} parent=5 // pred_check_branch
        %184 = sbr.rel (%p182) target = $region24
      $region23: #{discriminator_forward.5} parent=5 // pred_region
        // Predicated region
        $region25: #{discriminator_forward.5} parent=23 // pred_check
          %p185 = pneg %p42
        $region26: #{discriminator_forward.5} parent=23 // pred_check_branch
          %187 = sbr.rel (%p185) target = $region28
        $region27: #{discriminator_forward.5} parent=23 // pred_region
          %s188 = sand.u32 %s32, 1
          %s189 = sand.u32 %s32, 1
          %s190 = smul.addr %s189, 928
          %s191 = scalar_lea.vmem [#allocation3], %s190
          %s192 = smul.u32 4, %s18
          %s193 = smul.addr %s192, 4
          %s194 = scalar_lea.vmem %s0, %s193
          // Predicated region
          $region29: #{discriminator_forward.5} parent=27 // pred_check
            _
          $region30: #{discriminator_forward.5} parent=27 // pred_check_branch
            %196 = sbr.rel (0) target = $region32
          $region31: #{discriminator_forward.5} parent=27 // pred_region
            // Predicated region
            $region33: #{discriminator_forward.5} parent=31 // pred_check
              _
            $region34: #{discriminator_forward.5} parent=31 // pred_check_branch
              %198 = sbr.rel (0) target = $region36
            $region35: #{discriminator_forward.5} parent=31 // pred_region
              loop: start=0, step=1, limit=1
              $region37: #{discriminator_forward.5} parent=35 // loop_pre_header
                _
              $region38: #{discriminator_forward.5} parent=35 // loop_header
                %s200 = sphi 0, %s204
                %p201 = scmp.ge.s32.totalorder %s200, 1
                %s205 = sphi %s194, %s194
                %s206 = sphi %s191, %s191
              $region39: #{discriminator_forward.5} parent=35 // loop_header_branch
                %203 = sbr.rel (%p201) target = $region43
              $region40: #{discriminator_forward.5} parent=35 // loop_body
                %v207 = vld [vmem:[%s205] sm:$0xff]
                %208 = vst [vmem:[%s206] sm:$0xff] %v207
                %v209 = vld [vmem:[%s205 + $0x8] sm:$0xff]
                %210 = vst [vmem:[%s206 + $0x8] sm:$0xff] %v209
                %v211 = vld [vmem:[%s205 + $0x20] sm:$0xff]
                %212 = vst [vmem:[%s206 + $0x10] sm:$0xff] %v211
                %v213 = vld [vmem:[%s205 + $0x28] sm:$0xff]
                %214 = vst [vmem:[%s206 + $0x18] sm:$0xff] %v213
                %v215 = vld [vmem:[%s205 + $0x40] sm:$0xff]
                %216 = vst [vmem:[%s206 + $0x20] sm:$0xff] %v215
                %v217 = vld [vmem:[%s205 + $0x48] sm:$0xff]
                %218 = vst [vmem:[%s206 + $0x28] sm:$0xff] %v217
                %v219 = vld [vmem:[%s205 + $0x60] sm:$0xff]
                %220 = vst [vmem:[%s206 + $0x30] sm:$0xff] %v219
                %v221 = vld [vmem:[%s205 + $0x68] sm:$0xff]
                %222 = vst [vmem:[%s206 + $0x38] sm:$0xff] %v221
                %v223 = vld [vmem:[%s205 + $0x80] sm:$0xff]
                %224 = vst [vmem:[%s206 + $0x40] sm:$0xff] %v223
                %v225 = vld [vmem:[%s205 + $0x88] sm:$0xff]
                %226 = vst [vmem:[%s206 + $0x48] sm:$0xff] %v225
                %v227 = vld [vmem:[%s205 + $0xa0] sm:$0xff]
                %228 = vst [vmem:[%s206 + $0x50] sm:$0xff] %v227
                %v229 = vld [vmem:[%s205 + $0xa8] sm:$0xff]
                %230 = vst [vmem:[%s206 + $0x58] sm:$0xff] %v229
                %v231 = vld [vmem:[%s205 + $0xc0] sm:$0xff]
                %232 = vst [vmem:[%s206 + $0x60] sm:$0xff] %v231
                %v233 = vld [vmem:[%s205 + $0xc8] sm:$0xff]
                %234 = vst [vmem:[%s206 + $0x68] sm:$0xff] %v233
                %v235 = vld [vmem:[%s205 + $0xe0] sm:$0xff]
                %236 = vst [vmem:[%s206 + $0x70] sm:$0xff] %v235
                %v237 = vld [vmem:[%s205 + $0xe8] sm:$0xff]
                %238 = vst [vmem:[%s206 + $0x78] sm:$0xff] %v237
                %v239 = vld [vmem:[%s205 + $0x100] sm:$0xff]
                %240 = vst [vmem:[%s206 + $0x80] sm:$0xff] %v239
                %v241 = vld [vmem:[%s205 + $0x108] sm:$0xff]
                %242 = vst [vmem:[%s206 + $0x88] sm:$0xff] %v241
                %v243 = vld [vmem:[%s205 + $0x120] sm:$0xff]
                %244 = vst [vmem:[%s206 + $0x90] sm:$0xff] %v243
                %v245 = vld [vmem:[%s205 + $0x128] sm:$0xff]
                %246 = vst [vmem:[%s206 + $0x98] sm:$0xff] %v245
                %v247 = vld [vmem:[%s205 + $0x140] sm:$0xff]
                %248 = vst [vmem:[%s206 + $0xa0] sm:$0xff] %v247
                %v249 = vld [vmem:[%s205 + $0x148] sm:$0xff]
                %250 = vst [vmem:[%s206 + $0xa8] sm:$0xff] %v249
                %v251 = vld [vmem:[%s205 + $0x160] sm:$0xff]
                %252 = vst [vmem:[%s206 + $0xb0] sm:$0xff] %v251
                %v253 = vld [vmem:[%s205 + $0x168] sm:$0xff]
                %254 = vst [vmem:[%s206 + $0xb8] sm:$0xff] %v253
                %v255 = vld [vmem:[%s205 + $0x180] sm:$0xff]
                %256 = vst [vmem:[%s206 + $0xc0] sm:$0xff] %v255
                %v257 = vld [vmem:[%s205 + $0x188] sm:$0xff]
                %258 = vst [vmem:[%s206 + $0xc8] sm:$0xff] %v257
                %v259 = vld [vmem:[%s205 + $0x1a0] sm:$0xff]
                %260 = vst [vmem:[%s206 + $0xd0] sm:$0xff] %v259
                %v261 = vld [vmem:[%s205 + $0x1a8] sm:$0xff]
                %262 = vst [vmem:[%s206 + $0xd8] sm:$0xff] %v261
                %v263 = vld [vmem:[%s205 + $0x1c0] sm:$0xff]
                %264 = vst [vmem:[%s206 + $0xe0] sm:$0xff] %v263
                %v265 = vld [vmem:[%s205 + $0x1c8] sm:$0xff]
                %266 = vst [vmem:[%s206 + $0xe8] sm:$0xff] %v265
                %v267 = vld [vmem:[%s205 + $0x1e0] sm:$0xff]
                %268 = vst [vmem:[%s206 + $0xf0] sm:$0xff] %v267
                %v269 = vld [vmem:[%s205 + $0x1e8] sm:$0xff]
                %270 = vst [vmem:[%s206 + $0xf8] sm:$0xff] %v269
                %v271 = vld [vmem:[%s205 + $0x200] sm:$0xff]
                %272 = vst [vmem:[%s206 + $0x100] sm:$0xff] %v271
                %v273 = vld [vmem:[%s205 + $0x208] sm:$0xff]
                %274 = vst [vmem:[%s206 + $0x108] sm:$0xff] %v273
                %v275 = vld [vmem:[%s205 + $0x220] sm:$0xff]
                %276 = vst [vmem:[%s206 + $0x110] sm:$0xff] %v275
                %v277 = vld [vmem:[%s205 + $0x228] sm:$0xff]
                %278 = vst [vmem:[%s206 + $0x118] sm:$0xff] %v277
                %v279 = vld [vmem:[%s205 + $0x240] sm:$0xff]
                %280 = vst [vmem:[%s206 + $0x120] sm:$0xff] %v279
                %v281 = vld [vmem:[%s205 + $0x248] sm:$0xff]
                %282 = vst [vmem:[%s206 + $0x128] sm:$0xff] %v281
                %v283 = vld [vmem:[%s205 + $0x260] sm:$0xff]
                %284 = vst [vmem:[%s206 + $0x130] sm:$0xff] %v283
                %v285 = vld [vmem:[%s205 + $0x268] sm:$0xff]
                %286 = vst [vmem:[%s206 + $0x138] sm:$0xff] %v285
                %v287 = vld [vmem:[%s205 + $0x280] sm:$0xff]
                %288 = vst [vmem:[%s206 + $0x140] sm:$0xff] %v287
                %v289 = vld [vmem:[%s205 + $0x288] sm:$0xff]
                %290 = vst [vmem:[%s206 + $0x148] sm:$0xff] %v289
                %v291 = vld [vmem:[%s205 + $0x2a0] sm:$0xff]
                %292 = vst [vmem:[%s206 + $0x150] sm:$0xff] %v291
                %v293 = vld [vmem:[%s205 + $0x2a8] sm:$0xff]
                %294 = vst [vmem:[%s206 + $0x158] sm:$0xff] %v293
                %v295 = vld [vmem:[%s205 + $0x2c0] sm:$0xff]
                %296 = vst [vmem:[%s206 + $0x160] sm:$0xff] %v295
                %v297 = vld [vmem:[%s205 + $0x2c8] sm:$0xff]
                %298 = vst [vmem:[%s206 + $0x168] sm:$0xff] %v297
                %v299 = vld [vmem:[%s205 + $0x2e0] sm:$0xff]
                %300 = vst [vmem:[%s206 + $0x170] sm:$0xff] %v299
                %v301 = vld [vmem:[%s205 + $0x2e8] sm:$0xff]
                %302 = vst [vmem:[%s206 + $0x178] sm:$0xff] %v301
                %v303 = vld [vmem:[%s205 + $0x300] sm:$0xff]
                %304 = vst [vmem:[%s206 + $0x180] sm:$0xff] %v303
                %v305 = vld [vmem:[%s205 + $0x308] sm:$0xff]
                %306 = vst [vmem:[%s206 + $0x188] sm:$0xff] %v305
                %v307 = vld [vmem:[%s205 + $0x320] sm:$0xff]
                %308 = vst [vmem:[%s206 + $0x190] sm:$0xff] %v307
                %v309 = vld [vmem:[%s205 + $0x328] sm:$0xff]
                %310 = vst [vmem:[%s206 + $0x198] sm:$0xff] %v309
                %v311 = vld [vmem:[%s205 + $0x340] sm:$0xff]
                %312 = vst [vmem:[%s206 + $0x1a0] sm:$0xff] %v311
                %v313 = vld [vmem:[%s205 + $0x348] sm:$0xff]
                %314 = vst [vmem:[%s206 + $0x1a8] sm:$0xff] %v313
                %v315 = vld [vmem:[%s205 + $0x360] sm:$0xff]
                %316 = vst [vmem:[%s206 + $0x1b0] sm:$0xff] %v315
                %v317 = vld [vmem:[%s205 + $0x368] sm:$0xff]
                %318 = vst [vmem:[%s206 + $0x1b8] sm:$0xff] %v317
                %v319 = vld [vmem:[%s205 + $0x380] sm:$0xff]
                %320 = vst [vmem:[%s206 + $0x1c0] sm:$0xff] %v319
                %v321 = vld [vmem:[%s205 + $0x388] sm:$0xff]
                %322 = vst [vmem:[%s206 + $0x1c8] sm:$0xff] %v321
                %v323 = vld [vmem:[%s205 + $0x3a0] sm:$0xff]
                %324 = vst [vmem:[%s206 + $0x1d0] sm:$0xff] %v323
                %v325 = vld [vmem:[%s205 + $0x3a8] sm:$0xff]
                %326 = vst [vmem:[%s206 + $0x1d8] sm:$0xff] %v325
                %v327 = vld [vmem:[%s205 + $0x3c0] sm:$0xff]
                %328 = vst [vmem:[%s206 + $0x1e0] sm:$0xff] %v327
                %v329 = vld [vmem:[%s205 + $0x3c8] sm:$0xff]
                %330 = vst [vmem:[%s206 + $0x1e8] sm:$0xff] %v329
                %v331 = vld [vmem:[%s205 + $0x3e0] sm:$0xff]
                %332 = vst [vmem:[%s206 + $0x1f0] sm:$0xff] %v331
                %v333 = vld [vmem:[%s205 + $0x3e8] sm:$0xff]
                %334 = vst [vmem:[%s206 + $0x1f8] sm:$0xff] %v333
                %v335 = vld [vmem:[%s205 + $0x400] sm:$0xff]
                %336 = vst [vmem:[%s206 + $0x200] sm:$0xff] %v335
                %v337 = vld [vmem:[%s205 + $0x408] sm:$0xff]
                %338 = vst [vmem:[%s206 + $0x208] sm:$0xff] %v337
                %v339 = vld [vmem:[%s205 + $0x420] sm:$0xff]
                %340 = vst [vmem:[%s206 + $0x210] sm:$0xff] %v339
                %v341 = vld [vmem:[%s205 + $0x428] sm:$0xff]
                %342 = vst [vmem:[%s206 + $0x218] sm:$0xff] %v341
                %v343 = vld [vmem:[%s205 + $0x440] sm:$0xff]
                %344 = vst [vmem:[%s206 + $0x220] sm:$0xff] %v343
                %v345 = vld [vmem:[%s205 + $0x448] sm:$0xff]
                %346 = vst [vmem:[%s206 + $0x228] sm:$0xff] %v345
                %v347 = vld [vmem:[%s205 + $0x460] sm:$0xff]
                %348 = vst [vmem:[%s206 + $0x230] sm:$0xff] %v347
                %v349 = vld [vmem:[%s205 + $0x468] sm:$0xff]
                %350 = vst [vmem:[%s206 + $0x238] sm:$0xff] %v349
                %v351 = vld [vmem:[%s205 + $0x480] sm:$0xff]
                %352 = vst [vmem:[%s206 + $0x240] sm:$0xff] %v351
                %v353 = vld [vmem:[%s205 + $0x488] sm:$0xff]
                %354 = vst [vmem:[%s206 + $0x248] sm:$0xff] %v353
                %v355 = vld [vmem:[%s205 + $0x4a0] sm:$0xff]
                %356 = vst [vmem:[%s206 + $0x250] sm:$0xff] %v355
                %v357 = vld [vmem:[%s205 + $0x4a8] sm:$0xff]
                %358 = vst [vmem:[%s206 + $0x258] sm:$0xff] %v357
                %v359 = vld [vmem:[%s205 + $0x4c0] sm:$0xff]
                %360 = vst [vmem:[%s206 + $0x260] sm:$0xff] %v359
                %v361 = vld [vmem:[%s205 + $0x4c8] sm:$0xff]
                %362 = vst [vmem:[%s206 + $0x268] sm:$0xff] %v361
                %v363 = vld [vmem:[%s205 + $0x4e0] sm:$0xff]
                %364 = vst [vmem:[%s206 + $0x270] sm:$0xff] %v363
                %v365 = vld [vmem:[%s205 + $0x4e8] sm:$0xff]
                %366 = vst [vmem:[%s206 + $0x278] sm:$0xff] %v365
                %v367 = vld [vmem:[%s205 + $0x500] sm:$0xff]
                %368 = vst [vmem:[%s206 + $0x280] sm:$0xff] %v367
                %v369 = vld [vmem:[%s205 + $0x508] sm:$0xff]
                %370 = vst [vmem:[%s206 + $0x288] sm:$0xff] %v369
                %v371 = vld [vmem:[%s205 + $0x520] sm:$0xff]
                %372 = vst [vmem:[%s206 + $0x290] sm:$0xff] %v371
                %v373 = vld [vmem:[%s205 + $0x528] sm:$0xff]
                %374 = vst [vmem:[%s206 + $0x298] sm:$0xff] %v373
                %v375 = vld [vmem:[%s205 + $0x540] sm:$0xff]
                %376 = vst [vmem:[%s206 + $0x2a0] sm:$0xff] %v375
                %v377 = vld [vmem:[%s205 + $0x548] sm:$0xff]
                %378 = vst [vmem:[%s206 + $0x2a8] sm:$0xff] %v377
                %v379 = vld [vmem:[%s205 + $0x560] sm:$0xff]
                %380 = vst [vmem:[%s206 + $0x2b0] sm:$0xff] %v379
                %v381 = vld [vmem:[%s205 + $0x568] sm:$0xff]
                %382 = vst [vmem:[%s206 + $0x2b8] sm:$0xff] %v381
                %v383 = vld [vmem:[%s205 + $0x580] sm:$0xff]
                %384 = vst [vmem:[%s206 + $0x2c0] sm:$0xff] %v383
                %v385 = vld [vmem:[%s205 + $0x588] sm:$0xff]
                %386 = vst [vmem:[%s206 + $0x2c8] sm:$0xff] %v385
                %v387 = vld [vmem:[%s205 + $0x5a0] sm:$0xff]
                %388 = vst [vmem:[%s206 + $0x2d0] sm:$0xff] %v387
                %v389 = vld [vmem:[%s205 + $0x5a8] sm:$0xff]
                %390 = vst [vmem:[%s206 + $0x2d8] sm:$0xff] %v389
                %v391 = vld [vmem:[%s205 + $0x5c0] sm:$0xff]
                %392 = vst [vmem:[%s206 + $0x2e0] sm:$0xff] %v391
                %v393 = vld [vmem:[%s205 + $0x5c8] sm:$0xff]
                %394 = vst [vmem:[%s206 + $0x2e8] sm:$0xff] %v393
                %v395 = vld [vmem:[%s205 + $0x5e0] sm:$0xff]
                %396 = vst [vmem:[%s206 + $0x2f0] sm:$0xff] %v395
                %v397 = vld [vmem:[%s205 + $0x5e8] sm:$0xff]
                %398 = vst [vmem:[%s206 + $0x2f8] sm:$0xff] %v397
                %v399 = vld [vmem:[%s205 + $0x600] sm:$0xff]
                %400 = vst [vmem:[%s206 + $0x300] sm:$0xff] %v399
                %v401 = vld [vmem:[%s205 + $0x608] sm:$0xff]
                %402 = vst [vmem:[%s206 + $0x308] sm:$0xff] %v401
                %v403 = vld [vmem:[%s205 + $0x620] sm:$0xff]
                %404 = vst [vmem:[%s206 + $0x310] sm:$0xff] %v403
                %v405 = vld [vmem:[%s205 + $0x628] sm:$0xff]
                %406 = vst [vmem:[%s206 + $0x318] sm:$0xff] %v405
                %v407 = vld [vmem:[%s205 + $0x640] sm:$0xff]
                %408 = vst [vmem:[%s206 + $0x320] sm:$0xff] %v407
                %v409 = vld [vmem:[%s205 + $0x648] sm:$0xff]
                %410 = vst [vmem:[%s206 + $0x328] sm:$0xff] %v409
                %v411 = vld [vmem:[%s205 + $0x660] sm:$0xff]
                %412 = vst [vmem:[%s206 + $0x330] sm:$0xff] %v411
                %v413 = vld [vmem:[%s205 + $0x668] sm:$0xff]
                %414 = vst [vmem:[%s206 + $0x338] sm:$0xff] %v413
                %v415 = vld [vmem:[%s205 + $0x680] sm:$0xff]
                %416 = vst [vmem:[%s206 + $0x340] sm:$0xff] %v415
                %v417 = vld [vmem:[%s205 + $0x688] sm:$0xff]
                %418 = vst [vmem:[%s206 + $0x348] sm:$0xff] %v417
                %v419 = vld [vmem:[%s205 + $0x6a0] sm:$0xff]
                %420 = vst [vmem:[%s206 + $0x350] sm:$0xff] %v419
                %v421 = vld [vmem:[%s205 + $0x6a8] sm:$0xff]
                %422 = vst [vmem:[%s206 + $0x358] sm:$0xff] %v421
                %v423 = vld [vmem:[%s205 + $0x6c0] sm:$0xff]
                %424 = vst [vmem:[%s206 + $0x360] sm:$0xff] %v423
                %v425 = vld [vmem:[%s205 + $0x6c8] sm:$0xff]
                %426 = vst [vmem:[%s206 + $0x368] sm:$0xff] %v425
                %v427 = vld [vmem:[%s205 + $0x6e0] sm:$0xff]
                %428 = vst [vmem:[%s206 + $0x370] sm:$0xff] %v427
                %v429 = vld [vmem:[%s205 + $0x6e8] sm:$0xff]
                %430 = vst [vmem:[%s206 + $0x378] sm:$0xff] %v429
                %v431 = vld [vmem:[%s205 + $0x700] sm:$0xff]
                %432 = vst [vmem:[%s206 + $0x380] sm:$0xff] %v431
                %v433 = vld [vmem:[%s205 + $0x708] sm:$0xff]
                %434 = vst [vmem:[%s206 + $0x388] sm:$0xff] %v433
                %v435 = vld [vmem:[%s205 + $0x720] sm:$0xff]
                %436 = vst [vmem:[%s206 + $0x390] sm:$0xff] %v435
                %v437 = vld [vmem:[%s205 + $0x728] sm:$0xff]
                %438 = vst [vmem:[%s206 + $0x398] sm:$0xff] %v437
              $region41: #{discriminator_forward.5} parent=35 // loop_footer
                %s204 = sadd.s32 1, %s200
              $region42: #{discriminator_forward.5} parent=35 // loop_footer_branch
                %199 = sbr.rel target = $region38
              $region43: #{discriminator_forward.5} parent=35 // loop_exit
                _
            $region36: #{discriminator_forward.5} parent=31 // pred_fallthru
              _
            // Predicated region
            $region44: #{discriminator_forward.5} parent=31 // pred_check
              _
            $region45: #{discriminator_forward.5} parent=31 // pred_check_branch
              %440 = sbr.rel target = $region47
            $region46: #{discriminator_forward.5} parent=31 // pred_region
              _
            $region47: #{discriminator_forward.5} parent=31 // pred_fallthru
              _
          $region32: #{discriminator_forward.5} parent=27 // pred_fallthru
            _
          %441 = vnop
        $region28: #{discriminator_forward.5} parent=23 // pred_fallthru
          _
        // Predicated region
        $region48: #{discriminator_forward.5} parent=23 // pred_check
          %p442 = pneg %p70
        $region49: #{discriminator_forward.5} parent=23 // pred_check_branch
          %444 = sbr.rel (%p442) target = $region51
        $region50: #{discriminator_forward.5} parent=23 // pred_region
          %s445 = smul.u32 64, %s18
          %p446 = scmp.lt.s32.totalorder %s445, 127
          %s447 = scalar_select %p446, %s445, 127
          %p448 = scmp.lt.s32.totalorder %s17, 0
          %s449 = scalar_select %p448, %s17, 0
          %s450 = sadd.s32 %s449, %s447
          %s451 = smul.addr %s450, 4
          %s452 = scalar_lea.vmem %s1, %s451
          %s453 = smul.u32 64, %s18
        $region51: #{discriminator_forward.5} parent=23 // pred_fallthru
          _
      $region24: #{discriminator_forward.5} parent=5 // pred_fallthru
        _
      %p454 = scmp.le.s32.totalorder 1, %s10
      %p455 = scmp.lt.s32.totalorder %s10, 3
      %p456 = pnand %p454, %p455
      %p457 = pneg %p456
      // Predicated region
      $region52: #{discriminator_forward.5} parent=5 // pred_check
        _
      $region53: #{discriminator_forward.5} parent=5 // pred_check_branch
        %459 = sbr.rel (%p456) target = $region55
      $region54: #{discriminator_forward.5} parent=5 // pred_region
        %s460 = ssub.s32 %s10, 1
        %s461 = sand.u32 %s35, 1
        %s462 = sand.u32 %s35, 1
        %s463 = smul.addr %s462, 928
        %s464 = scalar_lea.vmem [#allocation3], %s463
        // Predicated region
        $region56: #{discriminator_forward.5} parent=54 // pred_check
          %p465 = pneg %p48
        $region57: #{discriminator_forward.5} parent=54 // pred_check_branch
          %467 = sbr.rel (%p465) target = $region59
        $region58: #{discriminator_forward.5} parent=54 // pred_region
          _
        $region59: #{discriminator_forward.5} parent=54 // pred_fallthru
          _
        %s468 = sand.u32 %s35, 1
        %s469 = sand.u32 %s35, 1
        %s470 = smul.addr %s469, 928
        %s471 = scalar_lea.vmem [#allocation3], %s470
        %p472 = pneg %p48
        %p473 = pneg %p45
        %s474 = smul.u32 64, %s20
        %p475 = scmp.lt.s32.totalorder %s474, 127
        %s476 = scalar_select %p475, %s474, 127
        %p477 = scmp.lt.s32.totalorder %s19, 0
        %s478 = scalar_select %p477, %s19, 0
        %s479 = sadd.s32 %s478, %s476
        %s480 = smul.addr %s479, 4
        %s481 = scalar_lea.vmem %s1, %s480
        %p482 = pneg %p76
        %p483 = pneg %p73
        %p484 = scmp.lt.s32.totalorder %s19, 0
        %s485 = scalar_select %p484, %s19, 0
        %s486 = scalar_lea.vmem %s2, %s485
        %p487 = pneg %p102
        %p488 = pneg %p99
        %p489 = scmp.lt.s32.totalorder %s19, 0
        %s490 = scalar_select %p489, %s19, 0
        %s491 = scalar_lea.vmem %s3, %s490
        %p492 = pneg %p128
        %p493 = pneg %p125
        %p494 = pneg %p154
        %p495 = pneg %p151
        %p496 = scmp.lt.s32.totalorder %s19, 0
        %s497 = scalar_select %p496, %s19, 0
        %s498 = smul.addr %s497, 4
        %s499 = scalar_lea.vmem %s4, %s498
        %s500 = smul.u32 4, %s20
        %s501 = smul.u32 64, %s20
        %p502 = scmp.lt.s32.totalorder %s501, 127
        %s503 = scalar_select %p502, %s501, 127
        %p504 = scmp.lt.s32.totalorder %s19, 0
        %s505 = scalar_select %p504, %s19, 0
        %s506 = sadd.s32 %s505, %s503
        %s507 = smul.addr %s506, 4
        %s508 = scalar_lea.vmem %s1, %s507
        %s509 = smul.u32 64, %s20
        %p510 = scmp.lt.s32.totalorder %s19, 0
        %s511 = scalar_select %p510, %s19, 0
        %s512 = scalar_lea.vmem %s2, %s511
        %p513 = scmp.lt.s32.totalorder %s19, 0
        %s514 = scalar_select %p513, %s19, 0
        %s515 = scalar_lea.vmem %s3, %s514
        %p516 = scmp.lt.s32.totalorder %s19, 0
        %s517 = scalar_select %p516, %s19, 0
        %s518 = smul.addr %s517, 4
        %s519 = scalar_lea.vmem %s4, %s518
        %p521 = scmp.eq.s32.totalorder %s20, 0
        // Predicated region
        $region60: #{discriminator_forward.5} parent=54 // pred_check
          %p522 = pneg %p521
        $region61: #{discriminator_forward.5} parent=54 // pred_check_branch
          %524 = sbr.rel (%p522) target = $region63
        $region62: #{discriminator_forward.5} parent=54 // pred_region
          %525 = vst [vmem:[#allocation2] sm:$0xff] 0.0
          %526 = vst [vmem:[#allocation2 + $0x8] sm:$0xff] 0.0
          %527 = vst [vmem:[#allocation2 + $0x10] sm:$0xff] 0.0
          %528 = vst [vmem:[#allocation2 + $0x18] sm:$0xff] 0.0
          %529 = vst [vmem:[#allocation2 + $0x20] sm:$0xff] 0.0
          %530 = vst [vmem:[#allocation2 + $0x28] sm:$0xff] 0.0
          %531 = vst [vmem:[#allocation2 + $0x30] sm:$0xff] 0.0
          %532 = vst [vmem:[#allocation2 + $0x38] sm:$0xff] 0.0
          %533 = vst [vmem:[#allocation2 + $0x40] sm:$0xff] 0.0
          %534 = vst [vmem:[#allocation2 + $0x48] sm:$0xff] 0.0
          %535 = vst [vmem:[#allocation2 + $0x50] sm:$0xff] 0.0
          %536 = vst [vmem:[#allocation2 + $0x58] sm:$0xff] 0.0
          %537 = vst [vmem:[#allocation2 + $0x60] sm:$0xff] 0.0
          %538 = vst [vmem:[#allocation2 + $0x68] sm:$0xff] 0.0
          %539 = vst [vmem:[#allocation2 + $0x70] sm:$0xff] 0.0
          %540 = vst [vmem:[#allocation2 + $0x78] sm:$0xff] 0.0
          %541 = vst [vmem:[#allocation2 + $0x80] sm:$0xff] 0.0
          %542 = vst [vmem:[#allocation2 + $0x88] sm:$0xff] 0.0
          %543 = vst [vmem:[#allocation2 + $0x90] sm:$0xff] 0.0
          %544 = vst [vmem:[#allocation2 + $0x98] sm:$0xff] 0.0
          %545 = vst [vmem:[#allocation2 + $0xa0] sm:$0xff] 0.0
          %546 = vst [vmem:[#allocation2 + $0xa8] sm:$0xff] 0.0
          %547 = vst [vmem:[#allocation2 + $0xb0] sm:$0xff] 0.0
          %548 = vst [vmem:[#allocation2 + $0xb8] sm:$0xff] 0.0
          %549 = vst [vmem:[#allocation2 + $0xc0] sm:$0xff] 0.0
          %550 = vst [vmem:[#allocation2 + $0xc8] sm:$0xff] 0.0
          %551 = vst [vmem:[#allocation2 + $0xd0] sm:$0xff] 0.0
          %552 = vst [vmem:[#allocation2 + $0xd8] sm:$0xff] 0.0
          %553 = vst [vmem:[#allocation2 + $0xe0] sm:$0xff] 0.0
          %554 = vst [vmem:[#allocation2 + $0xe8] sm:$0xff] 0.0
          %555 = vst [vmem:[#allocation2 + $0xf0] sm:$0xff] 0.0
          %556 = vst [vmem:[#allocation2 + $0xf8] sm:$0xff] 0.0
          %557 = vst [vmem:[#allocation2 + $0x100] sm:$0xff] 0.0
          %558 = vst [vmem:[#allocation2 + $0x108] sm:$0xff] 0.0
          %559 = vst [vmem:[#allocation2 + $0x110] sm:$0xff] 0.0
          %560 = vst [vmem:[#allocation2 + $0x118] sm:$0xff] 0.0
          %561 = vst [vmem:[#allocation2 + $0x120] sm:$0xff] 0.0
          %562 = vst [vmem:[#allocation2 + $0x128] sm:$0xff] 0.0
          %563 = vst [vmem:[#allocation2 + $0x130] sm:$0xff] 0.0
          %564 = vst [vmem:[#allocation2 + $0x138] sm:$0xff] 0.0
          %565 = vst [vmem:[#allocation2 + $0x140] sm:$0xff] 0.0
          %566 = vst [vmem:[#allocation2 + $0x148] sm:$0xff] 0.0
          %567 = vst [vmem:[#allocation2 + $0x150] sm:$0xff] 0.0
          %568 = vst [vmem:[#allocation2 + $0x158] sm:$0xff] 0.0
          %569 = vst [vmem:[#allocation2 + $0x160] sm:$0xff] 0.0
          %570 = vst [vmem:[#allocation2 + $0x168] sm:$0xff] 0.0
          %571 = vst [vmem:[#allocation2 + $0x170] sm:$0xff] 0.0
          %572 = vst [vmem:[#allocation2 + $0x178] sm:$0xff] 0.0
          %573 = vst [vmem:[#allocation2 + $0x180] sm:$0xff] 0.0
          %574 = vst [vmem:[#allocation2 + $0x188] sm:$0xff] 0.0
          %575 = vst [vmem:[#allocation2 + $0x190] sm:$0xff] 0.0
          %576 = vst [vmem:[#allocation2 + $0x198] sm:$0xff] 0.0
          %577 = vst [vmem:[#allocation2 + $0x1a0] sm:$0xff] 0.0
          %578 = vst [vmem:[#allocation2 + $0x1a8] sm:$0xff] 0.0
          %579 = vst [vmem:[#allocation2 + $0x1b0] sm:$0xff] 0.0
          %580 = vst [vmem:[#allocation2 + $0x1b8] sm:$0xff] 0.0
          %581 = vst [vmem:[#allocation2 + $0x1c0] sm:$0xff] 0.0
          %582 = vst [vmem:[#allocation2 + $0x1c8] sm:$0xff] 0.0
        $region63: #{discriminator_forward.5} parent=54 // pred_fallthru
          _
        %v583 = vld [vmem:[#allocation2] sm:$0xff]
        %v584 = vld [vmem:[#allocation2 + $0x8] sm:$0xff]
        %v585 = vld [vmem:[#allocation2 + $0x10] sm:$0xff]
        %v586 = vld [vmem:[#allocation2 + $0x18] sm:$0xff]
        %v587 = vld [vmem:[#allocation2 + $0x20] sm:$0xff]
        %v588 = vld [vmem:[#allocation2 + $0x28] sm:$0xff]
        %v589 = vld [vmem:[#allocation2 + $0x30] sm:$0xff]
        %v590 = vld [vmem:[#allocation2 + $0x38] sm:$0xff]
        %v591 = vld [vmem:[#allocation2 + $0x40] sm:$0xff]
        %v592 = vld [vmem:[#allocation2 + $0x48] sm:$0xff]
        %v593 = vld [vmem:[#allocation2 + $0x50] sm:$0xff]
        %v594 = vld [vmem:[#allocation2 + $0x58] sm:$0xff]
        %v595 = vld [vmem:[#allocation2 + $0x60] sm:$0xff]
        %v596 = vld [vmem:[#allocation2 + $0x68] sm:$0xff]
        %v597 = vld [vmem:[#allocation2 + $0x70] sm:$0xff]
        %v598 = vld [vmem:[#allocation2 + $0x78] sm:$0xff]
        %v599 = vld [vmem:[#allocation2 + $0x80] sm:$0xff]
        %v600 = vld [vmem:[#allocation2 + $0x88] sm:$0xff]
        %v601 = vld [vmem:[#allocation2 + $0x90] sm:$0xff]
        %v602 = vld [vmem:[#allocation2 + $0x98] sm:$0xff]
        %v603 = vld [vmem:[#allocation2 + $0xa0] sm:$0xff]
        %v604 = vld [vmem:[#allocation2 + $0xa8] sm:$0xff]
        %v605 = vld [vmem:[#allocation2 + $0xb0] sm:$0xff]
        %v606 = vld [vmem:[#allocation2 + $0xb8] sm:$0xff]
        %v607 = vld [vmem:[#allocation2 + $0xc0] sm:$0xff]
        %v608 = vld [vmem:[#allocation2 + $0xc8] sm:$0xff]
        %v609 = vld [vmem:[#allocation2 + $0xd0] sm:$0xff]
        %v610 = vld [vmem:[#allocation2 + $0xd8] sm:$0xff]
        %v611 = vld [vmem:[#allocation2 + $0xe0] sm:$0xff]
        %v612 = vld [vmem:[#allocation2 + $0xe8] sm:$0xff]
        %v613 = vld [vmem:[#allocation2 + $0xf0] sm:$0xff]
        %v614 = vld [vmem:[#allocation2 + $0xf8] sm:$0xff]
        %v615 = vld [vmem:[#allocation2 + $0x100] sm:$0xff]
        %v616 = vld [vmem:[#allocation2 + $0x108] sm:$0xff]
        %v617 = vld [vmem:[#allocation2 + $0x110] sm:$0xff]
        %v618 = vld [vmem:[#allocation2 + $0x118] sm:$0xff]
        %v619 = vld [vmem:[#allocation2 + $0x120] sm:$0xff]
        %v620 = vld [vmem:[#allocation2 + $0x128] sm:$0xff]
        %v621 = vld [vmem:[#allocation2 + $0x130] sm:$0xff]
        %v622 = vld [vmem:[#allocation2 + $0x138] sm:$0xff]
        %v623 = vld [vmem:[#allocation2 + $0x140] sm:$0xff]
        %v624 = vld [vmem:[#allocation2 + $0x148] sm:$0xff]
        %v625 = vld [vmem:[#allocation2 + $0x150] sm:$0xff]
        %v626 = vld [vmem:[#allocation2 + $0x158] sm:$0xff]
        %v627 = vld [vmem:[#allocation2 + $0x160] sm:$0xff]
        %v628 = vld [vmem:[#allocation2 + $0x168] sm:$0xff]
        %v629 = vld [vmem:[#allocation2 + $0x170] sm:$0xff]
        %v630 = vld [vmem:[#allocation2 + $0x178] sm:$0xff]
        %v631 = vld [vmem:[#allocation2 + $0x180] sm:$0xff]
        %v632 = vld [vmem:[#allocation2 + $0x188] sm:$0xff]
        %v633 = vld [vmem:[#allocation2 + $0x190] sm:$0xff]
        %v634 = vld [vmem:[#allocation2 + $0x198] sm:$0xff]
        %v635 = vld [vmem:[#allocation2 + $0x1a0] sm:$0xff]
        %v636 = vld [vmem:[#allocation2 + $0x1a8] sm:$0xff]
        %v637 = vld [vmem:[#allocation2 + $0x1b0] sm:$0xff]
        %v638 = vld [vmem:[#allocation2 + $0x1b8] sm:$0xff]
        %v639 = vld [vmem:[#allocation2 + $0x1c0] sm:$0xff]
        %v640 = vld [vmem:[#allocation2 + $0x1c8] sm:$0xff]
        %v641 = vld [vmem:[%s464] sm:$0xff]
        %v642 = vld [vmem:[%s464 + $0x8] sm:$0xff]
        %v643 = vld [vmem:[%s464 + $0x10] sm:$0xff]
        %v644 = vld [vmem:[%s464 + $0x18] sm:$0xff]
        %v645 = vld [vmem:[%s464 + $0x20] sm:$0xff]
        %v646 = vld [vmem:[%s464 + $0x28] sm:$0xff]
        %v647 = vld [vmem:[%s464 + $0x30] sm:$0xff]
        %v648 = vld [vmem:[%s464 + $0x38] sm:$0xff]
        %v649 = vld [vmem:[%s464 + $0x40] sm:$0xff]
        %v650 = vld [vmem:[%s464 + $0x48] sm:$0xff]
        %v651 = vld [vmem:[%s464 + $0x50] sm:$0xff]
        %v652 = vld [vmem:[%s464 + $0x58] sm:$0xff]
        %v653 = vld [vmem:[%s464 + $0x60] sm:$0xff]
        %v654 = vld [vmem:[%s464 + $0x68] sm:$0xff]
        %v655 = vld [vmem:[%s464 + $0x70] sm:$0xff]
        %v656 = vld [vmem:[%s464 + $0x78] sm:$0xff]
        %v657 = vld [vmem:[%s464 + $0x80] sm:$0xff]
        %v658 = vld [vmem:[%s464 + $0x88] sm:$0xff]
        %v659 = vld [vmem:[%s464 + $0x90] sm:$0xff]
        %v660 = vld [vmem:[%s464 + $0x98] sm:$0xff]
        %v661 = vld [vmem:[%s464 + $0xa0] sm:$0xff]
        %v662 = vld [vmem:[%s464 + $0xa8] sm:$0xff]
        %v663 = vld [vmem:[%s464 + $0xb0] sm:$0xff]
        %v664 = vld [vmem:[%s464 + $0xb8] sm:$0xff]
        %v665 = vld [vmem:[%s464 + $0xc0] sm:$0xff]
        %v666 = vld [vmem:[%s464 + $0xc8] sm:$0xff]
        %v667 = vld [vmem:[%s464 + $0xd0] sm:$0xff]
        %v668 = vld [vmem:[%s464 + $0xd8] sm:$0xff]
        %v669 = vld [vmem:[%s464 + $0xe0] sm:$0xff]
        %v670 = vld [vmem:[%s464 + $0xe8] sm:$0xff]
        %v671 = vld [vmem:[%s464 + $0xf0] sm:$0xff]
        %v672 = vld [vmem:[%s464 + $0xf8] sm:$0xff]
        %v673 = vld [vmem:[%s464 + $0x100] sm:$0xff]
        %v674 = vld [vmem:[%s464 + $0x108] sm:$0xff]
        %v675 = vld [vmem:[%s464 + $0x110] sm:$0xff]
        %v676 = vld [vmem:[%s464 + $0x118] sm:$0xff]
        %v677 = vld [vmem:[%s464 + $0x120] sm:$0xff]
        %v678 = vld [vmem:[%s464 + $0x128] sm:$0xff]
        %v679 = vld [vmem:[%s464 + $0x130] sm:$0xff]
        %v680 = vld [vmem:[%s464 + $0x138] sm:$0xff]
        %v681 = vld [vmem:[%s464 + $0x140] sm:$0xff]
        %v682 = vld [vmem:[%s464 + $0x148] sm:$0xff]
        %v683 = vld [vmem:[%s464 + $0x150] sm:$0xff]
        %v684 = vld [vmem:[%s464 + $0x158] sm:$0xff]
        %v685 = vld [vmem:[%s464 + $0x160] sm:$0xff]
        %v686 = vld [vmem:[%s464 + $0x168] sm:$0xff]
        %v687 = vld [vmem:[%s464 + $0x170] sm:$0xff]
        %v688 = vld [vmem:[%s464 + $0x178] sm:$0xff]
        %v689 = vld [vmem:[%s464 + $0x180] sm:$0xff]
        %v690 = vld [vmem:[%s464 + $0x188] sm:$0xff]
        %v691 = vld [vmem:[%s464 + $0x190] sm:$0xff]
        %v692 = vld [vmem:[%s464 + $0x198] sm:$0xff]
        %v693 = vld [vmem:[%s464 + $0x1a0] sm:$0xff]
        %v694 = vld [vmem:[%s464 + $0x1a8] sm:$0xff]
        %v695 = vld [vmem:[%s464 + $0x1b0] sm:$0xff]
        %v696 = vld [vmem:[%s464 + $0x1b8] sm:$0xff]
        %v697 = vld [vmem:[%s464 + $0x1c0] sm:$0xff]
        %v698 = vld [vmem:[%s464 + $0x1c8] sm:$0xff]
        %v699 = vld [vmem:[%s464 + $0x1d0] sm:$0xff]
        %v700 = vld [vmem:[%s464 + $0x1d8] sm:$0xff]
        %v701 = vld [vmem:[%s464 + $0x1e0] sm:$0xff]
        %v702 = vld [vmem:[%s464 + $0x1e8] sm:$0xff]
        %v703 = vld [vmem:[%s464 + $0x1f0] sm:$0xff]
        %v704 = vld [vmem:[%s464 + $0x1f8] sm:$0xff]
        %v705 = vld [vmem:[%s464 + $0x200] sm:$0xff]
        %v706 = vld [vmem:[%s464 + $0x208] sm:$0xff]
        %v707 = vld [vmem:[%s464 + $0x210] sm:$0xff]
        %v708 = vld [vmem:[%s464 + $0x218] sm:$0xff]
        %v709 = vld [vmem:[%s464 + $0x220] sm:$0xff]
        %v710 = vld [vmem:[%s464 + $0x228] sm:$0xff]
        %v711 = vld [vmem:[%s464 + $0x230] sm:$0xff]
        %v712 = vld [vmem:[%s464 + $0x238] sm:$0xff]
        %v713 = vld [vmem:[%s464 + $0x240] sm:$0xff]
        %v714 = vld [vmem:[%s464 + $0x248] sm:$0xff]
        %v715 = vld [vmem:[%s464 + $0x250] sm:$0xff]
        %v716 = vld [vmem:[%s464 + $0x258] sm:$0xff]
        %v717 = vld [vmem:[%s464 + $0x260] sm:$0xff]
        %v718 = vld [vmem:[%s464 + $0x268] sm:$0xff]
        %v719 = vld [vmem:[%s464 + $0x270] sm:$0xff]
        %v720 = vld [vmem:[%s464 + $0x278] sm:$0xff]
        %v721 = vld [vmem:[%s464 + $0x280] sm:$0xff]
        %v722 = vld [vmem:[%s464 + $0x288] sm:$0xff]
        %v723 = vld [vmem:[%s464 + $0x290] sm:$0xff]
        %v724 = vld [vmem:[%s464 + $0x298] sm:$0xff]
        %v725 = vld [vmem:[%s464 + $0x2a0] sm:$0xff]
        %v726 = vld [vmem:[%s464 + $0x2a8] sm:$0xff]
        %v727 = vld [vmem:[%s464 + $0x2b0] sm:$0xff]
        %v728 = vld [vmem:[%s464 + $0x2b8] sm:$0xff]
        %v729 = vld [vmem:[%s464 + $0x2c0] sm:$0xff]
        %v730 = vld [vmem:[%s464 + $0x2c8] sm:$0xff]
        %v731 = vld [vmem:[%s464 + $0x2d0] sm:$0xff]
        %v732 = vld [vmem:[%s464 + $0x2d8] sm:$0xff]
        %v733 = vld [vmem:[%s464 + $0x2e0] sm:$0xff]
        %v734 = vld [vmem:[%s464 + $0x2e8] sm:$0xff]
        %v735 = vld [vmem:[%s464 + $0x2f0] sm:$0xff]
        %v736 = vld [vmem:[%s464 + $0x2f8] sm:$0xff]
        %v737 = vld [vmem:[%s464 + $0x300] sm:$0xff]
        %v738 = vld [vmem:[%s464 + $0x308] sm:$0xff]
        %v739 = vld [vmem:[%s464 + $0x310] sm:$0xff]
        %v740 = vld [vmem:[%s464 + $0x318] sm:$0xff]
        %v741 = vld [vmem:[%s464 + $0x320] sm:$0xff]
        %v742 = vld [vmem:[%s464 + $0x328] sm:$0xff]
        %v743 = vld [vmem:[%s464 + $0x330] sm:$0xff]
        %v744 = vld [vmem:[%s464 + $0x338] sm:$0xff]
        %v745 = vld [vmem:[%s464 + $0x340] sm:$0xff]
        %v746 = vld [vmem:[%s464 + $0x348] sm:$0xff]
        %v747 = vld [vmem:[%s464 + $0x350] sm:$0xff]
        %v748 = vld [vmem:[%s464 + $0x358] sm:$0xff]
        %v749 = vld [vmem:[%s464 + $0x360] sm:$0xff]
        %v750 = vld [vmem:[%s464 + $0x368] sm:$0xff]
        %v751 = vld [vmem:[%s464 + $0x370] sm:$0xff]
        %v752 = vld [vmem:[%s464 + $0x378] sm:$0xff]
        %v753 = vld [vmem:[%s464 + $0x380] sm:$0xff]
        %v754 = vld [vmem:[%s464 + $0x388] sm:$0xff]
        %v755 = vld [vmem:[%s464 + $0x390] sm:$0xff]
        %v756 = vld [vmem:[%s464 + $0x398] sm:$0xff]
        %v757 = vld [vmem:[%s508] sm:$0xf]
        %v758 = vld [vmem:[%s508 + $0x4] sm:$0xf]
        %v759 = vld [vmem:[%s508 + $0x8] sm:$0xf]
        %v760 = vld [vmem:[%s508 + $0xc] sm:$0xf]
        %v761 = vld [vmem:[%s508 + $0x10] sm:$0xf]
        %v762 = vld [vmem:[%s508 + $0x14] sm:$0xf]
        %v763 = vld [vmem:[%s508 + $0x18] sm:$0xf]
        %v764 = vld [vmem:[%s508 + $0x1c] sm:$0xf]
        %v765 = vld [vmem:[%s508 + $0x20] sm:$0xf]
        %v766 = vld [vmem:[%s508 + $0x24] sm:$0xf]
        %v767 = vld [vmem:[%s508 + $0x28] sm:$0xf]
        %v768 = vld [vmem:[%s508 + $0x2c] sm:$0xf]
        %v769 = vld [vmem:[%s508 + $0x30] sm:$0xf]
        %v770 = vld [vmem:[%s508 + $0x34] sm:$0xf]
        %v771 = vld [vmem:[%s508 + $0x38] sm:$0xf]
        %v772 = vld [vmem:[%s508 + $0x3c] sm:$0xf]
        %v773 = vld [vmem:[%s508 + $0x40] sm:$0xf]
        %v774 = vld [vmem:[%s508 + $0x44] sm:$0xf]
        %v775 = vld [vmem:[%s508 + $0x48] sm:$0xf]
        %v776 = vld [vmem:[%s508 + $0x4c] sm:$0xf]
        %v777 = vld [vmem:[%s508 + $0x50] sm:$0xf]
        %v778 = vld [vmem:[%s508 + $0x54] sm:$0xf]
        %v779 = vld [vmem:[%s508 + $0x58] sm:$0xf]
        %v780 = vld [vmem:[%s508 + $0x5c] sm:$0xf]
        %v781 = vld [vmem:[%s508 + $0x60] sm:$0xf]
        %v782 = vld [vmem:[%s508 + $0x64] sm:$0xf]
        %v783 = vld [vmem:[%s508 + $0x68] sm:$0xf]
        %v784 = vld [vmem:[%s508 + $0x6c] sm:$0xf]
        %v785 = vld [vmem:[%s508 + $0x70] sm:$0xf]
        %v786 = vld [vmem:[%s508 + $0x74] sm:$0xf]
        %v787 = vld [vmem:[%s508 + $0x78] sm:$0xf]
        %v788 = vld [vmem:[%s508 + $0x7c] sm:$0xf]
        %v789 = vld [vmem:[%s508 + $0x80] sm:$0xf]
        %v790 = vld [vmem:[%s508 + $0x84] sm:$0xf]
        %v791 = vld [vmem:[%s508 + $0x88] sm:$0xf]
        %v792 = vld [vmem:[%s508 + $0x8c] sm:$0xf]
        %v793 = vld [vmem:[%s508 + $0x90] sm:$0xf]
        %v794 = vld [vmem:[%s508 + $0x94] sm:$0xf]
        %v795 = vld [vmem:[%s508 + $0x98] sm:$0xf]
        %v796 = vld [vmem:[%s508 + $0x9c] sm:$0xf]
        %v797 = vld [vmem:[%s508 + $0xa0] sm:$0xf]
        %v798 = vld [vmem:[%s508 + $0xa4] sm:$0xf]
        %v799 = vld [vmem:[%s508 + $0xa8] sm:$0xf]
        %v800 = vld [vmem:[%s508 + $0xac] sm:$0xf]
        %v801 = vld [vmem:[%s508 + $0xb0] sm:$0xf]
        %v802 = vld [vmem:[%s508 + $0xb4] sm:$0xf]
        %v803 = vld [vmem:[%s508 + $0xb8] sm:$0xf]
        %v804 = vld [vmem:[%s508 + $0xbc] sm:$0xf]
        %v805 = vld [vmem:[%s508 + $0xc0] sm:$0xf]
        %v806 = vld [vmem:[%s508 + $0xc4] sm:$0xf]
        %v807 = vld [vmem:[%s508 + $0xc8] sm:$0xf]
        %v808 = vld [vmem:[%s508 + $0xcc] sm:$0xf]
        %v809 = vld [vmem:[%s508 + $0xd0] sm:$0xf]
        %v810 = vld [vmem:[%s508 + $0xd4] sm:$0xf]
        %v811 = vld [vmem:[%s508 + $0xd8] sm:$0xf]
        %v812 = vld [vmem:[%s508 + $0xdc] sm:$0xf]
        %v813 = vld [vmem:[%s508 + $0xe0] sm:$0xf]
        %v814 = vld [vmem:[%s508 + $0xe4] sm:$0xf]
        %v815 = vld [vmem:[%s508 + $0xe8] sm:$0xf]
        %v816 = vld [vmem:[%s508 + $0xec] sm:$0xf]
        %v817 = vld [vmem:[%s508 + $0xf0] sm:$0xf]
        %v818 = vld [vmem:[%s508 + $0xf4] sm:$0xf]
        %v819 = vld [vmem:[%s508 + $0xf8] sm:$0xf]
        %v820 = vld [vmem:[%s508 + $0xfc] sm:$0xf]
        %v937 = vunpack.c.l.b16 %v641
        %v938 = vunpack.c.h.b16 %v641
        %v939 = vunpack.c.l.b16 %v642
        %v940 = vunpack.c.h.b16 %v642
        %v941 = vunpack.c.l.b16 %v643
        %v942 = vunpack.c.h.b16 %v643
        %v943 = vunpack.c.l.b16 %v644
        %v944 = vunpack.c.h.b16 %v644
        %v945 = vunpack.c.l.b16 %v645
        %v946 = vunpack.c.h.b16 %v645
        %v947 = vunpack.c.l.b16 %v646
        %v948 = vunpack.c.h.b16 %v646
        %v949 = vunpack.c.l.b16 %v647
        %v950 = vunpack.c.h.b16 %v647
        %v951 = vunpack.c.l.b16 %v648
        %v952 = vunpack.c.h.b16 %v648
        %v953 = vunpack.c.l.b16 %v649
        %v954 = vunpack.c.h.b16 %v649
        %v955 = vunpack.c.l.b16 %v650
        %v956 = vunpack.c.h.b16 %v650
        %v957 = vunpack.c.l.b16 %v651
        %v958 = vunpack.c.h.b16 %v651
        %v959 = vunpack.c.l.b16 %v652
        %v960 = vunpack.c.h.b16 %v652
        %v961 = vunpack.c.l.b16 %v653
        %v962 = vunpack.c.h.b16 %v653
        %v963 = vunpack.c.l.b16 %v654
        %v964 = vunpack.c.h.b16 %v654
        %v965 = vunpack.c.l.b16 %v655
        %v966 = vunpack.c.h.b16 %v655
        %v967 = vunpack.c.l.b16 %v656
        %v968 = vunpack.c.h.b16 %v656
        %v969 = vunpack.c.l.b16 %v657
        %v970 = vunpack.c.h.b16 %v657
        %v971 = vunpack.c.l.b16 %v658
        %v972 = vunpack.c.h.b16 %v658
        %v973 = vunpack.c.l.b16 %v659
        %v974 = vunpack.c.h.b16 %v659
        %v975 = vunpack.c.l.b16 %v660
        %v976 = vunpack.c.h.b16 %v660
        %v977 = vunpack.c.l.b16 %v661
        %v978 = vunpack.c.h.b16 %v661
        %v979 = vunpack.c.l.b16 %v662
        %v980 = vunpack.c.h.b16 %v662
        %v981 = vunpack.c.l.b16 %v663
        %v982 = vunpack.c.h.b16 %v663
        %v983 = vunpack.c.l.b16 %v664
        %v984 = vunpack.c.h.b16 %v664
        %v985 = vunpack.c.l.b16 %v665
        %v986 = vunpack.c.h.b16 %v665
        %v987 = vunpack.c.l.b16 %v666
        %v988 = vunpack.c.h.b16 %v666
        %v989 = vunpack.c.l.b16 %v667
        %v990 = vunpack.c.h.b16 %v667
        %v991 = vunpack.c.l.b16 %v668
        %v992 = vunpack.c.h.b16 %v668
        %v993 = vunpack.c.l.b16 %v669
        %v994 = vunpack.c.h.b16 %v669
        %v995 = vunpack.c.l.b16 %v670
        %v996 = vunpack.c.h.b16 %v670
        %v997 = vunpack.c.l.b16 %v671
        %v998 = vunpack.c.h.b16 %v671
        %v999 = vunpack.c.l.b16 %v672
        %v1000 = vunpack.c.h.b16 %v672
        %v1001 = vunpack.c.l.b16 %v673
        %v1002 = vunpack.c.h.b16 %v673
        %v1003 = vunpack.c.l.b16 %v674
        %v1004 = vunpack.c.h.b16 %v674
        %v1005 = vunpack.c.l.b16 %v675
        %v1006 = vunpack.c.h.b16 %v675
        %v1007 = vunpack.c.l.b16 %v676
        %v1008 = vunpack.c.h.b16 %v676
        %v1009 = vunpack.c.l.b16 %v677
        %v1010 = vunpack.c.h.b16 %v677
        %v1011 = vunpack.c.l.b16 %v678
        %v1012 = vunpack.c.h.b16 %v678
        %v1013 = vunpack.c.l.b16 %v679
        %v1014 = vunpack.c.h.b16 %v679
        %v1015 = vunpack.c.l.b16 %v680
        %v1016 = vunpack.c.h.b16 %v680
        %v1017 = vunpack.c.l.b16 %v681
        %v1018 = vunpack.c.h.b16 %v681
        %v1019 = vunpack.c.l.b16 %v682
        %v1020 = vunpack.c.h.b16 %v682
        %v1021 = vunpack.c.l.b16 %v683
        %v1022 = vunpack.c.h.b16 %v683
        %v1023 = vunpack.c.l.b16 %v684
        %v1024 = vunpack.c.h.b16 %v684
        %v1025 = vunpack.c.l.b16 %v685
        %v1026 = vunpack.c.h.b16 %v685
        %v1027 = vunpack.c.l.b16 %v686
        %v1028 = vunpack.c.h.b16 %v686
        %v1029 = vunpack.c.l.b16 %v687
        %v1030 = vunpack.c.h.b16 %v687
        %v1031 = vunpack.c.l.b16 %v688
        %v1032 = vunpack.c.h.b16 %v688
        %v1033 = vunpack.c.l.b16 %v689
        %v1034 = vunpack.c.h.b16 %v689
        %v1035 = vunpack.c.l.b16 %v690
        %v1036 = vunpack.c.h.b16 %v690
        %v1037 = vunpack.c.l.b16 %v691
        %v1038 = vunpack.c.h.b16 %v691
        %v1039 = vunpack.c.l.b16 %v692
        %v1040 = vunpack.c.h.b16 %v692
        %v1041 = vunpack.c.l.b16 %v693
        %v1042 = vunpack.c.h.b16 %v693
        %v1043 = vunpack.c.l.b16 %v694
        %v1044 = vunpack.c.h.b16 %v694
        %v1045 = vunpack.c.l.b16 %v695
        %v1046 = vunpack.c.h.b16 %v695
        %v1047 = vunpack.c.l.b16 %v696
        %v1048 = vunpack.c.h.b16 %v696
        %v1049 = vunpack.c.l.b16 %v697
        %v1050 = vunpack.c.h.b16 %v697
        %v1051 = vunpack.c.l.b16 %v698
        %v1052 = vunpack.c.h.b16 %v698
        %v1053 = vunpack.c.l.b16 %v699
        %v1054 = vunpack.c.h.b16 %v699
        %v1055 = vunpack.c.l.b16 %v700
        %v1056 = vunpack.c.h.b16 %v700
        %v1057 = vunpack.c.l.b16 %v701
        %v1058 = vunpack.c.h.b16 %v701
        %v1059 = vunpack.c.l.b16 %v702
        %v1060 = vunpack.c.h.b16 %v702
        %v1061 = vunpack.c.l.b16 %v703
        %v1062 = vunpack.c.h.b16 %v703
        %v1063 = vunpack.c.l.b16 %v704
        %v1064 = vunpack.c.h.b16 %v704
        %v1065 = vunpack.c.l.b16 %v705
        %v1066 = vunpack.c.h.b16 %v705
        %v1067 = vunpack.c.l.b16 %v706
        %v1068 = vunpack.c.h.b16 %v706
        %v1069 = vunpack.c.l.b16 %v707
        %v1070 = vunpack.c.h.b16 %v707
        %v1071 = vunpack.c.l.b16 %v708
        %v1072 = vunpack.c.h.b16 %v708
        %v1073 = vunpack.c.l.b16 %v709
        %v1074 = vunpack.c.h.b16 %v709
        %v1075 = vunpack.c.l.b16 %v710
        %v1076 = vunpack.c.h.b16 %v710
        %v1077 = vunpack.c.l.b16 %v711
        %v1078 = vunpack.c.h.b16 %v711
        %v1079 = vunpack.c.l.b16 %v712
        %v1080 = vunpack.c.h.b16 %v712
        %v1081 = vunpack.c.l.b16 %v713
        %v1082 = vunpack.c.h.b16 %v713
        %v1083 = vunpack.c.l.b16 %v714
        %v1084 = vunpack.c.h.b16 %v714
        %v1085 = vunpack.c.l.b16 %v715
        %v1086 = vunpack.c.h.b16 %v715
        %v1087 = vunpack.c.l.b16 %v716
        %v1088 = vunpack.c.h.b16 %v716
        %v1089 = vunpack.c.l.b16 %v717
        %v1090 = vunpack.c.h.b16 %v717
        %v1091 = vunpack.c.l.b16 %v718
        %v1092 = vunpack.c.h.b16 %v718
        %v1093 = vunpack.c.l.b16 %v719
        %v1094 = vunpack.c.h.b16 %v719
        %v1095 = vunpack.c.l.b16 %v720
        %v1096 = vunpack.c.h.b16 %v720
        %v1097 = vunpack.c.l.b16 %v721
        %v1098 = vunpack.c.h.b16 %v721
        %v1099 = vunpack.c.l.b16 %v722
        %v1100 = vunpack.c.h.b16 %v722
        %v1101 = vunpack.c.l.b16 %v723
        %v1102 = vunpack.c.h.b16 %v723
        %v1103 = vunpack.c.l.b16 %v724
        %v1104 = vunpack.c.h.b16 %v724
        %v1105 = vunpack.c.l.b16 %v725
        %v1106 = vunpack.c.h.b16 %v725
        %v1107 = vunpack.c.l.b16 %v726
        %v1108 = vunpack.c.h.b16 %v726
        %v1109 = vunpack.c.l.b16 %v727
        %v1110 = vunpack.c.h.b16 %v727
        %v1111 = vunpack.c.l.b16 %v728
        %v1112 = vunpack.c.h.b16 %v728
        %v1113 = vunpack.c.l.b16 %v729
        %v1114 = vunpack.c.h.b16 %v729
        %v1115 = vunpack.c.l.b16 %v730
        %v1116 = vunpack.c.h.b16 %v730
        %v1117 = vunpack.c.l.b16 %v731
        %v1118 = vunpack.c.h.b16 %v731
        %v1119 = vunpack.c.l.b16 %v732
        %v1120 = vunpack.c.h.b16 %v732
        %v1121 = vunpack.c.l.b16 %v733
        %v1122 = vunpack.c.h.b16 %v733
        %v1123 = vunpack.c.l.b16 %v734
        %v1124 = vunpack.c.h.b16 %v734
        %v1125 = vunpack.c.l.b16 %v735
        %v1126 = vunpack.c.h.b16 %v735
        %v1127 = vunpack.c.l.b16 %v736
        %v1128 = vunpack.c.h.b16 %v736
        %v1129 = vunpack.c.l.b16 %v737
        %v1130 = vunpack.c.h.b16 %v737
        %v1131 = vunpack.c.l.b16 %v738
        %v1132 = vunpack.c.h.b16 %v738
        %v1133 = vunpack.c.l.b16 %v739
        %v1134 = vunpack.c.h.b16 %v739
        %v1135 = vunpack.c.l.b16 %v740
        %v1136 = vunpack.c.h.b16 %v740
        %v1137 = vunpack.c.l.b16 %v741
        %v1138 = vunpack.c.h.b16 %v741
        %v1139 = vunpack.c.l.b16 %v742
        %v1140 = vunpack.c.h.b16 %v742
        %v1141 = vunpack.c.l.b16 %v743
        %v1142 = vunpack.c.h.b16 %v743
        %v1143 = vunpack.c.l.b16 %v744
        %v1144 = vunpack.c.h.b16 %v744
        %v1145 = vunpack.c.l.b16 %v745
        %v1146 = vunpack.c.h.b16 %v745
        %v1147 = vunpack.c.l.b16 %v746
        %v1148 = vunpack.c.h.b16 %v746
        %v1149 = vunpack.c.l.b16 %v747
        %v1150 = vunpack.c.h.b16 %v747
        %v1151 = vunpack.c.l.b16 %v748
        %v1152 = vunpack.c.h.b16 %v748
        %v1153 = vunpack.c.l.b16 %v749
        %v1154 = vunpack.c.h.b16 %v749
        %v1155 = vunpack.c.l.b16 %v750
        %v1156 = vunpack.c.h.b16 %v750
        %v1157 = vunpack.c.l.b16 %v751
        %v1158 = vunpack.c.h.b16 %v751
        %v1159 = vunpack.c.l.b16 %v752
        %v1160 = vunpack.c.h.b16 %v752
        %v1161 = vunpack.c.l.b16 %v753
        %v1162 = vunpack.c.h.b16 %v753
        %v1163 = vunpack.c.l.b16 %v754
        %v1164 = vunpack.c.h.b16 %v754
        %v1165 = vunpack.c.l.b16 %v755
        %v1166 = vunpack.c.h.b16 %v755
        %v1167 = vunpack.c.l.b16 %v756
        %v1168 = vunpack.c.h.b16 %v756
        %v1169 = vpack.c.b16 %v941, %v937
        %v1170 = vpack.c.b16 %v942, %v938
        %v1171 = vpack.c.b16 %v943, %v939
        %v1172 = vpack.c.b16 %v944, %v940
        %v1173 = vpack.c.b16 %v949, %v945
        %v1174 = vpack.c.b16 %v950, %v946
        %v1175 = vpack.c.b16 %v951, %v947
        %v1176 = vpack.c.b16 %v952, %v948
        %v1177 = vpack.c.b16 %v957, %v953
        %v1178 = vpack.c.b16 %v958, %v954
        %v1179 = vpack.c.b16 %v959, %v955
        %v1180 = vpack.c.b16 %v960, %v956
        %v1181 = vpack.c.b16 %v965, %v961
        %v1182 = vpack.c.b16 %v966, %v962
        %v1183 = vpack.c.b16 %v967, %v963
        %v1184 = vpack.c.b16 %v968, %v964
        %v1185 = vpack.c.b16 %v973, %v969
        %v1186 = vpack.c.b16 %v974, %v970
        %v1187 = vpack.c.b16 %v975, %v971
        %v1188 = vpack.c.b16 %v976, %v972
        %v1189 = vpack.c.b16 %v981, %v977
        %v1190 = vpack.c.b16 %v982, %v978
        %v1191 = vpack.c.b16 %v983, %v979
        %v1192 = vpack.c.b16 %v984, %v980
        %v1193 = vpack.c.b16 %v989, %v985
        %v1194 = vpack.c.b16 %v990, %v986
        %v1195 = vpack.c.b16 %v991, %v987
        %v1196 = vpack.c.b16 %v992, %v988
        %v1197 = vpack.c.b16 %v997, %v993
        %v1198 = vpack.c.b16 %v998, %v994
        %v1199 = vpack.c.b16 %v999, %v995
        %v1200 = vpack.c.b16 %v1000, %v996
        %v1201 = vpack.c.b16 %v1005, %v1001
        %v1202 = vpack.c.b16 %v1006, %v1002
        %v1203 = vpack.c.b16 %v1007, %v1003
        %v1204 = vpack.c.b16 %v1008, %v1004
        %v1205 = vpack.c.b16 %v1013, %v1009
        %v1206 = vpack.c.b16 %v1014, %v1010
        %v1207 = vpack.c.b16 %v1015, %v1011
        %v1208 = vpack.c.b16 %v1016, %v1012
        %v1209 = vpack.c.b16 %v1021, %v1017
        %v1210 = vpack.c.b16 %v1022, %v1018
        %v1211 = vpack.c.b16 %v1023, %v1019
        %v1212 = vpack.c.b16 %v1024, %v1020
        %v1213 = vpack.c.b16 %v1029, %v1025
        %v1214 = vpack.c.b16 %v1030, %v1026
        %v1215 = vpack.c.b16 %v1031, %v1027
        %v1216 = vpack.c.b16 %v1032, %v1028
        %v1217 = vpack.c.b16 %v1037, %v1033
        %v1218 = vpack.c.b16 %v1038, %v1034
        %v1219 = vpack.c.b16 %v1039, %v1035
        %v1220 = vpack.c.b16 %v1040, %v1036
        %v1221 = vpack.c.b16 %v1045, %v1041
        %v1222 = vpack.c.b16 %v1046, %v1042
        %v1223 = vpack.c.b16 %v1047, %v1043
        %v1224 = vpack.c.b16 %v1048, %v1044
        %v1225 = vpack.c.b16 %v1053, %v1049
        %v1226 = vpack.c.b16 %v1054, %v1050
        %v1227 = vpack.c.b16 %v1055, %v1051
        %v1228 = vpack.c.b16 %v1056, %v1052
        %v1229 = vpack.c.b16 %v1061, %v1057
        %v1230 = vpack.c.b16 %v1062, %v1058
        %v1231 = vpack.c.b16 %v1063, %v1059
        %v1232 = vpack.c.b16 %v1064, %v1060
        %v1233 = vpack.c.b16 %v1069, %v1065
        %v1234 = vpack.c.b16 %v1070, %v1066
        %v1235 = vpack.c.b16 %v1071, %v1067
        %v1236 = vpack.c.b16 %v1072, %v1068
        %v1237 = vpack.c.b16 %v1077, %v1073
        %v1238 = vpack.c.b16 %v1078, %v1074
        %v1239 = vpack.c.b16 %v1079, %v1075
        %v1240 = vpack.c.b16 %v1080, %v1076
        %v1241 = vpack.c.b16 %v1085, %v1081
        %v1242 = vpack.c.b16 %v1086, %v1082
        %v1243 = vpack.c.b16 %v1087, %v1083
        %v1244 = vpack.c.b16 %v1088, %v1084
        %v1245 = vpack.c.b16 %v1093, %v1089
        %v1246 = vpack.c.b16 %v1094, %v1090
        %v1247 = vpack.c.b16 %v1095, %v1091
        %v1248 = vpack.c.b16 %v1096, %v1092
        %v1249 = vpack.c.b16 %v1101, %v1097
        %v1250 = vpack.c.b16 %v1102, %v1098
        %v1251 = vpack.c.b16 %v1103, %v1099
        %v1252 = vpack.c.b16 %v1104, %v1100
        %v1253 = vpack.c.b16 %v1109, %v1105
        %v1254 = vpack.c.b16 %v1110, %v1106
        %v1255 = vpack.c.b16 %v1111, %v1107
        %v1256 = vpack.c.b16 %v1112, %v1108
        %v1257 = vpack.c.b16 %v1117, %v1113
        %v1258 = vpack.c.b16 %v1118, %v1114
        %v1259 = vpack.c.b16 %v1119, %v1115
        %v1260 = vpack.c.b16 %v1120, %v1116
        %v1261 = vpack.c.b16 %v1125, %v1121
        %v1262 = vpack.c.b16 %v1126, %v1122
        %v1263 = vpack.c.b16 %v1127, %v1123
        %v1264 = vpack.c.b16 %v1128, %v1124
        %v1265 = vpack.c.b16 %v1133, %v1129
        %v1266 = vpack.c.b16 %v1134, %v1130
        %v1267 = vpack.c.b16 %v1135, %v1131
        %v1268 = vpack.c.b16 %v1136, %v1132
        %v1269 = vpack.c.b16 %v1141, %v1137
        %v1270 = vpack.c.b16 %v1142, %v1138
        %v1271 = vpack.c.b16 %v1143, %v1139
        %v1272 = vpack.c.b16 %v1144, %v1140
        %v1273 = vpack.c.b16 %v1149, %v1145
        %v1274 = vpack.c.b16 %v1150, %v1146
        %v1275 = vpack.c.b16 %v1151, %v1147
        %v1276 = vpack.c.b16 %v1152, %v1148
        %v1277 = vpack.c.b16 %v1157, %v1153
        %v1278 = vpack.c.b16 %v1158, %v1154
        %v1279 = vpack.c.b16 %v1159, %v1155
        %v1280 = vpack.c.b16 %v1160, %v1156
        %v1281 = vpack.c.b16 %v1165, %v1161
        %v1282 = vpack.c.b16 %v1166, %v1162
        %v1283 = vpack.c.b16 %v1167, %v1163
        %v1284 = vpack.c.b16 %v1168, %v1164
        %v1465 = vunpack.c.l.b16 %v757
        %v1466 = vunpack.c.l.b16 %v758
        %v1467 = vunpack.c.l.b16 %v759
        %v1468 = vunpack.c.l.b16 %v760
        %v1469 = vunpack.c.l.b16 %v761
        %v1470 = vunpack.c.l.b16 %v762
        %v1471 = vunpack.c.l.b16 %v763
        %v1472 = vunpack.c.l.b16 %v764
        %v1473 = vunpack.c.l.b16 %v765
        %v1474 = vunpack.c.l.b16 %v766
        %v1475 = vunpack.c.l.b16 %v767
        %v1476 = vunpack.c.l.b16 %v768
        %v1477 = vunpack.c.l.b16 %v769
        %v1478 = vunpack.c.l.b16 %v770
        %v1479 = vunpack.c.l.b16 %v771
        %v1480 = vunpack.c.l.b16 %v772
        %v1481 = vunpack.c.l.b16 %v773
        %v1482 = vunpack.c.l.b16 %v774
        %v1483 = vunpack.c.l.b16 %v775
        %v1484 = vunpack.c.l.b16 %v776
        %v1485 = vunpack.c.l.b16 %v777
        %v1486 = vunpack.c.l.b16 %v778
        %v1487 = vunpack.c.l.b16 %v779
        %v1488 = vunpack.c.l.b16 %v780
        %v1489 = vunpack.c.l.b16 %v781
        %v1490 = vunpack.c.l.b16 %v782
        %v1491 = vunpack.c.l.b16 %v783
        %v1492 = vunpack.c.l.b16 %v784
        %v1493 = vunpack.c.l.b16 %v785
        %v1494 = vunpack.c.l.b16 %v786
        %v1495 = vunpack.c.l.b16 %v787
        %v1496 = vunpack.c.l.b16 %v788
        %v1497 = vunpack.c.l.b16 %v789
        %v1498 = vunpack.c.l.b16 %v790
        %v1499 = vunpack.c.l.b16 %v791
        %v1500 = vunpack.c.l.b16 %v792
        %v1501 = vunpack.c.l.b16 %v793
        %v1502 = vunpack.c.l.b16 %v794
        %v1503 = vunpack.c.l.b16 %v795
        %v1504 = vunpack.c.l.b16 %v796
        %v1505 = vunpack.c.l.b16 %v797
        %v1506 = vunpack.c.l.b16 %v798
        %v1507 = vunpack.c.l.b16 %v799
        %v1508 = vunpack.c.l.b16 %v800
        %v1509 = vunpack.c.l.b16 %v801
        %v1510 = vunpack.c.l.b16 %v802
        %v1511 = vunpack.c.l.b16 %v803
        %v1512 = vunpack.c.l.b16 %v804
        %v1513 = vunpack.c.l.b16 %v805
        %v1514 = vunpack.c.l.b16 %v806
        %v1515 = vunpack.c.l.b16 %v807
        %v1516 = vunpack.c.l.b16 %v808
        %v1517 = vunpack.c.l.b16 %v809
        %v1518 = vunpack.c.l.b16 %v810
        %v1519 = vunpack.c.l.b16 %v811
        %v1520 = vunpack.c.l.b16 %v812
        %v1521 = vunpack.c.l.b16 %v813
        %v1522 = vunpack.c.l.b16 %v814
        %v1523 = vunpack.c.l.b16 %v815
        %v1524 = vunpack.c.l.b16 %v816
        %v1525 = vunpack.c.l.b16 %v817
        %v1526 = vunpack.c.l.b16 %v818
        %v1527 = vunpack.c.l.b16 %v819
        %v1528 = vunpack.c.l.b16 %v820
        %v1529 = vpack.c.b16 %v1466, %v1465
        %v1530 = vpack.c.b16 %v1468, %v1467
        %v1531 = vpack.c.b16 %v1470, %v1469
        %v1532 = vpack.c.b16 %v1472, %v1471
        %v1533 = vpack.c.b16 %v1474, %v1473
        %v1534 = vpack.c.b16 %v1476, %v1475
        %v1535 = vpack.c.b16 %v1478, %v1477
        %v1536 = vpack.c.b16 %v1480, %v1479
        %v1537 = vpack.c.b16 %v1482, %v1481
        %v1538 = vpack.c.b16 %v1484, %v1483
        %v1539 = vpack.c.b16 %v1486, %v1485
        %v1540 = vpack.c.b16 %v1488, %v1487
        %v1541 = vpack.c.b16 %v1490, %v1489
        %v1542 = vpack.c.b16 %v1492, %v1491
        %v1543 = vpack.c.b16 %v1494, %v1493
        %v1544 = vpack.c.b16 %v1496, %v1495
        %v1545 = vpack.c.b16 %v1498, %v1497
        %v1546 = vpack.c.b16 %v1500, %v1499
        %v1547 = vpack.c.b16 %v1502, %v1501
        %v1548 = vpack.c.b16 %v1504, %v1503
        %v1549 = vpack.c.b16 %v1506, %v1505
        %v1550 = vpack.c.b16 %v1508, %v1507
        %v1551 = vpack.c.b16 %v1510, %v1509
        %v1552 = vpack.c.b16 %v1512, %v1511
        %v1553 = vpack.c.b16 %v1514, %v1513
        %v1554 = vpack.c.b16 %v1516, %v1515
        %v1555 = vpack.c.b16 %v1518, %v1517
        %v1556 = vpack.c.b16 %v1520, %v1519
        %v1557 = vpack.c.b16 %v1522, %v1521
        %v1558 = vpack.c.b16 %v1524, %v1523
        %v1559 = vpack.c.b16 %v1526, %v1525
        %v1560 = vpack.c.b16 %v1528, %v1527
        %1593 = vmatprep.subr.bf16.mxu0 0
        %1594 = vmatpush1.bf16.msra.mxu0 %v1536
        %1595 = vmatprep.subr.bf16.mxu0 0
        %1596 = vmatpush1.bf16.msra.mxu0 %v1535
        %1597 = vmatprep.subr.bf16.mxu0 0
        %1598 = vmatpush1.bf16.msra.mxu0 %v1534
        %1599 = vmatprep.subr.bf16.mxu0 0
        %1600 = vmatpush1.bf16.msra.mxu0 %v1533
        %1601 = vmatprep.subr.bf16.mxu0 0
        %1602 = vmatpush1.bf16.msra.mxu0 %v1532
        %1603 = vmatprep.subr.bf16.mxu0 0
        %1604 = vmatpush1.bf16.msra.mxu0 %v1531
        %1605 = vmatprep.subr.bf16.mxu0 0
        %1606 = vmatpush1.bf16.msra.mxu0 %v1530
        %1607 = vmatprep.subr.bf16.mxu0 0
        %1608 = vmatpush1.bf16.msra.mxu0 %v1529
        %1609 = vmatprep.subr.bf16.mxu0 0
        %1610 = vmatpush2.bf16.msra.mxu0 %v1544
        %1611 = vmatprep.subr.bf16.mxu0 0
        %1612 = vmatpush2.bf16.msra.mxu0 %v1543
        %1613 = vmatprep.subr.bf16.mxu0 0
        %1614 = vmatpush2.bf16.msra.mxu0 %v1542
        %1615 = vmatprep.subr.bf16.mxu0 0
        %1616 = vmatpush2.bf16.msra.mxu0 %v1541
        %1617 = vmatprep.subr.bf16.mxu0 0
        %1618 = vmatpush2.bf16.msra.mxu0 %v1540
        %1619 = vmatprep.subr.bf16.mxu0 0
        %1620 = vmatpush2.bf16.msra.mxu0 %v1539
        %1621 = vmatprep.subr.bf16.mxu0 0
        %1622 = vmatpush2.bf16.msra.mxu0 %v1538
        %1623 = vmatprep.subr.bf16.mxu0 0
        %1624 = vmatpush2.bf16.msra.mxu0 %v1537
        %1625 = vmatprep.mubr.bf16.mxu0 %v1170
        %1626 = vmatmul.mubr.bf16.gmra.mxu0 %v1169
        %v1627 = vpop.f32.mrf.mxu0
        %v1628 = vadd.f32 0.0, %v1627
        %v1629 = vpop.f32.mrf.mxu0
        %v1630 = vpop.f32.mrf.mxu0
        %v1631 = vadd.f32 0.0, %v1630
        %v1632 = vpop.f32.mrf.mxu0
        %1633 = vmatprep.mubr.bf16.mxu0 %v1174
        %1634 = vmatmul.mubr.bf16.gmra.mxu0 %v1173
        %v1635 = vpop.f32.mrf.mxu0
        %v1636 = vadd.f32 0.0, %v1635
        %v1637 = vpop.f32.mrf.mxu0
        %v1638 = vpop.f32.mrf.mxu0
        %v1639 = vadd.f32 0.0, %v1638
        %v1640 = vpop.f32.mrf.mxu0
        %1641 = vmatprep.mubr.bf16.mxu0 %v1178
        %1642 = vmatmul.mubr.bf16.gmra.mxu0 %v1177
        %v1643 = vpop.f32.mrf.mxu0
        %v1644 = vadd.f32 0.0, %v1643
        %v1645 = vpop.f32.mrf.mxu0
        %v1646 = vpop.f32.mrf.mxu0
        %v1647 = vadd.f32 0.0, %v1646
        %v1648 = vpop.f32.mrf.mxu0
        %1649 = vmatprep.mubr.bf16.mxu0 %v1182
        %1650 = vmatmul.mubr.bf16.gmra.mxu0 %v1181
        %v1651 = vpop.f32.mrf.mxu0
        %v1652 = vadd.f32 0.0, %v1651
        %v1653 = vpop.f32.mrf.mxu0
        %v1654 = vpop.f32.mrf.mxu0
        %v1655 = vadd.f32 0.0, %v1654
        %v1656 = vpop.f32.mrf.mxu0
        %1657 = vmatprep.mubr.bf16.mxu0 %v1186
        %1658 = vmatmul.mubr.bf16.gmra.mxu0 %v1185
        %v1659 = vpop.f32.mrf.mxu0
        %v1660 = vadd.f32 0.0, %v1659
        %v1661 = vpop.f32.mrf.mxu0
        %v1662 = vpop.f32.mrf.mxu0
        %v1663 = vadd.f32 0.0, %v1662
        %v1664 = vpop.f32.mrf.mxu0
        %1665 = vmatprep.mubr.bf16.mxu0 %v1190
        %1666 = vmatmul.mubr.bf16.gmra.mxu0 %v1189
        %v1667 = vpop.f32.mrf.mxu0
        %v1668 = vadd.f32 0.0, %v1667
        %v1669 = vpop.f32.mrf.mxu0
        %v1670 = vpop.f32.mrf.mxu0
        %v1671 = vadd.f32 0.0, %v1670
        %v1672 = vpop.f32.mrf.mxu0
        %1673 = vmatprep.mubr.bf16.mxu0 %v1194
        %1674 = vmatmul.mubr.bf16.gmra.mxu0 %v1193
        %v1675 = vpop.f32.mrf.mxu0
        %v1676 = vadd.f32 0.0, %v1675
        %v1677 = vpop.f32.mrf.mxu0
        %v1678 = vpop.f32.mrf.mxu0
        %v1679 = vadd.f32 0.0, %v1678
        %v1680 = vpop.f32.mrf.mxu0
        %1681 = vmatprep.mubr.bf16.mxu0 %v1198
        %1682 = vmatmul.mubr.bf16.gmra.mxu0 %v1197
        %v1683 = vpop.f32.mrf.mxu0
        %v1684 = vadd.f32 0.0, %v1683
        %v1685 = vpop.f32.mrf.mxu0
        %v1686 = vpop.f32.mrf.mxu0
        %v1687 = vadd.f32 0.0, %v1686
        %v1688 = vpop.f32.mrf.mxu0
        %1689 = vmatprep.mubr.bf16.mxu0 %v1202
        %1690 = vmatmul.mubr.bf16.gmra.mxu0 %v1201
        %v1691 = vpop.f32.mrf.mxu0
        %v1692 = vadd.f32 0.0, %v1691
        %v1693 = vpop.f32.mrf.mxu0
        %v1694 = vpop.f32.mrf.mxu0
        %v1695 = vadd.f32 0.0, %v1694
        %v1696 = vpop.f32.mrf.mxu0
        %1697 = vmatprep.mubr.bf16.mxu0 %v1206
        %1698 = vmatmul.mubr.bf16.gmra.mxu0 %v1205
        %v1699 = vpop.f32.mrf.mxu0
        %v1700 = vadd.f32 0.0, %v1699
        %v1701 = vpop.f32.mrf.mxu0
        %v1702 = vpop.f32.mrf.mxu0
        %v1703 = vadd.f32 0.0, %v1702
        %v1704 = vpop.f32.mrf.mxu0
        %1705 = vmatprep.mubr.bf16.mxu0 %v1210
        %1706 = vmatmul.mubr.bf16.gmra.mxu0 %v1209
        %v1707 = vpop.f32.mrf.mxu0
        %v1708 = vadd.f32 0.0, %v1707
        %v1709 = vpop.f32.mrf.mxu0
        %v1710 = vpop.f32.mrf.mxu0
        %v1711 = vadd.f32 0.0, %v1710
        %v1712 = vpop.f32.mrf.mxu0
        %1713 = vmatprep.mubr.bf16.mxu0 %v1214
        %1714 = vmatmul.mubr.bf16.gmra.mxu0 %v1213
        %v1715 = vpop.f32.mrf.mxu0
        %v1716 = vadd.f32 0.0, %v1715
        %v1717 = vpop.f32.mrf.mxu0
        %v1718 = vpop.f32.mrf.mxu0
        %v1719 = vadd.f32 0.0, %v1718
        %v1720 = vpop.f32.mrf.mxu0
        %1721 = vmatprep.mubr.bf16.mxu0 %v1218
        %1722 = vmatmul.mubr.bf16.gmra.mxu0 %v1217
        %v1723 = vpop.f32.mrf.mxu0
        %v1724 = vadd.f32 0.0, %v1723
        %v1725 = vpop.f32.mrf.mxu0
        %v1726 = vpop.f32.mrf.mxu0
        %v1727 = vadd.f32 0.0, %v1726
        %v1728 = vpop.f32.mrf.mxu0
        %1729 = vmatprep.mubr.bf16.mxu0 %v1222
        %1730 = vmatmul.mubr.bf16.gmra.mxu0 %v1221
        %v1731 = vpop.f32.mrf.mxu0
        %v1732 = vadd.f32 0.0, %v1731
        %v1733 = vpop.f32.mrf.mxu0
        %v1734 = vpop.f32.mrf.mxu0
        %v1735 = vadd.f32 0.0, %v1734
        %v1736 = vpop.f32.mrf.mxu0
        %1737 = vmatprep.mubr.bf16.mxu0 %v1226
        %1738 = vmatmul.mubr.bf16.gmra.mxu0 %v1225
        %v1739 = vpop.f32.mrf.mxu0
        %v1740 = vadd.f32 0.0, %v1739
        %v1741 = vpop.f32.mrf.mxu0
        %v1742 = vpop.f32.mrf.mxu0
        %v1743 = vadd.f32 0.0, %v1742
        %v1744 = vpop.f32.mrf.mxu0
        %1745 = vmatprep.mubr.bf16.mxu0 %v1230
        %1746 = vmatmul.mubr.bf16.gmra.mxu0 %v1229
        %v1747 = vpop.f32.mrf.mxu0
        %v1748 = vadd.f32 0.0, %v1747
        %v1749 = vpop.f32.mrf.mxu0
        %v1750 = vpop.f32.mrf.mxu0
        %v1751 = vadd.f32 0.0, %v1750
        %v1752 = vpop.f32.mrf.mxu0
        %1753 = vmatprep.mubr.bf16.mxu0 %v1234
        %1754 = vmatmul.mubr.bf16.gmra.mxu0 %v1233
        %v1755 = vpop.f32.mrf.mxu0
        %v1756 = vadd.f32 0.0, %v1755
        %v1757 = vpop.f32.mrf.mxu0
        %v1758 = vpop.f32.mrf.mxu0
        %v1759 = vadd.f32 0.0, %v1758
        %v1760 = vpop.f32.mrf.mxu0
        %1761 = vmatprep.mubr.bf16.mxu0 %v1238
        %1762 = vmatmul.mubr.bf16.gmra.mxu0 %v1237
        %v1763 = vpop.f32.mrf.mxu0
        %v1764 = vadd.f32 0.0, %v1763
        %v1765 = vpop.f32.mrf.mxu0
        %v1766 = vpop.f32.mrf.mxu0
        %v1767 = vadd.f32 0.0, %v1766
        %v1768 = vpop.f32.mrf.mxu0
        %1769 = vmatprep.mubr.bf16.mxu0 %v1242
        %1770 = vmatmul.mubr.bf16.gmra.mxu0 %v1241
        %v1771 = vpop.f32.mrf.mxu0
        %v1772 = vadd.f32 0.0, %v1771
        %v1773 = vpop.f32.mrf.mxu0
        %v1774 = vpop.f32.mrf.mxu0
        %v1775 = vadd.f32 0.0, %v1774
        %v1776 = vpop.f32.mrf.mxu0
        %1777 = vmatprep.mubr.bf16.mxu0 %v1246
        %1778 = vmatmul.mubr.bf16.gmra.mxu0 %v1245
        %v1779 = vpop.f32.mrf.mxu0
        %v1780 = vadd.f32 0.0, %v1779
        %v1781 = vpop.f32.mrf.mxu0
        %v1782 = vpop.f32.mrf.mxu0
        %v1783 = vadd.f32 0.0, %v1782
        %v1784 = vpop.f32.mrf.mxu0
        %1785 = vmatprep.mubr.bf16.mxu0 %v1250
        %1786 = vmatmul.mubr.bf16.gmra.mxu0 %v1249
        %v1787 = vpop.f32.mrf.mxu0
        %v1788 = vadd.f32 0.0, %v1787
        %v1789 = vpop.f32.mrf.mxu0
        %v1790 = vpop.f32.mrf.mxu0
        %v1791 = vadd.f32 0.0, %v1790
        %v1792 = vpop.f32.mrf.mxu0
        %1793 = vmatprep.mubr.bf16.mxu0 %v1254
        %1794 = vmatmul.mubr.bf16.gmra.mxu0 %v1253
        %v1795 = vpop.f32.mrf.mxu0
        %v1796 = vadd.f32 0.0, %v1795
        %v1797 = vpop.f32.mrf.mxu0
        %v1798 = vpop.f32.mrf.mxu0
        %v1799 = vadd.f32 0.0, %v1798
        %v1800 = vpop.f32.mrf.mxu0
        %1801 = vmatprep.mubr.bf16.mxu0 %v1258
        %1802 = vmatmul.mubr.bf16.gmra.mxu0 %v1257
        %v1803 = vpop.f32.mrf.mxu0
        %v1804 = vadd.f32 0.0, %v1803
        %v1805 = vpop.f32.mrf.mxu0
        %v1806 = vpop.f32.mrf.mxu0
        %v1807 = vadd.f32 0.0, %v1806
        %v1808 = vpop.f32.mrf.mxu0
        %1809 = vmatprep.mubr.bf16.mxu0 %v1262
        %1810 = vmatmul.mubr.bf16.gmra.mxu0 %v1261
        %v1811 = vpop.f32.mrf.mxu0
        %v1812 = vadd.f32 0.0, %v1811
        %v1813 = vpop.f32.mrf.mxu0
        %v1814 = vpop.f32.mrf.mxu0
        %v1815 = vadd.f32 0.0, %v1814
        %v1816 = vpop.f32.mrf.mxu0
        %1817 = vmatprep.mubr.bf16.mxu0 %v1266
        %1818 = vmatmul.mubr.bf16.gmra.mxu0 %v1265
        %v1819 = vpop.f32.mrf.mxu0
        %v1820 = vadd.f32 0.0, %v1819
        %v1821 = vpop.f32.mrf.mxu0
        %v1822 = vpop.f32.mrf.mxu0
        %v1823 = vadd.f32 0.0, %v1822
        %v1824 = vpop.f32.mrf.mxu0
        %1825 = vmatprep.mubr.bf16.mxu0 %v1270
        %1826 = vmatmul.mubr.bf16.gmra.mxu0 %v1269
        %v1827 = vpop.f32.mrf.mxu0
        %v1828 = vadd.f32 0.0, %v1827
        %v1829 = vpop.f32.mrf.mxu0
        %v1830 = vpop.f32.mrf.mxu0
        %v1831 = vadd.f32 0.0, %v1830
        %v1832 = vpop.f32.mrf.mxu0
        %1833 = vmatprep.mubr.bf16.mxu0 %v1274
        %1834 = vmatmul.mubr.bf16.gmra.mxu0 %v1273
        %v1835 = vpop.f32.mrf.mxu0
        %v1836 = vadd.f32 0.0, %v1835
        %v1837 = vpop.f32.mrf.mxu0
        %v1838 = vpop.f32.mrf.mxu0
        %v1839 = vadd.f32 0.0, %v1838
        %v1840 = vpop.f32.mrf.mxu0
        %1841 = vmatprep.mubr.bf16.mxu0 %v1278
        %1842 = vmatmul.mubr.bf16.gmra.mxu0 %v1277
        %v1843 = vpop.f32.mrf.mxu0
        %v1844 = vadd.f32 0.0, %v1843
        %v1845 = vpop.f32.mrf.mxu0
        %v1846 = vpop.f32.mrf.mxu0
        %v1847 = vadd.f32 0.0, %v1846
        %v1848 = vpop.f32.mrf.mxu0
        %1849 = vmatprep.mubr.bf16.mxu0 %v1282
        %1850 = vmatmul.mubr.bf16.gmra.mxu0 %v1281
        %v1851 = vpop.f32.mrf.mxu0
        %v1852 = vadd.f32 0.0, %v1851
        %v1853 = vpop.f32.mrf.mxu0
        %v1854 = vpop.f32.mrf.mxu0
        %v1855 = vadd.f32 0.0, %v1854
        %v1856 = vpop.f32.mrf.mxu0
        %1857 = vdwg.mxu0
        %1858 = vmatprep.subr.bf16.mxu0 0
        %1859 = vmatpush1.bf16.msra.mxu0 %v1552
        %1860 = vmatprep.subr.bf16.mxu0 0
        %1861 = vmatpush1.bf16.msra.mxu0 %v1551
        %1862 = vmatprep.subr.bf16.mxu0 0
        %1863 = vmatpush1.bf16.msra.mxu0 %v1550
        %1864 = vmatprep.subr.bf16.mxu0 0
        %1865 = vmatpush1.bf16.msra.mxu0 %v1549
        %1866 = vmatprep.subr.bf16.mxu0 0
        %1867 = vmatpush1.bf16.msra.mxu0 %v1548
        %1868 = vmatprep.subr.bf16.mxu0 0
        %1869 = vmatpush1.bf16.msra.mxu0 %v1547
        %1870 = vmatprep.subr.bf16.mxu0 0
        %1871 = vmatpush1.bf16.msra.mxu0 %v1546
        %1872 = vmatprep.subr.bf16.mxu0 0
        %1873 = vmatpush1.bf16.msra.mxu0 %v1545
        %1874 = vmatprep.subr.bf16.mxu0 0
        %1875 = vmatpush2.bf16.msra.mxu0 %v1560
        %1876 = vmatprep.subr.bf16.mxu0 0
        %1877 = vmatpush2.bf16.msra.mxu0 %v1559
        %1878 = vmatprep.subr.bf16.mxu0 0
        %1879 = vmatpush2.bf16.msra.mxu0 %v1558
        %1880 = vmatprep.subr.bf16.mxu0 0
        %1881 = vmatpush2.bf16.msra.mxu0 %v1557
        %1882 = vmatprep.subr.bf16.mxu0 0
        %1883 = vmatpush2.bf16.msra.mxu0 %v1556
        %1884 = vmatprep.subr.bf16.mxu0 0
        %1885 = vmatpush2.bf16.msra.mxu0 %v1555
        %1886 = vmatprep.subr.bf16.mxu0 0
        %1887 = vmatpush2.bf16.msra.mxu0 %v1554
        %1888 = vmatprep.subr.bf16.mxu0 0
        %1889 = vmatpush2.bf16.msra.mxu0 %v1553
        %1890 = vmatprep.mubr.bf16.mxu0 %v1172
        %1891 = vmatmul.mubr.bf16.gmra.mxu0 %v1171
        %v1892 = vpop.f32.mrf.mxu0
        %v1893 = vadd.f32 %v1628, %v1892
        %v1894 = vpop.f32.mrf.mxu0
        %v1895 = vpop.f32.mrf.mxu0
        %v1896 = vadd.f32 %v1631, %v1895
        %v1897 = vpop.f32.mrf.mxu0
        %1898 = vmatprep.mubr.bf16.mxu0 %v1176
        %1899 = vmatmul.mubr.bf16.gmra.mxu0 %v1175
        %v1900 = vpop.f32.mrf.mxu0
        %v1901 = vadd.f32 %v1636, %v1900
        %v1902 = vpop.f32.mrf.mxu0
        %v1903 = vpop.f32.mrf.mxu0
        %v1904 = vadd.f32 %v1639, %v1903
        %v1905 = vpop.f32.mrf.mxu0
        %1906 = vmatprep.mubr.bf16.mxu0 %v1180
        %1907 = vmatmul.mubr.bf16.gmra.mxu0 %v1179
        %v1908 = vpop.f32.mrf.mxu0
        %v1909 = vadd.f32 %v1644, %v1908
        %v1910 = vpop.f32.mrf.mxu0
        %v1911 = vpop.f32.mrf.mxu0
        %v1912 = vadd.f32 %v1647, %v1911
        %v1913 = vpop.f32.mrf.mxu0
        %1914 = vmatprep.mubr.bf16.mxu0 %v1184
        %1915 = vmatmul.mubr.bf16.gmra.mxu0 %v1183
        %v1916 = vpop.f32.mrf.mxu0
        %v1917 = vadd.f32 %v1652, %v1916
        %v1918 = vpop.f32.mrf.mxu0
        %v1919 = vpop.f32.mrf.mxu0
        %v1920 = vadd.f32 %v1655, %v1919
        %v1921 = vpop.f32.mrf.mxu0
        %1922 = vmatprep.mubr.bf16.mxu0 %v1188
        %1923 = vmatmul.mubr.bf16.gmra.mxu0 %v1187
        %v1924 = vpop.f32.mrf.mxu0
        %v1925 = vadd.f32 %v1660, %v1924
        %v1926 = vpop.f32.mrf.mxu0
        %v1927 = vpop.f32.mrf.mxu0
        %v1928 = vadd.f32 %v1663, %v1927
        %v1929 = vpop.f32.mrf.mxu0
        %1930 = vmatprep.mubr.bf16.mxu0 %v1192
        %1931 = vmatmul.mubr.bf16.gmra.mxu0 %v1191
        %v1932 = vpop.f32.mrf.mxu0
        %v1933 = vadd.f32 %v1668, %v1932
        %v1934 = vpop.f32.mrf.mxu0
        %v1935 = vpop.f32.mrf.mxu0
        %v1936 = vadd.f32 %v1671, %v1935
        %v1937 = vpop.f32.mrf.mxu0
        %1938 = vmatprep.mubr.bf16.mxu0 %v1196
        %1939 = vmatmul.mubr.bf16.gmra.mxu0 %v1195
        %v1940 = vpop.f32.mrf.mxu0
        %v1941 = vadd.f32 %v1676, %v1940
        %v1942 = vpop.f32.mrf.mxu0
        %v1943 = vpop.f32.mrf.mxu0
        %v1944 = vadd.f32 %v1679, %v1943
        %v1945 = vpop.f32.mrf.mxu0
        %1946 = vmatprep.mubr.bf16.mxu0 %v1200
        %1947 = vmatmul.mubr.bf16.gmra.mxu0 %v1199
        %v1948 = vpop.f32.mrf.mxu0
        %v1949 = vadd.f32 %v1684, %v1948
        %v1950 = vpop.f32.mrf.mxu0
        %v1951 = vpop.f32.mrf.mxu0
        %v1952 = vadd.f32 %v1687, %v1951
        %v1953 = vpop.f32.mrf.mxu0
        %1954 = vmatprep.mubr.bf16.mxu0 %v1204
        %1955 = vmatmul.mubr.bf16.gmra.mxu0 %v1203
        %v1956 = vpop.f32.mrf.mxu0
        %v1957 = vadd.f32 %v1692, %v1956
        %v1958 = vpop.f32.mrf.mxu0
        %v1959 = vpop.f32.mrf.mxu0
        %v1960 = vadd.f32 %v1695, %v1959
        %v1961 = vpop.f32.mrf.mxu0
        %1962 = vmatprep.mubr.bf16.mxu0 %v1208
        %1963 = vmatmul.mubr.bf16.gmra.mxu0 %v1207
        %v1964 = vpop.f32.mrf.mxu0
        %v1965 = vadd.f32 %v1700, %v1964
        %v1966 = vpop.f32.mrf.mxu0
        %v1967 = vpop.f32.mrf.mxu0
        %v1968 = vadd.f32 %v1703, %v1967
        %v1969 = vpop.f32.mrf.mxu0
        %1970 = vmatprep.mubr.bf16.mxu0 %v1212
        %1971 = vmatmul.mubr.bf16.gmra.mxu0 %v1211
        %v1972 = vpop.f32.mrf.mxu0
        %v1973 = vadd.f32 %v1708, %v1972
        %v1974 = vpop.f32.mrf.mxu0
        %v1975 = vpop.f32.mrf.mxu0
        %v1976 = vadd.f32 %v1711, %v1975
        %v1977 = vpop.f32.mrf.mxu0
        %1978 = vmatprep.mubr.bf16.mxu0 %v1216
        %1979 = vmatmul.mubr.bf16.gmra.mxu0 %v1215
        %v1980 = vpop.f32.mrf.mxu0
        %v1981 = vadd.f32 %v1716, %v1980
        %v1982 = vpop.f32.mrf.mxu0
        %v1983 = vpop.f32.mrf.mxu0
        %v1984 = vadd.f32 %v1719, %v1983
        %v1985 = vpop.f32.mrf.mxu0
        %1986 = vmatprep.mubr.bf16.mxu0 %v1220
        %1987 = vmatmul.mubr.bf16.gmra.mxu0 %v1219
        %v1988 = vpop.f32.mrf.mxu0
        %v1989 = vadd.f32 %v1724, %v1988
        %v1990 = vpop.f32.mrf.mxu0
        %v1991 = vpop.f32.mrf.mxu0
        %v1992 = vadd.f32 %v1727, %v1991
        %v1993 = vpop.f32.mrf.mxu0
        %1994 = vmatprep.mubr.bf16.mxu0 %v1224
        %1995 = vmatmul.mubr.bf16.gmra.mxu0 %v1223
        %v1996 = vpop.f32.mrf.mxu0
        %v1997 = vadd.f32 %v1732, %v1996
        %v1998 = vpop.f32.mrf.mxu0
        %v1999 = vpop.f32.mrf.mxu0
        %v2000 = vadd.f32 %v1735, %v1999
        %v2001 = vpop.f32.mrf.mxu0
        %2002 = vmatprep.mubr.bf16.mxu0 %v1228
        %2003 = vmatmul.mubr.bf16.gmra.mxu0 %v1227
        %v2004 = vpop.f32.mrf.mxu0
        %v2005 = vadd.f32 %v1740, %v2004
        %v2006 = vpop.f32.mrf.mxu0
        %v2007 = vpop.f32.mrf.mxu0
        %v2008 = vadd.f32 %v1743, %v2007
        %v2009 = vpop.f32.mrf.mxu0
        %2010 = vmatprep.mubr.bf16.mxu0 %v1232
        %2011 = vmatmul.mubr.bf16.gmra.mxu0 %v1231
        %v2012 = vpop.f32.mrf.mxu0
        %v2013 = vadd.f32 %v1748, %v2012
        %v2014 = vpop.f32.mrf.mxu0
        %v2015 = vpop.f32.mrf.mxu0
        %v2016 = vadd.f32 %v1751, %v2015
        %v2017 = vpop.f32.mrf.mxu0
        %2018 = vmatprep.mubr.bf16.mxu0 %v1236
        %2019 = vmatmul.mubr.bf16.gmra.mxu0 %v1235
        %v2020 = vpop.f32.mrf.mxu0
        %v2021 = vadd.f32 %v1756, %v2020
        %v2022 = vpop.f32.mrf.mxu0
        %v2023 = vpop.f32.mrf.mxu0
        %v2024 = vadd.f32 %v1759, %v2023
        %v2025 = vpop.f32.mrf.mxu0
        %2026 = vmatprep.mubr.bf16.mxu0 %v1240
        %2027 = vmatmul.mubr.bf16.gmra.mxu0 %v1239
        %v2028 = vpop.f32.mrf.mxu0
        %v2029 = vadd.f32 %v1764, %v2028
        %v2030 = vpop.f32.mrf.mxu0
        %v2031 = vpop.f32.mrf.mxu0
        %v2032 = vadd.f32 %v1767, %v2031
        %v2033 = vpop.f32.mrf.mxu0
        %2034 = vmatprep.mubr.bf16.mxu0 %v1244
        %2035 = vmatmul.mubr.bf16.gmra.mxu0 %v1243
        %v2036 = vpop.f32.mrf.mxu0
        %v2037 = vadd.f32 %v1772, %v2036
        %v2038 = vpop.f32.mrf.mxu0
        %v2039 = vpop.f32.mrf.mxu0
        %v2040 = vadd.f32 %v1775, %v2039
        %v2041 = vpop.f32.mrf.mxu0
        %2042 = vmatprep.mubr.bf16.mxu0 %v1248
        %2043 = vmatmul.mubr.bf16.gmra.mxu0 %v1247
        %v2044 = vpop.f32.mrf.mxu0
        %v2045 = vadd.f32 %v1780, %v2044
        %v2046 = vpop.f32.mrf.mxu0
        %v2047 = vpop.f32.mrf.mxu0
        %v2048 = vadd.f32 %v1783, %v2047
        %v2049 = vpop.f32.mrf.mxu0
        %2050 = vmatprep.mubr.bf16.mxu0 %v1252
        %2051 = vmatmul.mubr.bf16.gmra.mxu0 %v1251
        %v2052 = vpop.f32.mrf.mxu0
        %v2053 = vadd.f32 %v1788, %v2052
        %v2054 = vpop.f32.mrf.mxu0
        %v2055 = vpop.f32.mrf.mxu0
        %v2056 = vadd.f32 %v1791, %v2055
        %v2057 = vpop.f32.mrf.mxu0
        %2058 = vmatprep.mubr.bf16.mxu0 %v1256
        %2059 = vmatmul.mubr.bf16.gmra.mxu0 %v1255
        %v2060 = vpop.f32.mrf.mxu0
        %v2061 = vadd.f32 %v1796, %v2060
        %v2062 = vpop.f32.mrf.mxu0
        %v2063 = vpop.f32.mrf.mxu0
        %v2064 = vadd.f32 %v1799, %v2063
        %v2065 = vpop.f32.mrf.mxu0
        %2066 = vmatprep.mubr.bf16.mxu0 %v1260
        %2067 = vmatmul.mubr.bf16.gmra.mxu0 %v1259
        %v2068 = vpop.f32.mrf.mxu0
        %v2069 = vadd.f32 %v1804, %v2068
        %v2070 = vpop.f32.mrf.mxu0
        %v2071 = vpop.f32.mrf.mxu0
        %v2072 = vadd.f32 %v1807, %v2071
        %v2073 = vpop.f32.mrf.mxu0
        %2074 = vmatprep.mubr.bf16.mxu0 %v1264
        %2075 = vmatmul.mubr.bf16.gmra.mxu0 %v1263
        %v2076 = vpop.f32.mrf.mxu0
        %v2077 = vadd.f32 %v1812, %v2076
        %v2078 = vpop.f32.mrf.mxu0
        %v2079 = vpop.f32.mrf.mxu0
        %v2080 = vadd.f32 %v1815, %v2079
        %v2081 = vpop.f32.mrf.mxu0
        %2082 = vmatprep.mubr.bf16.mxu0 %v1268
        %2083 = vmatmul.mubr.bf16.gmra.mxu0 %v1267
        %v2084 = vpop.f32.mrf.mxu0
        %v2085 = vadd.f32 %v1820, %v2084
        %v2086 = vpop.f32.mrf.mxu0
        %v2087 = vpop.f32.mrf.mxu0
        %v2088 = vadd.f32 %v1823, %v2087
        %v2089 = vpop.f32.mrf.mxu0
        %2090 = vmatprep.mubr.bf16.mxu0 %v1272
        %2091 = vmatmul.mubr.bf16.gmra.mxu0 %v1271
        %v2092 = vpop.f32.mrf.mxu0
        %v2093 = vadd.f32 %v1828, %v2092
        %v2094 = vpop.f32.mrf.mxu0
        %v2095 = vpop.f32.mrf.mxu0
        %v2096 = vadd.f32 %v1831, %v2095
        %v2097 = vpop.f32.mrf.mxu0
        %2098 = vmatprep.mubr.bf16.mxu0 %v1276
        %2099 = vmatmul.mubr.bf16.gmra.mxu0 %v1275
        %v2100 = vpop.f32.mrf.mxu0
        %v2101 = vadd.f32 %v1836, %v2100
        %v2102 = vpop.f32.mrf.mxu0
        %v2103 = vpop.f32.mrf.mxu0
        %v2104 = vadd.f32 %v1839, %v2103
        %v2105 = vpop.f32.mrf.mxu0
        %2106 = vmatprep.mubr.bf16.mxu0 %v1280
        %2107 = vmatmul.mubr.bf16.gmra.mxu0 %v1279
        %v2108 = vpop.f32.mrf.mxu0
        %v2109 = vadd.f32 %v1844, %v2108
        %v2110 = vpop.f32.mrf.mxu0
        %v2111 = vpop.f32.mrf.mxu0
        %v2112 = vadd.f32 %v1847, %v2111
        %v2113 = vpop.f32.mrf.mxu0
        %2114 = vmatprep.mubr.bf16.mxu0 %v1284
        %2115 = vmatmul.mubr.bf16.gmra.mxu0 %v1283
        %v2116 = vpop.f32.mrf.mxu0
        %v2117 = vadd.f32 %v1852, %v2116
        %v2118 = vpop.f32.mrf.mxu0
        %v2119 = vpop.f32.mrf.mxu0
        %v2120 = vadd.f32 %v1855, %v2119
        %v2121 = vpop.f32.mrf.mxu0
        %2122 = vdwg.mxu0
        %v2123 = vadd.f32 %v583, %v1893
        %v2124 = vadd.f32 %v584, %v1896
        %v2125 = vadd.f32 %v585, %v1901
        %v2126 = vadd.f32 %v586, %v1904
        %v2127 = vadd.f32 %v587, %v1909
        %v2128 = vadd.f32 %v588, %v1912
        %v2129 = vadd.f32 %v589, %v1917
        %v2130 = vadd.f32 %v590, %v1920
        %v2131 = vadd.f32 %v591, %v1925
        %v2132 = vadd.f32 %v592, %v1928
        %v2133 = vadd.f32 %v593, %v1933
        %v2134 = vadd.f32 %v594, %v1936
        %v2135 = vadd.f32 %v595, %v1941
        %v2136 = vadd.f32 %v596, %v1944
        %v2137 = vadd.f32 %v597, %v1949
        %v2138 = vadd.f32 %v598, %v1952
        %v2139 = vadd.f32 %v599, %v1957
        %v2140 = vadd.f32 %v600, %v1960
        %v2141 = vadd.f32 %v601, %v1965
        %v2142 = vadd.f32 %v602, %v1968
        %v2143 = vadd.f32 %v603, %v1973
        %v2144 = vadd.f32 %v604, %v1976
        %v2145 = vadd.f32 %v605, %v1981
        %v2146 = vadd.f32 %v606, %v1984
        %v2147 = vadd.f32 %v607, %v1989
        %v2148 = vadd.f32 %v608, %v1992
        %v2149 = vadd.f32 %v609, %v1997
        %v2150 = vadd.f32 %v610, %v2000
        %v2151 = vadd.f32 %v611, %v2005
        %v2152 = vadd.f32 %v612, %v2008
        %v2153 = vadd.f32 %v613, %v2013
        %v2154 = vadd.f32 %v614, %v2016
        %v2155 = vadd.f32 %v615, %v2021
        %v2156 = vadd.f32 %v616, %v2024
        %v2157 = vadd.f32 %v617, %v2029
        %v2158 = vadd.f32 %v618, %v2032
        %v2159 = vadd.f32 %v619, %v2037
        %v2160 = vadd.f32 %v620, %v2040
        %v2161 = vadd.f32 %v621, %v2045
        %v2162 = vadd.f32 %v622, %v2048
        %v2163 = vadd.f32 %v623, %v2053
        %v2164 = vadd.f32 %v624, %v2056
        %v2165 = vadd.f32 %v625, %v2061
        %v2166 = vadd.f32 %v626, %v2064
        %v2167 = vadd.f32 %v627, %v2069
        %v2168 = vadd.f32 %v628, %v2072
        %v2169 = vadd.f32 %v629, %v2077
        %v2170 = vadd.f32 %v630, %v2080
        %v2171 = vadd.f32 %v631, %v2085
        %v2172 = vadd.f32 %v632, %v2088
        %v2173 = vadd.f32 %v633, %v2093
        %v2174 = vadd.f32 %v634, %v2096
        %v2175 = vadd.f32 %v635, %v2101
        %v2176 = vadd.f32 %v636, %v2104
        %v2177 = vadd.f32 %v637, %v2109
        %v2178 = vadd.f32 %v638, %v2112
        %v2179 = vadd.f32 %v639, %v2117
        %v2180 = vadd.f32 %v640, %v2120
        %2181 = vst [vmem:[#allocation2] sm:$0xff] %v2123
        %2182 = vst [vmem:[#allocation2 + $0x8] sm:$0xff] %v2124
        %2183 = vst [vmem:[#allocation2 + $0x10] sm:$0xff] %v2125
        %2184 = vst [vmem:[#allocation2 + $0x18] sm:$0xff] %v2126
        %2185 = vst [vmem:[#allocation2 + $0x20] sm:$0xff] %v2127
        %2186 = vst [vmem:[#allocation2 + $0x28] sm:$0xff] %v2128
        %2187 = vst [vmem:[#allocation2 + $0x30] sm:$0xff] %v2129
        %2188 = vst [vmem:[#allocation2 + $0x38] sm:$0xff] %v2130
        %2189 = vst [vmem:[#allocation2 + $0x40] sm:$0xff] %v2131
        %2190 = vst [vmem:[#allocation2 + $0x48] sm:$0xff] %v2132
        %2191 = vst [vmem:[#allocation2 + $0x50] sm:$0xff] %v2133
        %2192 = vst [vmem:[#allocation2 + $0x58] sm:$0xff] %v2134
        %2193 = vst [vmem:[#allocation2 + $0x60] sm:$0xff] %v2135
        %2194 = vst [vmem:[#allocation2 + $0x68] sm:$0xff] %v2136
        %2195 = vst [vmem:[#allocation2 + $0x70] sm:$0xff] %v2137
        %2196 = vst [vmem:[#allocation2 + $0x78] sm:$0xff] %v2138
        %2197 = vst [vmem:[#allocation2 + $0x80] sm:$0xff] %v2139
        %2198 = vst [vmem:[#allocation2 + $0x88] sm:$0xff] %v2140
        %2199 = vst [vmem:[#allocation2 + $0x90] sm:$0xff] %v2141
        %2200 = vst [vmem:[#allocation2 + $0x98] sm:$0xff] %v2142
        %2201 = vst [vmem:[#allocation2 + $0xa0] sm:$0xff] %v2143
        %2202 = vst [vmem:[#allocation2 + $0xa8] sm:$0xff] %v2144
        %2203 = vst [vmem:[#allocation2 + $0xb0] sm:$0xff] %v2145
        %2204 = vst [vmem:[#allocation2 + $0xb8] sm:$0xff] %v2146
        %2205 = vst [vmem:[#allocation2 + $0xc0] sm:$0xff] %v2147
        %2206 = vst [vmem:[#allocation2 + $0xc8] sm:$0xff] %v2148
        %2207 = vst [vmem:[#allocation2 + $0xd0] sm:$0xff] %v2149
        %2208 = vst [vmem:[#allocation2 + $0xd8] sm:$0xff] %v2150
        %2209 = vst [vmem:[#allocation2 + $0xe0] sm:$0xff] %v2151
        %2210 = vst [vmem:[#allocation2 + $0xe8] sm:$0xff] %v2152
        %2211 = vst [vmem:[#allocation2 + $0xf0] sm:$0xff] %v2153
        %2212 = vst [vmem:[#allocation2 + $0xf8] sm:$0xff] %v2154
        %2213 = vst [vmem:[#allocation2 + $0x100] sm:$0xff] %v2155
        %2214 = vst [vmem:[#allocation2 + $0x108] sm:$0xff] %v2156
        %2215 = vst [vmem:[#allocation2 + $0x110] sm:$0xff] %v2157
        %2216 = vst [vmem:[#allocation2 + $0x118] sm:$0xff] %v2158
        %2217 = vst [vmem:[#allocation2 + $0x120] sm:$0xff] %v2159
        %2218 = vst [vmem:[#allocation2 + $0x128] sm:$0xff] %v2160
        %2219 = vst [vmem:[#allocation2 + $0x130] sm:$0xff] %v2161
        %2220 = vst [vmem:[#allocation2 + $0x138] sm:$0xff] %v2162
        %2221 = vst [vmem:[#allocation2 + $0x140] sm:$0xff] %v2163
        %2222 = vst [vmem:[#allocation2 + $0x148] sm:$0xff] %v2164
        %2223 = vst [vmem:[#allocation2 + $0x150] sm:$0xff] %v2165
        %2224 = vst [vmem:[#allocation2 + $0x158] sm:$0xff] %v2166
        %2225 = vst [vmem:[#allocation2 + $0x160] sm:$0xff] %v2167
        %2226 = vst [vmem:[#allocation2 + $0x168] sm:$0xff] %v2168
        %2227 = vst [vmem:[#allocation2 + $0x170] sm:$0xff] %v2169
        %2228 = vst [vmem:[#allocation2 + $0x178] sm:$0xff] %v2170
        %2229 = vst [vmem:[#allocation2 + $0x180] sm:$0xff] %v2171
        %2230 = vst [vmem:[#allocation2 + $0x188] sm:$0xff] %v2172
        %2231 = vst [vmem:[#allocation2 + $0x190] sm:$0xff] %v2173
        %2232 = vst [vmem:[#allocation2 + $0x198] sm:$0xff] %v2174
        %2233 = vst [vmem:[#allocation2 + $0x1a0] sm:$0xff] %v2175
        %2234 = vst [vmem:[#allocation2 + $0x1a8] sm:$0xff] %v2176
        %2235 = vst [vmem:[#allocation2 + $0x1b0] sm:$0xff] %v2177
        %2236 = vst [vmem:[#allocation2 + $0x1b8] sm:$0xff] %v2178
        %2237 = vst [vmem:[#allocation2 + $0x1c0] sm:$0xff] %v2179
        %2238 = vst [vmem:[#allocation2 + $0x1c8] sm:$0xff] %v2180
        %p2239 = scmp.eq.s32.totalorder %s20, 1
        // Predicated region
        $region64: #{discriminator_forward.5} parent=54 // pred_check
          %p2240 = pneg %p2239
        $region65: #{discriminator_forward.5} parent=54 // pred_check_branch
          %2242 = sbr.rel (%p2240) target = $region67
        $region66: #{discriminator_forward.5} parent=54 // pred_region
          %v2243 = vld [vmem:[#allocation2] sm:$0xff]
          %v2244 = vld [vmem:[#allocation2 + $0x8] sm:$0xff]
          %v2245 = vld [vmem:[#allocation2 + $0x10] sm:$0xff]
          %v2246 = vld [vmem:[#allocation2 + $0x18] sm:$0xff]
          %v2247 = vld [vmem:[#allocation2 + $0x20] sm:$0xff]
          %v2248 = vld [vmem:[#allocation2 + $0x28] sm:$0xff]
          %v2249 = vld [vmem:[#allocation2 + $0x30] sm:$0xff]
          %v2250 = vld [vmem:[#allocation2 + $0x38] sm:$0xff]
          %v2251 = vld [vmem:[#allocation2 + $0x40] sm:$0xff]
          %v2252 = vld [vmem:[#allocation2 + $0x48] sm:$0xff]
          %v2253 = vld [vmem:[#allocation2 + $0x50] sm:$0xff]
          %v2254 = vld [vmem:[#allocation2 + $0x58] sm:$0xff]
          %v2255 = vld [vmem:[#allocation2 + $0x60] sm:$0xff]
          %v2256 = vld [vmem:[#allocation2 + $0x68] sm:$0xff]
          %v2257 = vld [vmem:[#allocation2 + $0x70] sm:$0xff]
          %v2258 = vld [vmem:[#allocation2 + $0x78] sm:$0xff]
          %v2259 = vld [vmem:[#allocation2 + $0x80] sm:$0xff]
          %v2260 = vld [vmem:[#allocation2 + $0x88] sm:$0xff]
          %v2261 = vld [vmem:[#allocation2 + $0x90] sm:$0xff]
          %v2262 = vld [vmem:[#allocation2 + $0x98] sm:$0xff]
          %v2263 = vld [vmem:[#allocation2 + $0xa0] sm:$0xff]
          %v2264 = vld [vmem:[#allocation2 + $0xa8] sm:$0xff]
          %v2265 = vld [vmem:[#allocation2 + $0xb0] sm:$0xff]
          %v2266 = vld [vmem:[#allocation2 + $0xb8] sm:$0xff]
          %v2267 = vld [vmem:[#allocation2 + $0xc0] sm:$0xff]
          %v2268 = vld [vmem:[#allocation2 + $0xc8] sm:$0xff]
          %v2269 = vld [vmem:[#allocation2 + $0xd0] sm:$0xff]
          %v2270 = vld [vmem:[#allocation2 + $0xd8] sm:$0xff]
          %v2271 = vld [vmem:[#allocation2 + $0xe0] sm:$0xff]
          %v2272 = vld [vmem:[#allocation2 + $0xe8] sm:$0xff]
          %v2273 = vld [vmem:[#allocation2 + $0xf0] sm:$0xff]
          %v2274 = vld [vmem:[#allocation2 + $0xf8] sm:$0xff]
          %v2275 = vld [vmem:[#allocation2 + $0x100] sm:$0xff]
          %v2276 = vld [vmem:[#allocation2 + $0x108] sm:$0xff]
          %v2277 = vld [vmem:[#allocation2 + $0x110] sm:$0xff]
          %v2278 = vld [vmem:[#allocation2 + $0x118] sm:$0xff]
          %v2279 = vld [vmem:[#allocation2 + $0x120] sm:$0xff]
          %v2280 = vld [vmem:[#allocation2 + $0x128] sm:$0xff]
          %v2281 = vld [vmem:[#allocation2 + $0x130] sm:$0xff]
          %v2282 = vld [vmem:[#allocation2 + $0x138] sm:$0xff]
          %v2283 = vld [vmem:[#allocation2 + $0x140] sm:$0xff]
          %v2284 = vld [vmem:[#allocation2 + $0x148] sm:$0xff]
          %v2285 = vld [vmem:[#allocation2 + $0x150] sm:$0xff]
          %v2286 = vld [vmem:[#allocation2 + $0x158] sm:$0xff]
          %v2287 = vld [vmem:[#allocation2 + $0x160] sm:$0xff]
          %v2288 = vld [vmem:[#allocation2 + $0x168] sm:$0xff]
          %v2289 = vld [vmem:[#allocation2 + $0x170] sm:$0xff]
          %v2290 = vld [vmem:[#allocation2 + $0x178] sm:$0xff]
          %v2291 = vld [vmem:[#allocation2 + $0x180] sm:$0xff]
          %v2292 = vld [vmem:[#allocation2 + $0x188] sm:$0xff]
          %v2293 = vld [vmem:[#allocation2 + $0x190] sm:$0xff]
          %v2294 = vld [vmem:[#allocation2 + $0x198] sm:$0xff]
          %v2295 = vld [vmem:[#allocation2 + $0x1a0] sm:$0xff]
          %v2296 = vld [vmem:[#allocation2 + $0x1a8] sm:$0xff]
          %v2297 = vld [vmem:[#allocation2 + $0x1b0] sm:$0xff]
          %v2298 = vld [vmem:[#allocation2 + $0x1b8] sm:$0xff]
          %v2299 = vld [vmem:[#allocation2 + $0x1c0] sm:$0xff]
          %v2300 = vld [vmem:[#allocation2 + $0x1c8] sm:$0xff]
          %v2301 = vadd.f32 %v2243, %v2244
          %v2302 = vadd.f32 %v2301, %v2245
          %v2303 = vadd.f32 %v2302, %v2246
          %v2304 = vadd.f32 %v2303, %v2247
          %v2305 = vadd.f32 %v2304, %v2248
          %v2306 = vadd.f32 %v2305, %v2249
          %v2307 = vadd.f32 %v2306, %v2250
          %v2308 = vadd.f32 %v2307, %v2251
          %v2309 = vadd.f32 %v2308, %v2252
          %v2310 = vadd.f32 %v2309, %v2253
          %v2311 = vadd.f32 %v2310, %v2254
          %v2312 = vadd.f32 %v2311, %v2255
          %v2313 = vadd.f32 %v2312, %v2256
          %v2314 = vadd.f32 %v2313, %v2257
          %v2315 = vadd.f32 %v2314, %v2258
          %v2316 = vadd.f32 %v2315, %v2259
          %v2317 = vadd.f32 %v2316, %v2260
          %v2318 = vadd.f32 %v2317, %v2261
          %v2319 = vadd.f32 %v2318, %v2262
          %v2320 = vadd.f32 %v2319, %v2263
          %v2321 = vadd.f32 %v2320, %v2264
          %v2322 = vadd.f32 %v2321, %v2265
          %v2323 = vadd.f32 %v2322, %v2266
          %v2324 = vadd.f32 %v2323, %v2267
          %v2325 = vadd.f32 %v2324, %v2268
          %v2326 = vadd.f32 %v2325, %v2269
          %v2327 = vadd.f32 %v2326, %v2270
          %v2328 = vadd.f32 %v2327, %v2271
          %v2329 = vadd.f32 %v2328, %v2272
          %v2330 = vadd.f32 %v2329, %v2273
          %v2331 = vadd.f32 %v2330, %v2274
          %v2332 = vadd.f32 %v2331, %v2275
          %v2333 = vadd.f32 %v2332, %v2276
          %v2334 = vadd.f32 %v2333, %v2277
          %v2335 = vadd.f32 %v2334, %v2278
          %v2336 = vadd.f32 %v2335, %v2279
          %v2337 = vadd.f32 %v2336, %v2280
          %v2338 = vadd.f32 %v2337, %v2281
          %v2339 = vadd.f32 %v2338, %v2282
          %v2340 = vadd.f32 %v2339, %v2283
          %v2341 = vadd.f32 %v2340, %v2284
          %v2342 = vadd.f32 %v2341, %v2285
          %v2343 = vadd.f32 %v2342, %v2286
          %v2344 = vadd.f32 %v2343, %v2287
          %v2345 = vadd.f32 %v2344, %v2288
          %v2346 = vadd.f32 %v2345, %v2289
          %v2347 = vadd.f32 %v2346, %v2290
          %v2348 = vadd.f32 %v2347, %v2291
          %v2349 = vadd.f32 %v2348, %v2292
          %v2350 = vadd.f32 %v2349, %v2293
          %v2351 = vadd.f32 %v2350, %v2294
          %v2352 = vadd.f32 %v2351, %v2295
          %v2353 = vadd.f32 %v2352, %v2296
          %v2354 = vadd.f32 %v2353, %v2297
          %v2355 = vadd.f32 %v2354, %v2298
          %v2356 = vadd.f32 %v2355, %v2299
          %v2357 = vadd.f32 %v2356, %v2300
          %v2358 = vrot.slane %v2357, 4
          %v2359 = vadd.f32 %v2357, %v2358
          %v2360 = vrot.slane %v2359, 2
          %v2361 = vadd.f32 %v2359, %v2360
          %v2362 = vrot.slane %v2361, 1
          %v2363 = vadd.f32 %v2361, %v2362
          %v2364 = vmul.f32 %v2243, %v2243
          %v2365 = vmul.f32 %v2244, %v2244
          %v2366 = vmul.f32 %v2245, %v2245
          %v2367 = vmul.f32 %v2246, %v2246
          %v2368 = vmul.f32 %v2247, %v2247
          %v2369 = vmul.f32 %v2248, %v2248
          %v2370 = vmul.f32 %v2249, %v2249
          %v2371 = vmul.f32 %v2250, %v2250
          %v2372 = vmul.f32 %v2251, %v2251
          %v2373 = vmul.f32 %v2252, %v2252
          %v2374 = vmul.f32 %v2253, %v2253
          %v2375 = vmul.f32 %v2254, %v2254
          %v2376 = vmul.f32 %v2255, %v2255
          %v2377 = vmul.f32 %v2256, %v2256
          %v2378 = vmul.f32 %v2257, %v2257
          %v2379 = vmul.f32 %v2258, %v2258
          %v2380 = vmul.f32 %v2259, %v2259
          %v2381 = vmul.f32 %v2260, %v2260
          %v2382 = vmul.f32 %v2261, %v2261
          %v2383 = vmul.f32 %v2262, %v2262
          %v2384 = vmul.f32 %v2263, %v2263
          %v2385 = vmul.f32 %v2264, %v2264
          %v2386 = vmul.f32 %v2265, %v2265
          %v2387 = vmul.f32 %v2266, %v2266
          %v2388 = vmul.f32 %v2267, %v2267
          %v2389 = vmul.f32 %v2268, %v2268
          %v2390 = vmul.f32 %v2269, %v2269
          %v2391 = vmul.f32 %v2270, %v2270
          %v2392 = vmul.f32 %v2271, %v2271
          %v2393 = vmul.f32 %v2272, %v2272
          %v2394 = vmul.f32 %v2273, %v2273
          %v2395 = vmul.f32 %v2274, %v2274
          %v2396 = vmul.f32 %v2275, %v2275
          %v2397 = vmul.f32 %v2276, %v2276
          %v2398 = vmul.f32 %v2277, %v2277
          %v2399 = vmul.f32 %v2278, %v2278
          %v2400 = vmul.f32 %v2279, %v2279
          %v2401 = vmul.f32 %v2280, %v2280
          %v2402 = vmul.f32 %v2281, %v2281
          %v2403 = vmul.f32 %v2282, %v2282
          %v2404 = vmul.f32 %v2283, %v2283
          %v2405 = vmul.f32 %v2284, %v2284
          %v2406 = vmul.f32 %v2285, %v2285
          %v2407 = vmul.f32 %v2286, %v2286
          %v2408 = vmul.f32 %v2287, %v2287
          %v2409 = vmul.f32 %v2288, %v2288
          %v2410 = vmul.f32 %v2289, %v2289
          %v2411 = vmul.f32 %v2290, %v2290
          %v2412 = vmul.f32 %v2291, %v2291
          %v2413 = vmul.f32 %v2292, %v2292
          %v2414 = vmul.f32 %v2293, %v2293
          %v2415 = vmul.f32 %v2294, %v2294
          %v2416 = vmul.f32 %v2295, %v2295
          %v2417 = vmul.f32 %v2296, %v2296
          %v2418 = vmul.f32 %v2297, %v2297
          %v2419 = vmul.f32 %v2298, %v2298
          %v2420 = vmul.f32 %v2299, %v2299
          %v2421 = vmul.f32 %v2300, %v2300
          %v2422 = vadd.f32 %v2364, %v2365
          %v2423 = vadd.f32 %v2422, %v2366
          %v2424 = vadd.f32 %v2423, %v2367
          %v2425 = vadd.f32 %v2424, %v2368
          %v2426 = vadd.f32 %v2425, %v2369
          %v2427 = vadd.f32 %v2426, %v2370
          %v2428 = vadd.f32 %v2427, %v2371
          %v2429 = vadd.f32 %v2428, %v2372
          %v2430 = vadd.f32 %v2429, %v2373
          %v2431 = vadd.f32 %v2430, %v2374
          %v2432 = vadd.f32 %v2431, %v2375
          %v2433 = vadd.f32 %v2432, %v2376
          %v2434 = vadd.f32 %v2433, %v2377
          %v2435 = vadd.f32 %v2434, %v2378
          %v2436 = vadd.f32 %v2435, %v2379
          %v2437 = vadd.f32 %v2436, %v2380
          %v2438 = vadd.f32 %v2437, %v2381
          %v2439 = vadd.f32 %v2438, %v2382
          %v2440 = vadd.f32 %v2439, %v2383
          %v2441 = vadd.f32 %v2440, %v2384
          %v2442 = vadd.f32 %v2441, %v2385
          %v2443 = vadd.f32 %v2442, %v2386
          %v2444 = vadd.f32 %v2443, %v2387
          %v2445 = vadd.f32 %v2444, %v2388
          %v2446 = vadd.f32 %v2445, %v2389
          %v2447 = vadd.f32 %v2446, %v2390
          %v2448 = vadd.f32 %v2447, %v2391
          %v2449 = vadd.f32 %v2448, %v2392
          %v2450 = vadd.f32 %v2449, %v2393
          %v2451 = vadd.f32 %v2450, %v2394
          %v2452 = vadd.f32 %v2451, %v2395
          %v2453 = vadd.f32 %v2452, %v2396
          %v2454 = vadd.f32 %v2453, %v2397
          %v2455 = vadd.f32 %v2454, %v2398
          %v2456 = vadd.f32 %v2455, %v2399
          %v2457 = vadd.f32 %v2456, %v2400
          %v2458 = vadd.f32 %v2457, %v2401
          %v2459 = vadd.f32 %v2458, %v2402
          %v2460 = vadd.f32 %v2459, %v2403
          %v2461 = vadd.f32 %v2460, %v2404
          %v2462 = vadd.f32 %v2461, %v2405
          %v2463 = vadd.f32 %v2462, %v2406
          %v2464 = vadd.f32 %v2463, %v2407
          %v2465 = vadd.f32 %v2464, %v2408
          %v2466 = vadd.f32 %v2465, %v2409
          %v2467 = vadd.f32 %v2466, %v2410
          %v2468 = vadd.f32 %v2467, %v2411
          %v2469 = vadd.f32 %v2468, %v2412
          %v2470 = vadd.f32 %v2469, %v2413
          %v2471 = vadd.f32 %v2470, %v2414
          %v2472 = vadd.f32 %v2471, %v2415
          %v2473 = vadd.f32 %v2472, %v2416
          %v2474 = vadd.f32 %v2473, %v2417
          %v2475 = vadd.f32 %v2474, %v2418
          %v2476 = vadd.f32 %v2475, %v2419
          %v2477 = vadd.f32 %v2476, %v2420
          %v2478 = vadd.f32 %v2477, %v2421
          %v2479 = vrot.slane %v2478, 4
          %v2480 = vadd.f32 %v2478, %v2479
          %v2481 = vrot.slane %v2480, 2
          %v2482 = vadd.f32 %v2480, %v2481
          %v2483 = vrot.slane %v2482, 1
          %v2484 = vadd.f32 %v2482, %v2483
          %v2485 = vmul.f32 %v2363, 0.0022222223
          %v2486 = vmul.f32 %v2484, 0.0022222223
          %v2487 = vmul.f32 %v2485, %v2485
          %v2488 = vsub.f32 %v2486, %v2487
          %v2489 = vmax.f32 %v2488, 0.0
          %v2490 = vld [vmem:[%s512] sm:$0x1]
          %v2491 = vadd.f32 %v2489, 1e-05
          %v2492 = vrsqrt.pop %v2491
          %v2493 = vmul.f32 %v2490, %v2492
          %v2494 = vsub.f32 %v2243, %v2485
          %v2495 = vsub.f32 %v2244, %v2485
          %v2496 = vsub.f32 %v2245, %v2485
          %v2497 = vsub.f32 %v2246, %v2485
          %v2498 = vsub.f32 %v2247, %v2485
          %v2499 = vsub.f32 %v2248, %v2485
          %v2500 = vsub.f32 %v2249, %v2485
          %v2501 = vsub.f32 %v2250, %v2485
          %v2502 = vsub.f32 %v2251, %v2485
          %v2503 = vsub.f32 %v2252, %v2485
          %v2504 = vsub.f32 %v2253, %v2485
          %v2505 = vsub.f32 %v2254, %v2485
          %v2506 = vsub.f32 %v2255, %v2485
          %v2507 = vsub.f32 %v2256, %v2485
          %v2508 = vsub.f32 %v2257, %v2485
          %v2509 = vsub.f32 %v2258, %v2485
          %v2510 = vsub.f32 %v2259, %v2485
          %v2511 = vsub.f32 %v2260, %v2485
          %v2512 = vsub.f32 %v2261, %v2485
          %v2513 = vsub.f32 %v2262, %v2485
          %v2514 = vsub.f32 %v2263, %v2485
          %v2515 = vsub.f32 %v2264, %v2485
          %v2516 = vsub.f32 %v2265, %v2485
          %v2517 = vsub.f32 %v2266, %v2485
          %v2518 = vsub.f32 %v2267, %v2485
          %v2519 = vsub.f32 %v2268, %v2485
          %v2520 = vsub.f32 %v2269, %v2485
          %v2521 = vsub.f32 %v2270, %v2485
          %v2522 = vsub.f32 %v2271, %v2485
          %v2523 = vsub.f32 %v2272, %v2485
          %v2524 = vsub.f32 %v2273, %v2485
          %v2525 = vsub.f32 %v2274, %v2485
          %v2526 = vsub.f32 %v2275, %v2485
          %v2527 = vsub.f32 %v2276, %v2485
          %v2528 = vsub.f32 %v2277, %v2485
          %v2529 = vsub.f32 %v2278, %v2485
          %v2530 = vsub.f32 %v2279, %v2485
          %v2531 = vsub.f32 %v2280, %v2485
          %v2532 = vsub.f32 %v2281, %v2485
          %v2533 = vsub.f32 %v2282, %v2485
          %v2534 = vsub.f32 %v2283, %v2485
          %v2535 = vsub.f32 %v2284, %v2485
          %v2536 = vsub.f32 %v2285, %v2485
          %v2537 = vsub.f32 %v2286, %v2485
          %v2538 = vsub.f32 %v2287, %v2485
          %v2539 = vsub.f32 %v2288, %v2485
          %v2540 = vsub.f32 %v2289, %v2485
          %v2541 = vsub.f32 %v2290, %v2485
          %v2542 = vsub.f32 %v2291, %v2485
          %v2543 = vsub.f32 %v2292, %v2485
          %v2544 = vsub.f32 %v2293, %v2485
          %v2545 = vsub.f32 %v2294, %v2485
          %v2546 = vsub.f32 %v2295, %v2485
          %v2547 = vsub.f32 %v2296, %v2485
          %v2548 = vsub.f32 %v2297, %v2485
          %v2549 = vsub.f32 %v2298, %v2485
          %v2550 = vsub.f32 %v2299, %v2485
          %v2551 = vsub.f32 %v2300, %v2485
          %v2553 = vlaneseq
          %v2554 = vshrl.u32 %v2553, 7
          %v2555 = vsub.s32 0, %v2554
          %v2556 = vrot.slane %v2493, %v2555
          %v2558 = vmul.f32 %v2494, %v2556
          %v2559 = vmul.f32 %v2495, %v2556
          %v2560 = vmul.f32 %v2496, %v2556
          %v2561 = vmul.f32 %v2497, %v2556
          %v2562 = vmul.f32 %v2498, %v2556
          %v2563 = vmul.f32 %v2499, %v2556
          %v2564 = vmul.f32 %v2500, %v2556
          %v2565 = vmul.f32 %v2501, %v2556
          %v2566 = vmul.f32 %v2502, %v2556
          %v2567 = vmul.f32 %v2503, %v2556
          %v2568 = vmul.f32 %v2504, %v2556
          %v2569 = vmul.f32 %v2505, %v2556
          %v2570 = vmul.f32 %v2506, %v2556
          %v2571 = vmul.f32 %v2507, %v2556
          %v2572 = vmul.f32 %v2508, %v2556
          %v2573 = vmul.f32 %v2509, %v2556
          %v2574 = vmul.f32 %v2510, %v2556
          %v2575 = vmul.f32 %v2511, %v2556
          %v2576 = vmul.f32 %v2512, %v2556
          %v2577 = vmul.f32 %v2513, %v2556
          %v2578 = vmul.f32 %v2514, %v2556
          %v2579 = vmul.f32 %v2515, %v2556
          %v2580 = vmul.f32 %v2516, %v2556
          %v2581 = vmul.f32 %v2517, %v2556
          %v2582 = vmul.f32 %v2518, %v2556
          %v2583 = vmul.f32 %v2519, %v2556
          %v2584 = vmul.f32 %v2520, %v2556
          %v2585 = vmul.f32 %v2521, %v2556
          %v2586 = vmul.f32 %v2522, %v2556
          %v2587 = vmul.f32 %v2523, %v2556
          %v2588 = vmul.f32 %v2524, %v2556
          %v2589 = vmul.f32 %v2525, %v2556
          %v2590 = vmul.f32 %v2526, %v2556
          %v2591 = vmul.f32 %v2527, %v2556
          %v2592 = vmul.f32 %v2528, %v2556
          %v2593 = vmul.f32 %v2529, %v2556
          %v2594 = vmul.f32 %v2530, %v2556
          %v2595 = vmul.f32 %v2531, %v2556
          %v2596 = vmul.f32 %v2532, %v2556
          %v2597 = vmul.f32 %v2533, %v2556
          %v2598 = vmul.f32 %v2534, %v2556
          %v2599 = vmul.f32 %v2535, %v2556
          %v2600 = vmul.f32 %v2536, %v2556
          %v2601 = vmul.f32 %v2537, %v2556
          %v2602 = vmul.f32 %v2538, %v2556
          %v2603 = vmul.f32 %v2539, %v2556
          %v2604 = vmul.f32 %v2540, %v2556
          %v2605 = vmul.f32 %v2541, %v2556
          %v2606 = vmul.f32 %v2542, %v2556
          %v2607 = vmul.f32 %v2543, %v2556
          %v2608 = vmul.f32 %v2544, %v2556
          %v2609 = vmul.f32 %v2545, %v2556
          %v2610 = vmul.f32 %v2546, %v2556
          %v2611 = vmul.f32 %v2547, %v2556
          %v2612 = vmul.f32 %v2548, %v2556
          %v2613 = vmul.f32 %v2549, %v2556
          %v2614 = vmul.f32 %v2550, %v2556
          %v2615 = vmul.f32 %v2551, %v2556
          %v2616 = vld [vmem:[%s515] sm:$0x1]
          %v2618 = vlaneseq
          %v2619 = vshrl.u32 %v2618, 7
          %v2620 = vsub.s32 0, %v2619
          %v2621 = vrot.slane %v2616, %v2620
          %v2623 = vadd.f32 %v2558, %v2621
          %v2624 = vadd.f32 %v2559, %v2621
          %v2625 = vadd.f32 %v2560, %v2621
          %v2626 = vadd.f32 %v2561, %v2621
          %v2627 = vadd.f32 %v2562, %v2621
          %v2628 = vadd.f32 %v2563, %v2621
          %v2629 = vadd.f32 %v2564, %v2621
          %v2630 = vadd.f32 %v2565, %v2621
          %v2631 = vadd.f32 %v2566, %v2621
          %v2632 = vadd.f32 %v2567, %v2621
          %v2633 = vadd.f32 %v2568, %v2621
          %v2634 = vadd.f32 %v2569, %v2621
          %v2635 = vadd.f32 %v2570, %v2621
          %v2636 = vadd.f32 %v2571, %v2621
          %v2637 = vadd.f32 %v2572, %v2621
          %v2638 = vadd.f32 %v2573, %v2621
          %v2639 = vadd.f32 %v2574, %v2621
          %v2640 = vadd.f32 %v2575, %v2621
          %v2641 = vadd.f32 %v2576, %v2621
          %v2642 = vadd.f32 %v2577, %v2621
          %v2643 = vadd.f32 %v2578, %v2621
          %v2644 = vadd.f32 %v2579, %v2621
          %v2645 = vadd.f32 %v2580, %v2621
          %v2646 = vadd.f32 %v2581, %v2621
          %v2647 = vadd.f32 %v2582, %v2621
          %v2648 = vadd.f32 %v2583, %v2621
          %v2649 = vadd.f32 %v2584, %v2621
          %v2650 = vadd.f32 %v2585, %v2621
          %v2651 = vadd.f32 %v2586, %v2621
          %v2652 = vadd.f32 %v2587, %v2621
          %v2653 = vadd.f32 %v2588, %v2621
          %v2654 = vadd.f32 %v2589, %v2621
          %v2655 = vadd.f32 %v2590, %v2621
          %v2656 = vadd.f32 %v2591, %v2621
          %v2657 = vadd.f32 %v2592, %v2621
          %v2658 = vadd.f32 %v2593, %v2621
          %v2659 = vadd.f32 %v2594, %v2621
          %v2660 = vadd.f32 %v2595, %v2621
          %v2661 = vadd.f32 %v2596, %v2621
          %v2662 = vadd.f32 %v2597, %v2621
          %v2663 = vadd.f32 %v2598, %v2621
          %v2664 = vadd.f32 %v2599, %v2621
          %v2665 = vadd.f32 %v2600, %v2621
          %v2666 = vadd.f32 %v2601, %v2621
          %v2667 = vadd.f32 %v2602, %v2621
          %v2668 = vadd.f32 %v2603, %v2621
          %v2669 = vadd.f32 %v2604, %v2621
          %v2670 = vadd.f32 %v2605, %v2621
          %v2671 = vadd.f32 %v2606, %v2621
          %v2672 = vadd.f32 %v2607, %v2621
          %v2673 = vadd.f32 %v2608, %v2621
          %v2674 = vadd.f32 %v2609, %v2621
          %v2675 = vadd.f32 %v2610, %v2621
          %v2676 = vadd.f32 %v2611, %v2621
          %v2677 = vadd.f32 %v2612, %v2621
          %v2678 = vadd.f32 %v2613, %v2621
          %v2679 = vadd.f32 %v2614, %v2621
          %v2680 = vadd.f32 %v2615, %v2621
          %vm2681 = vcmp.ge.f32.partialorder %v2623, 0.0
          %vm2682 = vcmp.ge.f32.partialorder %v2624, 0.0
          %vm2683 = vcmp.ge.f32.partialorder %v2625, 0.0
          %vm2684 = vcmp.ge.f32.partialorder %v2626, 0.0
          %vm2685 = vcmp.ge.f32.partialorder %v2627, 0.0
          %vm2686 = vcmp.ge.f32.partialorder %v2628, 0.0
          %vm2687 = vcmp.ge.f32.partialorder %v2629, 0.0
          %vm2688 = vcmp.ge.f32.partialorder %v2630, 0.0
          %vm2689 = vcmp.ge.f32.partialorder %v2631, 0.0
          %vm2690 = vcmp.ge.f32.partialorder %v2632, 0.0
          %vm2691 = vcmp.ge.f32.partialorder %v2633, 0.0
          %vm2692 = vcmp.ge.f32.partialorder %v2634, 0.0
          %vm2693 = vcmp.ge.f32.partialorder %v2635, 0.0
          %vm2694 = vcmp.ge.f32.partialorder %v2636, 0.0
          %vm2695 = vcmp.ge.f32.partialorder %v2637, 0.0
          %vm2696 = vcmp.ge.f32.partialorder %v2638, 0.0
          %vm2697 = vcmp.ge.f32.partialorder %v2639, 0.0
          %vm2698 = vcmp.ge.f32.partialorder %v2640, 0.0
          %vm2699 = vcmp.ge.f32.partialorder %v2641, 0.0
          %vm2700 = vcmp.ge.f32.partialorder %v2642, 0.0
          %vm2701 = vcmp.ge.f32.partialorder %v2643, 0.0
          %vm2702 = vcmp.ge.f32.partialorder %v2644, 0.0
          %vm2703 = vcmp.ge.f32.partialorder %v2645, 0.0
          %vm2704 = vcmp.ge.f32.partialorder %v2646, 0.0
          %vm2705 = vcmp.ge.f32.partialorder %v2647, 0.0
          %vm2706 = vcmp.ge.f32.partialorder %v2648, 0.0
          %vm2707 = vcmp.ge.f32.partialorder %v2649, 0.0
          %vm2708 = vcmp.ge.f32.partialorder %v2650, 0.0
          %vm2709 = vcmp.ge.f32.partialorder %v2651, 0.0
          %vm2710 = vcmp.ge.f32.partialorder %v2652, 0.0
          %vm2711 = vcmp.ge.f32.partialorder %v2653, 0.0
          %vm2712 = vcmp.ge.f32.partialorder %v2654, 0.0
          %vm2713 = vcmp.ge.f32.partialorder %v2655, 0.0
          %vm2714 = vcmp.ge.f32.partialorder %v2656, 0.0
          %vm2715 = vcmp.ge.f32.partialorder %v2657, 0.0
          %vm2716 = vcmp.ge.f32.partialorder %v2658, 0.0
          %vm2717 = vcmp.ge.f32.partialorder %v2659, 0.0
          %vm2718 = vcmp.ge.f32.partialorder %v2660, 0.0
          %vm2719 = vcmp.ge.f32.partialorder %v2661, 0.0
          %vm2720 = vcmp.ge.f32.partialorder %v2662, 0.0
          %vm2721 = vcmp.ge.f32.partialorder %v2663, 0.0
          %vm2722 = vcmp.ge.f32.partialorder %v2664, 0.0
          %vm2723 = vcmp.ge.f32.partialorder %v2665, 0.0
          %vm2724 = vcmp.ge.f32.partialorder %v2666, 0.0
          %vm2725 = vcmp.ge.f32.partialorder %v2667, 0.0
          %vm2726 = vcmp.ge.f32.partialorder %v2668, 0.0
          %vm2727 = vcmp.ge.f32.partialorder %v2669, 0.0
          %vm2728 = vcmp.ge.f32.partialorder %v2670, 0.0
          %vm2729 = vcmp.ge.f32.partialorder %v2671, 0.0
          %vm2730 = vcmp.ge.f32.partialorder %v2672, 0.0
          %vm2731 = vcmp.ge.f32.partialorder %v2673, 0.0
          %vm2732 = vcmp.ge.f32.partialorder %v2674, 0.0
          %vm2733 = vcmp.ge.f32.partialorder %v2675, 0.0
          %vm2734 = vcmp.ge.f32.partialorder %v2676, 0.0
          %vm2735 = vcmp.ge.f32.partialorder %v2677, 0.0
          %vm2736 = vcmp.ge.f32.partialorder %v2678, 0.0
          %vm2737 = vcmp.ge.f32.partialorder %v2679, 0.0
          %vm2738 = vcmp.ge.f32.partialorder %v2680, 0.0
          %v2739 = vmul.f32 %v2623, 0.2
          %v2740 = vmul.f32 %v2624, 0.2
          %v2741 = vmul.f32 %v2625, 0.2
          %v2742 = vmul.f32 %v2626, 0.2
          %v2743 = vmul.f32 %v2627, 0.2
          %v2744 = vmul.f32 %v2628, 0.2
          %v2745 = vmul.f32 %v2629, 0.2
          %v2746 = vmul.f32 %v2630, 0.2
          %v2747 = vmul.f32 %v2631, 0.2
          %v2748 = vmul.f32 %v2632, 0.2
          %v2749 = vmul.f32 %v2633, 0.2
          %v2750 = vmul.f32 %v2634, 0.2
          %v2751 = vmul.f32 %v2635, 0.2
          %v2752 = vmul.f32 %v2636, 0.2
          %v2753 = vmul.f32 %v2637, 0.2
          %v2754 = vmul.f32 %v2638, 0.2
          %v2755 = vmul.f32 %v2639, 0.2
          %v2756 = vmul.f32 %v2640, 0.2
          %v2757 = vmul.f32 %v2641, 0.2
          %v2758 = vmul.f32 %v2642, 0.2
          %v2759 = vmul.f32 %v2643, 0.2
          %v2760 = vmul.f32 %v2644, 0.2
          %v2761 = vmul.f32 %v2645, 0.2
          %v2762 = vmul.f32 %v2646, 0.2
          %v2763 = vmul.f32 %v2647, 0.2
          %v2764 = vmul.f32 %v2648, 0.2
          %v2765 = vmul.f32 %v2649, 0.2
          %v2766 = vmul.f32 %v2650, 0.2
          %v2767 = vmul.f32 %v2651, 0.2
          %v2768 = vmul.f32 %v2652, 0.2
          %v2769 = vmul.f32 %v2653, 0.2
          %v2770 = vmul.f32 %v2654, 0.2
          %v2771 = vmul.f32 %v2655, 0.2
          %v2772 = vmul.f32 %v2656, 0.2
          %v2773 = vmul.f32 %v2657, 0.2
          %v2774 = vmul.f32 %v2658, 0.2
          %v2775 = vmul.f32 %v2659, 0.2
          %v2776 = vmul.f32 %v2660, 0.2
          %v2777 = vmul.f32 %v2661, 0.2
          %v2778 = vmul.f32 %v2662, 0.2
          %v2779 = vmul.f32 %v2663, 0.2
          %v2780 = vmul.f32 %v2664, 0.2
          %v2781 = vmul.f32 %v2665, 0.2
          %v2782 = vmul.f32 %v2666, 0.2
          %v2783 = vmul.f32 %v2667, 0.2
          %v2784 = vmul.f32 %v2668, 0.2
          %v2785 = vmul.f32 %v2669, 0.2
          %v2786 = vmul.f32 %v2670, 0.2
          %v2787 = vmul.f32 %v2671, 0.2
          %v2788 = vmul.f32 %v2672, 0.2
          %v2789 = vmul.f32 %v2673, 0.2
          %v2790 = vmul.f32 %v2674, 0.2
          %v2791 = vmul.f32 %v2675, 0.2
          %v2792 = vmul.f32 %v2676, 0.2
          %v2793 = vmul.f32 %v2677, 0.2
          %v2794 = vmul.f32 %v2678, 0.2
          %v2795 = vmul.f32 %v2679, 0.2
          %v2796 = vmul.f32 %v2680, 0.2
          %v2797 = vsel %vm2681, %v2623, %v2739
          %v2798 = vsel %vm2682, %v2624, %v2740
          %v2799 = vsel %vm2683, %v2625, %v2741
          %v2800 = vsel %vm2684, %v2626, %v2742
          %v2801 = vsel %vm2685, %v2627, %v2743
          %v2802 = vsel %vm2686, %v2628, %v2744
          %v2803 = vsel %vm2687, %v2629, %v2745
          %v2804 = vsel %vm2688, %v2630, %v2746
          %v2805 = vsel %vm2689, %v2631, %v2747
          %v2806 = vsel %vm2690, %v2632, %v2748
          %v2807 = vsel %vm2691, %v2633, %v2749
          %v2808 = vsel %vm2692, %v2634, %v2750
          %v2809 = vsel %vm2693, %v2635, %v2751
          %v2810 = vsel %vm2694, %v2636, %v2752
          %v2811 = vsel %vm2695, %v2637, %v2753
          %v2812 = vsel %vm2696, %v2638, %v2754
          %v2813 = vsel %vm2697, %v2639, %v2755
          %v2814 = vsel %vm2698, %v2640, %v2756
          %v2815 = vsel %vm2699, %v2641, %v2757
          %v2816 = vsel %vm2700, %v2642, %v2758
          %v2817 = vsel %vm2701, %v2643, %v2759
          %v2818 = vsel %vm2702, %v2644, %v2760
          %v2819 = vsel %vm2703, %v2645, %v2761
          %v2820 = vsel %vm2704, %v2646, %v2762
          %v2821 = vsel %vm2705, %v2647, %v2763
          %v2822 = vsel %vm2706, %v2648, %v2764
          %v2823 = vsel %vm2707, %v2649, %v2765
          %v2824 = vsel %vm2708, %v2650, %v2766
          %v2825 = vsel %vm2709, %v2651, %v2767
          %v2826 = vsel %vm2710, %v2652, %v2768
          %v2827 = vsel %vm2711, %v2653, %v2769
          %v2828 = vsel %vm2712, %v2654, %v2770
          %v2829 = vsel %vm2713, %v2655, %v2771
          %v2830 = vsel %vm2714, %v2656, %v2772
          %v2831 = vsel %vm2715, %v2657, %v2773
          %v2832 = vsel %vm2716, %v2658, %v2774
          %v2833 = vsel %vm2717, %v2659, %v2775
          %v2834 = vsel %vm2718, %v2660, %v2776
          %v2835 = vsel %vm2719, %v2661, %v2777
          %v2836 = vsel %vm2720, %v2662, %v2778
          %v2837 = vsel %vm2721, %v2663, %v2779
          %v2838 = vsel %vm2722, %v2664, %v2780
          %v2839 = vsel %vm2723, %v2665, %v2781
          %v2840 = vsel %vm2724, %v2666, %v2782
          %v2841 = vsel %vm2725, %v2667, %v2783
          %v2842 = vsel %vm2726, %v2668, %v2784
          %v2843 = vsel %vm2727, %v2669, %v2785
          %v2844 = vsel %vm2728, %v2670, %v2786
          %v2845 = vsel %vm2729, %v2671, %v2787
          %v2846 = vsel %vm2730, %v2672, %v2788
          %v2847 = vsel %vm2731, %v2673, %v2789
          %v2848 = vsel %vm2732, %v2674, %v2790
          %v2849 = vsel %vm2733, %v2675, %v2791
          %v2850 = vsel %vm2734, %v2676, %v2792
          %v2851 = vsel %vm2735, %v2677, %v2793
          %v2852 = vsel %vm2736, %v2678, %v2794
          %v2853 = vsel %vm2737, %v2679, %v2795
          %v2854 = vsel %vm2738, %v2680, %v2796
          %v2855 = vpack.c.bf16 %v2798, %v2797
          %v2856 = vpack.c.bf16 %v2800, %v2799
          %v2857 = vpack.c.bf16 %v2802, %v2801
          %v2858 = vpack.c.bf16 %v2804, %v2803
          %v2859 = vpack.c.bf16 %v2806, %v2805
          %v2860 = vpack.c.bf16 %v2808, %v2807
          %v2861 = vpack.c.bf16 %v2810, %v2809
          %v2862 = vpack.c.bf16 %v2812, %v2811
          %v2863 = vpack.c.bf16 %v2814, %v2813
          %v2864 = vpack.c.bf16 %v2816, %v2815
          %v2865 = vpack.c.bf16 %v2818, %v2817
          %v2866 = vpack.c.bf16 %v2820, %v2819
          %v2867 = vpack.c.bf16 %v2822, %v2821
          %v2868 = vpack.c.bf16 %v2824, %v2823
          %v2869 = vpack.c.bf16 %v2826, %v2825
          %v2870 = vpack.c.bf16 %v2828, %v2827
          %v2871 = vpack.c.bf16 %v2830, %v2829
          %v2872 = vpack.c.bf16 %v2832, %v2831
          %v2873 = vpack.c.bf16 %v2834, %v2833
          %v2874 = vpack.c.bf16 %v2836, %v2835
          %v2875 = vpack.c.bf16 %v2838, %v2837
          %v2876 = vpack.c.bf16 %v2840, %v2839
          %v2877 = vpack.c.bf16 %v2842, %v2841
          %v2878 = vpack.c.bf16 %v2844, %v2843
          %v2879 = vpack.c.bf16 %v2846, %v2845
          %v2880 = vpack.c.bf16 %v2848, %v2847
          %v2881 = vpack.c.bf16 %v2850, %v2849
          %v2882 = vpack.c.bf16 %v2852, %v2851
          %v2883 = vpack.c.bf16 %v2854, %v2853
          %v2913 = vunpack.c.l.b16 %v2855
          %v2914 = vunpack.c.h.b16 %v2855
          %v2915 = vunpack.c.l.b16 %v2856
          %v2916 = vunpack.c.h.b16 %v2856
          %v2917 = vunpack.c.l.b16 %v2857
          %v2918 = vunpack.c.h.b16 %v2857
          %v2919 = vunpack.c.l.b16 %v2858
          %v2920 = vunpack.c.h.b16 %v2858
          %v2921 = vunpack.c.l.b16 %v2859
          %v2922 = vunpack.c.h.b16 %v2859
          %v2923 = vunpack.c.l.b16 %v2860
          %v2924 = vunpack.c.h.b16 %v2860
          %v2925 = vunpack.c.l.b16 %v2861
          %v2926 = vunpack.c.h.b16 %v2861
          %v2927 = vunpack.c.l.b16 %v2862
          %v2928 = vunpack.c.h.b16 %v2862
          %v2929 = vunpack.c.l.b16 %v2863
          %v2930 = vunpack.c.h.b16 %v2863
          %v2931 = vunpack.c.l.b16 %v2864
          %v2932 = vunpack.c.h.b16 %v2864
          %v2933 = vunpack.c.l.b16 %v2865
          %v2934 = vunpack.c.h.b16 %v2865
          %v2935 = vunpack.c.l.b16 %v2866
          %v2936 = vunpack.c.h.b16 %v2866
          %v2937 = vunpack.c.l.b16 %v2867
          %v2938 = vunpack.c.h.b16 %v2867
          %v2939 = vunpack.c.l.b16 %v2868
          %v2940 = vunpack.c.h.b16 %v2868
          %v2941 = vunpack.c.l.b16 %v2869
          %v2942 = vunpack.c.h.b16 %v2869
          %v2943 = vunpack.c.l.b16 %v2870
          %v2944 = vunpack.c.h.b16 %v2870
          %v2945 = vunpack.c.l.b16 %v2871
          %v2946 = vunpack.c.h.b16 %v2871
          %v2947 = vunpack.c.l.b16 %v2872
          %v2948 = vunpack.c.h.b16 %v2872
          %v2949 = vunpack.c.l.b16 %v2873
          %v2950 = vunpack.c.h.b16 %v2873
          %v2951 = vunpack.c.l.b16 %v2874
          %v2952 = vunpack.c.h.b16 %v2874
          %v2953 = vunpack.c.l.b16 %v2875
          %v2954 = vunpack.c.h.b16 %v2875
          %v2955 = vunpack.c.l.b16 %v2876
          %v2956 = vunpack.c.h.b16 %v2876
          %v2957 = vunpack.c.l.b16 %v2877
          %v2958 = vunpack.c.h.b16 %v2877
          %v2959 = vunpack.c.l.b16 %v2878
          %v2960 = vunpack.c.h.b16 %v2878
          %v2961 = vunpack.c.l.b16 %v2879
          %v2962 = vunpack.c.h.b16 %v2879
          %v2963 = vunpack.c.l.b16 %v2880
          %v2964 = vunpack.c.h.b16 %v2880
          %v2965 = vunpack.c.l.b16 %v2881
          %v2966 = vunpack.c.h.b16 %v2881
          %v2967 = vunpack.c.l.b16 %v2882
          %v2968 = vunpack.c.h.b16 %v2882
          %v2969 = vunpack.c.l.b16 %v2883
          %v2970 = vunpack.c.h.b16 %v2883
          %v2971 = vpack.c.b16 %v2913, %v2913
          %v2972 = vpack.c.b16 %v2914, %v2914
          %v2973 = vpack.c.b16 %v2915, %v2915
          %v2974 = vpack.c.b16 %v2916, %v2916
          %v2975 = vpack.c.b16 %v2917, %v2917
          %v2976 = vpack.c.b16 %v2918, %v2918
          %v2977 = vpack.c.b16 %v2919, %v2919
          %v2978 = vpack.c.b16 %v2920, %v2920
          %v2979 = vpack.c.b16 %v2921, %v2921
          %v2980 = vpack.c.b16 %v2922, %v2922
          %v2981 = vpack.c.b16 %v2923, %v2923
          %v2982 = vpack.c.b16 %v2924, %v2924
          %v2983 = vpack.c.b16 %v2925, %v2925
          %v2984 = vpack.c.b16 %v2926, %v2926
          %v2985 = vpack.c.b16 %v2927, %v2927
          %v2986 = vpack.c.b16 %v2928, %v2928
          %v2987 = vpack.c.b16 %v2929, %v2929
          %v2988 = vpack.c.b16 %v2930, %v2930
          %v2989 = vpack.c.b16 %v2931, %v2931
          %v2990 = vpack.c.b16 %v2932, %v2932
          %v2991 = vpack.c.b16 %v2933, %v2933
          %v2992 = vpack.c.b16 %v2934, %v2934
          %v2993 = vpack.c.b16 %v2935, %v2935
          %v2994 = vpack.c.b16 %v2936, %v2936
          %v2995 = vpack.c.b16 %v2937, %v2937
          %v2996 = vpack.c.b16 %v2938, %v2938
          %v2997 = vpack.c.b16 %v2939, %v2939
          %v2998 = vpack.c.b16 %v2940, %v2940
          %v2999 = vpack.c.b16 %v2941, %v2941
          %v3000 = vpack.c.b16 %v2942, %v2942
          %v3001 = vpack.c.b16 %v2943, %v2943
          %v3002 = vpack.c.b16 %v2944, %v2944
          %v3003 = vpack.c.b16 %v2945, %v2945
          %v3004 = vpack.c.b16 %v2946, %v2946
          %v3005 = vpack.c.b16 %v2947, %v2947
          %v3006 = vpack.c.b16 %v2948, %v2948
          %v3007 = vpack.c.b16 %v2949, %v2949
          %v3008 = vpack.c.b16 %v2950, %v2950
          %v3009 = vpack.c.b16 %v2951, %v2951
          %v3010 = vpack.c.b16 %v2952, %v2952
          %v3011 = vpack.c.b16 %v2953, %v2953
          %v3012 = vpack.c.b16 %v2954, %v2954
          %v3013 = vpack.c.b16 %v2955, %v2955
          %v3014 = vpack.c.b16 %v2956, %v2956
          %v3015 = vpack.c.b16 %v2957, %v2957
          %v3016 = vpack.c.b16 %v2958, %v2958
          %v3017 = vpack.c.b16 %v2959, %v2959
          %v3018 = vpack.c.b16 %v2960, %v2960
          %v3019 = vpack.c.b16 %v2961, %v2961
          %v3020 = vpack.c.b16 %v2962, %v2962
          %v3021 = vpack.c.b16 %v2963, %v2963
          %v3022 = vpack.c.b16 %v2964, %v2964
          %v3023 = vpack.c.b16 %v2965, %v2965
          %v3024 = vpack.c.b16 %v2966, %v2966
          %v3025 = vpack.c.b16 %v2967, %v2967
          %v3026 = vpack.c.b16 %v2968, %v2968
          %v3027 = vpack.c.b16 %v2969, %v2969
          %v3028 = vpack.c.b16 %v2970, %v2970
          %3087 = vst [vmem:[%s519] sm:$0xf] %v2971
          %3088 = vst [vmem:[%s519 + $0x4] sm:$0xf] %v2972
          %3089 = vst [vmem:[%s519 + $0x8] sm:$0xf] %v2973
          %3090 = vst [vmem:[%s519 + $0xc] sm:$0xf] %v2974
          %3091 = vst [vmem:[%s519 + $0x10] sm:$0xf] %v2975
          %3092 = vst [vmem:[%s519 + $0x14] sm:$0xf] %v2976
          %3093 = vst [vmem:[%s519 + $0x18] sm:$0xf] %v2977
          %3094 = vst [vmem:[%s519 + $0x1c] sm:$0xf] %v2978
          %3095 = vst [vmem:[%s519 + $0x20] sm:$0xf] %v2979
          %3096 = vst [vmem:[%s519 + $0x24] sm:$0xf] %v2980
          %3097 = vst [vmem:[%s519 + $0x28] sm:$0xf] %v2981
          %3098 = vst [vmem:[%s519 + $0x2c] sm:$0xf] %v2982
          %3099 = vst [vmem:[%s519 + $0x30] sm:$0xf] %v2983
          %3100 = vst [vmem:[%s519 + $0x34] sm:$0xf] %v2984
          %3101 = vst [vmem:[%s519 + $0x38] sm:$0xf] %v2985
          %3102 = vst [vmem:[%s519 + $0x3c] sm:$0xf] %v2986
          %3103 = vst [vmem:[%s519 + $0x40] sm:$0xf] %v2987
          %3104 = vst [vmem:[%s519 + $0x44] sm:$0xf] %v2988
          %3105 = vst [vmem:[%s519 + $0x48] sm:$0xf] %v2989
          %3106 = vst [vmem:[%s519 + $0x4c] sm:$0xf] %v2990
          %3107 = vst [vmem:[%s519 + $0x50] sm:$0xf] %v2991
          %3108 = vst [vmem:[%s519 + $0x54] sm:$0xf] %v2992
          %3109 = vst [vmem:[%s519 + $0x58] sm:$0xf] %v2993
          %3110 = vst [vmem:[%s519 + $0x5c] sm:$0xf] %v2994
          %3111 = vst [vmem:[%s519 + $0x60] sm:$0xf] %v2995
          %3112 = vst [vmem:[%s519 + $0x64] sm:$0xf] %v2996
          %3113 = vst [vmem:[%s519 + $0x68] sm:$0xf] %v2997
          %3114 = vst [vmem:[%s519 + $0x6c] sm:$0xf] %v2998
          %3115 = vst [vmem:[%s519 + $0x70] sm:$0xf] %v2999
          %3116 = vst [vmem:[%s519 + $0x74] sm:$0xf] %v3000
          %3117 = vst [vmem:[%s519 + $0x78] sm:$0xf] %v3001
          %3118 = vst [vmem:[%s519 + $0x7c] sm:$0xf] %v3002
          %3119 = vst [vmem:[%s519 + $0x80] sm:$0xf] %v3003
          %3120 = vst [vmem:[%s519 + $0x84] sm:$0xf] %v3004
          %3121 = vst [vmem:[%s519 + $0x88] sm:$0xf] %v3005
          %3122 = vst [vmem:[%s519 + $0x8c] sm:$0xf] %v3006
          %3123 = vst [vmem:[%s519 + $0x90] sm:$0xf] %v3007
          %3124 = vst [vmem:[%s519 + $0x94] sm:$0xf] %v3008
          %3125 = vst [vmem:[%s519 + $0x98] sm:$0xf] %v3009
          %3126 = vst [vmem:[%s519 + $0x9c] sm:$0xf] %v3010
          %3127 = vst [vmem:[%s519 + $0xa0] sm:$0xf] %v3011
          %3128 = vst [vmem:[%s519 + $0xa4] sm:$0xf] %v3012
          %3129 = vst [vmem:[%s519 + $0xa8] sm:$0xf] %v3013
          %3130 = vst [vmem:[%s519 + $0xac] sm:$0xf] %v3014
          %3131 = vst [vmem:[%s519 + $0xb0] sm:$0xf] %v3015
          %3132 = vst [vmem:[%s519 + $0xb4] sm:$0xf] %v3016
          %3133 = vst [vmem:[%s519 + $0xb8] sm:$0xf] %v3017
          %3134 = vst [vmem:[%s519 + $0xbc] sm:$0xf] %v3018
          %3135 = vst [vmem:[%s519 + $0xc0] sm:$0xf] %v3019
          %3136 = vst [vmem:[%s519 + $0xc4] sm:$0xf] %v3020
          %3137 = vst [vmem:[%s519 + $0xc8] sm:$0xf] %v3021
          %3138 = vst [vmem:[%s519 + $0xcc] sm:$0xf] %v3022
          %3139 = vst [vmem:[%s519 + $0xd0] sm:$0xf] %v3023
          %3140 = vst [vmem:[%s519 + $0xd4] sm:$0xf] %v3024
          %3141 = vst [vmem:[%s519 + $0xd8] sm:$0xf] %v3025
          %3142 = vst [vmem:[%s519 + $0xdc] sm:$0xf] %v3026
          %3143 = vst [vmem:[%s519 + $0xe0] sm:$0xf] %v3027
          %3144 = vst [vmem:[%s519 + $0xe4] sm:$0xf] %v3028
        $region67: #{discriminator_forward.5} parent=54 // pred_fallthru
          _
        %p3145 = scmp.lt.s32.totalorder %s19, 0
        %s3146 = scalar_select %p3145, %s19, 0
        %s3147 = smul.addr %s3146, 4
        %s3148 = scalar_lea.vmem %s4, %s3147
        // Predicated region
        $region68: #{discriminator_forward.5} parent=54 // pred_check
          %p3149 = pneg %p151
        $region69: #{discriminator_forward.5} parent=54 // pred_check_branch
          %3151 = sbr.rel (%p3149) target = $region71
        $region70: #{discriminator_forward.5} parent=54 // pred_region
          _
        $region71: #{discriminator_forward.5} parent=54 // pred_fallthru
          _
        // Predicated region
        $region72: #{discriminator_forward.5} parent=54 // pred_check
          %p3152 = pneg %p151
        $region73: #{discriminator_forward.5} parent=54 // pred_check_branch
          %3154 = sbr.rel (%p3152) target = $region75
        $region74: #{discriminator_forward.5} parent=54 // pred_region
          %p3155 = scmp.lt.s32.totalorder %s19, 0
          %s3156 = scalar_select %p3155, %s19, 0
          %s3157 = smul.addr %s3156, 4
          %s3158 = scalar_lea.vmem %s4, %s3157
        $region75: #{discriminator_forward.5} parent=54 // pred_fallthru
          _
      $region55: #{discriminator_forward.5} parent=5 // pred_fallthru
        _
      %p3159 = scmp.le.s32.totalorder 2, %s10
      // Predicated region
      $region76: #{discriminator_forward.5} parent=5 // pred_check
        %p3160 = pneg %p3159
      $region77: #{discriminator_forward.5} parent=5 // pred_check_branch
        %3162 = sbr.rel (%p3160) target = $region79
      $region78: #{discriminator_forward.5} parent=5 // pred_region
        %s3163 = ssub.s32 %s10, 2
      $region79: #{discriminator_forward.5} parent=5 // pred_fallthru
        _
    $region6: #{discriminator_forward.5} parent=1 // loop_footer
      %s14 = sadd.s32 1, %s10
    $region7: #{discriminator_forward.5} parent=1 // loop_footer_branch
      %9 = sbr.rel target = $region3
    $region8: #{discriminator_forward.5} parent=1 // loop_exit
      _

// kernel: discriminator_forward.6
$region0: #{discriminator_forward.6}
  #allocation0 [shape = 'u32[]', space=smem, size = 0x4, offset = 0x4, fixed_abs, tag = 'smem constant byte address 0x4 - core index']
  #allocation1 [shape = 'u32[144,128]{1,0:T(1,128)}', space=vmem, size = 0x12000, scoped, tag = 'internal scratch']
  #allocation2 [shape = 'f32[80,256]{1,0:T(8,128)}', space=vmem, size = 0x14000, scoped, tag = 'scratch operand']
  %s0 = inlined_call_operand.vmem [shape: bf16[80,2048], index: 0, kind: input, shape index: {}]
  %s1 = inlined_call_operand.vmem [shape: bf16[2048,256], index: 1, kind: input, shape index: {}]
  %s2 = inlined_call_operand.vmem [shape: f32[1,256], index: 2, kind: input, shape index: {}]
  %s3 = inlined_call_operand.vmem [shape: f32[1,256], index: 3, kind: input, shape index: {}]
  %s4 = inlined_call_operand.vmem [shape: bf16[80,256], index: 4, kind: output, shape index: {}]
  %s5 = sld [smem:[#allocation0]]
  $region80: #{discriminator_forward.6} parent=0
    _
  %s7 = ssub.s32 1, %s5
  %s8 = scalar_select 0, %s7, %s5
  $region1: #{discriminator_forward.6} parent=0
    #allocation3 [shape = 'u8[163840]{0}', space=vmem, size = 0x28000, scoped, tag = 'input window, operand 0']
    loop: start=0, step=1, limit=6
    $region2: #{discriminator_forward.6} parent=1 // loop_pre_header
      _
    $region3: #{discriminator_forward.6} parent=1 // loop_header
      %s10 = sphi 0, %s14
      %p11 = scmp.ge.s32.totalorder %s10, 6
      %s17 = sphi 0, %s29
      %s18 = sphi 0, %s25
      %s19 = sphi 0, %s17
      %s20 = sphi 0, %s18
      %s21 = sphi 0, %s19
      %s22 = sphi 0, %s20
      %s32 = sphi 0, %s34
      %s35 = sphi 0, %s32
      %s36 = sphi 0, %s35
      %s52 = sphi 0, %s36
      %s60 = sphi 0, %s62
      %s63 = sphi 0, %s60
      %s64 = sphi 0, %s63
      %s80 = sphi 0, %s64
      %s86 = sphi 0, %s88
      %s89 = sphi 0, %s86
      %s90 = sphi 0, %s89
      %s106 = sphi 0, %s90
      %s112 = sphi 0, %s114
      %s115 = sphi 0, %s112
      %s116 = sphi 0, %s115
      %s132 = sphi 0, %s116
      %s138 = sphi 0, %s140
      %s141 = sphi 0, %s138
      %s142 = sphi 0, %s141
      %s158 = sphi 0, %s142
    $region4: #{discriminator_forward.6} parent=1 // loop_header_branch
      %13 = sbr.rel (%p11) target = $region8
    $region5: #{discriminator_forward.6} parent=1 // loop_body
      %s15 = ssub.s32 %s10, 1
      %s16 = ssub.s32 %s10, 2
      %s23 = sadd.s32 1, %s18
      %p24 = scmp.ge.s32.totalorder %s23, 4
      %s25 = scalar_select %p24, 0, %s23
      %s26 = sadd.s32 1, %s17
      %s27 = scalar_select %p24, %s26, %s17
      %p28 = scmp.ge.s32.totalorder %s27, 1
      %s29 = scalar_select %p28, 0, %s27
      %s30 = ssub.s32 %s18, %s25
      %p31 = scmp.eq.s32.totalorder %s30, 0
      %s33 = sadd.s32 %s32, 1
      %s34 = scalar_select %p31, %s32, %s33
      %p37 = pneg %p31
      %p38 = scmp.eq.s32.totalorder %s10, 3
      %p39 = por %p37, %p38
      %p40 = scmp.ne.s32.totalorder %s32, %s35
      %p41 = scmp.eq.s32.totalorder %s10, 0
      %p42 = por %p40, %p41
      %p43 = scmp.ne.s32.totalorder %s32, %s35
      %p44 = scmp.eq.s32.totalorder %s15, 3
      %p45 = por %p43, %p44
      %p46 = scmp.ne.s32.totalorder %s35, %s36
      %p47 = scmp.eq.s32.totalorder %s15, 0
      %p48 = por %p46, %p47
      %p49 = scmp.ne.s32.totalorder %s35, %s36
      %p50 = scmp.eq.s32.totalorder %s16, 3
      %p51 = por %p49, %p50
      %p53 = scmp.ne.s32.totalorder %s36, %s52
      %p54 = scmp.eq.s32.totalorder %s16, 0
      %p55 = por %p53, %p54
      %s56 = ssub.s32 %s18, %s25
      %s57 = ssub.s32 %s17, %s29
      %s58 = sor.u32 %s56, %s57
      %p59 = scmp.eq.s32.totalorder %s58, 0
      %s61 = sadd.s32 %s60, 1
      %s62 = scalar_select %p59, %s60, %s61
      %p65 = pneg %p59
      %p66 = scmp.eq.s32.totalorder %s10, 3
      %p67 = por %p65, %p66
      %p68 = scmp.ne.s32.totalorder %s60, %s63
      %p69 = scmp.eq.s32.totalorder %s10, 0
      %p70 = por %p68, %p69
      %p71 = scmp.ne.s32.totalorder %s60, %s63
      %p72 = scmp.eq.s32.totalorder %s15, 3
      %p73 = por %p71, %p72
      %p74 = scmp.ne.s32.totalorder %s63, %s64
      %p75 = scmp.eq.s32.totalorder %s15, 0
      %p76 = por %p74, %p75
      %p77 = scmp.ne.s32.totalorder %s63, %s64
      %p78 = scmp.eq.s32.totalorder %s16, 3
      %p79 = por %p77, %p78
      %p81 = scmp.ne.s32.totalorder %s64, %s80
      %p82 = scmp.eq.s32.totalorder %s16, 0
      %p83 = por %p81, %p82
      %s84 = ssub.s32 %s17, %s29
      %p85 = scmp.eq.s32.totalorder %s84, 0
      %s87 = sadd.s32 %s86, 1
      %s88 = scalar_select %p85, %s86, %s87
      %p91 = pneg %p85
      %p92 = scmp.eq.s32.totalorder %s10, 3
      %p93 = por %p91, %p92
      %p94 = scmp.ne.s32.totalorder %s86, %s89
      %p95 = scmp.eq.s32.totalorder %s10, 0
      %p96 = por %p94, %p95
      %p97 = scmp.ne.s32.totalorder %s86, %s89
      %p98 = scmp.eq.s32.totalorder %s15, 3
      %p99 = por %p97, %p98
      %p100 = scmp.ne.s32.totalorder %s89, %s90
      %p101 = scmp.eq.s32.totalorder %s15, 0
      %p102 = por %p100, %p101
      %p103 = scmp.ne.s32.totalorder %s89, %s90
      %p104 = scmp.eq.s32.totalorder %s16, 3
      %p105 = por %p103, %p104
      %p107 = scmp.ne.s32.totalorder %s90, %s106
      %p108 = scmp.eq.s32.totalorder %s16, 0
      %p109 = por %p107, %p108
      %s110 = ssub.s32 %s17, %s29
      %p111 = scmp.eq.s32.totalorder %s110, 0
      %s113 = sadd.s32 %s112, 1
      %s114 = scalar_select %p111, %s112, %s113
      %p117 = pneg %p111
      %p118 = scmp.eq.s32.totalorder %s10, 3
      %p119 = por %p117, %p118
      %p120 = scmp.ne.s32.totalorder %s112, %s115
      %p121 = scmp.eq.s32.totalorder %s10, 0
      %p122 = por %p120, %p121
      %p123 = scmp.ne.s32.totalorder %s112, %s115
      %p124 = scmp.eq.s32.totalorder %s15, 3
      %p125 = por %p123, %p124
      %p126 = scmp.ne.s32.totalorder %s115, %s116
      %p127 = scmp.eq.s32.totalorder %s15, 0
      %p128 = por %p126, %p127
      %p129 = scmp.ne.s32.totalorder %s115, %s116
      %p130 = scmp.eq.s32.totalorder %s16, 3
      %p131 = por %p129, %p130
      %p133 = scmp.ne.s32.totalorder %s116, %s132
      %p134 = scmp.eq.s32.totalorder %s16, 0
      %p135 = por %p133, %p134
      %s136 = ssub.s32 %s17, %s29
      %p137 = scmp.eq.s32.totalorder %s136, 0
      %s139 = sadd.s32 %s138, 1
      %s140 = scalar_select %p137, %s138, %s139
      %p143 = pneg %p137
      %p144 = scmp.eq.s32.totalorder %s10, 3
      %p145 = por %p143, %p144
      %p146 = scmp.ne.s32.totalorder %s138, %s141
      %p147 = scmp.eq.s32.totalorder %s10, 0
      %p148 = por %p146, %p147
      %p149 = scmp.ne.s32.totalorder %s138, %s141
      %p150 = scmp.eq.s32.totalorder %s15, 3
      %p151 = por %p149, %p150
      %p152 = scmp.ne.s32.totalorder %s141, %s142
      %p153 = scmp.eq.s32.totalorder %s15, 0
      %p154 = por %p152, %p153
      %p155 = scmp.ne.s32.totalorder %s141, %s142
      %p156 = scmp.eq.s32.totalorder %s16, 3
      %p157 = por %p155, %p156
      %p159 = scmp.ne.s32.totalorder %s142, %s158
      %p160 = scmp.eq.s32.totalorder %s16, 0
      %p161 = por %p159, %p160
      %p162 = scmp.le.s32.totalorder 1, %s10
      %p163 = scmp.lt.s32.totalorder %s10, 5
      %p164 = pnand %p162, %p163
      %p165 = pneg %p164
      // Predicated region
      $region9: #{discriminator_forward.6} parent=5 // pred_check
        _
      $region10: #{discriminator_forward.6} parent=5 // pred_check_branch
        %167 = sbr.rel (%p164) target = $region12
      $region11: #{discriminator_forward.6} parent=5 // pred_region
        %s168 = ssub.s32 %s10, 1
        // Predicated region
        $region13: #{discriminator_forward.6} parent=11 // pred_check
          %p169 = pneg %p102
        $region14: #{discriminator_forward.6} parent=11 // pred_check_branch
          %171 = sbr.rel (%p169) target = $region16
        $region15: #{discriminator_forward.6} parent=11 // pred_region
          %s172 = smul.u32 2, %s19
          %p173 = scmp.lt.s32.totalorder %s172, 1
          %s174 = scalar_select %p173, %s172, 1
          %s175 = scalar_lea.vmem %s2, %s174
          %s176 = smul.u32 2, %s19
        $region16: #{discriminator_forward.6} parent=11 // pred_fallthru
          _
        // Predicated region
        $region17: #{discriminator_forward.6} parent=11 // pred_check
          %p177 = pneg %p128
        $region18: #{discriminator_forward.6} parent=11 // pred_check_branch
          %179 = sbr.rel (%p177) target = $region20
        $region19: #{discriminator_forward.6} parent=11 // pred_region
          %s180 = smul.u32 2, %s19
          %p181 = scmp.lt.s32.totalorder %s180, 1
          %s182 = scalar_select %p181, %s180, 1
          %s183 = scalar_lea.vmem %s3, %s182
          %s184 = smul.u32 2, %s19
        $region20: #{discriminator_forward.6} parent=11 // pred_fallthru
          _
      $region12: #{discriminator_forward.6} parent=5 // pred_fallthru
        _
      %p185 = scmp.lt.s32.totalorder %s10, 4
      // Predicated region
      $region21: #{discriminator_forward.6} parent=5 // pred_check
        %p186 = pneg %p185
      $region22: #{discriminator_forward.6} parent=5 // pred_check_branch
        %188 = sbr.rel (%p186) target = $region24
      $region23: #{discriminator_forward.6} parent=5 // pred_region
        // Predicated region
        $region25: #{discriminator_forward.6} parent=23 // pred_check
          %p189 = pneg %p42
        $region26: #{discriminator_forward.6} parent=23 // pred_check_branch
          %191 = sbr.rel (%p189) target = $region28
        $region27: #{discriminator_forward.6} parent=23 // pred_region
          %s192 = sand.u32 %s32, 1
          %s193 = sand.u32 %s32, 1
          %s194 = smul.addr %s193, 160
          %s195 = scalar_lea.vmem [#allocation3], %s194
          %s196 = smul.u32 4, %s18
          %s197 = smul.addr %s196, 4
          %s198 = scalar_lea.vmem %s0, %s197
          // Predicated region
          $region29: #{discriminator_forward.6} parent=27 // pred_check
            _
          $region30: #{discriminator_forward.6} parent=27 // pred_check_branch
            %200 = sbr.rel (0) target = $region32
          $region31: #{discriminator_forward.6} parent=27 // pred_region
            // Predicated region
            $region33: #{discriminator_forward.6} parent=31 // pred_check
              _
            $region34: #{discriminator_forward.6} parent=31 // pred_check_branch
              %202 = sbr.rel (0) target = $region36
            $region35: #{discriminator_forward.6} parent=31 // pred_region
              loop: start=0, step=1, limit=1
              $region37: #{discriminator_forward.6} parent=35 // loop_pre_header
                _
              $region38: #{discriminator_forward.6} parent=35 // loop_header
                %s204 = sphi 0, %s208
                %p205 = scmp.ge.s32.totalorder %s204, 1
                %s209 = sphi %s198, %s198
                %s210 = sphi %s195, %s195
              $region39: #{discriminator_forward.6} parent=35 // loop_header_branch
                %207 = sbr.rel (%p205) target = $region43
              $region40: #{discriminator_forward.6} parent=35 // loop_body
                %v211 = vld [vmem:[%s209] sm:$0xff]
                %212 = vst [vmem:[%s210] sm:$0xff] %v211
                %v213 = vld [vmem:[%s209 + $0x8] sm:$0xff]
                %214 = vst [vmem:[%s210 + $0x8] sm:$0xff] %v213
                %v215 = vld [vmem:[%s209 + $0x40] sm:$0xff]
                %216 = vst [vmem:[%s210 + $0x10] sm:$0xff] %v215
                %v217 = vld [vmem:[%s209 + $0x48] sm:$0xff]
                %218 = vst [vmem:[%s210 + $0x18] sm:$0xff] %v217
                %v219 = vld [vmem:[%s209 + $0x80] sm:$0xff]
                %220 = vst [vmem:[%s210 + $0x20] sm:$0xff] %v219
                %v221 = vld [vmem:[%s209 + $0x88] sm:$0xff]
                %222 = vst [vmem:[%s210 + $0x28] sm:$0xff] %v221
                %v223 = vld [vmem:[%s209 + $0xc0] sm:$0xff]
                %224 = vst [vmem:[%s210 + $0x30] sm:$0xff] %v223
                %v225 = vld [vmem:[%s209 + $0xc8] sm:$0xff]
                %226 = vst [vmem:[%s210 + $0x38] sm:$0xff] %v225
                %v227 = vld [vmem:[%s209 + $0x100] sm:$0xff]
                %228 = vst [vmem:[%s210 + $0x40] sm:$0xff] %v227
                %v229 = vld [vmem:[%s209 + $0x108] sm:$0xff]
                %230 = vst [vmem:[%s210 + $0x48] sm:$0xff] %v229
                %v231 = vld [vmem:[%s209 + $0x140] sm:$0xff]
                %232 = vst [vmem:[%s210 + $0x50] sm:$0xff] %v231
                %v233 = vld [vmem:[%s209 + $0x148] sm:$0xff]
                %234 = vst [vmem:[%s210 + $0x58] sm:$0xff] %v233
                %v235 = vld [vmem:[%s209 + $0x180] sm:$0xff]
                %236 = vst [vmem:[%s210 + $0x60] sm:$0xff] %v235
                %v237 = vld [vmem:[%s209 + $0x188] sm:$0xff]
                %238 = vst [vmem:[%s210 + $0x68] sm:$0xff] %v237
                %v239 = vld [vmem:[%s209 + $0x1c0] sm:$0xff]
                %240 = vst [vmem:[%s210 + $0x70] sm:$0xff] %v239
                %v241 = vld [vmem:[%s209 + $0x1c8] sm:$0xff]
                %242 = vst [vmem:[%s210 + $0x78] sm:$0xff] %v241
                %v243 = vld [vmem:[%s209 + $0x200] sm:$0xff]
                %244 = vst [vmem:[%s210 + $0x80] sm:$0xff] %v243
                %v245 = vld [vmem:[%s209 + $0x208] sm:$0xff]
                %246 = vst [vmem:[%s210 + $0x88] sm:$0xff] %v245
                %v247 = vld [vmem:[%s209 + $0x240] sm:$0xff]
                %248 = vst [vmem:[%s210 + $0x90] sm:$0xff] %v247
                %v249 = vld [vmem:[%s209 + $0x248] sm:$0xff]
                %250 = vst [vmem:[%s210 + $0x98] sm:$0xff] %v249
              $region41: #{discriminator_forward.6} parent=35 // loop_footer
                %s208 = sadd.s32 1, %s204
              $region42: #{discriminator_forward.6} parent=35 // loop_footer_branch
                %203 = sbr.rel target = $region38
              $region43: #{discriminator_forward.6} parent=35 // loop_exit
                _
            $region36: #{discriminator_forward.6} parent=31 // pred_fallthru
              _
            // Predicated region
            $region44: #{discriminator_forward.6} parent=31 // pred_check
              _
            $region45: #{discriminator_forward.6} parent=31 // pred_check_branch
              %252 = sbr.rel target = $region47
            $region46: #{discriminator_forward.6} parent=31 // pred_region
              _
            $region47: #{discriminator_forward.6} parent=31 // pred_fallthru
              _
          $region32: #{discriminator_forward.6} parent=27 // pred_fallthru
            _
          %253 = vnop
        $region28: #{discriminator_forward.6} parent=23 // pred_fallthru
          _
        // Predicated region
        $region48: #{discriminator_forward.6} parent=23 // pred_check
          %p254 = pneg %p70
        $region49: #{discriminator_forward.6} parent=23 // pred_check_branch
          %256 = sbr.rel (%p254) target = $region51
        $region50: #{discriminator_forward.6} parent=23 // pred_region
          %s257 = smul.u32 64, %s18
          %s258 = smul.u32 2, %s17
          %p259 = scmp.lt.s32.totalorder %s257, 255
          %s260 = scalar_select %p259, %s257, 255
          %p261 = scmp.lt.s32.totalorder %s258, 1
          %s262 = scalar_select %p261, %s258, 1
          %s263 = smul.addr %s260, 2
          %s264 = sadd.s32 %s262, %s263
          %s265 = smul.addr %s264, 4
          %s266 = scalar_lea.vmem %s1, %s265
          %s267 = smul.u32 64, %s18
          %s268 = smul.u32 2, %s17
        $region51: #{discriminator_forward.6} parent=23 // pred_fallthru
          _
      $region24: #{discriminator_forward.6} parent=5 // pred_fallthru
        _
      %p269 = scmp.le.s32.totalorder 1, %s10
      %p270 = scmp.lt.s32.totalorder %s10, 5
      %p271 = pnand %p269, %p270
      %p272 = pneg %p271
      // Predicated region
      $region52: #{discriminator_forward.6} parent=5 // pred_check
        _
      $region53: #{discriminator_forward.6} parent=5 // pred_check_branch
        %274 = sbr.rel (%p271) target = $region55
      $region54: #{discriminator_forward.6} parent=5 // pred_region
        %s275 = ssub.s32 %s10, 1
        %s276 = sand.u32 %s35, 1
        %s277 = sand.u32 %s35, 1
        %s278 = smul.addr %s277, 160
        %s279 = scalar_lea.vmem [#allocation3], %s278
        // Predicated region
        $region56: #{discriminator_forward.6} parent=54 // pred_check
          %p280 = pneg %p48
        $region57: #{discriminator_forward.6} parent=54 // pred_check_branch
          %282 = sbr.rel (%p280) target = $region59
        $region58: #{discriminator_forward.6} parent=54 // pred_region
          _
        $region59: #{discriminator_forward.6} parent=54 // pred_fallthru
          _
        %s283 = sand.u32 %s35, 1
        %s284 = sand.u32 %s35, 1
        %s285 = smul.addr %s284, 160
        %s286 = scalar_lea.vmem [#allocation3], %s285
        %p287 = pneg %p48
        %p288 = pneg %p45
        %s289 = smul.u32 64, %s20
        %s290 = smul.u32 2, %s19
        %p291 = scmp.lt.s32.totalorder %s289, 255
        %s292 = scalar_select %p291, %s289, 255
        %p293 = scmp.lt.s32.totalorder %s290, 1
        %s294 = scalar_select %p293, %s290, 1
        %s295 = smul.addr %s292, 2
        %s296 = sadd.s32 %s294, %s295
        %s297 = smul.addr %s296, 4
        %s298 = scalar_lea.vmem %s1, %s297
        %p299 = pneg %p76
        %p300 = pneg %p73
        %s301 = smul.u32 2, %s19
        %p302 = scmp.lt.s32.totalorder %s301, 1
        %s303 = scalar_select %p302, %s301, 1
        %s304 = scalar_lea.vmem %s2, %s303
        %p305 = pneg %p102
        %p306 = pneg %p99
        %s307 = smul.u32 2, %s19
        %p308 = scmp.lt.s32.totalorder %s307, 1
        %s309 = scalar_select %p308, %s307, 1
        %s310 = scalar_lea.vmem %s3, %s309
        %p311 = pneg %p128
        %p312 = pneg %p125
        %p313 = pneg %p154
        %p314 = pneg %p151
        %s315 = smul.u32 2, %s19
        %p316 = scmp.lt.s32.totalorder %s315, 1
        %s317 = scalar_select %p316, %s315, 1
        %s318 = smul.addr %s317, 4
        %s319 = scalar_lea.vmem %s4, %s318
        %s320 = smul.u32 4, %s20
        %s321 = smul.u32 64, %s20
        %s322 = smul.u32 2, %s19
        %p323 = scmp.lt.s32.totalorder %s321, 255
        %s324 = scalar_select %p323, %s321, 255
        %p325 = scmp.lt.s32.totalorder %s322, 1
        %s326 = scalar_select %p325, %s322, 1
        %s327 = smul.addr %s324, 2
        %s328 = sadd.s32 %s326, %s327
        %s329 = smul.addr %s328, 4
        %s330 = scalar_lea.vmem %s1, %s329
        %s331 = smul.u32 64, %s20
        %s332 = smul.u32 2, %s19
        %s333 = smul.u32 2, %s19
        %p334 = scmp.lt.s32.totalorder %s333, 1
        %s335 = scalar_select %p334, %s333, 1
        %s336 = scalar_lea.vmem %s2, %s335
        %s337 = smul.u32 2, %s19
        %s338 = smul.u32 2, %s19
        %p339 = scmp.lt.s32.totalorder %s338, 1
        %s340 = scalar_select %p339, %s338, 1
        %s341 = scalar_lea.vmem %s3, %s340
        %s342 = smul.u32 2, %s19
        %s343 = smul.u32 2, %s19
        %p344 = scmp.lt.s32.totalorder %s343, 1
        %s345 = scalar_select %p344, %s343, 1
        %s346 = smul.addr %s345, 4
        %s347 = scalar_lea.vmem %s4, %s346
        %s348 = smul.u32 2, %s19
        %p349 = scmp.eq.s32.totalorder %s20, 0
        // Predicated region
        $region60: #{discriminator_forward.6} parent=54 // pred_check
          %p350 = pneg %p349
        $region61: #{discriminator_forward.6} parent=54 // pred_check_branch
          %352 = sbr.rel (%p350) target = $region63
        $region62: #{discriminator_forward.6} parent=54 // pred_region
          %353 = vst [vmem:[#allocation2] sm:$0xff] 0.0
          %354 = vst [vmem:[#allocation2 + $0x8] sm:$0xff] 0.0
          %355 = vst [vmem:[#allocation2 + $0x10] sm:$0xff] 0.0
          %356 = vst [vmem:[#allocation2 + $0x18] sm:$0xff] 0.0
          %357 = vst [vmem:[#allocation2 + $0x20] sm:$0xff] 0.0
          %358 = vst [vmem:[#allocation2 + $0x28] sm:$0xff] 0.0
          %359 = vst [vmem:[#allocation2 + $0x30] sm:$0xff] 0.0
          %360 = vst [vmem:[#allocation2 + $0x38] sm:$0xff] 0.0
          %361 = vst [vmem:[#allocation2 + $0x40] sm:$0xff] 0.0
          %362 = vst [vmem:[#allocation2 + $0x48] sm:$0xff] 0.0
          %363 = vst [vmem:[#allocation2 + $0x50] sm:$0xff] 0.0
          %364 = vst [vmem:[#allocation2 + $0x58] sm:$0xff] 0.0
          %365 = vst [vmem:[#allocation2 + $0x60] sm:$0xff] 0.0
          %366 = vst [vmem:[#allocation2 + $0x68] sm:$0xff] 0.0
          %367 = vst [vmem:[#allocation2 + $0x70] sm:$0xff] 0.0
          %368 = vst [vmem:[#allocation2 + $0x78] sm:$0xff] 0.0
          %369 = vst [vmem:[#allocation2 + $0x80] sm:$0xff] 0.0
          %370 = vst [vmem:[#allocation2 + $0x88] sm:$0xff] 0.0
          %371 = vst [vmem:[#allocation2 + $0x90] sm:$0xff] 0.0
          %372 = vst [vmem:[#allocation2 + $0x98] sm:$0xff] 0.0
        $region63: #{discriminator_forward.6} parent=54 // pred_fallthru
          _
        %v373 = vld [vmem:[#allocation2] sm:$0xff]
        %v374 = vld [vmem:[#allocation2 + $0x8] sm:$0xff]
        %v375 = vld [vmem:[#allocation2 + $0x10] sm:$0xff]
        %v376 = vld [vmem:[#allocation2 + $0x18] sm:$0xff]
        %v377 = vld [vmem:[#allocation2 + $0x20] sm:$0xff]
        %v378 = vld [vmem:[#allocation2 + $0x28] sm:$0xff]
        %v379 = vld [vmem:[#allocation2 + $0x30] sm:$0xff]
        %v380 = vld [vmem:[#allocation2 + $0x38] sm:$0xff]
        %v381 = vld [vmem:[#allocation2 + $0x40] sm:$0xff]
        %v382 = vld [vmem:[#allocation2 + $0x48] sm:$0xff]
        %v383 = vld [vmem:[#allocation2 + $0x50] sm:$0xff]
        %v384 = vld [vmem:[#allocation2 + $0x58] sm:$0xff]
        %v385 = vld [vmem:[#allocation2 + $0x60] sm:$0xff]
        %v386 = vld [vmem:[#allocation2 + $0x68] sm:$0xff]
        %v387 = vld [vmem:[#allocation2 + $0x70] sm:$0xff]
        %v388 = vld [vmem:[#allocation2 + $0x78] sm:$0xff]
        %v389 = vld [vmem:[#allocation2 + $0x80] sm:$0xff]
        %v390 = vld [vmem:[#allocation2 + $0x88] sm:$0xff]
        %v391 = vld [vmem:[#allocation2 + $0x90] sm:$0xff]
        %v392 = vld [vmem:[#allocation2 + $0x98] sm:$0xff]
        %v393 = vld [vmem:[%s279] sm:$0xff]
        %v394 = vld [vmem:[%s279 + $0x8] sm:$0xff]
        %v395 = vld [vmem:[%s279 + $0x10] sm:$0xff]
        %v396 = vld [vmem:[%s279 + $0x18] sm:$0xff]
        %v397 = vld [vmem:[%s279 + $0x20] sm:$0xff]
        %v398 = vld [vmem:[%s279 + $0x28] sm:$0xff]
        %v399 = vld [vmem:[%s279 + $0x30] sm:$0xff]
        %v400 = vld [vmem:[%s279 + $0x38] sm:$0xff]
        %v401 = vld [vmem:[%s279 + $0x40] sm:$0xff]
        %v402 = vld [vmem:[%s279 + $0x48] sm:$0xff]
        %v403 = vld [vmem:[%s279 + $0x50] sm:$0xff]
        %v404 = vld [vmem:[%s279 + $0x58] sm:$0xff]
        %v405 = vld [vmem:[%s279 + $0x60] sm:$0xff]
        %v406 = vld [vmem:[%s279 + $0x68] sm:$0xff]
        %v407 = vld [vmem:[%s279 + $0x70] sm:$0xff]
        %v408 = vld [vmem:[%s279 + $0x78] sm:$0xff]
        %v409 = vld [vmem:[%s279 + $0x80] sm:$0xff]
        %v410 = vld [vmem:[%s279 + $0x88] sm:$0xff]
        %v411 = vld [vmem:[%s279 + $0x90] sm:$0xff]
        %v412 = vld [vmem:[%s279 + $0x98] sm:$0xff]
        %v413 = vld [vmem:[%s330] sm:$0xff]
        %v414 = vld [vmem:[%s330 + $0x8] sm:$0xff]
        %v415 = vld [vmem:[%s330 + $0x10] sm:$0xff]
        %v416 = vld [vmem:[%s330 + $0x18] sm:$0xff]
        %v417 = vld [vmem:[%s330 + $0x20] sm:$0xff]
        %v418 = vld [vmem:[%s330 + $0x28] sm:$0xff]
        %v419 = vld [vmem:[%s330 + $0x30] sm:$0xff]
        %v420 = vld [vmem:[%s330 + $0x38] sm:$0xff]
        %v421 = vld [vmem:[%s330 + $0x40] sm:$0xff]
        %v422 = vld [vmem:[%s330 + $0x48] sm:$0xff]
        %v423 = vld [vmem:[%s330 + $0x50] sm:$0xff]
        %v424 = vld [vmem:[%s330 + $0x58] sm:$0xff]
        %v425 = vld [vmem:[%s330 + $0x60] sm:$0xff]
        %v426 = vld [vmem:[%s330 + $0x68] sm:$0xff]
        %v427 = vld [vmem:[%s330 + $0x70] sm:$0xff]
        %v428 = vld [vmem:[%s330 + $0x78] sm:$0xff]
        %v429 = vld [vmem:[%s330 + $0x80] sm:$0xff]
        %v430 = vld [vmem:[%s330 + $0x88] sm:$0xff]
        %v431 = vld [vmem:[%s330 + $0x90] sm:$0xff]
        %v432 = vld [vmem:[%s330 + $0x98] sm:$0xff]
        %v433 = vld [vmem:[%s330 + $0xa0] sm:$0xff]
        %v434 = vld [vmem:[%s330 + $0xa8] sm:$0xff]
        %v435 = vld [vmem:[%s330 + $0xb0] sm:$0xff]
        %v436 = vld [vmem:[%s330 + $0xb8] sm:$0xff]
        %v437 = vld [vmem:[%s330 + $0xc0] sm:$0xff]
        %v438 = vld [vmem:[%s330 + $0xc8] sm:$0xff]
        %v439 = vld [vmem:[%s330 + $0xd0] sm:$0xff]
        %v440 = vld [vmem:[%s330 + $0xd8] sm:$0xff]
        %v441 = vld [vmem:[%s330 + $0xe0] sm:$0xff]
        %v442 = vld [vmem:[%s330 + $0xe8] sm:$0xff]
        %v443 = vld [vmem:[%s330 + $0xf0] sm:$0xff]
        %v444 = vld [vmem:[%s330 + $0xf8] sm:$0xff]
        %v445 = vld [vmem:[%s330 + $0x100] sm:$0xff]
        %v446 = vld [vmem:[%s330 + $0x108] sm:$0xff]
        %v447 = vld [vmem:[%s330 + $0x110] sm:$0xff]
        %v448 = vld [vmem:[%s330 + $0x118] sm:$0xff]
        %v449 = vld [vmem:[%s330 + $0x120] sm:$0xff]
        %v450 = vld [vmem:[%s330 + $0x128] sm:$0xff]
        %v451 = vld [vmem:[%s330 + $0x130] sm:$0xff]
        %v452 = vld [vmem:[%s330 + $0x138] sm:$0xff]
        %v453 = vld [vmem:[%s330 + $0x140] sm:$0xff]
        %v454 = vld [vmem:[%s330 + $0x148] sm:$0xff]
        %v455 = vld [vmem:[%s330 + $0x150] sm:$0xff]
        %v456 = vld [vmem:[%s330 + $0x158] sm:$0xff]
        %v457 = vld [vmem:[%s330 + $0x160] sm:$0xff]
        %v458 = vld [vmem:[%s330 + $0x168] sm:$0xff]
        %v459 = vld [vmem:[%s330 + $0x170] sm:$0xff]
        %v460 = vld [vmem:[%s330 + $0x178] sm:$0xff]
        %v461 = vld [vmem:[%s330 + $0x180] sm:$0xff]
        %v462 = vld [vmem:[%s330 + $0x188] sm:$0xff]
        %v463 = vld [vmem:[%s330 + $0x190] sm:$0xff]
        %v464 = vld [vmem:[%s330 + $0x198] sm:$0xff]
        %v465 = vld [vmem:[%s330 + $0x1a0] sm:$0xff]
        %v466 = vld [vmem:[%s330 + $0x1a8] sm:$0xff]
        %v467 = vld [vmem:[%s330 + $0x1b0] sm:$0xff]
        %v468 = vld [vmem:[%s330 + $0x1b8] sm:$0xff]
        %v469 = vld [vmem:[%s330 + $0x1c0] sm:$0xff]
        %v470 = vld [vmem:[%s330 + $0x1c8] sm:$0xff]
        %v471 = vld [vmem:[%s330 + $0x1d0] sm:$0xff]
        %v472 = vld [vmem:[%s330 + $0x1d8] sm:$0xff]
        %v473 = vld [vmem:[%s330 + $0x1e0] sm:$0xff]
        %v474 = vld [vmem:[%s330 + $0x1e8] sm:$0xff]
        %v475 = vld [vmem:[%s330 + $0x1f0] sm:$0xff]
        %v476 = vld [vmem:[%s330 + $0x1f8] sm:$0xff]
        %v497 = vunpack.c.l.b16 %v393
        %v498 = vunpack.c.h.b16 %v393
        %v499 = vunpack.c.l.b16 %v394
        %v500 = vunpack.c.h.b16 %v394
        %v501 = vunpack.c.l.b16 %v395
        %v502 = vunpack.c.h.b16 %v395
        %v503 = vunpack.c.l.b16 %v396
        %v504 = vunpack.c.h.b16 %v396
        %v505 = vunpack.c.l.b16 %v397
        %v506 = vunpack.c.h.b16 %v397
        %v507 = vunpack.c.l.b16 %v398
        %v508 = vunpack.c.h.b16 %v398
        %v509 = vunpack.c.l.b16 %v399
        %v510 = vunpack.c.h.b16 %v399
        %v511 = vunpack.c.l.b16 %v400
        %v512 = vunpack.c.h.b16 %v400
        %v513 = vunpack.c.l.b16 %v401
        %v514 = vunpack.c.h.b16 %v401
        %v515 = vunpack.c.l.b16 %v402
        %v516 = vunpack.c.h.b16 %v402
        %v517 = vunpack.c.l.b16 %v403
        %v518 = vunpack.c.h.b16 %v403
        %v519 = vunpack.c.l.b16 %v404
        %v520 = vunpack.c.h.b16 %v404
        %v521 = vunpack.c.l.b16 %v405
        %v522 = vunpack.c.h.b16 %v405
        %v523 = vunpack.c.l.b16 %v406
        %v524 = vunpack.c.h.b16 %v406
        %v525 = vunpack.c.l.b16 %v407
        %v526 = vunpack.c.h.b16 %v407
        %v527 = vunpack.c.l.b16 %v408
        %v528 = vunpack.c.h.b16 %v408
        %v529 = vunpack.c.l.b16 %v409
        %v530 = vunpack.c.h.b16 %v409
        %v531 = vunpack.c.l.b16 %v410
        %v532 = vunpack.c.h.b16 %v410
        %v533 = vunpack.c.l.b16 %v411
        %v534 = vunpack.c.h.b16 %v411
        %v535 = vunpack.c.l.b16 %v412
        %v536 = vunpack.c.h.b16 %v412
        %v537 = vpack.c.b16 %v501, %v497
        %v538 = vpack.c.b16 %v502, %v498
        %v539 = vpack.c.b16 %v503, %v499
        %v540 = vpack.c.b16 %v504, %v500
        %v541 = vpack.c.b16 %v509, %v505
        %v542 = vpack.c.b16 %v510, %v506
        %v543 = vpack.c.b16 %v511, %v507
        %v544 = vpack.c.b16 %v512, %v508
        %v545 = vpack.c.b16 %v517, %v513
        %v546 = vpack.c.b16 %v518, %v514
        %v547 = vpack.c.b16 %v519, %v515
        %v548 = vpack.c.b16 %v520, %v516
        %v549 = vpack.c.b16 %v525, %v521
        %v550 = vpack.c.b16 %v526, %v522
        %v551 = vpack.c.b16 %v527, %v523
        %v552 = vpack.c.b16 %v528, %v524
        %v553 = vpack.c.b16 %v533, %v529
        %v554 = vpack.c.b16 %v534, %v530
        %v555 = vpack.c.b16 %v535, %v531
        %v556 = vpack.c.b16 %v536, %v532
        %v641 = vunpack.c.l.b16 %v413
        %v642 = vunpack.c.h.b16 %v413
        %v643 = vunpack.c.l.b16 %v414
        %v644 = vunpack.c.h.b16 %v414
        %v645 = vunpack.c.l.b16 %v415
        %v646 = vunpack.c.h.b16 %v415
        %v647 = vunpack.c.l.b16 %v416
        %v648 = vunpack.c.h.b16 %v416
        %v649 = vunpack.c.l.b16 %v417
        %v650 = vunpack.c.h.b16 %v417
        %v651 = vunpack.c.l.b16 %v418
        %v652 = vunpack.c.h.b16 %v418
        %v653 = vunpack.c.l.b16 %v419
        %v654 = vunpack.c.h.b16 %v419
        %v655 = vunpack.c.l.b16 %v420
        %v656 = vunpack.c.h.b16 %v420
        %v657 = vunpack.c.l.b16 %v421
        %v658 = vunpack.c.h.b16 %v421
        %v659 = vunpack.c.l.b16 %v422
        %v660 = vunpack.c.h.b16 %v422
        %v661 = vunpack.c.l.b16 %v423
        %v662 = vunpack.c.h.b16 %v423
        %v663 = vunpack.c.l.b16 %v424
        %v664 = vunpack.c.h.b16 %v424
        %v665 = vunpack.c.l.b16 %v425
        %v666 = vunpack.c.h.b16 %v425
        %v667 = vunpack.c.l.b16 %v426
        %v668 = vunpack.c.h.b16 %v426
        %v669 = vunpack.c.l.b16 %v427
        %v670 = vunpack.c.h.b16 %v427
        %v671 = vunpack.c.l.b16 %v428
        %v672 = vunpack.c.h.b16 %v428
        %v673 = vunpack.c.l.b16 %v429
        %v674 = vunpack.c.h.b16 %v429
        %v675 = vunpack.c.l.b16 %v430
        %v676 = vunpack.c.h.b16 %v430
        %v677 = vunpack.c.l.b16 %v431
        %v678 = vunpack.c.h.b16 %v431
        %v679 = vunpack.c.l.b16 %v432
        %v680 = vunpack.c.h.b16 %v432
        %v681 = vunpack.c.l.b16 %v433
        %v682 = vunpack.c.h.b16 %v433
        %v683 = vunpack.c.l.b16 %v434
        %v684 = vunpack.c.h.b16 %v434
        %v685 = vunpack.c.l.b16 %v435
        %v686 = vunpack.c.h.b16 %v435
        %v687 = vunpack.c.l.b16 %v436
        %v688 = vunpack.c.h.b16 %v436
        %v689 = vunpack.c.l.b16 %v437
        %v690 = vunpack.c.h.b16 %v437
        %v691 = vunpack.c.l.b16 %v438
        %v692 = vunpack.c.h.b16 %v438
        %v693 = vunpack.c.l.b16 %v439
        %v694 = vunpack.c.h.b16 %v439
        %v695 = vunpack.c.l.b16 %v440
        %v696 = vunpack.c.h.b16 %v440
        %v697 = vunpack.c.l.b16 %v441
        %v698 = vunpack.c.h.b16 %v441
        %v699 = vunpack.c.l.b16 %v442
        %v700 = vunpack.c.h.b16 %v442
        %v701 = vunpack.c.l.b16 %v443
        %v702 = vunpack.c.h.b16 %v443
        %v703 = vunpack.c.l.b16 %v444
        %v704 = vunpack.c.h.b16 %v444
        %v705 = vunpack.c.l.b16 %v445
        %v706 = vunpack.c.h.b16 %v445
        %v707 = vunpack.c.l.b16 %v446
        %v708 = vunpack.c.h.b16 %v446
        %v709 = vunpack.c.l.b16 %v447
        %v710 = vunpack.c.h.b16 %v447
        %v711 = vunpack.c.l.b16 %v448
        %v712 = vunpack.c.h.b16 %v448
        %v713 = vunpack.c.l.b16 %v449
        %v714 = vunpack.c.h.b16 %v449
        %v715 = vunpack.c.l.b16 %v450
        %v716 = vunpack.c.h.b16 %v450
        %v717 = vunpack.c.l.b16 %v451
        %v718 = vunpack.c.h.b16 %v451
        %v719 = vunpack.c.l.b16 %v452
        %v720 = vunpack.c.h.b16 %v452
        %v721 = vunpack.c.l.b16 %v453
        %v722 = vunpack.c.h.b16 %v453
        %v723 = vunpack.c.l.b16 %v454
        %v724 = vunpack.c.h.b16 %v454
        %v725 = vunpack.c.l.b16 %v455
        %v726 = vunpack.c.h.b16 %v455
        %v727 = vunpack.c.l.b16 %v456
        %v728 = vunpack.c.h.b16 %v456
        %v729 = vunpack.c.l.b16 %v457
        %v730 = vunpack.c.h.b16 %v457
        %v731 = vunpack.c.l.b16 %v458
        %v732 = vunpack.c.h.b16 %v458
        %v733 = vunpack.c.l.b16 %v459
        %v734 = vunpack.c.h.b16 %v459
        %v735 = vunpack.c.l.b16 %v460
        %v736 = vunpack.c.h.b16 %v460
        %v737 = vunpack.c.l.b16 %v461
        %v738 = vunpack.c.h.b16 %v461
        %v739 = vunpack.c.l.b16 %v462
        %v740 = vunpack.c.h.b16 %v462
        %v741 = vunpack.c.l.b16 %v463
        %v742 = vunpack.c.h.b16 %v463
        %v743 = vunpack.c.l.b16 %v464
        %v744 = vunpack.c.h.b16 %v464
        %v745 = vunpack.c.l.b16 %v465
        %v746 = vunpack.c.h.b16 %v465
        %v747 = vunpack.c.l.b16 %v466
        %v748 = vunpack.c.h.b16 %v466
        %v749 = vunpack.c.l.b16 %v467
        %v750 = vunpack.c.h.b16 %v467
        %v751 = vunpack.c.l.b16 %v468
        %v752 = vunpack.c.h.b16 %v468
        %v753 = vunpack.c.l.b16 %v469
        %v754 = vunpack.c.h.b16 %v469
        %v755 = vunpack.c.l.b16 %v470
        %v756 = vunpack.c.h.b16 %v470
        %v757 = vunpack.c.l.b16 %v471
        %v758 = vunpack.c.h.b16 %v471
        %v759 = vunpack.c.l.b16 %v472
        %v760 = vunpack.c.h.b16 %v472
        %v761 = vunpack.c.l.b16 %v473
        %v762 = vunpack.c.h.b16 %v473
        %v763 = vunpack.c.l.b16 %v474
        %v764 = vunpack.c.h.b16 %v474
        %v765 = vunpack.c.l.b16 %v475
        %v766 = vunpack.c.h.b16 %v475
        %v767 = vunpack.c.l.b16 %v476
        %v768 = vunpack.c.h.b16 %v476
        %v769 = vpack.c.b16 %v643, %v641
        %v770 = vpack.c.b16 %v644, %v642
        %v771 = vpack.c.b16 %v647, %v645
        %v772 = vpack.c.b16 %v648, %v646
        %v773 = vpack.c.b16 %v651, %v649
        %v774 = vpack.c.b16 %v652, %v650
        %v775 = vpack.c.b16 %v655, %v653
        %v776 = vpack.c.b16 %v656, %v654
        %v777 = vpack.c.b16 %v659, %v657
        %v778 = vpack.c.b16 %v660, %v658
        %v779 = vpack.c.b16 %v663, %v661
        %v780 = vpack.c.b16 %v664, %v662
        %v781 = vpack.c.b16 %v667, %v665
        %v782 = vpack.c.b16 %v668, %v666
        %v783 = vpack.c.b16 %v671, %v669
        %v784 = vpack.c.b16 %v672, %v670
        %v785 = vpack.c.b16 %v675, %v673
        %v786 = vpack.c.b16 %v676, %v674
        %v787 = vpack.c.b16 %v679, %v677
        %v788 = vpack.c.b16 %v680, %v678
        %v789 = vpack.c.b16 %v683, %v681
        %v790 = vpack.c.b16 %v684, %v682
        %v791 = vpack.c.b16 %v687, %v685
        %v792 = vpack.c.b16 %v688, %v686
        %v793 = vpack.c.b16 %v691, %v689
        %v794 = vpack.c.b16 %v692, %v690
        %v795 = vpack.c.b16 %v695, %v693
        %v796 = vpack.c.b16 %v696, %v694
        %v797 = vpack.c.b16 %v699, %v697
        %v798 = vpack.c.b16 %v700, %v698
        %v799 = vpack.c.b16 %v703, %v701
        %v800 = vpack.c.b16 %v704, %v702
        %v801 = vpack.c.b16 %v707, %v705
        %v802 = vpack.c.b16 %v708, %v706
        %v803 = vpack.c.b16 %v711, %v709
        %v804 = vpack.c.b16 %v712, %v710
        %v805 = vpack.c.b16 %v715, %v713
        %v806 = vpack.c.b16 %v716, %v714
        %v807 = vpack.c.b16 %v719, %v717
        %v808 = vpack.c.b16 %v720, %v718
        %v809 = vpack.c.b16 %v723, %v721
        %v810 = vpack.c.b16 %v724, %v722
        %v811 = vpack.c.b16 %v727, %v725
        %v812 = vpack.c.b16 %v728, %v726
        %v813 = vpack.c.b16 %v731, %v729
        %v814 = vpack.c.b16 %v732, %v730
        %v815 = vpack.c.b16 %v735, %v733
        %v816 = vpack.c.b16 %v736, %v734
        %v817 = vpack.c.b16 %v739, %v737
        %v818 = vpack.c.b16 %v740, %v738
        %v819 = vpack.c.b16 %v743, %v741
        %v820 = vpack.c.b16 %v744, %v742
        %v821 = vpack.c.b16 %v747, %v745
        %v822 = vpack.c.b16 %v748, %v746
        %v823 = vpack.c.b16 %v751, %v749
        %v824 = vpack.c.b16 %v752, %v750
        %v825 = vpack.c.b16 %v755, %v753
        %v826 = vpack.c.b16 %v756, %v754
        %v827 = vpack.c.b16 %v759, %v757
        %v828 = vpack.c.b16 %v760, %v758
        %v829 = vpack.c.b16 %v763, %v761
        %v830 = vpack.c.b16 %v764, %v762
        %v831 = vpack.c.b16 %v767, %v765
        %v832 = vpack.c.b16 %v768, %v766
        %897 = vmatprep.subr.bf16.mxu0 %v784
        %898 = vmatpush1.bf16.msra.mxu0 %v783
        %899 = vmatprep.subr.bf16.mxu0 %v782
        %900 = vmatpush1.bf16.msra.mxu0 %v781
        %901 = vmatprep.subr.bf16.mxu0 %v780
        %902 = vmatpush1.bf16.msra.mxu0 %v779
        %903 = vmatprep.subr.bf16.mxu0 %v778
        %904 = vmatpush1.bf16.msra.mxu0 %v777
        %905 = vmatprep.subr.bf16.mxu0 %v776
        %906 = vmatpush1.bf16.msra.mxu0 %v775
        %907 = vmatprep.subr.bf16.mxu0 %v774
        %908 = vmatpush1.bf16.msra.mxu0 %v773
        %909 = vmatprep.subr.bf16.mxu0 %v772
        %910 = vmatpush1.bf16.msra.mxu0 %v771
        %911 = vmatprep.subr.bf16.mxu0 %v770
        %912 = vmatpush1.bf16.msra.mxu0 %v769
        %913 = vmatprep.subr.bf16.mxu0 %v800
        %914 = vmatpush2.bf16.msra.mxu0 %v799
        %915 = vmatprep.subr.bf16.mxu0 %v798
        %916 = vmatpush2.bf16.msra.mxu0 %v797
        %917 = vmatprep.subr.bf16.mxu0 %v796
        %918 = vmatpush2.bf16.msra.mxu0 %v795
        %919 = vmatprep.subr.bf16.mxu0 %v794
        %920 = vmatpush2.bf16.msra.mxu0 %v793
        %921 = vmatprep.subr.bf16.mxu0 %v792
        %922 = vmatpush2.bf16.msra.mxu0 %v791
        %923 = vmatprep.subr.bf16.mxu0 %v790
        %924 = vmatpush2.bf16.msra.mxu0 %v789
        %925 = vmatprep.subr.bf16.mxu0 %v788
        %926 = vmatpush2.bf16.msra.mxu0 %v787
        %927 = vmatprep.subr.bf16.mxu0 %v786
        %928 = vmatpush2.bf16.msra.mxu0 %v785
        %929 = vmatprep.mubr.bf16.mxu0 %v538
        %930 = vmatmul.mubr.bf16.gmra.mxu0 %v537
        %v931 = vpop.f32.mrf.mxu0
        %v932 = vadd.f32 0.0, %v931
        %v933 = vpop.f32.mrf.mxu0
        %v934 = vadd.f32 0.0, %v933
        %v935 = vpop.f32.mrf.mxu0
        %v936 = vadd.f32 0.0, %v935
        %v937 = vpop.f32.mrf.mxu0
        %v938 = vadd.f32 0.0, %v937
        %939 = vmatprep.mubr.bf16.mxu0 %v542
        %940 = vmatmul.mubr.bf16.gmra.mxu0 %v541
        %v941 = vpop.f32.mrf.mxu0
        %v942 = vadd.f32 0.0, %v941
        %v943 = vpop.f32.mrf.mxu0
        %v944 = vadd.f32 0.0, %v943
        %v945 = vpop.f32.mrf.mxu0
        %v946 = vadd.f32 0.0, %v945
        %v947 = vpop.f32.mrf.mxu0
        %v948 = vadd.f32 0.0, %v947
        %949 = vmatprep.mubr.bf16.mxu0 %v546
        %950 = vmatmul.mubr.bf16.gmra.mxu0 %v545
        %v951 = vpop.f32.mrf.mxu0
        %v952 = vadd.f32 0.0, %v951
        %v953 = vpop.f32.mrf.mxu0
        %v954 = vadd.f32 0.0, %v953
        %v955 = vpop.f32.mrf.mxu0
        %v956 = vadd.f32 0.0, %v955
        %v957 = vpop.f32.mrf.mxu0
        %v958 = vadd.f32 0.0, %v957
        %959 = vmatprep.mubr.bf16.mxu0 %v550
        %960 = vmatmul.mubr.bf16.gmra.mxu0 %v549
        %v961 = vpop.f32.mrf.mxu0
        %v962 = vadd.f32 0.0, %v961
        %v963 = vpop.f32.mrf.mxu0
        %v964 = vadd.f32 0.0, %v963
        %v965 = vpop.f32.mrf.mxu0
        %v966 = vadd.f32 0.0, %v965
        %v967 = vpop.f32.mrf.mxu0
        %v968 = vadd.f32 0.0, %v967
        %969 = vmatprep.mubr.bf16.mxu0 %v554
        %970 = vmatmul.mubr.bf16.gmra.mxu0 %v553
        %v971 = vpop.f32.mrf.mxu0
        %v972 = vadd.f32 0.0, %v971
        %v973 = vpop.f32.mrf.mxu0
        %v974 = vadd.f32 0.0, %v973
        %v975 = vpop.f32.mrf.mxu0
        %v976 = vadd.f32 0.0, %v975
        %v977 = vpop.f32.mrf.mxu0
        %v978 = vadd.f32 0.0, %v977
        %979 = vdwg.mxu0
        %980 = vmatprep.subr.bf16.mxu0 %v816
        %981 = vmatpush1.bf16.msra.mxu0 %v815
        %982 = vmatprep.subr.bf16.mxu0 %v814
        %983 = vmatpush1.bf16.msra.mxu0 %v813
        %984 = vmatprep.subr.bf16.mxu0 %v812
        %985 = vmatpush1.bf16.msra.mxu0 %v811
        %986 = vmatprep.subr.bf16.mxu0 %v810
        %987 = vmatpush1.bf16.msra.mxu0 %v809
        %988 = vmatprep.subr.bf16.mxu0 %v808
        %989 = vmatpush1.bf16.msra.mxu0 %v807
        %990 = vmatprep.subr.bf16.mxu0 %v806
        %991 = vmatpush1.bf16.msra.mxu0 %v805
        %992 = vmatprep.subr.bf16.mxu0 %v804
        %993 = vmatpush1.bf16.msra.mxu0 %v803
        %994 = vmatprep.subr.bf16.mxu0 %v802
        %995 = vmatpush1.bf16.msra.mxu0 %v801
        %996 = vmatprep.subr.bf16.mxu0 %v832
        %997 = vmatpush2.bf16.msra.mxu0 %v831
        %998 = vmatprep.subr.bf16.mxu0 %v830
        %999 = vmatpush2.bf16.msra.mxu0 %v829
        %1000 = vmatprep.subr.bf16.mxu0 %v828
        %1001 = vmatpush2.bf16.msra.mxu0 %v827
        %1002 = vmatprep.subr.bf16.mxu0 %v826
        %1003 = vmatpush2.bf16.msra.mxu0 %v825
        %1004 = vmatprep.subr.bf16.mxu0 %v824
        %1005 = vmatpush2.bf16.msra.mxu0 %v823
        %1006 = vmatprep.subr.bf16.mxu0 %v822
        %1007 = vmatpush2.bf16.msra.mxu0 %v821
        %1008 = vmatprep.subr.bf16.mxu0 %v820
        %1009 = vmatpush2.bf16.msra.mxu0 %v819
        %1010 = vmatprep.subr.bf16.mxu0 %v818
        %1011 = vmatpush2.bf16.msra.mxu0 %v817
        %1012 = vmatprep.mubr.bf16.mxu0 %v540
        %1013 = vmatmul.mubr.bf16.gmra.mxu0 %v539
        %v1014 = vpop.f32.mrf.mxu0
        %v1015 = vadd.f32 %v932, %v1014
        %v1016 = vpop.f32.mrf.mxu0
        %v1017 = vadd.f32 %v934, %v1016
        %v1018 = vpop.f32.mrf.mxu0
        %v1019 = vadd.f32 %v936, %v1018
        %v1020 = vpop.f32.mrf.mxu0
        %v1021 = vadd.f32 %v938, %v1020
        %1022 = vmatprep.mubr.bf16.mxu0 %v544
        %1023 = vmatmul.mubr.bf16.gmra.mxu0 %v543
        %v1024 = vpop.f32.mrf.mxu0
        %v1025 = vadd.f32 %v942, %v1024
        %v1026 = vpop.f32.mrf.mxu0
        %v1027 = vadd.f32 %v944, %v1026
        %v1028 = vpop.f32.mrf.mxu0
        %v1029 = vadd.f32 %v946, %v1028
        %v1030 = vpop.f32.mrf.mxu0
        %v1031 = vadd.f32 %v948, %v1030
        %1032 = vmatprep.mubr.bf16.mxu0 %v548
        %1033 = vmatmul.mubr.bf16.gmra.mxu0 %v547
        %v1034 = vpop.f32.mrf.mxu0
        %v1035 = vadd.f32 %v952, %v1034
        %v1036 = vpop.f32.mrf.mxu0
        %v1037 = vadd.f32 %v954, %v1036
        %v1038 = vpop.f32.mrf.mxu0
        %v1039 = vadd.f32 %v956, %v1038
        %v1040 = vpop.f32.mrf.mxu0
        %v1041 = vadd.f32 %v958, %v1040
        %1042 = vmatprep.mubr.bf16.mxu0 %v552
        %1043 = vmatmul.mubr.bf16.gmra.mxu0 %v551
        %v1044 = vpop.f32.mrf.mxu0
        %v1045 = vadd.f32 %v962, %v1044
        %v1046 = vpop.f32.mrf.mxu0
        %v1047 = vadd.f32 %v964, %v1046
        %v1048 = vpop.f32.mrf.mxu0
        %v1049 = vadd.f32 %v966, %v1048
        %v1050 = vpop.f32.mrf.mxu0
        %v1051 = vadd.f32 %v968, %v1050
        %1052 = vmatprep.mubr.bf16.mxu0 %v556
        %1053 = vmatmul.mubr.bf16.gmra.mxu0 %v555
        %v1054 = vpop.f32.mrf.mxu0
        %v1055 = vadd.f32 %v972, %v1054
        %v1056 = vpop.f32.mrf.mxu0
        %v1057 = vadd.f32 %v974, %v1056
        %v1058 = vpop.f32.mrf.mxu0
        %v1059 = vadd.f32 %v976, %v1058
        %v1060 = vpop.f32.mrf.mxu0
        %v1061 = vadd.f32 %v978, %v1060
        %1062 = vdwg.mxu0
        %v1063 = vadd.f32 %v373, %v1015
        %v1064 = vadd.f32 %v374, %v1017
        %v1065 = vadd.f32 %v375, %v1019
        %v1066 = vadd.f32 %v376, %v1021
        %v1067 = vadd.f32 %v377, %v1025
        %v1068 = vadd.f32 %v378, %v1027
        %v1069 = vadd.f32 %v379, %v1029
        %v1070 = vadd.f32 %v380, %v1031
        %v1071 = vadd.f32 %v381, %v1035
        %v1072 = vadd.f32 %v382, %v1037
        %v1073 = vadd.f32 %v383, %v1039
        %v1074 = vadd.f32 %v384, %v1041
        %v1075 = vadd.f32 %v385, %v1045
        %v1076 = vadd.f32 %v386, %v1047
        %v1077 = vadd.f32 %v387, %v1049
        %v1078 = vadd.f32 %v388, %v1051
        %v1079 = vadd.f32 %v389, %v1055
        %v1080 = vadd.f32 %v390, %v1057
        %v1081 = vadd.f32 %v391, %v1059
        %v1082 = vadd.f32 %v392, %v1061
        %1083 = vst [vmem:[#allocation2] sm:$0xff] %v1063
        %1084 = vst [vmem:[#allocation2 + $0x8] sm:$0xff] %v1064
        %1085 = vst [vmem:[#allocation2 + $0x10] sm:$0xff] %v1065
        %1086 = vst [vmem:[#allocation2 + $0x18] sm:$0xff] %v1066
        %1087 = vst [vmem:[#allocation2 + $0x20] sm:$0xff] %v1067
        %1088 = vst [vmem:[#allocation2 + $0x28] sm:$0xff] %v1068
        %1089 = vst [vmem:[#allocation2 + $0x30] sm:$0xff] %v1069
        %1090 = vst [vmem:[#allocation2 + $0x38] sm:$0xff] %v1070
        %1091 = vst [vmem:[#allocation2 + $0x40] sm:$0xff] %v1071
        %1092 = vst [vmem:[#allocation2 + $0x48] sm:$0xff] %v1072
        %1093 = vst [vmem:[#allocation2 + $0x50] sm:$0xff] %v1073
        %1094 = vst [vmem:[#allocation2 + $0x58] sm:$0xff] %v1074
        %1095 = vst [vmem:[#allocation2 + $0x60] sm:$0xff] %v1075
        %1096 = vst [vmem:[#allocation2 + $0x68] sm:$0xff] %v1076
        %1097 = vst [vmem:[#allocation2 + $0x70] sm:$0xff] %v1077
        %1098 = vst [vmem:[#allocation2 + $0x78] sm:$0xff] %v1078
        %1099 = vst [vmem:[#allocation2 + $0x80] sm:$0xff] %v1079
        %1100 = vst [vmem:[#allocation2 + $0x88] sm:$0xff] %v1080
        %1101 = vst [vmem:[#allocation2 + $0x90] sm:$0xff] %v1081
        %1102 = vst [vmem:[#allocation2 + $0x98] sm:$0xff] %v1082
        %p1103 = scmp.eq.s32.totalorder %s20, 3
        // Predicated region
        $region64: #{discriminator_forward.6} parent=54 // pred_check
          %p1104 = pneg %p1103
        $region65: #{discriminator_forward.6} parent=54 // pred_check_branch
          %1106 = sbr.rel (%p1104) target = $region67
        $region66: #{discriminator_forward.6} parent=54 // pred_region
          %v1107 = vld [vmem:[#allocation2] sm:$0xff]
          %v1108 = vld [vmem:[#allocation2 + $0x8] sm:$0xff]
          %v1109 = vld [vmem:[#allocation2 + $0x10] sm:$0xff]
          %v1110 = vld [vmem:[#allocation2 + $0x18] sm:$0xff]
          %v1111 = vld [vmem:[#allocation2 + $0x20] sm:$0xff]
          %v1112 = vld [vmem:[#allocation2 + $0x28] sm:$0xff]
          %v1113 = vld [vmem:[#allocation2 + $0x30] sm:$0xff]
          %v1114 = vld [vmem:[#allocation2 + $0x38] sm:$0xff]
          %v1115 = vld [vmem:[#allocation2 + $0x40] sm:$0xff]
          %v1116 = vld [vmem:[#allocation2 + $0x48] sm:$0xff]
          %v1117 = vld [vmem:[#allocation2 + $0x50] sm:$0xff]
          %v1118 = vld [vmem:[#allocation2 + $0x58] sm:$0xff]
          %v1119 = vld [vmem:[#allocation2 + $0x60] sm:$0xff]
          %v1120 = vld [vmem:[#allocation2 + $0x68] sm:$0xff]
          %v1121 = vld [vmem:[#allocation2 + $0x70] sm:$0xff]
          %v1122 = vld [vmem:[#allocation2 + $0x78] sm:$0xff]
          %v1123 = vld [vmem:[#allocation2 + $0x80] sm:$0xff]
          %v1124 = vld [vmem:[#allocation2 + $0x88] sm:$0xff]
          %v1125 = vld [vmem:[#allocation2 + $0x90] sm:$0xff]
          %v1126 = vld [vmem:[#allocation2 + $0x98] sm:$0xff]
          %v1127 = vadd.f32 %v1107, %v1109
          %v1128 = vadd.f32 %v1127, %v1111
          %v1129 = vadd.f32 %v1128, %v1113
          %v1130 = vadd.f32 %v1129, %v1115
          %v1131 = vadd.f32 %v1130, %v1117
          %v1132 = vadd.f32 %v1131, %v1119
          %v1133 = vadd.f32 %v1132, %v1121
          %v1134 = vadd.f32 %v1133, %v1123
          %v1135 = vadd.f32 %v1134, %v1125
          %v1136 = vrot.slane %v1135, 4
          %v1137 = vadd.f32 %v1135, %v1136
          %v1138 = vrot.slane %v1137, 2
          %v1139 = vadd.f32 %v1137, %v1138
          %v1140 = vrot.slane %v1139, 1
          %v1141 = vadd.f32 %v1139, %v1140
          %v1142 = vadd.f32 %v1108, %v1110
          %v1143 = vadd.f32 %v1142, %v1112
          %v1144 = vadd.f32 %v1143, %v1114
          %v1145 = vadd.f32 %v1144, %v1116
          %v1146 = vadd.f32 %v1145, %v1118
          %v1147 = vadd.f32 %v1146, %v1120
          %v1148 = vadd.f32 %v1147, %v1122
          %v1149 = vadd.f32 %v1148, %v1124
          %v1150 = vadd.f32 %v1149, %v1126
          %v1151 = vrot.slane %v1150, 4
          %v1152 = vadd.f32 %v1150, %v1151
          %v1153 = vrot.slane %v1152, 2
          %v1154 = vadd.f32 %v1152, %v1153
          %v1155 = vrot.slane %v1154, 1
          %v1156 = vadd.f32 %v1154, %v1155
          %v1157 = vmul.f32 %v1107, %v1107
          %v1158 = vmul.f32 %v1108, %v1108
          %v1159 = vmul.f32 %v1109, %v1109
          %v1160 = vmul.f32 %v1110, %v1110
          %v1161 = vmul.f32 %v1111, %v1111
          %v1162 = vmul.f32 %v1112, %v1112
          %v1163 = vmul.f32 %v1113, %v1113
          %v1164 = vmul.f32 %v1114, %v1114
          %v1165 = vmul.f32 %v1115, %v1115
          %v1166 = vmul.f32 %v1116, %v1116
          %v1167 = vmul.f32 %v1117, %v1117
          %v1168 = vmul.f32 %v1118, %v1118
          %v1169 = vmul.f32 %v1119, %v1119
          %v1170 = vmul.f32 %v1120, %v1120
          %v1171 = vmul.f32 %v1121, %v1121
          %v1172 = vmul.f32 %v1122, %v1122
          %v1173 = vmul.f32 %v1123, %v1123
          %v1174 = vmul.f32 %v1124, %v1124
          %v1175 = vmul.f32 %v1125, %v1125
          %v1176 = vmul.f32 %v1126, %v1126
          %v1177 = vadd.f32 %v1157, %v1159
          %v1178 = vadd.f32 %v1177, %v1161
          %v1179 = vadd.f32 %v1178, %v1163
          %v1180 = vadd.f32 %v1179, %v1165
          %v1181 = vadd.f32 %v1180, %v1167
          %v1182 = vadd.f32 %v1181, %v1169
          %v1183 = vadd.f32 %v1182, %v1171
          %v1184 = vadd.f32 %v1183, %v1173
          %v1185 = vadd.f32 %v1184, %v1175
          %v1186 = vrot.slane %v1185, 4
          %v1187 = vadd.f32 %v1185, %v1186
          %v1188 = vrot.slane %v1187, 2
          %v1189 = vadd.f32 %v1187, %v1188
          %v1190 = vrot.slane %v1189, 1
          %v1191 = vadd.f32 %v1189, %v1190
          %v1192 = vadd.f32 %v1158, %v1160
          %v1193 = vadd.f32 %v1192, %v1162
          %v1194 = vadd.f32 %v1193, %v1164
          %v1195 = vadd.f32 %v1194, %v1166
          %v1196 = vadd.f32 %v1195, %v1168
          %v1197 = vadd.f32 %v1196, %v1170
          %v1198 = vadd.f32 %v1197, %v1172
          %v1199 = vadd.f32 %v1198, %v1174
          %v1200 = vadd.f32 %v1199, %v1176
          %v1201 = vrot.slane %v1200, 4
          %v1202 = vadd.f32 %v1200, %v1201
          %v1203 = vrot.slane %v1202, 2
          %v1204 = vadd.f32 %v1202, %v1203
          %v1205 = vrot.slane %v1204, 1
          %v1206 = vadd.f32 %v1204, %v1205
          %v1207 = vmul.f32 %v1141, 0.013888889
          %v1208 = vmul.f32 %v1156, 0.013888889
          %v1209 = vmul.f32 %v1191, 0.013888889
          %v1210 = vmul.f32 %v1206, 0.013888889
          %v1211 = vmul.f32 %v1207, %v1207
          %v1212 = vmul.f32 %v1208, %v1208
          %v1213 = vsub.f32 %v1209, %v1211
          %v1214 = vsub.f32 %v1210, %v1212
          %v1215 = vmax.f32 %v1213, 0.0
          %v1216 = vmax.f32 %v1214, 0.0
          %v1217 = vld [vmem:[%s336] sm:$0x3]
          %v1218 = vadd.f32 %v1215, 1e-05
          %v1219 = vadd.f32 %v1216, 1e-05
          %v1220 = vrsqrt.pop %v1218
          %v1221 = vrsqrt.pop %v1219
          %v1224 = vcombine.low %v1220, %v1221
          %v1226 = vunpack.c.l.s4 1966171168
          %v1227 = vunpack.c.0.s8 %v1226
          %v1228 = vlaneseq
          %v1229 = vshrl.u32 %v1228, 7
          %v1230 = vsub.s32 %v1227, %v1229
          %v1231 = vrot.slane %v1224, %v1230
          %v1233 = vunpack.c.l.s4 1966171168
          %v1234 = vunpack.c.0.s8 %v1233
          %v1235 = vlaneseq
          %v1236 = vshrl.u32 %v1235, 7
          %v1237 = vsub.s32 %v1234, %v1236
          %v1238 = vrot.slane %v1231, %v1237
          %v1240 = vmul.f32 %v1217, %v1238
          %v1241 = vsub.f32 %v1107, %v1207
          %v1242 = vsub.f32 %v1108, %v1208
          %v1243 = vsub.f32 %v1109, %v1207
          %v1244 = vsub.f32 %v1110, %v1208
          %v1245 = vsub.f32 %v1111, %v1207
          %v1246 = vsub.f32 %v1112, %v1208
          %v1247 = vsub.f32 %v1113, %v1207
          %v1248 = vsub.f32 %v1114, %v1208
          %v1249 = vsub.f32 %v1115, %v1207
          %v1250 = vsub.f32 %v1116, %v1208
          %v1251 = vsub.f32 %v1117, %v1207
          %v1252 = vsub.f32 %v1118, %v1208
          %v1253 = vsub.f32 %v1119, %v1207
          %v1254 = vsub.f32 %v1120, %v1208
          %v1255 = vsub.f32 %v1121, %v1207
          %v1256 = vsub.f32 %v1122, %v1208
          %v1257 = vsub.f32 %v1123, %v1207
          %v1258 = vsub.f32 %v1124, %v1208
          %v1259 = vsub.f32 %v1125, %v1207
          %v1260 = vsub.f32 %v1126, %v1208
          %v1262 = vlaneseq
          %v1263 = vshrl.u32 %v1262, 7
          %v1264 = vsub.s32 0, %v1263
          %v1265 = vrot.slane %v1240, %v1264
          %v1266 = vlaneseq
          %v1267 = vshrl.u32 %v1266, 7
          %v1268 = vsub.s32 1, %v1267
          %v1269 = vrot.slane %v1240, %v1268
          %v1272 = vmul.f32 %v1241, %v1265
          %v1273 = vmul.f32 %v1242, %v1269
          %v1274 = vmul.f32 %v1243, %v1265
          %v1275 = vmul.f32 %v1244, %v1269
          %v1276 = vmul.f32 %v1245, %v1265
          %v1277 = vmul.f32 %v1246, %v1269
          %v1278 = vmul.f32 %v1247, %v1265
          %v1279 = vmul.f32 %v1248, %v1269
          %v1280 = vmul.f32 %v1249, %v1265
          %v1281 = vmul.f32 %v1250, %v1269
          %v1282 = vmul.f32 %v1251, %v1265
          %v1283 = vmul.f32 %v1252, %v1269
          %v1284 = vmul.f32 %v1253, %v1265
          %v1285 = vmul.f32 %v1254, %v1269
          %v1286 = vmul.f32 %v1255, %v1265
          %v1287 = vmul.f32 %v1256, %v1269
          %v1288 = vmul.f32 %v1257, %v1265
          %v1289 = vmul.f32 %v1258, %v1269
          %v1290 = vmul.f32 %v1259, %v1265
          %v1291 = vmul.f32 %v1260, %v1269
          %v1292 = vld [vmem:[%s341] sm:$0x3]
          %v1294 = vlaneseq
          %v1295 = vshrl.u32 %v1294, 7
          %v1296 = vsub.s32 0, %v1295
          %v1297 = vrot.slane %v1292, %v1296
          %v1298 = vlaneseq
          %v1299 = vshrl.u32 %v1298, 7
          %v1300 = vsub.s32 1, %v1299
          %v1301 = vrot.slane %v1292, %v1300
          %v1304 = vadd.f32 %v1272, %v1297
          %v1305 = vadd.f32 %v1273, %v1301
          %v1306 = vadd.f32 %v1274, %v1297
          %v1307 = vadd.f32 %v1275, %v1301
          %v1308 = vadd.f32 %v1276, %v1297
          %v1309 = vadd.f32 %v1277, %v1301
          %v1310 = vadd.f32 %v1278, %v1297
          %v1311 = vadd.f32 %v1279, %v1301
          %v1312 = vadd.f32 %v1280, %v1297
          %v1313 = vadd.f32 %v1281, %v1301
          %v1314 = vadd.f32 %v1282, %v1297
          %v1315 = vadd.f32 %v1283, %v1301
          %v1316 = vadd.f32 %v1284, %v1297
          %v1317 = vadd.f32 %v1285, %v1301
          %v1318 = vadd.f32 %v1286, %v1297
          %v1319 = vadd.f32 %v1287, %v1301
          %v1320 = vadd.f32 %v1288, %v1297
          %v1321 = vadd.f32 %v1289, %v1301
          %v1322 = vadd.f32 %v1290, %v1297
          %v1323 = vadd.f32 %v1291, %v1301
          %vm1324 = vcmp.ge.f32.partialorder %v1304, 0.0
          %vm1325 = vcmp.ge.f32.partialorder %v1305, 0.0
          %vm1326 = vcmp.ge.f32.partialorder %v1306, 0.0
          %vm1327 = vcmp.ge.f32.partialorder %v1307, 0.0
          %vm1328 = vcmp.ge.f32.partialorder %v1308, 0.0
          %vm1329 = vcmp.ge.f32.partialorder %v1309, 0.0
          %vm1330 = vcmp.ge.f32.partialorder %v1310, 0.0
          %vm1331 = vcmp.ge.f32.partialorder %v1311, 0.0
          %vm1332 = vcmp.ge.f32.partialorder %v1312, 0.0
          %vm1333 = vcmp.ge.f32.partialorder %v1313, 0.0
          %vm1334 = vcmp.ge.f32.partialorder %v1314, 0.0
          %vm1335 = vcmp.ge.f32.partialorder %v1315, 0.0
          %vm1336 = vcmp.ge.f32.partialorder %v1316, 0.0
          %vm1337 = vcmp.ge.f32.partialorder %v1317, 0.0
          %vm1338 = vcmp.ge.f32.partialorder %v1318, 0.0
          %vm1339 = vcmp.ge.f32.partialorder %v1319, 0.0
          %vm1340 = vcmp.ge.f32.partialorder %v1320, 0.0
          %vm1341 = vcmp.ge.f32.partialorder %v1321, 0.0
          %vm1342 = vcmp.ge.f32.partialorder %v1322, 0.0
          %vm1343 = vcmp.ge.f32.partialorder %v1323, 0.0
          %v1344 = vmul.f32 %v1304, 0.2
          %v1345 = vmul.f32 %v1305, 0.2
          %v1346 = vmul.f32 %v1306, 0.2
          %v1347 = vmul.f32 %v1307, 0.2
          %v1348 = vmul.f32 %v1308, 0.2
          %v1349 = vmul.f32 %v1309, 0.2
          %v1350 = vmul.f32 %v1310, 0.2
          %v1351 = vmul.f32 %v1311, 0.2
          %v1352 = vmul.f32 %v1312, 0.2
          %v1353 = vmul.f32 %v1313, 0.2
          %v1354 = vmul.f32 %v1314, 0.2
          %v1355 = vmul.f32 %v1315, 0.2
          %v1356 = vmul.f32 %v1316, 0.2
          %v1357 = vmul.f32 %v1317, 0.2
          %v1358 = vmul.f32 %v1318, 0.2
          %v1359 = vmul.f32 %v1319, 0.2
          %v1360 = vmul.f32 %v1320, 0.2
          %v1361 = vmul.f32 %v1321, 0.2
          %v1362 = vmul.f32 %v1322, 0.2
          %v1363 = vmul.f32 %v1323, 0.2
          %v1364 = vsel %vm1324, %v1304, %v1344
          %v1365 = vsel %vm1325, %v1305, %v1345
          %v1366 = vsel %vm1326, %v1306, %v1346
          %v1367 = vsel %vm1327, %v1307, %v1347
          %v1368 = vsel %vm1328, %v1308, %v1348
          %v1369 = vsel %vm1329, %v1309, %v1349
          %v1370 = vsel %vm1330, %v1310, %v1350
          %v1371 = vsel %vm1331, %v1311, %v1351
          %v1372 = vsel %vm1332, %v1312, %v1352
          %v1373 = vsel %vm1333, %v1313, %v1353
          %v1374 = vsel %vm1334, %v1314, %v1354
          %v1375 = vsel %vm1335, %v1315, %v1355
          %v1376 = vsel %vm1336, %v1316, %v1356
          %v1377 = vsel %vm1337, %v1317, %v1357
          %v1378 = vsel %vm1338, %v1318, %v1358
          %v1379 = vsel %vm1339, %v1319, %v1359
          %v1380 = vsel %vm1340, %v1320, %v1360
          %v1381 = vsel %vm1341, %v1321, %v1361
          %v1382 = vsel %vm1342, %v1322, %v1362
          %v1383 = vsel %vm1343, %v1323, %v1363
          %v1384 = vpack.c.bf16 %v1366, %v1364
          %v1385 = vpack.c.bf16 %v1367, %v1365
          %v1386 = vpack.c.bf16 %v1370, %v1368
          %v1387 = vpack.c.bf16 %v1371, %v1369
          %v1388 = vpack.c.bf16 %v1374, %v1372
          %v1389 = vpack.c.bf16 %v1375, %v1373
          %v1390 = vpack.c.bf16 %v1378, %v1376
          %v1391 = vpack.c.bf16 %v1379, %v1377
          %v1392 = vpack.c.bf16 %v1382, %v1380
          %v1393 = vpack.c.bf16 %v1383, %v1381
          %v1404 = vunpack.c.l.b16 %v1384
          %v1405 = vunpack.c.l.b16 %v1385
          %v1406 = vunpack.c.h.b16 %v1384
          %v1407 = vunpack.c.h.b16 %v1385
          %v1408 = vunpack.c.l.b16 %v1386
          %v1409 = vunpack.c.l.b16 %v1387
          %v1410 = vunpack.c.h.b16 %v1386
          %v1411 = vunpack.c.h.b16 %v1387
          %v1412 = vunpack.c.l.b16 %v1388
          %v1413 = vunpack.c.l.b16 %v1389
          %v1414 = vunpack.c.h.b16 %v1388
          %v1415 = vunpack.c.h.b16 %v1389
          %v1416 = vunpack.c.l.b16 %v1390
          %v1417 = vunpack.c.l.b16 %v1391
          %v1418 = vunpack.c.h.b16 %v1390
          %v1419 = vunpack.c.h.b16 %v1391
          %v1420 = vunpack.c.l.b16 %v1392
          %v1421 = vunpack.c.l.b16 %v1393
          %v1422 = vunpack.c.h.b16 %v1392
          %v1423 = vunpack.c.h.b16 %v1393
          %v1424 = vpack.c.b16 %v1405, %v1404
          %v1425 = vpack.c.b16 %v1407, %v1406
          %v1426 = vpack.c.b16 %v1409, %v1408
          %v1427 = vpack.c.b16 %v1411, %v1410
          %v1428 = vpack.c.b16 %v1413, %v1412
          %v1429 = vpack.c.b16 %v1415, %v1414
          %v1430 = vpack.c.b16 %v1417, %v1416
          %v1431 = vpack.c.b16 %v1419, %v1418
          %v1432 = vpack.c.b16 %v1421, %v1420
          %v1433 = vpack.c.b16 %v1423, %v1422
          %1444 = vst [vmem:[%s347] sm:$0xff] %v1424
          %1445 = vst [vmem:[%s347 + $0x8] sm:$0xff] %v1425
          %1446 = vst [vmem:[%s347 + $0x10] sm:$0xff] %v1426
          %1447 = vst [vmem:[%s347 + $0x18] sm:$0xff] %v1427
          %1448 = vst [vmem:[%s347 + $0x20] sm:$0xff] %v1428
          %1449 = vst [vmem:[%s347 + $0x28] sm:$0xff] %v1429
          %1450 = vst [vmem:[%s347 + $0x30] sm:$0xff] %v1430
          %1451 = vst [vmem:[%s347 + $0x38] sm:$0xff] %v1431
          %1452 = vst [vmem:[%s347 + $0x40] sm:$0xff] %v1432
          %1453 = vst [vmem:[%s347 + $0x48] sm:$0xff] %v1433
        $region67: #{discriminator_forward.6} parent=54 // pred_fallthru
          _
        %s1454 = smul.u32 2, %s19
        %p1455 = scmp.lt.s32.totalorder %s1454, 1
        %s1456 = scalar_select %p1455, %s1454, 1
        %s1457 = smul.addr %s1456, 4
        %s1458 = scalar_lea.vmem %s4, %s1457
        // Predicated region
        $region68: #{discriminator_forward.6} parent=54 // pred_check
          %p1459 = pneg %p151
        $region69: #{discriminator_forward.6} parent=54 // pred_check_branch
          %1461 = sbr.rel (%p1459) target = $region71
        $region70: #{discriminator_forward.6} parent=54 // pred_region
          %s1462 = smul.u32 2, %s19
        $region71: #{discriminator_forward.6} parent=54 // pred_fallthru
          _
        // Predicated region
        $region72: #{discriminator_forward.6} parent=54 // pred_check
          %p1463 = pneg %p151
        $region73: #{discriminator_forward.6} parent=54 // pred_check_branch
          %1465 = sbr.rel (%p1463) target = $region75
        $region74: #{discriminator_forward.6} parent=54 // pred_region
          %s1466 = smul.u32 2, %s19
          %p1467 = scmp.lt.s32.totalorder %s1466, 1
          %s1468 = scalar_select %p1467, %s1466, 1
          %s1469 = smul.addr %s1468, 4
          %s1470 = scalar_lea.vmem %s4, %s1469
        $region75: #{discriminator_forward.6} parent=54 // pred_fallthru
          _
      $region55: #{discriminator_forward.6} parent=5 // pred_fallthru
        _
      %p1471 = scmp.le.s32.totalorder 2, %s10
      // Predicated region
      $region76: #{discriminator_forward.6} parent=5 // pred_check
        %p1472 = pneg %p1471
      $region77: #{discriminator_forward.6} parent=5 // pred_check_branch
        %1474 = sbr.rel (%p1472) target = $region79
      $region78: #{discriminator_forward.6} parent=5 // pred_region
        %s1475 = ssub.s32 %s10, 2
      $region79: #{discriminator_forward.6} parent=5 // pred_fallthru
        _
    $region6: #{discriminator_forward.6} parent=1 // loop_footer
      %s14 = sadd.s32 1, %s10
    $region7: #{discriminator_forward.6} parent=1 // loop_footer_branch
      %9 = sbr.rel target = $region3
    $region8: #{discriminator_forward.6} parent=1 // loop_exit
      _

// kernel: discriminator_forward.7
$region0: #{discriminator_forward.7}
  #allocation0 [shape = 'u32[]', space=smem, size = 0x4, offset = 0x4, fixed_abs, tag = 'smem constant byte address 0x4 - core index']
  #allocation1 [shape = 'u32[144,128]{1,0:T(1,128)}', space=vmem, size = 0x12000, scoped, tag = 'internal scratch']
  #allocation2 [shape = 'f32[32,256]{1,0:T(8,128)}', space=vmem, size = 0x8000, scoped, tag = 'scratch operand']
  %s0 = inlined_call_operand.vmem [shape: bf16[32,4096], index: 0, kind: input, shape index: {}]
  %s1 = inlined_call_operand.vmem [shape: bf16[4096,512], index: 1, kind: input, shape index: {}]
  %s2 = inlined_call_operand.vmem [shape: f32[1,512], index: 2, kind: input, shape index: {}]
  %s3 = inlined_call_operand.vmem [shape: f32[1,512], index: 3, kind: input, shape index: {}]
  %s4 = inlined_call_operand.vmem [shape: bf16[32,512], index: 4, kind: output, shape index: {}]
  %s5 = sld [smem:[#allocation0]]
  $region152: #{discriminator_forward.7} parent=0
    _
  %s7 = ssub.s32 1, %s5
  %s8 = scalar_select 0, %s7, %s5
  $region1: #{discriminator_forward.7} parent=0
    #allocation3 [shape = 'u8[65536]{0}', space=vmem, size = 0x10000, scoped, tag = 'input window, operand 0']
    #allocation4 [shape = 'u8[524288]{0}', space=vmem, size = 0x80000, scoped, tag = 'input window, operand 1']
    #allocation5 [shape = 'u8[32768]{0}', space=vmem, size = 0x8000, scoped, tag = 'output window, operand 0']
    loop: start=0, step=1, limit=18
    $region2: #{discriminator_forward.7} parent=1 // loop_pre_header
      _
    $region3: #{discriminator_forward.7} parent=1 // loop_header
      %s10 = sphi 0, %s14
      %p11 = scmp.ge.s32.totalorder %s10, 18
      %s17 = sphi 0, %s29
      %s18 = sphi 0, %s25
      %s19 = sphi 0, %s17
      %s20 = sphi 0, %s18
      %s21 = sphi 0, %s19
      %s22 = sphi 0, %s20
      %s32 = sphi 0, %s34
      %s35 = sphi 0, %s32
      %s36 = sphi 0, %s35
      %s52 = sphi 0, %s36
      %s60 = sphi 0, %s62
      %s63 = sphi 0, %s60
      %s64 = sphi 0, %s63
      %s80 = sphi 0, %s64
      %s86 = sphi 0, %s88
      %s89 = sphi 0, %s86
      %s90 = sphi 0, %s89
      %s106 = sphi 0, %s90
      %s112 = sphi 0, %s114
      %s115 = sphi 0, %s112
      %s116 = sphi 0, %s115
      %s132 = sphi 0, %s116
      %s138 = sphi 0, %s140
      %s141 = sphi 0, %s138
      %s142 = sphi 0, %s141
      %s158 = sphi 0, %s142
    $region4: #{discriminator_forward.7} parent=1 // loop_header_branch
      %13 = sbr.rel (%p11) target = $region8
    $region5: #{discriminator_forward.7} parent=1 // loop_body
      %s15 = ssub.s32 %s10, 1
      %s16 = ssub.s32 %s10, 2
      %s23 = sadd.s32 1, %s18
      %p24 = scmp.ge.s32.totalorder %s23, 8
      %s25 = scalar_select %p24, 0, %s23
      %s26 = sadd.s32 1, %s17
      %s27 = scalar_select %p24, %s26, %s17
      %p28 = scmp.ge.s32.totalorder %s27, 2
      %s29 = scalar_select %p28, 0, %s27
      %s30 = ssub.s32 %s18, %s25
      %p31 = scmp.eq.s32.totalorder %s30, 0
      %s33 = sadd.s32 %s32, 1
      %s34 = scalar_select %p31, %s32, %s33
      %p37 = pneg %p31
      %p38 = scmp.eq.s32.totalorder %s10, 15
      %p39 = por %p37, %p38
      %p40 = scmp.ne.s32.totalorder %s32, %s35
      %p41 = scmp.eq.s32.totalorder %s10, 0
      %p42 = por %p40, %p41
      %p43 = scmp.ne.s32.totalorder %s32, %s35
      %p44 = scmp.eq.s32.totalorder %s15, 15
      %p45 = por %p43, %p44
      %p46 = scmp.ne.s32.totalorder %s35, %s36
      %p47 = scmp.eq.s32.totalorder %s15, 0
      %p48 = por %p46, %p47
      %p49 = scmp.ne.s32.totalorder %s35, %s36
      %p50 = scmp.eq.s32.totalorder %s16, 15
      %p51 = por %p49, %p50
      %p53 = scmp.ne.s32.totalorder %s36, %s52
      %p54 = scmp.eq.s32.totalorder %s16, 0
      %p55 = por %p53, %p54
      %s56 = ssub.s32 %s18, %s25
      %s57 = ssub.s32 %s17, %s29
      %s58 = sor.u32 %s56, %s57
      %p59 = scmp.eq.s32.totalorder %s58, 0
      %s61 = sadd.s32 %s60, 1
      %s62 = scalar_select %p59, %s60, %s61
      %p65 = pneg %p59
      %p66 = scmp.eq.s32.totalorder %s10, 15
      %p67 = por %p65, %p66
      %p68 = scmp.ne.s32.totalorder %s60, %s63
      %p69 = scmp.eq.s32.totalorder %s10, 0
      %p70 = por %p68, %p69
      %p71 = scmp.ne.s32.totalorder %s60, %s63
      %p72 = scmp.eq.s32.totalorder %s15, 15
      %p73 = por %p71, %p72
      %p74 = scmp.ne.s32.totalorder %s63, %s64
      %p75 = scmp.eq.s32.totalorder %s15, 0
      %p76 = por %p74, %p75
      %p77 = scmp.ne.s32.totalorder %s63, %s64
      %p78 = scmp.eq.s32.totalorder %s16, 15
      %p79 = por %p77, %p78
      %p81 = scmp.ne.s32.totalorder %s64, %s80
      %p82 = scmp.eq.s32.totalorder %s16, 0
      %p83 = por %p81, %p82
      %s84 = ssub.s32 %s17, %s29
      %p85 = scmp.eq.s32.totalorder %s84, 0
      %s87 = sadd.s32 %s86, 1
      %s88 = scalar_select %p85, %s86, %s87
      %p91 = pneg %p85
      %p92 = scmp.eq.s32.totalorder %s10, 15
      %p93 = por %p91, %p92
      %p94 = scmp.ne.s32.totalorder %s86, %s89
      %p95 = scmp.eq.s32.totalorder %s10, 0
      %p96 = por %p94, %p95
      %p97 = scmp.ne.s32.totalorder %s86, %s89
      %p98 = scmp.eq.s32.totalorder %s15, 15
      %p99 = por %p97, %p98
      %p100 = scmp.ne.s32.totalorder %s89, %s90
      %p101 = scmp.eq.s32.totalorder %s15, 0
      %p102 = por %p100, %p101
      %p103 = scmp.ne.s32.totalorder %s89, %s90
      %p104 = scmp.eq.s32.totalorder %s16, 15
      %p105 = por %p103, %p104
      %p107 = scmp.ne.s32.totalorder %s90, %s106
      %p108 = scmp.eq.s32.totalorder %s16, 0
      %p109 = por %p107, %p108
      %s110 = ssub.s32 %s17, %s29
      %p111 = scmp.eq.s32.totalorder %s110, 0
      %s113 = sadd.s32 %s112, 1
      %s114 = scalar_select %p111, %s112, %s113
      %p117 = pneg %p111
      %p118 = scmp.eq.s32.totalorder %s10, 15
      %p119 = por %p117, %p118
      %p120 = scmp.ne.s32.totalorder %s112, %s115
      %p121 = scmp.eq.s32.totalorder %s10, 0
      %p122 = por %p120, %p121
      %p123 = scmp.ne.s32.totalorder %s112, %s115
      %p124 = scmp.eq.s32.totalorder %s15, 15
      %p125 = por %p123, %p124
      %p126 = scmp.ne.s32.totalorder %s115, %s116
      %p127 = scmp.eq.s32.totalorder %s15, 0
      %p128 = por %p126, %p127
      %p129 = scmp.ne.s32.totalorder %s115, %s116
      %p130 = scmp.eq.s32.totalorder %s16, 15
      %p131 = por %p129, %p130
      %p133 = scmp.ne.s32.totalorder %s116, %s132
      %p134 = scmp.eq.s32.totalorder %s16, 0
      %p135 = por %p133, %p134
      %s136 = ssub.s32 %s17, %s29
      %p137 = scmp.eq.s32.totalorder %s136, 0
      %s139 = sadd.s32 %s138, 1
      %s140 = scalar_select %p137, %s138, %s139
      %p143 = pneg %p137
      %p144 = scmp.eq.s32.totalorder %s10, 15
      %p145 = por %p143, %p144
      %p146 = scmp.ne.s32.totalorder %s138, %s141
      %p147 = scmp.eq.s32.totalorder %s10, 0
      %p148 = por %p146, %p147
      %p149 = scmp.ne.s32.totalorder %s138, %s141
      %p150 = scmp.eq.s32.totalorder %s15, 15
      %p151 = por %p149, %p150
      %p152 = scmp.ne.s32.totalorder %s141, %s142
      %p153 = scmp.eq.s32.totalorder %s15, 0
      %p154 = por %p152, %p153
      %p155 = scmp.ne.s32.totalorder %s141, %s142
      %p156 = scmp.eq.s32.totalorder %s16, 15
      %p157 = por %p155, %p156
      %p159 = scmp.ne.s32.totalorder %s142, %s158
      %p160 = scmp.eq.s32.totalorder %s16, 0
      %p161 = por %p159, %p160
      %p162 = scmp.le.s32.totalorder 1, %s10
      %p163 = scmp.lt.s32.totalorder %s10, 17
      %p164 = pnand %p162, %p163
      %p165 = pneg %p164
      // Predicated region
      $region9: #{discriminator_forward.7} parent=5 // pred_check
        _
      $region10: #{discriminator_forward.7} parent=5 // pred_check_branch
        %167 = sbr.rel (%p164) target = $region12
      $region11: #{discriminator_forward.7} parent=5 // pred_region
        %s168 = ssub.s32 %s10, 1
      $region12: #{discriminator_forward.7} parent=5 // pred_fallthru
        _
      %p169 = scmp.lt.s32.totalorder %s10, 16
      // Predicated region
      $region13: #{discriminator_forward.7} parent=5 // pred_check
        %p170 = pneg %p169
      $region14: #{discriminator_forward.7} parent=5 // pred_check_branch
        %172 = sbr.rel (%p170) target = $region16
      $region15: #{discriminator_forward.7} parent=5 // pred_region
        // Predicated region
        $region17: #{discriminator_forward.7} parent=15 // pred_check
          %p173 = pneg %p42
        $region18: #{discriminator_forward.7} parent=15 // pred_check_branch
          %175 = sbr.rel (%p173) target = $region20
        $region19: #{discriminator_forward.7} parent=15 // pred_region
          %s176 = sand.u32 %s32, 1
          %s177 = sand.u32 %s32, 1
          %s178 = smul.addr %s177, 64
          %s179 = scalar_lea.vmem [#allocation3], %s178
          %s180 = smul.u32 4, %s18
          %s181 = smul.addr %s180, 4
          %s182 = scalar_lea.vmem %s0, %s181
          // Predicated region
          $region21: #{discriminator_forward.7} parent=19 // pred_check
            _
          $region22: #{discriminator_forward.7} parent=19 // pred_check_branch
            %184 = sbr.rel (0) target = $region24
          $region23: #{discriminator_forward.7} parent=19 // pred_region
            // Predicated region
            $region25: #{discriminator_forward.7} parent=23 // pred_check
              _
            $region26: #{discriminator_forward.7} parent=23 // pred_check_branch
              %186 = sbr.rel (0) target = $region28
            $region27: #{discriminator_forward.7} parent=23 // pred_region
              loop: start=0, step=1, limit=1
              $region29: #{discriminator_forward.7} parent=27 // loop_pre_header
                _
              $region30: #{discriminator_forward.7} parent=27 // loop_header
                %s188 = sphi 0, %s192
                %p189 = scmp.ge.s32.totalorder %s188, 1
                %s193 = sphi %s182, %s182
                %s194 = sphi %s179, %s179
              $region31: #{discriminator_forward.7} parent=27 // loop_header_branch
                %191 = sbr.rel (%p189) target = $region35
              $region32: #{discriminator_forward.7} parent=27 // loop_body
                %v195 = vld [vmem:[%s193] sm:$0xff]
                %196 = vst [vmem:[%s194] sm:$0xff] %v195
                %v197 = vld [vmem:[%s193 + $0x8] sm:$0xff]
                %198 = vst [vmem:[%s194 + $0x8] sm:$0xff] %v197
                %v199 = vld [vmem:[%s193 + $0x80] sm:$0xff]
                %200 = vst [vmem:[%s194 + $0x10] sm:$0xff] %v199
                %v201 = vld [vmem:[%s193 + $0x88] sm:$0xff]
                %202 = vst [vmem:[%s194 + $0x18] sm:$0xff] %v201
                %v203 = vld [vmem:[%s193 + $0x100] sm:$0xff]
                %204 = vst [vmem:[%s194 + $0x20] sm:$0xff] %v203
                %v205 = vld [vmem:[%s193 + $0x108] sm:$0xff]
                %206 = vst [vmem:[%s194 + $0x28] sm:$0xff] %v205
                %v207 = vld [vmem:[%s193 + $0x180] sm:$0xff]
                %208 = vst [vmem:[%s194 + $0x30] sm:$0xff] %v207
                %v209 = vld [vmem:[%s193 + $0x188] sm:$0xff]
                %210 = vst [vmem:[%s194 + $0x38] sm:$0xff] %v209
              $region33: #{discriminator_forward.7} parent=27 // loop_footer
                %s192 = sadd.s32 1, %s188
              $region34: #{discriminator_forward.7} parent=27 // loop_footer_branch
                %187 = sbr.rel target = $region30
              $region35: #{discriminator_forward.7} parent=27 // loop_exit
                _
            $region28: #{discriminator_forward.7} parent=23 // pred_fallthru
              _
            // Predicated region
            $region36: #{discriminator_forward.7} parent=23 // pred_check
              _
            $region37: #{discriminator_forward.7} parent=23 // pred_check_branch
              %212 = sbr.rel target = $region39
            $region38: #{discriminator_forward.7} parent=23 // pred_region
              _
            $region39: #{discriminator_forward.7} parent=23 // pred_fallthru
              _
          $region24: #{discriminator_forward.7} parent=19 // pred_fallthru
            _
          %213 = vnop
        $region20: #{discriminator_forward.7} parent=15 // pred_fallthru
          _
        // Predicated region
        $region40: #{discriminator_forward.7} parent=15 // pred_check
          %p214 = pneg %p70
        $region41: #{discriminator_forward.7} parent=15 // pred_check_branch
          %216 = sbr.rel (%p214) target = $region43
        $region42: #{discriminator_forward.7} parent=15 // pred_region
          %s217 = sand.u32 %s60, 1
          %s218 = sand.u32 %s60, 1
          %s219 = smul.addr %s218, 512
          %s220 = scalar_lea.vmem [#allocation4], %s219
          %s221 = smul.u32 64, %s18
          %s222 = smul.u32 2, %s17
          %s223 = smul.addr %s221, 4
          %s224 = sadd.s32 %s222, %s223
          %s225 = smul.addr %s224, 4
          %s226 = scalar_lea.vmem %s1, %s225
          // Predicated region
          $region44: #{discriminator_forward.7} parent=42 // pred_check
            _
          $region45: #{discriminator_forward.7} parent=42 // pred_check_branch
            %228 = sbr.rel (0) target = $region47
          $region46: #{discriminator_forward.7} parent=42 // pred_region
            // Predicated region
            $region48: #{discriminator_forward.7} parent=46 // pred_check
              _
            $region49: #{discriminator_forward.7} parent=46 // pred_check_branch
              %230 = sbr.rel (0) target = $region51
            $region50: #{discriminator_forward.7} parent=46 // pred_region
              // Predicated region
              $region63: #{discriminator_forward.7} parent=50 // pred_check
                _
              $region64: #{discriminator_forward.7} parent=50 // pred_check_branch
                %372 = sbr.rel (0) target = $region66
              $region65: #{discriminator_forward.7} parent=50 // pred_region
                loop: start=0, step=1, limit=1
                $region67: #{discriminator_forward.7} parent=65 // loop_pre_header
                  _
                $region68: #{discriminator_forward.7} parent=65 // loop_header
                  %s374 = sphi 0, %s378
                  %p375 = scmp.ge.s32.totalorder %s374, 1
                  %s379 = sphi %s226, %s226
                  %s380 = sphi %s220, %s220
                $region69: #{discriminator_forward.7} parent=65 // loop_header_branch
                  %377 = sbr.rel (%p375) target = $region73
                $region70: #{discriminator_forward.7} parent=65 // loop_body
                  %v381 = vld [vmem:[%s379] sm:$0xff]
                  %382 = vst [vmem:[%s380] sm:$0xff] %v381
                  %v383 = vld [vmem:[%s379 + $0x10] sm:$0xff]
                  %384 = vst [vmem:[%s380 + $0x8] sm:$0xff] %v383
                  %v385 = vld [vmem:[%s379 + $0x20] sm:$0xff]
                  %386 = vst [vmem:[%s380 + $0x10] sm:$0xff] %v385
                  %v387 = vld [vmem:[%s379 + $0x30] sm:$0xff]
                  %388 = vst [vmem:[%s380 + $0x18] sm:$0xff] %v387
                  %v389 = vld [vmem:[%s379 + $0x40] sm:$0xff]
                  %390 = vst [vmem:[%s380 + $0x20] sm:$0xff] %v389
                  %v391 = vld [vmem:[%s379 + $0x50] sm:$0xff]
                  %392 = vst [vmem:[%s380 + $0x28] sm:$0xff] %v391
                  %v393 = vld [vmem:[%s379 + $0x60] sm:$0xff]
                  %394 = vst [vmem:[%s380 + $0x30] sm:$0xff] %v393
                  %v395 = vld [vmem:[%s379 + $0x70] sm:$0xff]
                  %396 = vst [vmem:[%s380 + $0x38] sm:$0xff] %v395
                  %v397 = vld [vmem:[%s379 + $0x80] sm:$0xff]
                  %398 = vst [vmem:[%s380 + $0x40] sm:$0xff] %v397
                  %v399 = vld [vmem:[%s379 + $0x90] sm:$0xff]
                  %400 = vst [vmem:[%s380 + $0x48] sm:$0xff] %v399
                  %v401 = vld [vmem:[%s379 + $0xa0] sm:$0xff]
                  %402 = vst [vmem:[%s380 + $0x50] sm:$0xff] %v401
                  %v403 = vld [vmem:[%s379 + $0xb0] sm:$0xff]
                  %404 = vst [vmem:[%s380 + $0x58] sm:$0xff] %v403
                  %v405 = vld [vmem:[%s379 + $0xc0] sm:$0xff]
                  %406 = vst [vmem:[%s380 + $0x60] sm:$0xff] %v405
                  %v407 = vld [vmem:[%s379 + $0xd0] sm:$0xff]
                  %408 = vst [vmem:[%s380 + $0x68] sm:$0xff] %v407
                  %v409 = vld [vmem:[%s379 + $0xe0] sm:$0xff]
                  %410 = vst [vmem:[%s380 + $0x70] sm:$0xff] %v409
                  %v411 = vld [vmem:[%s379 + $0xf0] sm:$0xff]
                  %412 = vst [vmem:[%s380 + $0x78] sm:$0xff] %v411
                  %v413 = vld [vmem:[%s379 + $0x100] sm:$0xff]
                  %414 = vst [vmem:[%s380 + $0x80] sm:$0xff] %v413
                  %v415 = vld [vmem:[%s379 + $0x110] sm:$0xff]
                  %416 = vst [vmem:[%s380 + $0x88] sm:$0xff] %v415
                  %v417 = vld [vmem:[%s379 + $0x120] sm:$0xff]
                  %418 = vst [vmem:[%s380 + $0x90] sm:$0xff] %v417
                  %v419 = vld [vmem:[%s379 + $0x130] sm:$0xff]
                  %420 = vst [vmem:[%s380 + $0x98] sm:$0xff] %v419
                  %v421 = vld [vmem:[%s379 + $0x140] sm:$0xff]
                  %422 = vst [vmem:[%s380 + $0xa0] sm:$0xff] %v421
                  %v423 = vld [vmem:[%s379 + $0x150] sm:$0xff]
                  %424 = vst [vmem:[%s380 + $0xa8] sm:$0xff] %v423
                  %v425 = vld [vmem:[%s379 + $0x160] sm:$0xff]
                  %426 = vst [vmem:[%s380 + $0xb0] sm:$0xff] %v425
                  %v427 = vld [vmem:[%s379 + $0x170] sm:$0xff]
                  %428 = vst [vmem:[%s380 + $0xb8] sm:$0xff] %v427
                  %v429 = vld [vmem:[%s379 + $0x180] sm:$0xff]
                  %430 = vst [vmem:[%s380 + $0xc0] sm:$0xff] %v429
                  %v431 = vld [vmem:[%s379 + $0x190] sm:$0xff]
                  %432 = vst [vmem:[%s380 + $0xc8] sm:$0xff] %v431
                  %v433 = vld [vmem:[%s379 + $0x1a0] sm:$0xff]
                  %434 = vst [vmem:[%s380 + $0xd0] sm:$0xff] %v433
                  %v435 = vld [vmem:[%s379 + $0x1b0] sm:$0xff]
                  %436 = vst [vmem:[%s380 + $0xd8] sm:$0xff] %v435
                  %v437 = vld [vmem:[%s379 + $0x1c0] sm:$0xff]
                  %438 = vst [vmem:[%s380 + $0xe0] sm:$0xff] %v437
                  %v439 = vld [vmem:[%s379 + $0x1d0] sm:$0xff]
                  %440 = vst [vmem:[%s380 + $0xe8] sm:$0xff] %v439
                  %v441 = vld [vmem:[%s379 + $0x1e0] sm:$0xff]
                  %442 = vst [vmem:[%s380 + $0xf0] sm:$0xff] %v441
                  %v443 = vld [vmem:[%s379 + $0x1f0] sm:$0xff]
                  %444 = vst [vmem:[%s380 + $0xf8] sm:$0xff] %v443
                  %v445 = vld [vmem:[%s379 + $0x200] sm:$0xff]
                  %446 = vst [vmem:[%s380 + $0x100] sm:$0xff] %v445
                  %v447 = vld [vmem:[%s379 + $0x210] sm:$0xff]
                  %448 = vst [vmem:[%s380 + $0x108] sm:$0xff] %v447
                  %v449 = vld [vmem:[%s379 + $0x220] sm:$0xff]
                  %450 = vst [vmem:[%s380 + $0x110] sm:$0xff] %v449
                  %v451 = vld [vmem:[%s379 + $0x230] sm:$0xff]
                  %452 = vst [vmem:[%s380 + $0x118] sm:$0xff] %v451
                  %v453 = vld [vmem:[%s379 + $0x240] sm:$0xff]
                  %454 = vst [vmem:[%s380 + $0x120] sm:$0xff] %v453
                  %v455 = vld [vmem:[%s379 + $0x250] sm:$0xff]
                  %456 = vst [vmem:[%s380 + $0x128] sm:$0xff] %v455
                  %v457 = vld [vmem:[%s379 + $0x260] sm:$0xff]
                  %458 = vst [vmem:[%s380 + $0x130] sm:$0xff] %v457
                  %v459 = vld [vmem:[%s379 + $0x270] sm:$0xff]
                  %460 = vst [vmem:[%s380 + $0x138] sm:$0xff] %v459
                  %v461 = vld [vmem:[%s379 + $0x280] sm:$0xff]
                  %462 = vst [vmem:[%s380 + $0x140] sm:$0xff] %v461
                  %v463 = vld [vmem:[%s379 + $0x290] sm:$0xff]
                  %464 = vst [vmem:[%s380 + $0x148] sm:$0xff] %v463
                  %v465 = vld [vmem:[%s379 + $0x2a0] sm:$0xff]
                  %466 = vst [vmem:[%s380 + $0x150] sm:$0xff] %v465
                  %v467 = vld [vmem:[%s379 + $0x2b0] sm:$0xff]
                  %468 = vst [vmem:[%s380 + $0x158] sm:$0xff] %v467
                  %v469 = vld [vmem:[%s379 + $0x2c0] sm:$0xff]
                  %470 = vst [vmem:[%s380 + $0x160] sm:$0xff] %v469
                  %v471 = vld [vmem:[%s379 + $0x2d0] sm:$0xff]
                  %472 = vst [vmem:[%s380 + $0x168] sm:$0xff] %v471
                  %v473 = vld [vmem:[%s379 + $0x2e0] sm:$0xff]
                  %474 = vst [vmem:[%s380 + $0x170] sm:$0xff] %v473
                  %v475 = vld [vmem:[%s379 + $0x2f0] sm:$0xff]
                  %476 = vst [vmem:[%s380 + $0x178] sm:$0xff] %v475
                  %v477 = vld [vmem:[%s379 + $0x300] sm:$0xff]
                  %478 = vst [vmem:[%s380 + $0x180] sm:$0xff] %v477
                  %v479 = vld [vmem:[%s379 + $0x310] sm:$0xff]
                  %480 = vst [vmem:[%s380 + $0x188] sm:$0xff] %v479
                  %v481 = vld [vmem:[%s379 + $0x320] sm:$0xff]
                  %482 = vst [vmem:[%s380 + $0x190] sm:$0xff] %v481
                  %v483 = vld [vmem:[%s379 + $0x330] sm:$0xff]
                  %484 = vst [vmem:[%s380 + $0x198] sm:$0xff] %v483
                  %v485 = vld [vmem:[%s379 + $0x340] sm:$0xff]
                  %486 = vst [vmem:[%s380 + $0x1a0] sm:$0xff] %v485
                  %v487 = vld [vmem:[%s379 + $0x350] sm:$0xff]
                  %488 = vst [vmem:[%s380 + $0x1a8] sm:$0xff] %v487
                  %v489 = vld [vmem:[%s379 + $0x360] sm:$0xff]
                  %490 = vst [vmem:[%s380 + $0x1b0] sm:$0xff] %v489
                  %v491 = vld [vmem:[%s379 + $0x370] sm:$0xff]
                  %492 = vst [vmem:[%s380 + $0x1b8] sm:$0xff] %v491
                  %v493 = vld [vmem:[%s379 + $0x380] sm:$0xff]
                  %494 = vst [vmem:[%s380 + $0x1c0] sm:$0xff] %v493
                  %v495 = vld [vmem:[%s379 + $0x390] sm:$0xff]
                  %496 = vst [vmem:[%s380 + $0x1c8] sm:$0xff] %v495
                  %v497 = vld [vmem:[%s379 + $0x3a0] sm:$0xff]
                  %498 = vst [vmem:[%s380 + $0x1d0] sm:$0xff] %v497
                  %v499 = vld [vmem:[%s379 + $0x3b0] sm:$0xff]
                  %500 = vst [vmem:[%s380 + $0x1d8] sm:$0xff] %v499
                  %v501 = vld [vmem:[%s379 + $0x3c0] sm:$0xff]
                  %502 = vst [vmem:[%s380 + $0x1e0] sm:$0xff] %v501
                  %v503 = vld [vmem:[%s379 + $0x3d0] sm:$0xff]
                  %504 = vst [vmem:[%s380 + $0x1e8] sm:$0xff] %v503
                  %v505 = vld [vmem:[%s379 + $0x3e0] sm:$0xff]
                  %506 = vst [vmem:[%s380 + $0x1f0] sm:$0xff] %v505
                  %v507 = vld [vmem:[%s379 + $0x3f0] sm:$0xff]
                  %508 = vst [vmem:[%s380 + $0x1f8] sm:$0xff] %v507
                $region71: #{discriminator_forward.7} parent=65 // loop_footer
                  %s378 = sadd.s32 1, %s374
                $region72: #{discriminator_forward.7} parent=65 // loop_footer_branch
                  %373 = sbr.rel target = $region68
                $region73: #{discriminator_forward.7} parent=65 // loop_exit
                  _
              $region66: #{discriminator_forward.7} parent=50 // pred_fallthru
                _
              // Predicated region
              $region74: #{discriminator_forward.7} parent=50 // pred_check
                _
              $region75: #{discriminator_forward.7} parent=50 // pred_check_branch
                %510 = sbr.rel target = $region77
              $region76: #{discriminator_forward.7} parent=50 // pred_region
                _
              $region77: #{discriminator_forward.7} parent=50 // pred_fallthru
                _
            $region51: #{discriminator_forward.7} parent=46 // pred_fallthru
              _
            // Predicated region
            $region52: #{discriminator_forward.7} parent=46 // pred_check
              _
            $region53: #{discriminator_forward.7} parent=46 // pred_check_branch
              %232 = sbr.rel target = $region55
            $region54: #{discriminator_forward.7} parent=46 // pred_region
              %s234 = ssub.s32 256, 1
              loop: start=0, step=1, limit=1
              $region56: #{discriminator_forward.7} parent=54 // loop_pre_header
                _
              $region57: #{discriminator_forward.7} parent=54 // loop_header
                %s236 = sphi 0, %s240
                %p237 = scmp.ge.s32.totalorder %s236, 1
                %s241 = sphi %s226, %s226
                %s242 = sphi %s220, %s220
              $region58: #{discriminator_forward.7} parent=54 // loop_header_branch
                %239 = sbr.rel (%p237) target = $region62
              $region59: #{discriminator_forward.7} parent=54 // loop_body
                %v243 = vld [vmem:[%s241] sm:%s234]
                %244 = vst [vmem:[%s242] sm:%s234] %v243
                %v245 = vld [vmem:[%s241 + $0x10] sm:%s234]
                %246 = vst [vmem:[%s242 + $0x8] sm:%s234] %v245
                %v247 = vld [vmem:[%s241 + $0x20] sm:%s234]
                %248 = vst [vmem:[%s242 + $0x10] sm:%s234] %v247
                %v249 = vld [vmem:[%s241 + $0x30] sm:%s234]
                %250 = vst [vmem:[%s242 + $0x18] sm:%s234] %v249
                %v251 = vld [vmem:[%s241 + $0x40] sm:%s234]
                %252 = vst [vmem:[%s242 + $0x20] sm:%s234] %v251
                %v253 = vld [vmem:[%s241 + $0x50] sm:%s234]
                %254 = vst [vmem:[%s242 + $0x28] sm:%s234] %v253
                %v255 = vld [vmem:[%s241 + $0x60] sm:%s234]
                %256 = vst [vmem:[%s242 + $0x30] sm:%s234] %v255
                %v257 = vld [vmem:[%s241 + $0x70] sm:%s234]
                %258 = vst [vmem:[%s242 + $0x38] sm:%s234] %v257
                %v259 = vld [vmem:[%s241 + $0x80] sm:%s234]
                %260 = vst [vmem:[%s242 + $0x40] sm:%s234] %v259
                %v261 = vld [vmem:[%s241 + $0x90] sm:%s234]
                %262 = vst [vmem:[%s242 + $0x48] sm:%s234] %v261
                %v263 = vld [vmem:[%s241 + $0xa0] sm:%s234]
                %264 = vst [vmem:[%s242 + $0x50] sm:%s234] %v263
                %v265 = vld [vmem:[%s241 + $0xb0] sm:%s234]
                %266 = vst [vmem:[%s242 + $0x58] sm:%s234] %v265
                %v267 = vld [vmem:[%s241 + $0xc0] sm:%s234]
                %268 = vst [vmem:[%s242 + $0x60] sm:%s234] %v267
                %v269 = vld [vmem:[%s241 + $0xd0] sm:%s234]
                %270 = vst [vmem:[%s242 + $0x68] sm:%s234] %v269
                %v271 = vld [vmem:[%s241 + $0xe0] sm:%s234]
                %272 = vst [vmem:[%s242 + $0x70] sm:%s234] %v271
                %v273 = vld [vmem:[%s241 + $0xf0] sm:%s234]
                %274 = vst [vmem:[%s242 + $0x78] sm:%s234] %v273
                %v275 = vld [vmem:[%s241 + $0x100] sm:%s234]
                %276 = vst [vmem:[%s242 + $0x80] sm:%s234] %v275
                %v277 = vld [vmem:[%s241 + $0x110] sm:%s234]
                %278 = vst [vmem:[%s242 + $0x88] sm:%s234] %v277
                %v279 = vld [vmem:[%s241 + $0x120] sm:%s234]
                %280 = vst [vmem:[%s242 + $0x90] sm:%s234] %v279
                %v281 = vld [vmem:[%s241 + $0x130] sm:%s234]
                %282 = vst [vmem:[%s242 + $0x98] sm:%s234] %v281
                %v283 = vld [vmem:[%s241 + $0x140] sm:%s234]
                %284 = vst [vmem:[%s242 + $0xa0] sm:%s234] %v283
                %v285 = vld [vmem:[%s241 + $0x150] sm:%s234]
                %286 = vst [vmem:[%s242 + $0xa8] sm:%s234] %v285
                %v287 = vld [vmem:[%s241 + $0x160] sm:%s234]
                %288 = vst [vmem:[%s242 + $0xb0] sm:%s234] %v287
                %v289 = vld [vmem:[%s241 + $0x170] sm:%s234]
                %290 = vst [vmem:[%s242 + $0xb8] sm:%s234] %v289
                %v291 = vld [vmem:[%s241 + $0x180] sm:%s234]
                %292 = vst [vmem:[%s242 + $0xc0] sm:%s234] %v291
                %v293 = vld [vmem:[%s241 + $0x190] sm:%s234]
                %294 = vst [vmem:[%s242 + $0xc8] sm:%s234] %v293
                %v295 = vld [vmem:[%s241 + $0x1a0] sm:%s234]
                %296 = vst [vmem:[%s242 + $0xd0] sm:%s234] %v295
                %v297 = vld [vmem:[%s241 + $0x1b0] sm:%s234]
                %298 = vst [vmem:[%s242 + $0xd8] sm:%s234] %v297
                %v299 = vld [vmem:[%s241 + $0x1c0] sm:%s234]
                %300 = vst [vmem:[%s242 + $0xe0] sm:%s234] %v299
                %v301 = vld [vmem:[%s241 + $0x1d0] sm:%s234]
                %302 = vst [vmem:[%s242 + $0xe8] sm:%s234] %v301
                %v303 = vld [vmem:[%s241 + $0x1e0] sm:%s234]
                %304 = vst [vmem:[%s242 + $0xf0] sm:%s234] %v303
                %v305 = vld [vmem:[%s241 + $0x1f0] sm:%s234]
                %306 = vst [vmem:[%s242 + $0xf8] sm:%s234] %v305
                %v307 = vld [vmem:[%s241 + $0x200] sm:%s234]
                %308 = vst [vmem:[%s242 + $0x100] sm:%s234] %v307
                %v309 = vld [vmem:[%s241 + $0x210] sm:%s234]
                %310 = vst [vmem:[%s242 + $0x108] sm:%s234] %v309
                %v311 = vld [vmem:[%s241 + $0x220] sm:%s234]
                %312 = vst [vmem:[%s242 + $0x110] sm:%s234] %v311
                %v313 = vld [vmem:[%s241 + $0x230] sm:%s234]
                %314 = vst [vmem:[%s242 + $0x118] sm:%s234] %v313
                %v315 = vld [vmem:[%s241 + $0x240] sm:%s234]
                %316 = vst [vmem:[%s242 + $0x120] sm:%s234] %v315
                %v317 = vld [vmem:[%s241 + $0x250] sm:%s234]
                %318 = vst [vmem:[%s242 + $0x128] sm:%s234] %v317
                %v319 = vld [vmem:[%s241 + $0x260] sm:%s234]
                %320 = vst [vmem:[%s242 + $0x130] sm:%s234] %v319
                %v321 = vld [vmem:[%s241 + $0x270] sm:%s234]
                %322 = vst [vmem:[%s242 + $0x138] sm:%s234] %v321
                %v323 = vld [vmem:[%s241 + $0x280] sm:%s234]
                %324 = vst [vmem:[%s242 + $0x140] sm:%s234] %v323
                %v325 = vld [vmem:[%s241 + $0x290] sm:%s234]
                %326 = vst [vmem:[%s242 + $0x148] sm:%s234] %v325
                %v327 = vld [vmem:[%s241 + $0x2a0] sm:%s234]
                %328 = vst [vmem:[%s242 + $0x150] sm:%s234] %v327
                %v329 = vld [vmem:[%s241 + $0x2b0] sm:%s234]
                %330 = vst [vmem:[%s242 + $0x158] sm:%s234] %v329
                %v331 = vld [vmem:[%s241 + $0x2c0] sm:%s234]
                %332 = vst [vmem:[%s242 + $0x160] sm:%s234] %v331
                %v333 = vld [vmem:[%s241 + $0x2d0] sm:%s234]
                %334 = vst [vmem:[%s242 + $0x168] sm:%s234] %v333
                %v335 = vld [vmem:[%s241 + $0x2e0] sm:%s234]
                %336 = vst [vmem:[%s242 + $0x170] sm:%s234] %v335
                %v337 = vld [vmem:[%s241 + $0x2f0] sm:%s234]
                %338 = vst [vmem:[%s242 + $0x178] sm:%s234] %v337
                %v339 = vld [vmem:[%s241 + $0x300] sm:%s234]
                %340 = vst [vmem:[%s242 + $0x180] sm:%s234] %v339
                %v341 = vld [vmem:[%s241 + $0x310] sm:%s234]
                %342 = vst [vmem:[%s242 + $0x188] sm:%s234] %v341
                %v343 = vld [vmem:[%s241 + $0x320] sm:%s234]
                %344 = vst [vmem:[%s242 + $0x190] sm:%s234] %v343
                %v345 = vld [vmem:[%s241 + $0x330] sm:%s234]
                %346 = vst [vmem:[%s242 + $0x198] sm:%s234] %v345
                %v347 = vld [vmem:[%s241 + $0x340] sm:%s234]
                %348 = vst [vmem:[%s242 + $0x1a0] sm:%s234] %v347
                %v349 = vld [vmem:[%s241 + $0x350] sm:%s234]
                %350 = vst [vmem:[%s242 + $0x1a8] sm:%s234] %v349
                %v351 = vld [vmem:[%s241 + $0x360] sm:%s234]
                %352 = vst [vmem:[%s242 + $0x1b0] sm:%s234] %v351
                %v353 = vld [vmem:[%s241 + $0x370] sm:%s234]
                %354 = vst [vmem:[%s242 + $0x1b8] sm:%s234] %v353
                %v355 = vld [vmem:[%s241 + $0x380] sm:%s234]
                %356 = vst [vmem:[%s242 + $0x1c0] sm:%s234] %v355
                %v357 = vld [vmem:[%s241 + $0x390] sm:%s234]
                %358 = vst [vmem:[%s242 + $0x1c8] sm:%s234] %v357
                %v359 = vld [vmem:[%s241 + $0x3a0] sm:%s234]
                %360 = vst [vmem:[%s242 + $0x1d0] sm:%s234] %v359
                %v361 = vld [vmem:[%s241 + $0x3b0] sm:%s234]
                %362 = vst [vmem:[%s242 + $0x1d8] sm:%s234] %v361
                %v363 = vld [vmem:[%s241 + $0x3c0] sm:%s234]
                %364 = vst [vmem:[%s242 + $0x1e0] sm:%s234] %v363
                %v365 = vld [vmem:[%s241 + $0x3d0] sm:%s234]
                %366 = vst [vmem:[%s242 + $0x1e8] sm:%s234] %v365
                %v367 = vld [vmem:[%s241 + $0x3e0] sm:%s234]
                %368 = vst [vmem:[%s242 + $0x1f0] sm:%s234] %v367
                %v369 = vld [vmem:[%s241 + $0x3f0] sm:%s234]
                %370 = vst [vmem:[%s242 + $0x1f8] sm:%s234] %v369
              $region60: #{discriminator_forward.7} parent=54 // loop_footer
                %s240 = sadd.s32 1, %s236
              $region61: #{discriminator_forward.7} parent=54 // loop_footer_branch
                %235 = sbr.rel target = $region57
              $region62: #{discriminator_forward.7} parent=54 // loop_exit
                _
            $region55: #{discriminator_forward.7} parent=46 // pred_fallthru
              _
          $region47: #{discriminator_forward.7} parent=42 // pred_fallthru
            _
          %511 = vnop
        $region43: #{discriminator_forward.7} parent=15 // pred_fallthru
          _
        // Predicated region
        $region78: #{discriminator_forward.7} parent=15 // pred_check
          %p512 = pneg %p96
        $region79: #{discriminator_forward.7} parent=15 // pred_check_branch
          %514 = sbr.rel (%p512) target = $region81
        $region80: #{discriminator_forward.7} parent=15 // pred_region
          %s515 = smul.u32 2, %s17
          %p516 = scmp.lt.s32.totalorder %s515, 3
          %s517 = scalar_select %p516, %s515, 3
          %s518 = scalar_lea.vmem %s2, %s517
          %s519 = smul.u32 2, %s17
        $region81: #{discriminator_forward.7} parent=15 // pred_fallthru
          _
        // Predicated region
        $region82: #{discriminator_forward.7} parent=15 // pred_check
          %p520 = pneg %p122
        $region83: #{discriminator_forward.7} parent=15 // pred_check_branch
          %522 = sbr.rel (%p520) target = $region85
        $region84: #{discriminator_forward.7} parent=15 // pred_region
          %s523 = smul.u32 2, %s17
          %p524 = scmp.lt.s32.totalorder %s523, 3
          %s525 = scalar_select %p524, %s523, 3
          %s526 = scalar_lea.vmem %s3, %s525
          %s527 = smul.u32 2, %s17
        $region85: #{discriminator_forward.7} parent=15 // pred_fallthru
          _
      $region16: #{discriminator_forward.7} parent=5 // pred_fallthru
        _
      %p528 = scmp.le.s32.totalorder 1, %s10
      %p529 = scmp.lt.s32.totalorder %s10, 17
      %p530 = pnand %p528, %p529
      %p531 = pneg %p530
      // Predicated region
      $region86: #{discriminator_forward.7} parent=5 // pred_check
        _
      $region87: #{discriminator_forward.7} parent=5 // pred_check_branch
        %533 = sbr.rel (%p530) target = $region89
      $region88: #{discriminator_forward.7} parent=5 // pred_region
        %s534 = ssub.s32 %s10, 1
        %s535 = sand.u32 %s35, 1
        %s536 = sand.u32 %s35, 1
        %s537 = smul.addr %s536, 64
        %s538 = scalar_lea.vmem [#allocation3], %s537
        // Predicated region
        $region90: #{discriminator_forward.7} parent=88 // pred_check
          %p539 = pneg %p48
        $region91: #{discriminator_forward.7} parent=88 // pred_check_branch
          %541 = sbr.rel (%p539) target = $region93
        $region92: #{discriminator_forward.7} parent=88 // pred_region
          _
        $region93: #{discriminator_forward.7} parent=88 // pred_fallthru
          _
        %s542 = sand.u32 %s63, 1
        %s543 = sand.u32 %s63, 1
        %s544 = smul.addr %s543, 512
        %s545 = scalar_lea.vmem [#allocation4], %s544
        // Predicated region
        $region94: #{discriminator_forward.7} parent=88 // pred_check
          %p546 = pneg %p76
        $region95: #{discriminator_forward.7} parent=88 // pred_check_branch
          %548 = sbr.rel (%p546) target = $region97
        $region96: #{discriminator_forward.7} parent=88 // pred_region
          _
        $region97: #{discriminator_forward.7} parent=88 // pred_fallthru
          _
        %s549 = sand.u32 %s35, 1
        %s550 = sand.u32 %s35, 1
        %s551 = smul.addr %s550, 64
        %s552 = scalar_lea.vmem [#allocation3], %s551
        %p553 = pneg %p48
        %p554 = pneg %p45
        %s555 = sand.u32 %s63, 1
        %s556 = sand.u32 %s63, 1
        %s557 = smul.addr %s556, 512
        %s558 = scalar_lea.vmem [#allocation4], %s557
        %p559 = pneg %p76
        %p560 = pneg %p73
        %s561 = smul.u32 2, %s19
        %p562 = scmp.lt.s32.totalorder %s561, 3
        %s563 = scalar_select %p562, %s561, 3
        %s564 = scalar_lea.vmem %s2, %s563
        %p565 = pneg %p102
        %p566 = pneg %p99
        %s567 = smul.u32 2, %s19
        %p568 = scmp.lt.s32.totalorder %s567, 3
        %s569 = scalar_select %p568, %s567, 3
        %s570 = scalar_lea.vmem %s3, %s569
        %p571 = pneg %p128
        %p572 = pneg %p125
        %p573 = pneg %p154
        %p574 = pneg %p151
        %s575 = sand.u32 %s141, 1
        %s576 = sand.u32 %s141, 1
        %s577 = smul.addr %s576, 32
        %s578 = scalar_lea.vmem [#allocation5], %s577
        %s579 = smul.u32 4, %s20
        %s580 = smul.u32 64, %s20
        %s581 = smul.u32 2, %s19
        %s582 = smul.u32 2, %s19
        %p583 = scmp.lt.s32.totalorder %s582, 3
        %s584 = scalar_select %p583, %s582, 3
        %s585 = scalar_lea.vmem %s2, %s584
        %s586 = smul.u32 2, %s19
        %s587 = smul.u32 2, %s19
        %p588 = scmp.lt.s32.totalorder %s587, 3
        %s589 = scalar_select %p588, %s587, 3
        %s590 = scalar_lea.vmem %s3, %s589
        %s591 = smul.u32 2, %s19
        %s592 = smul.u32 2, %s19
        %p593 = scmp.eq.s32.totalorder %s20, 0
        // Predicated region
        $region98: #{discriminator_forward.7} parent=88 // pred_check
          %p594 = pneg %p593
        $region99: #{discriminator_forward.7} parent=88 // pred_check_branch
          %596 = sbr.rel (%p594) target = $region101
        $region100: #{discriminator_forward.7} parent=88 // pred_region
          %597 = vst [vmem:[#allocation2] sm:$0xff] 0.0
          %598 = vst [vmem:[#allocation2 + $0x8] sm:$0xff] 0.0
          %599 = vst [vmem:[#allocation2 + $0x10] sm:$0xff] 0.0
          %600 = vst [vmem:[#allocation2 + $0x18] sm:$0xff] 0.0
          %601 = vst [vmem:[#allocation2 + $0x20] sm:$0xff] 0.0
          %602 = vst [vmem:[#allocation2 + $0x28] sm:$0xff] 0.0
          %603 = vst [vmem:[#allocation2 + $0x30] sm:$0xff] 0.0
          %604 = vst [vmem:[#allocation2 + $0x38] sm:$0xff] 0.0
        $region101: #{discriminator_forward.7} parent=88 // pred_fallthru
          _
        %v605 = vld [vmem:[#allocation2] sm:$0xff]
        %v606 = vld [vmem:[#allocation2 + $0x8] sm:$0xff]
        %v607 = vld [vmem:[#allocation2 + $0x10] sm:$0xff]
        %v608 = vld [vmem:[#allocation2 + $0x18] sm:$0xff]
        %v609 = vld [vmem:[#allocation2 + $0x20] sm:$0xff]
        %v610 = vld [vmem:[#allocation2 + $0x28] sm:$0xff]
        %v611 = vld [vmem:[#allocation2 + $0x30] sm:$0xff]
        %v612 = vld [vmem:[#allocation2 + $0x38] sm:$0xff]
        %v613 = vld [vmem:[%s538] sm:$0xff]
        %v614 = vld [vmem:[%s538 + $0x8] sm:$0xff]
        %v615 = vld [vmem:[%s538 + $0x10] sm:$0xff]
        %v616 = vld [vmem:[%s538 + $0x18] sm:$0xff]
        %v617 = vld [vmem:[%s538 + $0x20] sm:$0xff]
        %v618 = vld [vmem:[%s538 + $0x28] sm:$0xff]
        %v619 = vld [vmem:[%s538 + $0x30] sm:$0xff]
        %v620 = vld [vmem:[%s538 + $0x38] sm:$0xff]
        %v621 = vld [vmem:[%s545] sm:$0xff]
        %v622 = vld [vmem:[%s545 + $0x8] sm:$0xff]
        %v623 = vld [vmem:[%s545 + $0x10] sm:$0xff]
        %v624 = vld [vmem:[%s545 + $0x18] sm:$0xff]
        %v625 = vld [vmem:[%s545 + $0x20] sm:$0xff]
        %v626 = vld [vmem:[%s545 + $0x28] sm:$0xff]
        %v627 = vld [vmem:[%s545 + $0x30] sm:$0xff]
        %v628 = vld [vmem:[%s545 + $0x38] sm:$0xff]
        %v629 = vld [vmem:[%s545 + $0x40] sm:$0xff]
        %v630 = vld [vmem:[%s545 + $0x48] sm:$0xff]
        %v631 = vld [vmem:[%s545 + $0x50] sm:$0xff]
        %v632 = vld [vmem:[%s545 + $0x58] sm:$0xff]
        %v633 = vld [vmem:[%s545 + $0x60] sm:$0xff]
        %v634 = vld [vmem:[%s545 + $0x68] sm:$0xff]
        %v635 = vld [vmem:[%s545 + $0x70] sm:$0xff]
        %v636 = vld [vmem:[%s545 + $0x78] sm:$0xff]
        %v637 = vld [vmem:[%s545 + $0x80] sm:$0xff]
        %v638 = vld [vmem:[%s545 + $0x88] sm:$0xff]
        %v639 = vld [vmem:[%s545 + $0x90] sm:$0xff]
        %v640 = vld [vmem:[%s545 + $0x98] sm:$0xff]
        %v641 = vld [vmem:[%s545 + $0xa0] sm:$0xff]
        %v642 = vld [vmem:[%s545 + $0xa8] sm:$0xff]
        %v643 = vld [vmem:[%s545 + $0xb0] sm:$0xff]
        %v644 = vld [vmem:[%s545 + $0xb8] sm:$0xff]
        %v645 = vld [vmem:[%s545 + $0xc0] sm:$0xff]
        %v646 = vld [vmem:[%s545 + $0xc8] sm:$0xff]
        %v647 = vld [vmem:[%s545 + $0xd0] sm:$0xff]
        %v648 = vld [vmem:[%s545 + $0xd8] sm:$0xff]
        %v649 = vld [vmem:[%s545 + $0xe0] sm:$0xff]
        %v650 = vld [vmem:[%s545 + $0xe8] sm:$0xff]
        %v651 = vld [vmem:[%s545 + $0xf0] sm:$0xff]
        %v652 = vld [vmem:[%s545 + $0xf8] sm:$0xff]
        %v653 = vld [vmem:[%s545 + $0x100] sm:$0xff]
        %v654 = vld [vmem:[%s545 + $0x108] sm:$0xff]
        %v655 = vld [vmem:[%s545 + $0x110] sm:$0xff]
        %v656 = vld [vmem:[%s545 + $0x118] sm:$0xff]
        %v657 = vld [vmem:[%s545 + $0x120] sm:$0xff]
        %v658 = vld [vmem:[%s545 + $0x128] sm:$0xff]
        %v659 = vld [vmem:[%s545 + $0x130] sm:$0xff]
        %v660 = vld [vmem:[%s545 + $0x138] sm:$0xff]
        %v661 = vld [vmem:[%s545 + $0x140] sm:$0xff]
        %v662 = vld [vmem:[%s545 + $0x148] sm:$0xff]
        %v663 = vld [vmem:[%s545 + $0x150] sm:$0xff]
        %v664 = vld [vmem:[%s545 + $0x158] sm:$0xff]
        %v665 = vld [vmem:[%s545 + $0x160] sm:$0xff]
        %v666 = vld [vmem:[%s545 + $0x168] sm:$0xff]
        %v667 = vld [vmem:[%s545 + $0x170] sm:$0xff]
        %v668 = vld [vmem:[%s545 + $0x178] sm:$0xff]
        %v669 = vld [vmem:[%s545 + $0x180] sm:$0xff]
        %v670 = vld [vmem:[%s545 + $0x188] sm:$0xff]
        %v671 = vld [vmem:[%s545 + $0x190] sm:$0xff]
        %v672 = vld [vmem:[%s545 + $0x198] sm:$0xff]
        %v673 = vld [vmem:[%s545 + $0x1a0] sm:$0xff]
        %v674 = vld [vmem:[%s545 + $0x1a8] sm:$0xff]
        %v675 = vld [vmem:[%s545 + $0x1b0] sm:$0xff]
        %v676 = vld [vmem:[%s545 + $0x1b8] sm:$0xff]
        %v677 = vld [vmem:[%s545 + $0x1c0] sm:$0xff]
        %v678 = vld [vmem:[%s545 + $0x1c8] sm:$0xff]
        %v679 = vld [vmem:[%s545 + $0x1d0] sm:$0xff]
        %v680 = vld [vmem:[%s545 + $0x1d8] sm:$0xff]
        %v681 = vld [vmem:[%s545 + $0x1e0] sm:$0xff]
        %v682 = vld [vmem:[%s545 + $0x1e8] sm:$0xff]
        %v683 = vld [vmem:[%s545 + $0x1f0] sm:$0xff]
        %v684 = vld [vmem:[%s545 + $0x1f8] sm:$0xff]
        %v693 = vunpack.c.l.b16 %v613
        %v694 = vunpack.c.h.b16 %v613
        %v695 = vunpack.c.l.b16 %v614
        %v696 = vunpack.c.h.b16 %v614
        %v697 = vunpack.c.l.b16 %v615
        %v698 = vunpack.c.h.b16 %v615
        %v699 = vunpack.c.l.b16 %v616
        %v700 = vunpack.c.h.b16 %v616
        %v701 = vunpack.c.l.b16 %v617
        %v702 = vunpack.c.h.b16 %v617
        %v703 = vunpack.c.l.b16 %v618
        %v704 = vunpack.c.h.b16 %v618
        %v705 = vunpack.c.l.b16 %v619
        %v706 = vunpack.c.h.b16 %v619
        %v707 = vunpack.c.l.b16 %v620
        %v708 = vunpack.c.h.b16 %v620
        %v709 = vpack.c.b16 %v697, %v693
        %v710 = vpack.c.b16 %v698, %v694
        %v711 = vpack.c.b16 %v699, %v695
        %v712 = vpack.c.b16 %v700, %v696
        %v713 = vpack.c.b16 %v705, %v701
        %v714 = vpack.c.b16 %v706, %v702
        %v715 = vpack.c.b16 %v707, %v703
        %v716 = vpack.c.b16 %v708, %v704
        %v789 = vunpack.c.l.b16 %v621
        %v790 = vunpack.c.h.b16 %v621
        %v791 = vunpack.c.l.b16 %v622
        %v792 = vunpack.c.h.b16 %v622
        %v793 = vunpack.c.l.b16 %v623
        %v794 = vunpack.c.h.b16 %v623
        %v795 = vunpack.c.l.b16 %v624
        %v796 = vunpack.c.h.b16 %v624
        %v797 = vunpack.c.l.b16 %v625
        %v798 = vunpack.c.h.b16 %v625
        %v799 = vunpack.c.l.b16 %v626
        %v800 = vunpack.c.h.b16 %v626
        %v801 = vunpack.c.l.b16 %v627
        %v802 = vunpack.c.h.b16 %v627
        %v803 = vunpack.c.l.b16 %v628
        %v804 = vunpack.c.h.b16 %v628
        %v805 = vunpack.c.l.b16 %v629
        %v806 = vunpack.c.h.b16 %v629
        %v807 = vunpack.c.l.b16 %v630
        %v808 = vunpack.c.h.b16 %v630
        %v809 = vunpack.c.l.b16 %v631
        %v810 = vunpack.c.h.b16 %v631
        %v811 = vunpack.c.l.b16 %v632
        %v812 = vunpack.c.h.b16 %v632
        %v813 = vunpack.c.l.b16 %v633
        %v814 = vunpack.c.h.b16 %v633
        %v815 = vunpack.c.l.b16 %v634
        %v816 = vunpack.c.h.b16 %v634
        %v817 = vunpack.c.l.b16 %v635
        %v818 = vunpack.c.h.b16 %v635
        %v819 = vunpack.c.l.b16 %v636
        %v820 = vunpack.c.h.b16 %v636
        %v821 = vunpack.c.l.b16 %v637
        %v822 = vunpack.c.h.b16 %v637
        %v823 = vunpack.c.l.b16 %v638
        %v824 = vunpack.c.h.b16 %v638
        %v825 = vunpack.c.l.b16 %v639
        %v826 = vunpack.c.h.b16 %v639
        %v827 = vunpack.c.l.b16 %v640
        %v828 = vunpack.c.h.b16 %v640
        %v829 = vunpack.c.l.b16 %v641
        %v830 = vunpack.c.h.b16 %v641
        %v831 = vunpack.c.l.b16 %v642
        %v832 = vunpack.c.h.b16 %v642
        %v833 = vunpack.c.l.b16 %v643
        %v834 = vunpack.c.h.b16 %v643
        %v835 = vunpack.c.l.b16 %v644
        %v836 = vunpack.c.h.b16 %v644
        %v837 = vunpack.c.l.b16 %v645
        %v838 = vunpack.c.h.b16 %v645
        %v839 = vunpack.c.l.b16 %v646
        %v840 = vunpack.c.h.b16 %v646
        %v841 = vunpack.c.l.b16 %v647
        %v842 = vunpack.c.h.b16 %v647
        %v843 = vunpack.c.l.b16 %v648
        %v844 = vunpack.c.h.b16 %v648
        %v845 = vunpack.c.l.b16 %v649
        %v846 = vunpack.c.h.b16 %v649
        %v847 = vunpack.c.l.b16 %v650
        %v848 = vunpack.c.h.b16 %v650
        %v849 = vunpack.c.l.b16 %v651
        %v850 = vunpack.c.h.b16 %v651
        %v851 = vunpack.c.l.b16 %v652
        %v852 = vunpack.c.h.b16 %v652
        %v853 = vunpack.c.l.b16 %v653
        %v854 = vunpack.c.h.b16 %v653
        %v855 = vunpack.c.l.b16 %v654
        %v856 = vunpack.c.h.b16 %v654
        %v857 = vunpack.c.l.b16 %v655
        %v858 = vunpack.c.h.b16 %v655
        %v859 = vunpack.c.l.b16 %v656
        %v860 = vunpack.c.h.b16 %v656
        %v861 = vunpack.c.l.b16 %v657
        %v862 = vunpack.c.h.b16 %v657
        %v863 = vunpack.c.l.b16 %v658
        %v864 = vunpack.c.h.b16 %v658
        %v865 = vunpack.c.l.b16 %v659
        %v866 = vunpack.c.h.b16 %v659
        %v867 = vunpack.c.l.b16 %v660
        %v868 = vunpack.c.h.b16 %v660
        %v869 = vunpack.c.l.b16 %v661
        %v870 = vunpack.c.h.b16 %v661
        %v871 = vunpack.c.l.b16 %v662
        %v872 = vunpack.c.h.b16 %v662
        %v873 = vunpack.c.l.b16 %v663
        %v874 = vunpack.c.h.b16 %v663
        %v875 = vunpack.c.l.b16 %v664
        %v876 = vunpack.c.h.b16 %v664
        %v877 = vunpack.c.l.b16 %v665
        %v878 = vunpack.c.h.b16 %v665
        %v879 = vunpack.c.l.b16 %v666
        %v880 = vunpack.c.h.b16 %v666
        %v881 = vunpack.c.l.b16 %v667
        %v882 = vunpack.c.h.b16 %v667
        %v883 = vunpack.c.l.b16 %v668
        %v884 = vunpack.c.h.b16 %v668
        %v885 = vunpack.c.l.b16 %v669
        %v886 = vunpack.c.h.b16 %v669
        %v887 = vunpack.c.l.b16 %v670
        %v888 = vunpack.c.h.b16 %v670
        %v889 = vunpack.c.l.b16 %v671
        %v890 = vunpack.c.h.b16 %v671
        %v891 = vunpack.c.l.b16 %v672
        %v892 = vunpack.c.h.b16 %v672
        %v893 = vunpack.c.l.b16 %v673
        %v894 = vunpack.c.h.b16 %v673
        %v895 = vunpack.c.l.b16 %v674
        %v896 = vunpack.c.h.b16 %v674
        %v897 = vunpack.c.l.b16 %v675
        %v898 = vunpack.c.h.b16 %v675
        %v899 = vunpack.c.l.b16 %v676
        %v900 = vunpack.c.h.b16 %v676
        %v901 = vunpack.c.l.b16 %v677
        %v902 = vunpack.c.h.b16 %v677
        %v903 = vunpack.c.l.b16 %v678
        %v904 = vunpack.c.h.b16 %v678
        %v905 = vunpack.c.l.b16 %v679
        %v906 = vunpack.c.h.b16 %v679
        %v907 = vunpack.c.l.b16 %v680
        %v908 = vunpack.c.h.b16 %v680
        %v909 = vunpack.c.l.b16 %v681
        %v910 = vunpack.c.h.b16 %v681
        %v911 = vunpack.c.l.b16 %v682
        %v912 = vunpack.c.h.b16 %v682
        %v913 = vunpack.c.l.b16 %v683
        %v914 = vunpack.c.h.b16 %v683
        %v915 = vunpack.c.l.b16 %v684
        %v916 = vunpack.c.h.b16 %v684
        %v917 = vpack.c.b16 %v791, %v789
        %v918 = vpack.c.b16 %v792, %v790
        %v919 = vpack.c.b16 %v795, %v793
        %v920 = vpack.c.b16 %v796, %v794
        %v921 = vpack.c.b16 %v799, %v797
        %v922 = vpack.c.b16 %v800, %v798
        %v923 = vpack.c.b16 %v803, %v801
        %v924 = vpack.c.b16 %v804, %v802
        %v925 = vpack.c.b16 %v807, %v805
        %v926 = vpack.c.b16 %v808, %v806
        %v927 = vpack.c.b16 %v811, %v809
        %v928 = vpack.c.b16 %v812, %v810
        %v929 = vpack.c.b16 %v815, %v813
        %v930 = vpack.c.b16 %v816, %v814
        %v931 = vpack.c.b16 %v819, %v817
        %v932 = vpack.c.b16 %v820, %v818
        %v933 = vpack.c.b16 %v823, %v821
        %v934 = vpack.c.b16 %v824, %v822
        %v935 = vpack.c.b16 %v827, %v825
        %v936 = vpack.c.b16 %v828, %v826
        %v937 = vpack.c.b16 %v831, %v829
        %v938 = vpack.c.b16 %v832, %v830
        %v939 = vpack.c.b16 %v835, %v833
        %v940 = vpack.c.b16 %v836, %v834
        %v941 = vpack.c.b16 %v839, %v837
        %v942 = vpack.c.b16 %v840, %v838
        %v943 = vpack.c.b16 %v843, %v841
        %v944 = vpack.c.b16 %v844, %v842
        %v945 = vpack.c.b16 %v847, %v845
        %v946 = vpack.c.b16 %v848, %v846
        %v947 = vpack.c.b16 %v851, %v849
        %v948 = vpack.c.b16 %v852, %v850
        %v949 = vpack.c.b16 %v855, %v853
        %v950 = vpack.c.b16 %v856, %v854
        %v951 = vpack.c.b16 %v859, %v857
        %v952 = vpack.c.b16 %v860, %v858
        %v953 = vpack.c.b16 %v863, %v861
        %v954 = vpack.c.b16 %v864, %v862
        %v955 = vpack.c.b16 %v867, %v865
        %v956 = vpack.c.b16 %v868, %v866
        %v957 = vpack.c.b16 %v871, %v869
        %v958 = vpack.c.b16 %v872, %v870
        %v959 = vpack.c.b16 %v875, %v873
        %v960 = vpack.c.b16 %v876, %v874
        %v961 = vpack.c.b16 %v879, %v877
        %v962 = vpack.c.b16 %v880, %v878
        %v963 = vpack.c.b16 %v883, %v881
        %v964 = vpack.c.b16 %v884, %v882
        %v965 = vpack.c.b16 %v887, %v885
        %v966 = vpack.c.b16 %v888, %v886
        %v967 = vpack.c.b16 %v891, %v889
        %v968 = vpack.c.b16 %v892, %v890
        %v969 = vpack.c.b16 %v895, %v893
        %v970 = vpack.c.b16 %v896, %v894
        %v971 = vpack.c.b16 %v899, %v897
        %v972 = vpack.c.b16 %v900, %v898
        %v973 = vpack.c.b16 %v903, %v901
        %v974 = vpack.c.b16 %v904, %v902
        %v975 = vpack.c.b16 %v907, %v905
        %v976 = vpack.c.b16 %v908, %v906
        %v977 = vpack.c.b16 %v911, %v909
        %v978 = vpack.c.b16 %v912, %v910
        %v979 = vpack.c.b16 %v915, %v913
        %v980 = vpack.c.b16 %v916, %v914
        %1045 = vmatprep.subr.bf16.mxu0 %v932
        %1046 = vmatpush1.bf16.msra.mxu0 %v931
        %1047 = vmatprep.subr.bf16.mxu0 %v930
        %1048 = vmatpush1.bf16.msra.mxu0 %v929
        %1049 = vmatprep.subr.bf16.mxu0 %v928
        %1050 = vmatpush1.bf16.msra.mxu0 %v927
        %1051 = vmatprep.subr.bf16.mxu0 %v926
        %1052 = vmatpush1.bf16.msra.mxu0 %v925
        %1053 = vmatprep.subr.bf16.mxu0 %v924
        %1054 = vmatpush1.bf16.msra.mxu0 %v923
        %1055 = vmatprep.subr.bf16.mxu0 %v922
        %1056 = vmatpush1.bf16.msra.mxu0 %v921
        %1057 = vmatprep.subr.bf16.mxu0 %v920
        %1058 = vmatpush1.bf16.msra.mxu0 %v919
        %1059 = vmatprep.subr.bf16.mxu0 %v918
        %1060 = vmatpush1.bf16.msra.mxu0 %v917
        %1061 = vmatprep.subr.bf16.mxu0 %v948
        %1062 = vmatpush2.bf16.msra.mxu0 %v947
        %1063 = vmatprep.subr.bf16.mxu0 %v946
        %1064 = vmatpush2.bf16.msra.mxu0 %v945
        %1065 = vmatprep.subr.bf16.mxu0 %v944
        %1066 = vmatpush2.bf16.msra.mxu0 %v943
        %1067 = vmatprep.subr.bf16.mxu0 %v942
        %1068 = vmatpush2.bf16.msra.mxu0 %v941
        %1069 = vmatprep.subr.bf16.mxu0 %v940
        %1070 = vmatpush2.bf16.msra.mxu0 %v939
        %1071 = vmatprep.subr.bf16.mxu0 %v938
        %1072 = vmatpush2.bf16.msra.mxu0 %v937
        %1073 = vmatprep.subr.bf16.mxu0 %v936
        %1074 = vmatpush2.bf16.msra.mxu0 %v935
        %1075 = vmatprep.subr.bf16.mxu0 %v934
        %1076 = vmatpush2.bf16.msra.mxu0 %v933
        %1077 = vmatprep.mubr.bf16.mxu0 %v710
        %1078 = vmatmul.mubr.bf16.gmra.mxu0 %v709
        %v1079 = vpop.f32.mrf.mxu0
        %v1080 = vadd.f32 0.0, %v1079
        %v1081 = vpop.f32.mrf.mxu0
        %v1082 = vadd.f32 0.0, %v1081
        %v1083 = vpop.f32.mrf.mxu0
        %v1084 = vadd.f32 0.0, %v1083
        %v1085 = vpop.f32.mrf.mxu0
        %v1086 = vadd.f32 0.0, %v1085
        %1087 = vmatprep.mubr.bf16.mxu0 %v714
        %1088 = vmatmul.mubr.bf16.gmra.mxu0 %v713
        %v1089 = vpop.f32.mrf.mxu0
        %v1090 = vadd.f32 0.0, %v1089
        %v1091 = vpop.f32.mrf.mxu0
        %v1092 = vadd.f32 0.0, %v1091
        %v1093 = vpop.f32.mrf.mxu0
        %v1094 = vadd.f32 0.0, %v1093
        %v1095 = vpop.f32.mrf.mxu0
        %v1096 = vadd.f32 0.0, %v1095
        %1097 = vdwg.mxu0
        %1098 = vmatprep.subr.bf16.mxu0 %v964
        %1099 = vmatpush1.bf16.msra.mxu0 %v963
        %1100 = vmatprep.subr.bf16.mxu0 %v962
        %1101 = vmatpush1.bf16.msra.mxu0 %v961
        %1102 = vmatprep.subr.bf16.mxu0 %v960
        %1103 = vmatpush1.bf16.msra.mxu0 %v959
        %1104 = vmatprep.subr.bf16.mxu0 %v958
        %1105 = vmatpush1.bf16.msra.mxu0 %v957
        %1106 = vmatprep.subr.bf16.mxu0 %v956
        %1107 = vmatpush1.bf16.msra.mxu0 %v955
        %1108 = vmatprep.subr.bf16.mxu0 %v954
        %1109 = vmatpush1.bf16.msra.mxu0 %v953
        %1110 = vmatprep.subr.bf16.mxu0 %v952
        %1111 = vmatpush1.bf16.msra.mxu0 %v951
        %1112 = vmatprep.subr.bf16.mxu0 %v950
        %1113 = vmatpush1.bf16.msra.mxu0 %v949
        %1114 = vmatprep.subr.bf16.mxu0 %v980
        %1115 = vmatpush2.bf16.msra.mxu0 %v979
        %1116 = vmatprep.subr.bf16.mxu0 %v978
        %1117 = vmatpush2.bf16.msra.mxu0 %v977
        %1118 = vmatprep.subr.bf16.mxu0 %v976
        %1119 = vmatpush2.bf16.msra.mxu0 %v975
        %1120 = vmatprep.subr.bf16.mxu0 %v974
        %1121 = vmatpush2.bf16.msra.mxu0 %v973
        %1122 = vmatprep.subr.bf16.mxu0 %v972
        %1123 = vmatpush2.bf16.msra.mxu0 %v971
        %1124 = vmatprep.subr.bf16.mxu0 %v970
        %1125 = vmatpush2.bf16.msra.mxu0 %v969
        %1126 = vmatprep.subr.bf16.mxu0 %v968
        %1127 = vmatpush2.bf16.msra.mxu0 %v967
        %1128 = vmatprep.subr.bf16.mxu0 %v966
        %1129 = vmatpush2.bf16.msra.mxu0 %v965
        %1130 = vmatprep.mubr.bf16.mxu0 %v712
        %1131 = vmatmul.mubr.bf16.gmra.mxu0 %v711
        %v1132 = vpop.f32.mrf.mxu0
        %v1133 = vadd.f32 %v1080, %v1132
        %v1134 = vpop.f32.mrf.mxu0
        %v1135 = vadd.f32 %v1082, %v1134
        %v1136 = vpop.f32.mrf.mxu0
        %v1137 = vadd.f32 %v1084, %v1136
        %v1138 = vpop.f32.mrf.mxu0
        %v1139 = vadd.f32 %v1086, %v1138
        %1140 = vmatprep.mubr.bf16.mxu0 %v716
        %1141 = vmatmul.mubr.bf16.gmra.mxu0 %v715
        %v1142 = vpop.f32.mrf.mxu0
        %v1143 = vadd.f32 %v1090, %v1142
        %v1144 = vpop.f32.mrf.mxu0
        %v1145 = vadd.f32 %v1092, %v1144
        %v1146 = vpop.f32.mrf.mxu0
        %v1147 = vadd.f32 %v1094, %v1146
        %v1148 = vpop.f32.mrf.mxu0
        %v1149 = vadd.f32 %v1096, %v1148
        %1150 = vdwg.mxu0
        %v1151 = vadd.f32 %v605, %v1133
        %v1152 = vadd.f32 %v606, %v1135
        %v1153 = vadd.f32 %v607, %v1137
        %v1154 = vadd.f32 %v608, %v1139
        %v1155 = vadd.f32 %v609, %v1143
        %v1156 = vadd.f32 %v610, %v1145
        %v1157 = vadd.f32 %v611, %v1147
        %v1158 = vadd.f32 %v612, %v1149
        %1159 = vst [vmem:[#allocation2] sm:$0xff] %v1151
        %1160 = vst [vmem:[#allocation2 + $0x8] sm:$0xff] %v1152
        %1161 = vst [vmem:[#allocation2 + $0x10] sm:$0xff] %v1153
        %1162 = vst [vmem:[#allocation2 + $0x18] sm:$0xff] %v1154
        %1163 = vst [vmem:[#allocation2 + $0x20] sm:$0xff] %v1155
        %1164 = vst [vmem:[#allocation2 + $0x28] sm:$0xff] %v1156
        %1165 = vst [vmem:[#allocation2 + $0x30] sm:$0xff] %v1157
        %1166 = vst [vmem:[#allocation2 + $0x38] sm:$0xff] %v1158
        %p1167 = scmp.eq.s32.totalorder %s20, 7
        // Predicated region
        $region102: #{discriminator_forward.7} parent=88 // pred_check
          %p1168 = pneg %p1167
        $region103: #{discriminator_forward.7} parent=88 // pred_check_branch
          %1170 = sbr.rel (%p1168) target = $region105
        $region104: #{discriminator_forward.7} parent=88 // pred_region
          %v1171 = vld [vmem:[#allocation2] sm:$0xff]
          %v1172 = vld [vmem:[#allocation2 + $0x8] sm:$0xff]
          %v1173 = vld [vmem:[#allocation2 + $0x10] sm:$0xff]
          %v1174 = vld [vmem:[#allocation2 + $0x18] sm:$0xff]
          %v1175 = vld [vmem:[#allocation2 + $0x20] sm:$0xff]
          %v1176 = vld [vmem:[#allocation2 + $0x28] sm:$0xff]
          %v1177 = vld [vmem:[#allocation2 + $0x30] sm:$0xff]
          %v1178 = vld [vmem:[#allocation2 + $0x38] sm:$0xff]
          %v1179 = vadd.f32 %v1171, %v1173
          %v1180 = vadd.f32 %v1179, %v1175
          %v1181 = vadd.f32 %v1180, %v1177
          %v1182 = vrot.slane %v1181, 4
          %v1183 = vadd.f32 %v1181, %v1182
          %v1184 = vrot.slane %v1183, 2
          %v1185 = vadd.f32 %v1183, %v1184
          %v1186 = vrot.slane %v1185, 1
          %v1187 = vadd.f32 %v1185, %v1186
          %v1188 = vadd.f32 %v1172, %v1174
          %v1189 = vadd.f32 %v1188, %v1176
          %v1190 = vadd.f32 %v1189, %v1178
          %v1191 = vrot.slane %v1190, 4
          %v1192 = vadd.f32 %v1190, %v1191
          %v1193 = vrot.slane %v1192, 2
          %v1194 = vadd.f32 %v1192, %v1193
          %v1195 = vrot.slane %v1194, 1
          %v1196 = vadd.f32 %v1194, %v1195
          %v1197 = vmul.f32 %v1171, %v1171
          %v1198 = vmul.f32 %v1172, %v1172
          %v1199 = vmul.f32 %v1173, %v1173
          %v1200 = vmul.f32 %v1174, %v1174
          %v1201 = vmul.f32 %v1175, %v1175
          %v1202 = vmul.f32 %v1176, %v1176
          %v1203 = vmul.f32 %v1177, %v1177
          %v1204 = vmul.f32 %v1178, %v1178
          %v1205 = vadd.f32 %v1197, %v1199
          %v1206 = vadd.f32 %v1205, %v1201
          %v1207 = vadd.f32 %v1206, %v1203
          %v1208 = vrot.slane %v1207, 4
          %v1209 = vadd.f32 %v1207, %v1208
          %v1210 = vrot.slane %v1209, 2
          %v1211 = vadd.f32 %v1209, %v1210
          %v1212 = vrot.slane %v1211, 1
          %v1213 = vadd.f32 %v1211, %v1212
          %v1214 = vadd.f32 %v1198, %v1200
          %v1215 = vadd.f32 %v1214, %v1202
          %v1216 = vadd.f32 %v1215, %v1204
          %v1217 = vrot.slane %v1216, 4
          %v1218 = vadd.f32 %v1216, %v1217
          %v1219 = vrot.slane %v1218, 2
          %v1220 = vadd.f32 %v1218, %v1219
          %v1221 = vrot.slane %v1220, 1
          %v1222 = vadd.f32 %v1220, %v1221
          %v1223 = vmul.f32 %v1187, 0.055555556
          %v1224 = vmul.f32 %v1196, 0.055555556
          %v1225 = vmul.f32 %v1213, 0.055555556
          %v1226 = vmul.f32 %v1222, 0.055555556
          %v1227 = vmul.f32 %v1223, %v1223
          %v1228 = vmul.f32 %v1224, %v1224
          %v1229 = vsub.f32 %v1225, %v1227
          %v1230 = vsub.f32 %v1226, %v1228
          %v1231 = vmax.f32 %v1229, 0.0
          %v1232 = vmax.f32 %v1230, 0.0
          %v1233 = vld [vmem:[%s585] sm:$0x3]
          %v1234 = vadd.f32 %v1231, 1e-05
          %v1235 = vadd.f32 %v1232, 1e-05
          %v1236 = vrsqrt.pop %v1234
          %v1237 = vrsqrt.pop %v1235
          %v1240 = vcombine.low %v1236, %v1237
          %v1242 = vunpack.c.l.s4 1966171168
          %v1243 = vunpack.c.0.s8 %v1242
          %v1244 = vlaneseq
          %v1245 = vshrl.u32 %v1244, 7
          %v1246 = vsub.s32 %v1243, %v1245
          %v1247 = vrot.slane %v1240, %v1246
          %v1249 = vunpack.c.l.s4 1966171168
          %v1250 = vunpack.c.0.s8 %v1249
          %v1251 = vlaneseq
          %v1252 = vshrl.u32 %v1251, 7
          %v1253 = vsub.s32 %v1250, %v1252
          %v1254 = vrot.slane %v1247, %v1253
          %v1256 = vmul.f32 %v1233, %v1254
          %v1257 = vsub.f32 %v1171, %v1223
          %v1258 = vsub.f32 %v1172, %v1224
          %v1259 = vsub.f32 %v1173, %v1223
          %v1260 = vsub.f32 %v1174, %v1224
          %v1261 = vsub.f32 %v1175, %v1223
          %v1262 = vsub.f32 %v1176, %v1224
          %v1263 = vsub.f32 %v1177, %v1223
          %v1264 = vsub.f32 %v1178, %v1224
          %v1266 = vlaneseq
          %v1267 = vshrl.u32 %v1266, 7
          %v1268 = vsub.s32 0, %v1267
          %v1269 = vrot.slane %v1256, %v1268
          %v1270 = vlaneseq
          %v1271 = vshrl.u32 %v1270, 7
          %v1272 = vsub.s32 1, %v1271
          %v1273 = vrot.slane %v1256, %v1272
          %v1276 = vmul.f32 %v1257, %v1269
          %v1277 = vmul.f32 %v1258, %v1273
          %v1278 = vmul.f32 %v1259, %v1269
          %v1279 = vmul.f32 %v1260, %v1273
          %v1280 = vmul.f32 %v1261, %v1269
          %v1281 = vmul.f32 %v1262, %v1273
          %v1282 = vmul.f32 %v1263, %v1269
          %v1283 = vmul.f32 %v1264, %v1273
          %v1284 = vld [vmem:[%s590] sm:$0x3]
          %v1286 = vlaneseq
          %v1287 = vshrl.u32 %v1286, 7
          %v1288 = vsub.s32 0, %v1287
          %v1289 = vrot.slane %v1284, %v1288
          %v1290 = vlaneseq
          %v1291 = vshrl.u32 %v1290, 7
          %v1292 = vsub.s32 1, %v1291
          %v1293 = vrot.slane %v1284, %v1292
          %v1296 = vadd.f32 %v1276, %v1289
          %v1297 = vadd.f32 %v1277, %v1293
          %v1298 = vadd.f32 %v1278, %v1289
          %v1299 = vadd.f32 %v1279, %v1293
          %v1300 = vadd.f32 %v1280, %v1289
          %v1301 = vadd.f32 %v1281, %v1293
          %v1302 = vadd.f32 %v1282, %v1289
          %v1303 = vadd.f32 %v1283, %v1293
          %vm1304 = vcmp.ge.f32.partialorder %v1296, 0.0
          %vm1305 = vcmp.ge.f32.partialorder %v1297, 0.0
          %vm1306 = vcmp.ge.f32.partialorder %v1298, 0.0
          %vm1307 = vcmp.ge.f32.partialorder %v1299, 0.0
          %vm1308 = vcmp.ge.f32.partialorder %v1300, 0.0
          %vm1309 = vcmp.ge.f32.partialorder %v1301, 0.0
          %vm1310 = vcmp.ge.f32.partialorder %v1302, 0.0
          %vm1311 = vcmp.ge.f32.partialorder %v1303, 0.0
          %v1312 = vmul.f32 %v1296, 0.2
          %v1313 = vmul.f32 %v1297, 0.2
          %v1314 = vmul.f32 %v1298, 0.2
          %v1315 = vmul.f32 %v1299, 0.2
          %v1316 = vmul.f32 %v1300, 0.2
          %v1317 = vmul.f32 %v1301, 0.2
          %v1318 = vmul.f32 %v1302, 0.2
          %v1319 = vmul.f32 %v1303, 0.2
          %v1320 = vsel %vm1304, %v1296, %v1312
          %v1321 = vsel %vm1305, %v1297, %v1313
          %v1322 = vsel %vm1306, %v1298, %v1314
          %v1323 = vsel %vm1307, %v1299, %v1315
          %v1324 = vsel %vm1308, %v1300, %v1316
          %v1325 = vsel %vm1309, %v1301, %v1317
          %v1326 = vsel %vm1310, %v1302, %v1318
          %v1327 = vsel %vm1311, %v1303, %v1319
          %v1328 = vpack.c.bf16 %v1322, %v1320
          %v1329 = vpack.c.bf16 %v1323, %v1321
          %v1330 = vpack.c.bf16 %v1326, %v1324
          %v1331 = vpack.c.bf16 %v1327, %v1325
          %v1336 = vunpack.c.l.b16 %v1328
          %v1337 = vunpack.c.l.b16 %v1329
          %v1338 = vunpack.c.h.b16 %v1328
          %v1339 = vunpack.c.h.b16 %v1329
          %v1340 = vunpack.c.l.b16 %v1330
          %v1341 = vunpack.c.l.b16 %v1331
          %v1342 = vunpack.c.h.b16 %v1330
          %v1343 = vunpack.c.h.b16 %v1331
          %v1344 = vpack.c.b16 %v1337, %v1336
          %v1345 = vpack.c.b16 %v1339, %v1338
          %v1346 = vpack.c.b16 %v1341, %v1340
          %v1347 = vpack.c.b16 %v1343, %v1342
          %1352 = vst [vmem:[%s578] sm:$0xff] %v1344
          %1353 = vst [vmem:[%s578 + $0x8] sm:$0xff] %v1345
          %1354 = vst [vmem:[%s578 + $0x10] sm:$0xff] %v1346
          %1355 = vst [vmem:[%s578 + $0x18] sm:$0xff] %v1347
        $region105: #{discriminator_forward.7} parent=88 // pred_fallthru
          _
        %s1356 = sand.u32 %s141, 1
        %s1357 = sand.u32 %s141, 1
        %s1358 = smul.addr %s1357, 32
        %s1359 = scalar_lea.vmem [#allocation5], %s1358
        // Predicated region
        $region106: #{discriminator_forward.7} parent=88 // pred_check
          %p1360 = pneg %p151
        $region107: #{discriminator_forward.7} parent=88 // pred_check_branch
          %1362 = sbr.rel (%p1360) target = $region109
        $region108: #{discriminator_forward.7} parent=88 // pred_region
          %s1363 = smul.u32 2, %s19
          %s1364 = smul.addr %s1363, 4
          %s1365 = scalar_lea.vmem %s4, %s1364
          // Predicated region
          $region110: #{discriminator_forward.7} parent=108 // pred_check
            _
          $region111: #{discriminator_forward.7} parent=108 // pred_check_branch
            %1367 = sbr.rel (0) target = $region113
          $region112: #{discriminator_forward.7} parent=108 // pred_region
            // Predicated region
            $region114: #{discriminator_forward.7} parent=112 // pred_check
              _
            $region115: #{discriminator_forward.7} parent=112 // pred_check_branch
              %1369 = sbr.rel (0) target = $region117
            $region116: #{discriminator_forward.7} parent=112 // pred_region
              // Predicated region
              $region129: #{discriminator_forward.7} parent=116 // pred_check
                _
              $region130: #{discriminator_forward.7} parent=116 // pred_check_branch
                %1391 = sbr.rel (0) target = $region132
              $region131: #{discriminator_forward.7} parent=116 // pred_region
                loop: start=0, step=1, limit=1
                $region133: #{discriminator_forward.7} parent=131 // loop_pre_header
                  _
                $region134: #{discriminator_forward.7} parent=131 // loop_header
                  %s1393 = sphi 0, %s1397
                  %p1394 = scmp.ge.s32.totalorder %s1393, 1
                  %s1398 = sphi %s1359, %s1359
                  %s1399 = sphi %s1365, %s1365
                $region135: #{discriminator_forward.7} parent=131 // loop_header_branch
                  %1396 = sbr.rel (%p1394) target = $region139
                $region136: #{discriminator_forward.7} parent=131 // loop_body
                  %v1400 = vld [vmem:[%s1398] sm:$0xff]
                  %1401 = vst [vmem:[%s1399] sm:$0xff] %v1400
                  %v1402 = vld [vmem:[%s1398 + $0x8] sm:$0xff]
                  %1403 = vst [vmem:[%s1399 + $0x10] sm:$0xff] %v1402
                  %v1404 = vld [vmem:[%s1398 + $0x10] sm:$0xff]
                  %1405 = vst [vmem:[%s1399 + $0x20] sm:$0xff] %v1404
                  %v1406 = vld [vmem:[%s1398 + $0x18] sm:$0xff]
                  %1407 = vst [vmem:[%s1399 + $0x30] sm:$0xff] %v1406
                $region137: #{discriminator_forward.7} parent=131 // loop_footer
                  %s1397 = sadd.s32 1, %s1393
                $region138: #{discriminator_forward.7} parent=131 // loop_footer_branch
                  %1392 = sbr.rel target = $region134
                $region139: #{discriminator_forward.7} parent=131 // loop_exit
                  _
              $region132: #{discriminator_forward.7} parent=116 // pred_fallthru
                _
              // Predicated region
              $region140: #{discriminator_forward.7} parent=116 // pred_check
                _
              $region141: #{discriminator_forward.7} parent=116 // pred_check_branch
                %1409 = sbr.rel target = $region143
              $region142: #{discriminator_forward.7} parent=116 // pred_region
                _
              $region143: #{discriminator_forward.7} parent=116 // pred_fallthru
                _
            $region117: #{discriminator_forward.7} parent=112 // pred_fallthru
              _
            // Predicated region
            $region118: #{discriminator_forward.7} parent=112 // pred_check
              _
            $region119: #{discriminator_forward.7} parent=112 // pred_check_branch
              %1371 = sbr.rel target = $region121
            $region120: #{discriminator_forward.7} parent=112 // pred_region
              %s1373 = ssub.s32 256, 1
              loop: start=0, step=1, limit=1
              $region122: #{discriminator_forward.7} parent=120 // loop_pre_header
                _
              $region123: #{discriminator_forward.7} parent=120 // loop_header
                %s1375 = sphi 0, %s1379
                %p1376 = scmp.ge.s32.totalorder %s1375, 1
                %s1380 = sphi %s1359, %s1359
                %s1381 = sphi %s1365, %s1365
              $region124: #{discriminator_forward.7} parent=120 // loop_header_branch
                %1378 = sbr.rel (%p1376) target = $region128
              $region125: #{discriminator_forward.7} parent=120 // loop_body
                %v1382 = vld [vmem:[%s1380] sm:%s1373]
                %1383 = vst [vmem:[%s1381] sm:%s1373] %v1382
                %v1384 = vld [vmem:[%s1380 + $0x8] sm:%s1373]
                %1385 = vst [vmem:[%s1381 + $0x10] sm:%s1373] %v1384
                %v1386 = vld [vmem:[%s1380 + $0x10] sm:%s1373]
                %1387 = vst [vmem:[%s1381 + $0x20] sm:%s1373] %v1386
                %v1388 = vld [vmem:[%s1380 + $0x18] sm:%s1373]
                %1389 = vst [vmem:[%s1381 + $0x30] sm:%s1373] %v1388
              $region126: #{discriminator_forward.7} parent=120 // loop_footer
                %s1379 = sadd.s32 1, %s1375
              $region127: #{discriminator_forward.7} parent=120 // loop_footer_branch
                %1374 = sbr.rel target = $region123
              $region128: #{discriminator_forward.7} parent=120 // loop_exit
                _
            $region121: #{discriminator_forward.7} parent=112 // pred_fallthru
              _
          $region113: #{discriminator_forward.7} parent=108 // pred_fallthru
            _
          %1410 = vnop
        $region109: #{discriminator_forward.7} parent=88 // pred_fallthru
          _
      $region89: #{discriminator_forward.7} parent=5 // pred_fallthru
        _
      %p1411 = scmp.le.s32.totalorder 2, %s10
      // Predicated region
      $region144: #{discriminator_forward.7} parent=5 // pred_check
        %p1412 = pneg %p1411
      $region145: #{discriminator_forward.7} parent=5 // pred_check_branch
        %1414 = sbr.rel (%p1412) target = $region147
      $region146: #{discriminator_forward.7} parent=5 // pred_region
        %s1415 = ssub.s32 %s10, 2
        // Predicated region
        $region148: #{discriminator_forward.7} parent=146 // pred_check
          %p1416 = pneg %p157
        $region149: #{discriminator_forward.7} parent=146 // pred_check_branch
          %1418 = sbr.rel (%p1416) target = $region151
        $region150: #{discriminator_forward.7} parent=146 // pred_region
          %s1419 = sand.u32 %s142, 1
          %s1420 = sand.u32 %s142, 1
          %s1421 = smul.addr %s1420, 32
          %s1422 = scalar_lea.vmem [#allocation5], %s1421
        $region151: #{discriminator_forward.7} parent=146 // pred_fallthru
          _
      $region147: #{discriminator_forward.7} parent=5 // pred_fallthru
        _
    $region6: #{discriminator_forward.7} parent=1 // loop_footer
      %s14 = sadd.s32 1, %s10
    $region7: #{discriminator_forward.7} parent=1 // loop_footer_branch
      %9 = sbr.rel target = $region3
    $region8: #{discriminator_forward.7} parent=1 // loop_exit
      _

</llo_original>
